<compile_context>
chip_gen: v6e
topology: v6e:2x2x1
jax: 0.10.0
libtpu: 0.0.40
codegen_flags: <defaults>
</compile_context>

<pallas_src>
import jax
import jax.numpy as jnp
from jax.experimental import pallas as pl
from jax.experimental.pallas import tpu as pltpu


# Model dimensions implied by CNNModel.
C_OUT = 16                     # conv out channels
HP = 13                        # pooled height (28 -> 26 -> 13)
WP = 13                        # pooled width
NPOS = HP * WP                 # 169 pooled positions per image
NPOS_PAD = 176                 # padded to a multiple of 8 (sublane alignment)
ROWS_PER_IMG = 4 * NPOS_PAD    # 704 rows: one 176-row block per 2x2 sub-position
N_TAPS = 9                     # 3x3 conv taps
N_CLS = 10                     # FC output classes


def fused_cnn_kernel(p_ref, wc_ref, bc_ref, wf_ref, bf_ref, o_ref):
    """Fused conv(3x3,1->16) + ReLU + maxpool(2x2) + FC(2704->10) for BT images.

    p_ref : (1, BT*704, 9)  stacked im2col rows; per image, 4 blocks of 176
                            rows (one per 2x2 pooling sub-position); rows
                            169..175 of every block are zero padding.
    wc_ref: (9, 16)         conv weights  [tap, out-channel]
    bc_ref: (1, 16)         conv bias
    wf_ref: (16, 176, 10)   FC weights permuted to [channel, pooled-pos, class]
                            (PyTorch flatten order folded in; padded rows = 0)
    bf_ref: (1, 10)         FC bias
    o_ref : (1, BT, 10)     logits for the BT images of this grid step
    """
    bt = o_ref.shape[1]

    # Conv for every image / pooling sub-position / pooled position as ONE
    # stacked matmul on the MXU (default precision, f32 accumulation).
    y = jnp.dot(p_ref[0], wc_ref[...],
                preferred_element_type=jnp.float32)            # (BT*704, 16)
    y = y.reshape(bt, 4, NPOS_PAD, C_OUT)                      # leading-dim split

    # 2x2 max-pool == elementwise max over the four stacked row blocks.
    m = jnp.maximum(jnp.maximum(y[:, 0], y[:, 1]),
                    jnp.maximum(y[:, 2], y[:, 3]))             # (BT, 176, 16)

    # Bias + ReLU once, AFTER the max (per-channel bias, monotone ReLU).
    act = jnp.maximum(m + bc_ref[...], 0.0)                    # (BT, 176, 16)

    # FC: logits[b, o] = bf[o] + sum_{pos, c} act[b, pos, c] * wf[c, pos, o].
    # The 16-channel axis is unrolled into broadcast-FMAs on the VPU; the
    # position sum is reduced eagerly so only a (BT, 10) accumulator persists.
    # Padded positions hit zero FC weights so they contribute nothing.
    logits = jnp.broadcast_to(bf_ref[...], (bt, N_CLS))
    for c in range(C_OUT):
        t = act[:, :, c:c + 1] * wf_ref[c]                     # (BT, 176, 10)
        logits = logits + jnp.sum(t, axis=1)

    o_ref[0] = logits


def cnn_forward(x, conv_w, conv_b, fc_w, fc_b, *, batch_tile=4):
    # x: (B,1,28,28) NCHW, conv_w: (16,1,3,3), conv_b: (16,),
    # fc_w: (10, 2704), fc_b: (10,)   -- PyTorch parameter conventions.
    B = x.shape[0]
    bt = min(batch_tile, B)
    n_tiles = pl.cdiv(B, bt)
    b_pad = n_tiles * bt

    xs = x[:, 0].astype(jnp.float32)                           # (B, 28, 28)
    if b_pad != B:
        xs = jnp.pad(xs, ((0, b_pad - B), (0, 0), (0, 0)))

    # Stacked im2col, one 176-row block per pooling sub-position (a,b) in {0,1}^2.
    # Row = pooled position p*13+q, column = tap di*3+dj:
    #   value = xs[:, 2p + a + di, 2q + b + dj]
    blocks = []
    for a in range(2):
        for b in range(2):
            taps = []
            for di in range(3):
                for dj in range(3):
                    taps.append(xs[:, a + di:a + di + 2 * HP - 1:2,
                                      b + dj:b + dj + 2 * WP - 1:2])   # (b_pad,13,13)
            blk = jnp.stack(taps, axis=-1).reshape(b_pad, NPOS, N_TAPS)
            blk = jnp.pad(blk, ((0, 0), (0, NPOS_PAD - NPOS), (0, 0)))
            blocks.append(blk)
    patches = jnp.concatenate(blocks, axis=1)                  # (b_pad, 704, 9)
    # Merge batch tiles into the row dimension (trivial XLA reshape) so the
    # kernel sees a single 2D im2col slab per grid step.
    patches = patches.reshape(n_tiles, bt * ROWS_PER_IMG, N_TAPS)

    # One-time weight preprocessing (static weights, trace-time cost only).
    wc = conv_w.reshape(C_OUT, N_TAPS).T.astype(jnp.float32)   # (9, 16)  [tap, ch]
    bc = conv_b.reshape(1, C_OUT).astype(jnp.float32)          # (1, 16)
    # Fold PyTorch's NCHW flatten order (k = c*169 + p*13 + q) and the fc_w
    # transpose into the FC weights; zero-pad the pooled-position axis.
    wf = fc_w.reshape(N_CLS, C_OUT, NPOS).transpose(1, 2, 0)   # (16, 169, 10)
    wf = jnp.pad(wf, ((0, 0), (0, NPOS_PAD - NPOS), (0, 0)))   # (16, 176, 10)
    wf = wf.astype(jnp.float32)
    bf = fc_b.reshape(1, N_CLS).astype(jnp.float32)            # (1, 10)

    out = pl.pallas_call(
        fused_cnn_kernel,
        out_shape=jax.ShapeDtypeStruct((n_tiles, bt, N_CLS), jnp.float32),
        grid=(n_tiles,),
        in_specs=[
            pl.BlockSpec((1, bt * ROWS_PER_IMG, N_TAPS), lambda i: (i, 0, 0)),
            pl.BlockSpec((N_TAPS, C_OUT), lambda i: (0, 0)),
            pl.BlockSpec((1, C_OUT), lambda i: (0, 0)),
            pl.BlockSpec((C_OUT, NPOS_PAD, N_CLS), lambda i: (0, 0, 0)),
            pl.BlockSpec((1, N_CLS), lambda i: (0, 0)),
        ],
        out_specs=pl.BlockSpec((1, bt, N_CLS), lambda i: (i, 0, 0)),
        compiler_params=pltpu.CompilerParams(
            dimension_semantics=("parallel",),
            vmem_limit_bytes=32 * 1024 * 1024),
    )(patches, wc, bc, wf, bf)

    return out.reshape(b_pad, N_CLS)[:B]


# Pure-JAX reference (mirrors the PyTorch forward) for validation.
def reference_forward(x, conv_w, conv_b, fc_w, fc_b):
    y = jax.lax.conv_general_dilated(
        x, conv_w, window_strides=(1, 1), padding="VALID",
        dimension_numbers=("NCHW", "OIHW", "NCHW"),
        precision=jax.lax.Precision.HIGHEST,
    )
    y = jnp.maximum(y + conv_b[None, :, None, None], 0.0)
    B, C, H, W = y.shape
    y = y.reshape(B, C, H // 2, 2, W // 2, 2).max(axis=(3, 5))
    y = y.reshape(B, -1)
    return jnp.dot(y, fc_w.T, precision=jax.lax.Precision.HIGHEST) + fc_b


if __name__ == "__main__":
    key = jax.random.PRNGKey(0)
    k1, k2, k3, k4, k5 = jax.random.split(key, 5)

    # Deterministic synthetic parameters (shapes from CNNModel.__init__).
    conv_w = 0.1 * jax.random.normal(k1, (16, 1, 3, 3), dtype=jnp.float32)
    conv_b = 0.1 * jax.random.normal(k2, (16,), dtype=jnp.float32)
    fc_w = 0.02 * jax.random.normal(k3, (10, 16 * 13 * 13), dtype=jnp.float32)
    fc_b = 0.02 * jax.random.normal(k4, (10,), dtype=jnp.float32)

    # Input: batch=2, 1 channel, 28x28 (spatial size implied by fc = 16*13*13).
    x = jax.random.normal(k5, (2, 1, 28, 28), dtype=jnp.float32)

    fwd = jax.jit(cnn_forward)
    out = jax.block_until_ready(fwd(x, conv_w, conv_b, fc_w, fc_b))
    ref = jax.block_until_ready(reference_forward(x, conv_w, conv_b, fc_w, fc_b))

    assert out.shape == (2, 10)
    # DEFAULT MXU precision on the K=9 conv matmul -> ~1e-3-scale diffs vs the
    # HIGHEST-precision reference; 5e-3 keeps the check meaningful.
    assert jnp.allclose(out, ref, atol=5e-3, rtol=5e-3), "Pallas output mismatch"
    print("KERNEL_OK")
</pallas_src>

<mosaic_0001>
module attributes {stable_mosaic.version = 11 : i64} {
  func.func @fused_cnn_kernel(%arg0: i32, %arg1: memref<1x1408x9xf32, #tpu.memory_space<vmem>>, %arg2: memref<9x16xf32, #tpu.memory_space<vmem>>, %arg3: memref<1x16xf32, #tpu.memory_space<vmem>>, %arg4: memref<16x176x10xf32, #tpu.memory_space<vmem>>, %arg5: memref<1x10xf32, #tpu.memory_space<vmem>>, %arg6: memref<1x2x10xf32, #tpu.memory_space<vmem>>) attributes {dimension_semantics = [#tpu.dimension_semantics<parallel>], iteration_bounds = array<i64: 1>, scalar_prefetch = 0 : i64, scratch_operands = 0 : i64, tpu.core_type = #tpu.core_type<tc>, window_params = [{transform_indices = @transform_0, window_bounds = array<i64: 1, 1408, 9>}, {pipeline_mode = #tpu.pipeline_mode<synchronous>, transform_indices = @transform_1, window_bounds = array<i64: 9, 16>}, {pipeline_mode = #tpu.pipeline_mode<synchronous>, transform_indices = @transform_2, window_bounds = array<i64: 1, 16>}, {pipeline_mode = #tpu.pipeline_mode<synchronous>, transform_indices = @transform_3, window_bounds = array<i64: 16, 176, 10>}, {pipeline_mode = #tpu.pipeline_mode<synchronous>, transform_indices = @transform_4, window_bounds = array<i64: 1, 10>}, {transform_indices = @transform_5, window_bounds = array<i64: 1, 2, 10>}]} {
    %c0 = arith.constant 0 : index
    %c0_0 = arith.constant 0 : index
    %c0_1 = arith.constant 0 : index
    %0 = vector.load %arg1[%c0, %c0_0, %c0_1] : memref<1x1408x9xf32, #tpu.memory_space<vmem>>, vector<1x1408x9xf32>
    %1 = vector.shape_cast %0 : vector<1x1408x9xf32> to vector<1408x9xf32>
    %c0_2 = arith.constant 0 : index
    %c0_3 = arith.constant 0 : index
    %2 = vector.load %arg2[%c0_2, %c0_3] : memref<9x16xf32, #tpu.memory_space<vmem>>, vector<9x16xf32>
    %cst = arith.constant dense<0.000000e+00> : vector<1408x16xf32>
    %3 = tpu.matmul %1, %2, %cst {dimension_numbers = #tpu.dot_dimension_numbers<[1], [0], [0], [1], [0, 0, 1, 1], [], []>} : vector<1408x9xf32>, vector<9x16xf32>, vector<1408x16xf32> -> vector<1408x16xf32>
    %4 = vector.shape_cast %3 : vector<1408x16xf32> to vector<2x4x176x16xf32>
    %5 = vector.extract_strided_slice %4 {offsets = [0, 0, 0, 0], sizes = [2, 1, 176, 16], strides = [1, 1, 1, 1]} : vector<2x4x176x16xf32> to vector<2x1x176x16xf32>
    %6 = vector.shape_cast %5 : vector<2x1x176x16xf32> to vector<2x176x16xf32>
    %7 = vector.extract_strided_slice %4 {offsets = [0, 1, 0, 0], sizes = [2, 1, 176, 16], strides = [1, 1, 1, 1]} : vector<2x4x176x16xf32> to vector<2x1x176x16xf32>
    %8 = vector.shape_cast %7 : vector<2x1x176x16xf32> to vector<2x176x16xf32>
    %9 = arith.maximumf %6, %8 : vector<2x176x16xf32>
    %10 = vector.extract_strided_slice %4 {offsets = [0, 2, 0, 0], sizes = [2, 1, 176, 16], strides = [1, 1, 1, 1]} : vector<2x4x176x16xf32> to vector<2x1x176x16xf32>
    %11 = vector.shape_cast %10 : vector<2x1x176x16xf32> to vector<2x176x16xf32>
    %12 = vector.extract_strided_slice %4 {offsets = [0, 3, 0, 0], sizes = [2, 1, 176, 16], strides = [1, 1, 1, 1]} : vector<2x4x176x16xf32> to vector<2x1x176x16xf32>
    %13 = vector.shape_cast %12 : vector<2x1x176x16xf32> to vector<2x176x16xf32>
    %14 = arith.maximumf %11, %13 : vector<2x176x16xf32>
    %15 = arith.maximumf %9, %14 : vector<2x176x16xf32>
    %c0_4 = arith.constant 0 : index
    %c0_5 = arith.constant 0 : index
    %16 = vector.load %arg3[%c0_4, %c0_5] : memref<1x16xf32, #tpu.memory_space<vmem>>, vector<1x16xf32>
    %17 = vector.shape_cast %16 : vector<1x16xf32> to vector<1x1x16xf32>
    %18 = vector.broadcast %17 : vector<1x1x16xf32> to vector<2x176x16xf32>
    %19 = arith.addf %15, %18 : vector<2x176x16xf32>
    %cst_6 = arith.constant 0.000000e+00 : f32
    %20 = vector.broadcast %cst_6 : f32 to vector<2x176x16xf32>
    %21 = arith.maximumf %19, %20 : vector<2x176x16xf32>
    %c0_7 = arith.constant 0 : index
    %c0_8 = arith.constant 0 : index
    %22 = vector.load %arg5[%c0_7, %c0_8] : memref<1x10xf32, #tpu.memory_space<vmem>>, vector<1x10xf32>
    %23 = vector.shape_cast %22 : vector<1x10xf32> to vector<1x10xf32>
    %24 = vector.broadcast %23 : vector<1x10xf32> to vector<2x10xf32>
    %25 = vector.extract_strided_slice %21 {offsets = [0, 0, 0], sizes = [2, 176, 1], strides = [1, 1, 1]} : vector<2x176x16xf32> to vector<2x176x1xf32>
    %c0_9 = arith.constant 0 : index
    %c0_10 = arith.constant 0 : index
    %c0_11 = arith.constant 0 : index
    %26 = vector.load %arg4[%c0_9, %c0_10, %c0_11] : memref<16x176x10xf32, #tpu.memory_space<vmem>>, vector<1x176x10xf32>
    %27 = vector.shape_cast %26 : vector<1x176x10xf32> to vector<176x10xf32>
    %28 = vector.shape_cast %27 : vector<176x10xf32> to vector<1x176x10xf32>
    %29 = vector.broadcast %25 : vector<2x176x1xf32> to vector<2x176x10xf32>
    %30 = vector.broadcast %28 : vector<1x176x10xf32> to vector<2x176x10xf32>
    %31 = arith.mulf %29, %30 : vector<2x176x10xf32>
    %cst_12 = arith.constant dense<0.000000e+00> : vector<2x10xf32>
    %32 = vector.multi_reduction <add>, %31, %cst_12 [1] : vector<2x176x10xf32> to vector<2x10xf32>
    %33 = arith.addf %24, %32 : vector<2x10xf32>
    %34 = vector.extract_strided_slice %21 {offsets = [0, 0, 1], sizes = [2, 176, 1], strides = [1, 1, 1]} : vector<2x176x16xf32> to vector<2x176x1xf32>
    %c1 = arith.constant 1 : index
    %c0_13 = arith.constant 0 : index
    %c0_14 = arith.constant 0 : index
    %35 = vector.load %arg4[%c1, %c0_13, %c0_14] : memref<16x176x10xf32, #tpu.memory_space<vmem>>, vector<1x176x10xf32>
    %36 = vector.shape_cast %35 : vector<1x176x10xf32> to vector<176x10xf32>
    %37 = vector.shape_cast %36 : vector<176x10xf32> to vector<1x176x10xf32>
    %38 = vector.broadcast %34 : vector<2x176x1xf32> to vector<2x176x10xf32>
    %39 = vector.broadcast %37 : vector<1x176x10xf32> to vector<2x176x10xf32>
    %40 = arith.mulf %38, %39 : vector<2x176x10xf32>
    %cst_15 = arith.constant dense<0.000000e+00> : vector<2x10xf32>
    %41 = vector.multi_reduction <add>, %40, %cst_15 [1] : vector<2x176x10xf32> to vector<2x10xf32>
    %42 = arith.addf %33, %41 : vector<2x10xf32>
    %43 = vector.extract_strided_slice %21 {offsets = [0, 0, 2], sizes = [2, 176, 1], strides = [1, 1, 1]} : vector<2x176x16xf32> to vector<2x176x1xf32>
    %c2 = arith.constant 2 : index
    %c0_16 = arith.constant 0 : index
    %c0_17 = arith.constant 0 : index
    %44 = vector.load %arg4[%c2, %c0_16, %c0_17] : memref<16x176x10xf32, #tpu.memory_space<vmem>>, vector<1x176x10xf32>
    %45 = vector.shape_cast %44 : vector<1x176x10xf32> to vector<176x10xf32>
    %46 = vector.shape_cast %45 : vector<176x10xf32> to vector<1x176x10xf32>
    %47 = vector.broadcast %43 : vector<2x176x1xf32> to vector<2x176x10xf32>
    %48 = vector.broadcast %46 : vector<1x176x10xf32> to vector<2x176x10xf32>
    %49 = arith.mulf %47, %48 : vector<2x176x10xf32>
    %cst_18 = arith.constant dense<0.000000e+00> : vector<2x10xf32>
    %50 = vector.multi_reduction <add>, %49, %cst_18 [1] : vector<2x176x10xf32> to vector<2x10xf32>
    %51 = arith.addf %42, %50 : vector<2x10xf32>
    %52 = vector.extract_strided_slice %21 {offsets = [0, 0, 3], sizes = [2, 176, 1], strides = [1, 1, 1]} : vector<2x176x16xf32> to vector<2x176x1xf32>
    %c3 = arith.constant 3 : index
    %c0_19 = arith.constant 0 : index
    %c0_20 = arith.constant 0 : index
    %53 = vector.load %arg4[%c3, %c0_19, %c0_20] : memref<16x176x10xf32, #tpu.memory_space<vmem>>, vector<1x176x10xf32>
    %54 = vector.shape_cast %53 : vector<1x176x10xf32> to vector<176x10xf32>
    %55 = vector.shape_cast %54 : vector<176x10xf32> to vector<1x176x10xf32>
    %56 = vector.broadcast %52 : vector<2x176x1xf32> to vector<2x176x10xf32>
    %57 = vector.broadcast %55 : vector<1x176x10xf32> to vector<2x176x10xf32>
    %58 = arith.mulf %56, %57 : vector<2x176x10xf32>
    %cst_21 = arith.constant dense<0.000000e+00> : vector<2x10xf32>
    %59 = vector.multi_reduction <add>, %58, %cst_21 [1] : vector<2x176x10xf32> to vector<2x10xf32>
    %60 = arith.addf %51, %59 : vector<2x10xf32>
    %61 = vector.extract_strided_slice %21 {offsets = [0, 0, 4], sizes = [2, 176, 1], strides = [1, 1, 1]} : vector<2x176x16xf32> to vector<2x176x1xf32>
    %c4 = arith.constant 4 : index
    %c0_22 = arith.constant 0 : index
    %c0_23 = arith.constant 0 : index
    %62 = vector.load %arg4[%c4, %c0_22, %c0_23] : memref<16x176x10xf32, #tpu.memory_space<vmem>>, vector<1x176x10xf32>
    %63 = vector.shape_cast %62 : vector<1x176x10xf32> to vector<176x10xf32>
    %64 = vector.shape_cast %63 : vector<176x10xf32> to vector<1x176x10xf32>
    %65 = vector.broadcast %61 : vector<2x176x1xf32> to vector<2x176x10xf32>
    %66 = vector.broadcast %64 : vector<1x176x10xf32> to vector<2x176x10xf32>
    %67 = arith.mulf %65, %66 : vector<2x176x10xf32>
    %cst_24 = arith.constant dense<0.000000e+00> : vector<2x10xf32>
    %68 = vector.multi_reduction <add>, %67, %cst_24 [1] : vector<2x176x10xf32> to vector<2x10xf32>
    %69 = arith.addf %60, %68 : vector<2x10xf32>
    %70 = vector.extract_strided_slice %21 {offsets = [0, 0, 5], sizes = [2, 176, 1], strides = [1, 1, 1]} : vector<2x176x16xf32> to vector<2x176x1xf32>
    %c5 = arith.constant 5 : index
    %c0_25 = arith.constant 0 : index
    %c0_26 = arith.constant 0 : index
    %71 = vector.load %arg4[%c5, %c0_25, %c0_26] : memref<16x176x10xf32, #tpu.memory_space<vmem>>, vector<1x176x10xf32>
    %72 = vector.shape_cast %71 : vector<1x176x10xf32> to vector<176x10xf32>
    %73 = vector.shape_cast %72 : vector<176x10xf32> to vector<1x176x10xf32>
    %74 = vector.broadcast %70 : vector<2x176x1xf32> to vector<2x176x10xf32>
    %75 = vector.broadcast %73 : vector<1x176x10xf32> to vector<2x176x10xf32>
    %76 = arith.mulf %74, %75 : vector<2x176x10xf32>
    %cst_27 = arith.constant dense<0.000000e+00> : vector<2x10xf32>
    %77 = vector.multi_reduction <add>, %76, %cst_27 [1] : vector<2x176x10xf32> to vector<2x10xf32>
    %78 = arith.addf %69, %77 : vector<2x10xf32>
    %79 = vector.extract_strided_slice %21 {offsets = [0, 0, 6], sizes = [2, 176, 1], strides = [1, 1, 1]} : vector<2x176x16xf32> to vector<2x176x1xf32>
    %c6 = arith.constant 6 : index
    %c0_28 = arith.constant 0 : index
    %c0_29 = arith.constant 0 : index
    %80 = vector.load %arg4[%c6, %c0_28, %c0_29] : memref<16x176x10xf32, #tpu.memory_space<vmem>>, vector<1x176x10xf32>
    %81 = vector.shape_cast %80 : vector<1x176x10xf32> to vector<176x10xf32>
    %82 = vector.shape_cast %81 : vector<176x10xf32> to vector<1x176x10xf32>
    %83 = vector.broadcast %79 : vector<2x176x1xf32> to vector<2x176x10xf32>
    %84 = vector.broadcast %82 : vector<1x176x10xf32> to vector<2x176x10xf32>
    %85 = arith.mulf %83, %84 : vector<2x176x10xf32>
    %cst_30 = arith.constant dense<0.000000e+00> : vector<2x10xf32>
    %86 = vector.multi_reduction <add>, %85, %cst_30 [1] : vector<2x176x10xf32> to vector<2x10xf32>
    %87 = arith.addf %78, %86 : vector<2x10xf32>
    %88 = vector.extract_strided_slice %21 {offsets = [0, 0, 7], sizes = [2, 176, 1], strides = [1, 1, 1]} : vector<2x176x16xf32> to vector<2x176x1xf32>
    %c7 = arith.constant 7 : index
    %c0_31 = arith.constant 0 : index
    %c0_32 = arith.constant 0 : index
    %89 = vector.load %arg4[%c7, %c0_31, %c0_32] : memref<16x176x10xf32, #tpu.memory_space<vmem>>, vector<1x176x10xf32>
    %90 = vector.shape_cast %89 : vector<1x176x10xf32> to vector<176x10xf32>
    %91 = vector.shape_cast %90 : vector<176x10xf32> to vector<1x176x10xf32>
    %92 = vector.broadcast %88 : vector<2x176x1xf32> to vector<2x176x10xf32>
    %93 = vector.broadcast %91 : vector<1x176x10xf32> to vector<2x176x10xf32>
    %94 = arith.mulf %92, %93 : vector<2x176x10xf32>
    %cst_33 = arith.constant dense<0.000000e+00> : vector<2x10xf32>
    %95 = vector.multi_reduction <add>, %94, %cst_33 [1] : vector<2x176x10xf32> to vector<2x10xf32>
    %96 = arith.addf %87, %95 : vector<2x10xf32>
    %97 = vector.extract_strided_slice %21 {offsets = [0, 0, 8], sizes = [2, 176, 1], strides = [1, 1, 1]} : vector<2x176x16xf32> to vector<2x176x1xf32>
    %c8 = arith.constant 8 : index
    %c0_34 = arith.constant 0 : index
    %c0_35 = arith.constant 0 : index
    %98 = vector.load %arg4[%c8, %c0_34, %c0_35] : memref<16x176x10xf32, #tpu.memory_space<vmem>>, vector<1x176x10xf32>
    %99 = vector.shape_cast %98 : vector<1x176x10xf32> to vector<176x10xf32>
    %100 = vector.shape_cast %99 : vector<176x10xf32> to vector<1x176x10xf32>
    %101 = vector.broadcast %97 : vector<2x176x1xf32> to vector<2x176x10xf32>
    %102 = vector.broadcast %100 : vector<1x176x10xf32> to vector<2x176x10xf32>
    %103 = arith.mulf %101, %102 : vector<2x176x10xf32>
    %cst_36 = arith.constant dense<0.000000e+00> : vector<2x10xf32>
    %104 = vector.multi_reduction <add>, %103, %cst_36 [1] : vector<2x176x10xf32> to vector<2x10xf32>
    %105 = arith.addf %96, %104 : vector<2x10xf32>
    %106 = vector.extract_strided_slice %21 {offsets = [0, 0, 9], sizes = [2, 176, 1], strides = [1, 1, 1]} : vector<2x176x16xf32> to vector<2x176x1xf32>
    %c9 = arith.constant 9 : index
    %c0_37 = arith.constant 0 : index
    %c0_38 = arith.constant 0 : index
    %107 = vector.load %arg4[%c9, %c0_37, %c0_38] : memref<16x176x10xf32, #tpu.memory_space<vmem>>, vector<1x176x10xf32>
    %108 = vector.shape_cast %107 : vector<1x176x10xf32> to vector<176x10xf32>
    %109 = vector.shape_cast %108 : vector<176x10xf32> to vector<1x176x10xf32>
    %110 = vector.broadcast %106 : vector<2x176x1xf32> to vector<2x176x10xf32>
    %111 = vector.broadcast %109 : vector<1x176x10xf32> to vector<2x176x10xf32>
    %112 = arith.mulf %110, %111 : vector<2x176x10xf32>
    %cst_39 = arith.constant dense<0.000000e+00> : vector<2x10xf32>
    %113 = vector.multi_reduction <add>, %112, %cst_39 [1] : vector<2x176x10xf32> to vector<2x10xf32>
    %114 = arith.addf %105, %113 : vector<2x10xf32>
    %115 = vector.extract_strided_slice %21 {offsets = [0, 0, 10], sizes = [2, 176, 1], strides = [1, 1, 1]} : vector<2x176x16xf32> to vector<2x176x1xf32>
    %c10 = arith.constant 10 : index
    %c0_40 = arith.constant 0 : index
    %c0_41 = arith.constant 0 : index
    %116 = vector.load %arg4[%c10, %c0_40, %c0_41] : memref<16x176x10xf32, #tpu.memory_space<vmem>>, vector<1x176x10xf32>
    %117 = vector.shape_cast %116 : vector<1x176x10xf32> to vector<176x10xf32>
    %118 = vector.shape_cast %117 : vector<176x10xf32> to vector<1x176x10xf32>
    %119 = vector.broadcast %115 : vector<2x176x1xf32> to vector<2x176x10xf32>
    %120 = vector.broadcast %118 : vector<1x176x10xf32> to vector<2x176x10xf32>
    %121 = arith.mulf %119, %120 : vector<2x176x10xf32>
    %cst_42 = arith.constant dense<0.000000e+00> : vector<2x10xf32>
    %122 = vector.multi_reduction <add>, %121, %cst_42 [1] : vector<2x176x10xf32> to vector<2x10xf32>
    %123 = arith.addf %114, %122 : vector<2x10xf32>
    %124 = vector.extract_strided_slice %21 {offsets = [0, 0, 11], sizes = [2, 176, 1], strides = [1, 1, 1]} : vector<2x176x16xf32> to vector<2x176x1xf32>
    %c11 = arith.constant 11 : index
    %c0_43 = arith.constant 0 : index
    %c0_44 = arith.constant 0 : index
    %125 = vector.load %arg4[%c11, %c0_43, %c0_44] : memref<16x176x10xf32, #tpu.memory_space<vmem>>, vector<1x176x10xf32>
    %126 = vector.shape_cast %125 : vector<1x176x10xf32> to vector<176x10xf32>
    %127 = vector.shape_cast %126 : vector<176x10xf32> to vector<1x176x10xf32>
    %128 = vector.broadcast %124 : vector<2x176x1xf32> to vector<2x176x10xf32>
    %129 = vector.broadcast %127 : vector<1x176x10xf32> to vector<2x176x10xf32>
    %130 = arith.mulf %128, %129 : vector<2x176x10xf32>
    %cst_45 = arith.constant dense<0.000000e+00> : vector<2x10xf32>
    %131 = vector.multi_reduction <add>, %130, %cst_45 [1] : vector<2x176x10xf32> to vector<2x10xf32>
    %132 = arith.addf %123, %131 : vector<2x10xf32>
    %133 = vector.extract_strided_slice %21 {offsets = [0, 0, 12], sizes = [2, 176, 1], strides = [1, 1, 1]} : vector<2x176x16xf32> to vector<2x176x1xf32>
    %c12 = arith.constant 12 : index
    %c0_46 = arith.constant 0 : index
    %c0_47 = arith.constant 0 : index
    %134 = vector.load %arg4[%c12, %c0_46, %c0_47] : memref<16x176x10xf32, #tpu.memory_space<vmem>>, vector<1x176x10xf32>
    %135 = vector.shape_cast %134 : vector<1x176x10xf32> to vector<176x10xf32>
    %136 = vector.shape_cast %135 : vector<176x10xf32> to vector<1x176x10xf32>
    %137 = vector.broadcast %133 : vector<2x176x1xf32> to vector<2x176x10xf32>
    %138 = vector.broadcast %136 : vector<1x176x10xf32> to vector<2x176x10xf32>
    %139 = arith.mulf %137, %138 : vector<2x176x10xf32>
    %cst_48 = arith.constant dense<0.000000e+00> : vector<2x10xf32>
    %140 = vector.multi_reduction <add>, %139, %cst_48 [1] : vector<2x176x10xf32> to vector<2x10xf32>
    %141 = arith.addf %132, %140 : vector<2x10xf32>
    %142 = vector.extract_strided_slice %21 {offsets = [0, 0, 13], sizes = [2, 176, 1], strides = [1, 1, 1]} : vector<2x176x16xf32> to vector<2x176x1xf32>
    %c13 = arith.constant 13 : index
    %c0_49 = arith.constant 0 : index
    %c0_50 = arith.constant 0 : index
    %143 = vector.load %arg4[%c13, %c0_49, %c0_50] : memref<16x176x10xf32, #tpu.memory_space<vmem>>, vector<1x176x10xf32>
    %144 = vector.shape_cast %143 : vector<1x176x10xf32> to vector<176x10xf32>
    %145 = vector.shape_cast %144 : vector<176x10xf32> to vector<1x176x10xf32>
    %146 = vector.broadcast %142 : vector<2x176x1xf32> to vector<2x176x10xf32>
    %147 = vector.broadcast %145 : vector<1x176x10xf32> to vector<2x176x10xf32>
    %148 = arith.mulf %146, %147 : vector<2x176x10xf32>
    %cst_51 = arith.constant dense<0.000000e+00> : vector<2x10xf32>
    %149 = vector.multi_reduction <add>, %148, %cst_51 [1] : vector<2x176x10xf32> to vector<2x10xf32>
    %150 = arith.addf %141, %149 : vector<2x10xf32>
    %151 = vector.extract_strided_slice %21 {offsets = [0, 0, 14], sizes = [2, 176, 1], strides = [1, 1, 1]} : vector<2x176x16xf32> to vector<2x176x1xf32>
    %c14 = arith.constant 14 : index
    %c0_52 = arith.constant 0 : index
    %c0_53 = arith.constant 0 : index
    %152 = vector.load %arg4[%c14, %c0_52, %c0_53] : memref<16x176x10xf32, #tpu.memory_space<vmem>>, vector<1x176x10xf32>
    %153 = vector.shape_cast %152 : vector<1x176x10xf32> to vector<176x10xf32>
    %154 = vector.shape_cast %153 : vector<176x10xf32> to vector<1x176x10xf32>
    %155 = vector.broadcast %151 : vector<2x176x1xf32> to vector<2x176x10xf32>
    %156 = vector.broadcast %154 : vector<1x176x10xf32> to vector<2x176x10xf32>
    %157 = arith.mulf %155, %156 : vector<2x176x10xf32>
    %cst_54 = arith.constant dense<0.000000e+00> : vector<2x10xf32>
    %158 = vector.multi_reduction <add>, %157, %cst_54 [1] : vector<2x176x10xf32> to vector<2x10xf32>
    %159 = arith.addf %150, %158 : vector<2x10xf32>
    %160 = vector.extract_strided_slice %21 {offsets = [0, 0, 15], sizes = [2, 176, 1], strides = [1, 1, 1]} : vector<2x176x16xf32> to vector<2x176x1xf32>
    %c15 = arith.constant 15 : index
    %c0_55 = arith.constant 0 : index
    %c0_56 = arith.constant 0 : index
    %161 = vector.load %arg4[%c15, %c0_55, %c0_56] : memref<16x176x10xf32, #tpu.memory_space<vmem>>, vector<1x176x10xf32>
    %162 = vector.shape_cast %161 : vector<1x176x10xf32> to vector<176x10xf32>
    %163 = vector.shape_cast %162 : vector<176x10xf32> to vector<1x176x10xf32>
    %164 = vector.broadcast %160 : vector<2x176x1xf32> to vector<2x176x10xf32>
    %165 = vector.broadcast %163 : vector<1x176x10xf32> to vector<2x176x10xf32>
    %166 = arith.mulf %164, %165 : vector<2x176x10xf32>
    %cst_57 = arith.constant dense<0.000000e+00> : vector<2x10xf32>
    %167 = vector.multi_reduction <add>, %166, %cst_57 [1] : vector<2x176x10xf32> to vector<2x10xf32>
    %168 = arith.addf %159, %167 : vector<2x10xf32>
    %c0_58 = arith.constant 0 : index
    %c0_59 = arith.constant 0 : index
    %c0_60 = arith.constant 0 : index
    %169 = vector.load %arg6[%c0_58, %c0_59, %c0_60] : memref<1x2x10xf32, #tpu.memory_space<vmem>>, vector<1x2x10xf32>
    %170 = vector.shape_cast %169 : vector<1x2x10xf32> to vector<2x10xf32>
    %171 = vector.shape_cast %168 : vector<2x10xf32> to vector<1x2x10xf32>
    tpu.vector_store %arg6[%c0_58, %c0_59, %c0_60], %171 {strides = array<i32>} : memref<1x2x10xf32, #tpu.memory_space<vmem>>, vector<1x2x10xf32>,
    return
  }
  func.func @transform_0(%arg0: i32) -> (i32, i32, i32) {
    %c0_i32 = arith.constant 0 : i32
    %c0_i32_0 = arith.constant 0 : i32
    %c0_i32_1 = arith.constant 0 : i32
    return %arg0, %c0_i32, %c0_i32_0 : i32, i32, i32
  }
  func.func @transform_1(%arg0: i32) -> (i32, i32) {
    %c0_i32 = arith.constant 0 : i32
    %c0_i32_0 = arith.constant 0 : i32
    %c0_i32_1 = arith.constant 0 : i32
    return %c0_i32, %c0_i32_0 : i32, i32
  }
  func.func @transform_2(%arg0: i32) -> (i32, i32) {
    %c0_i32 = arith.constant 0 : i32
    %c0_i32_0 = arith.constant 0 : i32
    %c0_i32_1 = arith.constant 0 : i32
    return %c0_i32, %c0_i32_0 : i32, i32
  }
  func.func @transform_3(%arg0: i32) -> (i32, i32, i32) {
    %c0_i32 = arith.constant 0 : i32
    %c0_i32_0 = arith.constant 0 : i32
    %c0_i32_1 = arith.constant 0 : i32
    %c0_i32_2 = arith.constant 0 : i32
    return %c0_i32, %c0_i32_0, %c0_i32_1 : i32, i32, i32
  }
  func.func @transform_4(%arg0: i32) -> (i32, i32) {
    %c0_i32 = arith.constant 0 : i32
    %c0_i32_0 = arith.constant 0 : i32
    %c0_i32_1 = arith.constant 0 : i32
    return %c0_i32, %c0_i32_0 : i32, i32
  }
  func.func @transform_5(%arg0: i32) -> (i32, i32, i32) {
    %c0_i32 = arith.constant 0 : i32
    %c0_i32_0 = arith.constant 0 : i32
    %c0_i32_1 = arith.constant 0 : i32
    return %arg0, %c0_i32, %c0_i32_0 : i32, i32, i32
  }
}

</mosaic_0001>

<llo_original>
// kernel: cnn_forward.1
$region0: #{cnn_forward.1}
  #allocation0 [shape = 'u32[]', space=smem, size = 0x4, offset = 0x4, fixed_abs, tag = 'smem constant byte address 0x4 - core index']
  #allocation1 [shape = 'u32[144,128]{1,0:T(1,128)}', space=vmem, size = 0x12000, scoped, tag = 'internal scratch']
  %s0 = inlined_call_operand.vmem [shape: f32[1,1408,9], index: 0, kind: input, shape index: {}]
  %s1 = inlined_call_operand.vmem [shape: f32[9,16], index: 1, kind: input, shape index: {}]
  %s2 = inlined_call_operand.vmem [shape: f32[1,16], index: 2, kind: input, shape index: {}]
  %s3 = inlined_call_operand.vmem [shape: f32[16,176,10], index: 3, kind: input, shape index: {}]
  %s4 = inlined_call_operand.vmem [shape: f32[1,10], index: 4, kind: input, shape index: {}]
  %s5 = inlined_call_operand.hbm [shape: f32[1,2,10], index: 5, kind: output, shape index: {}]
  %s6 = sld [smem:[#allocation0]]
  $region30: #{cnn_forward.1} parent=0
    _
  %s8 = ssub.s32 1, %s6
  %s9 = scalar_select 0, %s8, %s6
  $region1: #{cnn_forward.1} parent=0
    #allocation2 [shape = 'u8[1024]{0}', space=vmem, size = 0x400, scoped, tag = 'output window, operand 0, single buffered']
    #allocation3 [shape = 's32[1]{0}', space=sflag, size = 0x4, scoped, tag = 'scoped memory for cnn_forward.1']
    %10 = vsyncpa [#allocation3], 0
    // Predicated region
    $region2: #{cnn_forward.1} parent=1 // pred_check
      _
    $region3: #{cnn_forward.1} parent=1 // pred_check_branch
      %12 = sbr.rel (0) target = $region5
    $region4: #{cnn_forward.1} parent=1 // pred_region
      _
    $region5: #{cnn_forward.1} parent=1 // pred_fallthru
      _
    // Predicated region
    $region6: #{cnn_forward.1} parent=1 // pred_check
      _
    $region7: #{cnn_forward.1} parent=1 // pred_check_branch
      %14 = sbr.rel (0) target = $region9
    $region8: #{cnn_forward.1} parent=1 // pred_region
      _
    $region9: #{cnn_forward.1} parent=1 // pred_fallthru
      _
    // Predicated region
    $region10: #{cnn_forward.1} parent=1 // pred_check
      _
    $region11: #{cnn_forward.1} parent=1 // pred_check_branch
      %16 = sbr.rel (0) target = $region13
    $region12: #{cnn_forward.1} parent=1 // pred_region
      _
    $region13: #{cnn_forward.1} parent=1 // pred_fallthru
      _
    // Predicated region
    $region14: #{cnn_forward.1} parent=1 // pred_check
      _
    $region15: #{cnn_forward.1} parent=1 // pred_check_branch
      %18 = sbr.rel (0) target = $region17
    $region16: #{cnn_forward.1} parent=1 // pred_region
      _
    $region17: #{cnn_forward.1} parent=1 // pred_fallthru
      _
    // Predicated region
    $region18: #{cnn_forward.1} parent=1 // pred_check
      _
    $region19: #{cnn_forward.1} parent=1 // pred_check_branch
      %20 = sbr.rel (0) target = $region21
    $region20: #{cnn_forward.1} parent=1 // pred_region
      _
    $region21: #{cnn_forward.1} parent=1 // pred_fallthru
      _
    %v21 = vld [vmem:[%s0] sm:$0xff]
    %v22 = vld [vmem:[%s0 + $0x8] sm:$0xff]
    %v23 = vld [vmem:[%s0 + $0x10] sm:$0xff]
    %v24 = vld [vmem:[%s0 + $0x18] sm:$0xff]
    %v25 = vld [vmem:[%s0 + $0x20] sm:$0xff]
    %v26 = vld [vmem:[%s0 + $0x28] sm:$0xff]
    %v27 = vld [vmem:[%s0 + $0x30] sm:$0xff]
    %v28 = vld [vmem:[%s0 + $0x38] sm:$0xff]
    %v29 = vld [vmem:[%s0 + $0x40] sm:$0xff]
    %v30 = vld [vmem:[%s0 + $0x48] sm:$0xff]
    %v31 = vld [vmem:[%s0 + $0x50] sm:$0xff]
    %v32 = vld [vmem:[%s0 + $0x58] sm:$0xff]
    %v33 = vld [vmem:[%s0 + $0x60] sm:$0xff]
    %v34 = vld [vmem:[%s0 + $0x68] sm:$0xff]
    %v35 = vld [vmem:[%s0 + $0x70] sm:$0xff]
    %v36 = vld [vmem:[%s0 + $0x78] sm:$0xff]
    %v37 = vld [vmem:[%s0 + $0x80] sm:$0xff]
    %v38 = vld [vmem:[%s0 + $0x88] sm:$0xff]
    %v39 = vld [vmem:[%s0 + $0x90] sm:$0xff]
    %v40 = vld [vmem:[%s0 + $0x98] sm:$0xff]
    %v41 = vld [vmem:[%s0 + $0xa0] sm:$0xff]
    %v42 = vld [vmem:[%s0 + $0xa8] sm:$0xff]
    %v43 = vld [vmem:[%s0 + $0xb0] sm:$0xff]
    %v44 = vld [vmem:[%s0 + $0xb8] sm:$0xff]
    %v45 = vld [vmem:[%s0 + $0xc0] sm:$0xff]
    %v46 = vld [vmem:[%s0 + $0xc8] sm:$0xff]
    %v47 = vld [vmem:[%s0 + $0xd0] sm:$0xff]
    %v48 = vld [vmem:[%s0 + $0xd8] sm:$0xff]
    %v49 = vld [vmem:[%s0 + $0xe0] sm:$0xff]
    %v50 = vld [vmem:[%s0 + $0xe8] sm:$0xff]
    %v51 = vld [vmem:[%s0 + $0xf0] sm:$0xff]
    %v52 = vld [vmem:[%s0 + $0xf8] sm:$0xff]
    %v53 = vld [vmem:[%s0 + $0x100] sm:$0xff]
    %v54 = vld [vmem:[%s0 + $0x108] sm:$0xff]
    %v55 = vld [vmem:[%s0 + $0x110] sm:$0xff]
    %v56 = vld [vmem:[%s0 + $0x118] sm:$0xff]
    %v57 = vld [vmem:[%s0 + $0x120] sm:$0xff]
    %v58 = vld [vmem:[%s0 + $0x128] sm:$0xff]
    %v59 = vld [vmem:[%s0 + $0x130] sm:$0xff]
    %v60 = vld [vmem:[%s0 + $0x138] sm:$0xff]
    %v61 = vld [vmem:[%s0 + $0x140] sm:$0xff]
    %v62 = vld [vmem:[%s0 + $0x148] sm:$0xff]
    %v63 = vld [vmem:[%s0 + $0x150] sm:$0xff]
    %v64 = vld [vmem:[%s0 + $0x158] sm:$0xff]
    %v65 = vld [vmem:[%s0 + $0x160] sm:$0xff]
    %v66 = vld [vmem:[%s0 + $0x168] sm:$0xff]
    %v67 = vld [vmem:[%s0 + $0x170] sm:$0xff]
    %v68 = vld [vmem:[%s0 + $0x178] sm:$0xff]
    %v69 = vld [vmem:[%s0 + $0x180] sm:$0xff]
    %v70 = vld [vmem:[%s0 + $0x188] sm:$0xff]
    %v71 = vld [vmem:[%s0 + $0x190] sm:$0xff]
    %v72 = vld [vmem:[%s0 + $0x198] sm:$0xff]
    %v73 = vld [vmem:[%s0 + $0x1a0] sm:$0xff]
    %v74 = vld [vmem:[%s0 + $0x1a8] sm:$0xff]
    %v75 = vld [vmem:[%s0 + $0x1b0] sm:$0xff]
    %v76 = vld [vmem:[%s0 + $0x1b8] sm:$0xff]
    %v77 = vld [vmem:[%s0 + $0x1c0] sm:$0xff]
    %v78 = vld [vmem:[%s0 + $0x1c8] sm:$0xff]
    %v79 = vld [vmem:[%s0 + $0x1d0] sm:$0xff]
    %v80 = vld [vmem:[%s0 + $0x1d8] sm:$0xff]
    %v81 = vld [vmem:[%s0 + $0x1e0] sm:$0xff]
    %v82 = vld [vmem:[%s0 + $0x1e8] sm:$0xff]
    %v83 = vld [vmem:[%s0 + $0x1f0] sm:$0xff]
    %v84 = vld [vmem:[%s0 + $0x1f8] sm:$0xff]
    %v85 = vld [vmem:[%s0 + $0x200] sm:$0xff]
    %v86 = vld [vmem:[%s0 + $0x208] sm:$0xff]
    %v87 = vld [vmem:[%s0 + $0x210] sm:$0xff]
    %v88 = vld [vmem:[%s0 + $0x218] sm:$0xff]
    %v89 = vld [vmem:[%s0 + $0x220] sm:$0xff]
    %v90 = vld [vmem:[%s0 + $0x228] sm:$0xff]
    %v91 = vld [vmem:[%s0 + $0x230] sm:$0xff]
    %v92 = vld [vmem:[%s0 + $0x238] sm:$0xff]
    %v93 = vld [vmem:[%s0 + $0x240] sm:$0xff]
    %v94 = vld [vmem:[%s0 + $0x248] sm:$0xff]
    %v95 = vld [vmem:[%s0 + $0x250] sm:$0xff]
    %v96 = vld [vmem:[%s0 + $0x258] sm:$0xff]
    %v97 = vld [vmem:[%s0 + $0x260] sm:$0xff]
    %v98 = vld [vmem:[%s0 + $0x268] sm:$0xff]
    %v99 = vld [vmem:[%s0 + $0x270] sm:$0xff]
    %v100 = vld [vmem:[%s0 + $0x278] sm:$0xff]
    %v101 = vld [vmem:[%s0 + $0x280] sm:$0xff]
    %v102 = vld [vmem:[%s0 + $0x288] sm:$0xff]
    %v103 = vld [vmem:[%s0 + $0x290] sm:$0xff]
    %v104 = vld [vmem:[%s0 + $0x298] sm:$0xff]
    %v105 = vld [vmem:[%s0 + $0x2a0] sm:$0xff]
    %v106 = vld [vmem:[%s0 + $0x2a8] sm:$0xff]
    %v107 = vld [vmem:[%s0 + $0x2b0] sm:$0xff]
    %v108 = vld [vmem:[%s0 + $0x2b8] sm:$0xff]
    %v109 = vld [vmem:[%s0 + $0x2c0] sm:$0xff]
    %v110 = vld [vmem:[%s0 + $0x2c8] sm:$0xff]
    %v111 = vld [vmem:[%s0 + $0x2d0] sm:$0xff]
    %v112 = vld [vmem:[%s0 + $0x2d8] sm:$0xff]
    %v113 = vld [vmem:[%s0 + $0x2e0] sm:$0xff]
    %v114 = vld [vmem:[%s0 + $0x2e8] sm:$0xff]
    %v115 = vld [vmem:[%s0 + $0x2f0] sm:$0xff]
    %v116 = vld [vmem:[%s0 + $0x2f8] sm:$0xff]
    %v117 = vld [vmem:[%s0 + $0x300] sm:$0xff]
    %v118 = vld [vmem:[%s0 + $0x308] sm:$0xff]
    %v119 = vld [vmem:[%s0 + $0x310] sm:$0xff]
    %v120 = vld [vmem:[%s0 + $0x318] sm:$0xff]
    %v121 = vld [vmem:[%s0 + $0x320] sm:$0xff]
    %v122 = vld [vmem:[%s0 + $0x328] sm:$0xff]
    %v123 = vld [vmem:[%s0 + $0x330] sm:$0xff]
    %v124 = vld [vmem:[%s0 + $0x338] sm:$0xff]
    %v125 = vld [vmem:[%s0 + $0x340] sm:$0xff]
    %v126 = vld [vmem:[%s0 + $0x348] sm:$0xff]
    %v127 = vld [vmem:[%s0 + $0x350] sm:$0xff]
    %v128 = vld [vmem:[%s0 + $0x358] sm:$0xff]
    %v129 = vld [vmem:[%s0 + $0x360] sm:$0xff]
    %v130 = vld [vmem:[%s0 + $0x368] sm:$0xff]
    %v131 = vld [vmem:[%s0 + $0x370] sm:$0xff]
    %v132 = vld [vmem:[%s0 + $0x378] sm:$0xff]
    %v133 = vld [vmem:[%s0 + $0x380] sm:$0xff]
    %v134 = vld [vmem:[%s0 + $0x388] sm:$0xff]
    %v135 = vld [vmem:[%s0 + $0x390] sm:$0xff]
    %v136 = vld [vmem:[%s0 + $0x398] sm:$0xff]
    %v137 = vld [vmem:[%s0 + $0x3a0] sm:$0xff]
    %v138 = vld [vmem:[%s0 + $0x3a8] sm:$0xff]
    %v139 = vld [vmem:[%s0 + $0x3b0] sm:$0xff]
    %v140 = vld [vmem:[%s0 + $0x3b8] sm:$0xff]
    %v141 = vld [vmem:[%s0 + $0x3c0] sm:$0xff]
    %v142 = vld [vmem:[%s0 + $0x3c8] sm:$0xff]
    %v143 = vld [vmem:[%s0 + $0x3d0] sm:$0xff]
    %v144 = vld [vmem:[%s0 + $0x3d8] sm:$0xff]
    %v145 = vld [vmem:[%s0 + $0x3e0] sm:$0xff]
    %v146 = vld [vmem:[%s0 + $0x3e8] sm:$0xff]
    %v147 = vld [vmem:[%s0 + $0x3f0] sm:$0xff]
    %v148 = vld [vmem:[%s0 + $0x3f8] sm:$0xff]
    %v149 = vld [vmem:[%s0 + $0x400] sm:$0xff]
    %v150 = vld [vmem:[%s0 + $0x408] sm:$0xff]
    %v151 = vld [vmem:[%s0 + $0x410] sm:$0xff]
    %v152 = vld [vmem:[%s0 + $0x418] sm:$0xff]
    %v153 = vld [vmem:[%s0 + $0x420] sm:$0xff]
    %v154 = vld [vmem:[%s0 + $0x428] sm:$0xff]
    %v155 = vld [vmem:[%s0 + $0x430] sm:$0xff]
    %v156 = vld [vmem:[%s0 + $0x438] sm:$0xff]
    %v157 = vld [vmem:[%s0 + $0x440] sm:$0xff]
    %v158 = vld [vmem:[%s0 + $0x448] sm:$0xff]
    %v159 = vld [vmem:[%s0 + $0x450] sm:$0xff]
    %v160 = vld [vmem:[%s0 + $0x458] sm:$0xff]
    %v161 = vld [vmem:[%s0 + $0x460] sm:$0xff]
    %v162 = vld [vmem:[%s0 + $0x468] sm:$0xff]
    %v163 = vld [vmem:[%s0 + $0x470] sm:$0xff]
    %v164 = vld [vmem:[%s0 + $0x478] sm:$0xff]
    %v165 = vld [vmem:[%s0 + $0x480] sm:$0xff]
    %v166 = vld [vmem:[%s0 + $0x488] sm:$0xff]
    %v167 = vld [vmem:[%s0 + $0x490] sm:$0xff]
    %v168 = vld [vmem:[%s0 + $0x498] sm:$0xff]
    %v169 = vld [vmem:[%s0 + $0x4a0] sm:$0xff]
    %v170 = vld [vmem:[%s0 + $0x4a8] sm:$0xff]
    %v171 = vld [vmem:[%s0 + $0x4b0] sm:$0xff]
    %v172 = vld [vmem:[%s0 + $0x4b8] sm:$0xff]
    %v173 = vld [vmem:[%s0 + $0x4c0] sm:$0xff]
    %v174 = vld [vmem:[%s0 + $0x4c8] sm:$0xff]
    %v175 = vld [vmem:[%s0 + $0x4d0] sm:$0xff]
    %v176 = vld [vmem:[%s0 + $0x4d8] sm:$0xff]
    %v177 = vld [vmem:[%s0 + $0x4e0] sm:$0xff]
    %v178 = vld [vmem:[%s0 + $0x4e8] sm:$0xff]
    %v179 = vld [vmem:[%s0 + $0x4f0] sm:$0xff]
    %v180 = vld [vmem:[%s0 + $0x4f8] sm:$0xff]
    %v181 = vld [vmem:[%s0 + $0x500] sm:$0xff]
    %v182 = vld [vmem:[%s0 + $0x508] sm:$0xff]
    %v183 = vld [vmem:[%s0 + $0x510] sm:$0xff]
    %v184 = vld [vmem:[%s0 + $0x518] sm:$0xff]
    %v185 = vld [vmem:[%s0 + $0x520] sm:$0xff]
    %v186 = vld [vmem:[%s0 + $0x528] sm:$0xff]
    %v187 = vld [vmem:[%s0 + $0x530] sm:$0xff]
    %v188 = vld [vmem:[%s0 + $0x538] sm:$0xff]
    %v189 = vld [vmem:[%s0 + $0x540] sm:$0xff]
    %v190 = vld [vmem:[%s0 + $0x548] sm:$0xff]
    %v191 = vld [vmem:[%s0 + $0x550] sm:$0xff]
    %v192 = vld [vmem:[%s0 + $0x558] sm:$0xff]
    %v193 = vld [vmem:[%s0 + $0x560] sm:$0xff]
    %v194 = vld [vmem:[%s0 + $0x568] sm:$0xff]
    %v195 = vld [vmem:[%s0 + $0x570] sm:$0xff]
    %v196 = vld [vmem:[%s0 + $0x578] sm:$0xff]
    %v197 = vld [vmem:[%s1] sm:$0xff]
    %v198 = vld [vmem:[%s1 + $0x8] sm:$0x1]
    %vm199 = vcmask 72704
    %v201 = vsel %vm199, %v21, 0
    %v204 = vsel %vm199, %v22, 0
    %v207 = vsel %vm199, %v23, 0
    %v210 = vsel %vm199, %v24, 0
    %v213 = vsel %vm199, %v25, 0
    %v216 = vsel %vm199, %v26, 0
    %v219 = vsel %vm199, %v27, 0
    %v222 = vsel %vm199, %v28, 0
    %v225 = vsel %vm199, %v29, 0
    %v228 = vsel %vm199, %v30, 0
    %v231 = vsel %vm199, %v31, 0
    %v234 = vsel %vm199, %v32, 0
    %v237 = vsel %vm199, %v33, 0
    %v240 = vsel %vm199, %v34, 0
    %v243 = vsel %vm199, %v35, 0
    %v246 = vsel %vm199, %v36, 0
    %v249 = vsel %vm199, %v37, 0
    %v252 = vsel %vm199, %v38, 0
    %v255 = vsel %vm199, %v39, 0
    %v258 = vsel %vm199, %v40, 0
    %v261 = vsel %vm199, %v41, 0
    %v264 = vsel %vm199, %v42, 0
    %v267 = vsel %vm199, %v43, 0
    %v270 = vsel %vm199, %v44, 0
    %v273 = vsel %vm199, %v45, 0
    %v276 = vsel %vm199, %v46, 0
    %v279 = vsel %vm199, %v47, 0
    %v282 = vsel %vm199, %v48, 0
    %v285 = vsel %vm199, %v49, 0
    %v288 = vsel %vm199, %v50, 0
    %v291 = vsel %vm199, %v51, 0
    %v294 = vsel %vm199, %v52, 0
    %v297 = vsel %vm199, %v53, 0
    %v300 = vsel %vm199, %v54, 0
    %v303 = vsel %vm199, %v55, 0
    %v306 = vsel %vm199, %v56, 0
    %v309 = vsel %vm199, %v57, 0
    %v312 = vsel %vm199, %v58, 0
    %v315 = vsel %vm199, %v59, 0
    %v318 = vsel %vm199, %v60, 0
    %v321 = vsel %vm199, %v61, 0
    %v324 = vsel %vm199, %v62, 0
    %v327 = vsel %vm199, %v63, 0
    %v330 = vsel %vm199, %v64, 0
    %v333 = vsel %vm199, %v65, 0
    %v336 = vsel %vm199, %v66, 0
    %v339 = vsel %vm199, %v67, 0
    %v342 = vsel %vm199, %v68, 0
    %v345 = vsel %vm199, %v69, 0
    %v348 = vsel %vm199, %v70, 0
    %v351 = vsel %vm199, %v71, 0
    %v354 = vsel %vm199, %v72, 0
    %v357 = vsel %vm199, %v73, 0
    %v360 = vsel %vm199, %v74, 0
    %v363 = vsel %vm199, %v75, 0
    %v366 = vsel %vm199, %v76, 0
    %v369 = vsel %vm199, %v77, 0
    %v372 = vsel %vm199, %v78, 0
    %v375 = vsel %vm199, %v79, 0
    %v378 = vsel %vm199, %v80, 0
    %v381 = vsel %vm199, %v81, 0
    %v384 = vsel %vm199, %v82, 0
    %v387 = vsel %vm199, %v83, 0
    %v390 = vsel %vm199, %v84, 0
    %v393 = vsel %vm199, %v85, 0
    %v396 = vsel %vm199, %v86, 0
    %v399 = vsel %vm199, %v87, 0
    %v402 = vsel %vm199, %v88, 0
    %v405 = vsel %vm199, %v89, 0
    %v408 = vsel %vm199, %v90, 0
    %v411 = vsel %vm199, %v91, 0
    %v414 = vsel %vm199, %v92, 0
    %v417 = vsel %vm199, %v93, 0
    %v420 = vsel %vm199, %v94, 0
    %v423 = vsel %vm199, %v95, 0
    %v426 = vsel %vm199, %v96, 0
    %v429 = vsel %vm199, %v97, 0
    %v432 = vsel %vm199, %v98, 0
    %v435 = vsel %vm199, %v99, 0
    %v438 = vsel %vm199, %v100, 0
    %v441 = vsel %vm199, %v101, 0
    %v444 = vsel %vm199, %v102, 0
    %v447 = vsel %vm199, %v103, 0
    %v450 = vsel %vm199, %v104, 0
    %v453 = vsel %vm199, %v105, 0
    %v456 = vsel %vm199, %v106, 0
    %v459 = vsel %vm199, %v107, 0
    %v462 = vsel %vm199, %v108, 0
    %v465 = vsel %vm199, %v109, 0
    %v468 = vsel %vm199, %v110, 0
    %v471 = vsel %vm199, %v111, 0
    %v474 = vsel %vm199, %v112, 0
    %v477 = vsel %vm199, %v113, 0
    %v480 = vsel %vm199, %v114, 0
    %v483 = vsel %vm199, %v115, 0
    %v486 = vsel %vm199, %v116, 0
    %v489 = vsel %vm199, %v117, 0
    %v492 = vsel %vm199, %v118, 0
    %v495 = vsel %vm199, %v119, 0
    %v498 = vsel %vm199, %v120, 0
    %v501 = vsel %vm199, %v121, 0
    %v504 = vsel %vm199, %v122, 0
    %v507 = vsel %vm199, %v123, 0
    %v510 = vsel %vm199, %v124, 0
    %v513 = vsel %vm199, %v125, 0
    %v516 = vsel %vm199, %v126, 0
    %v519 = vsel %vm199, %v127, 0
    %v522 = vsel %vm199, %v128, 0
    %v525 = vsel %vm199, %v129, 0
    %v528 = vsel %vm199, %v130, 0
    %v531 = vsel %vm199, %v131, 0
    %v534 = vsel %vm199, %v132, 0
    %v537 = vsel %vm199, %v133, 0
    %v540 = vsel %vm199, %v134, 0
    %v543 = vsel %vm199, %v135, 0
    %v546 = vsel %vm199, %v136, 0
    %v549 = vsel %vm199, %v137, 0
    %v552 = vsel %vm199, %v138, 0
    %v555 = vsel %vm199, %v139, 0
    %v558 = vsel %vm199, %v140, 0
    %v561 = vsel %vm199, %v141, 0
    %v564 = vsel %vm199, %v142, 0
    %v567 = vsel %vm199, %v143, 0
    %v570 = vsel %vm199, %v144, 0
    %v573 = vsel %vm199, %v145, 0
    %v576 = vsel %vm199, %v146, 0
    %v579 = vsel %vm199, %v147, 0
    %v582 = vsel %vm199, %v148, 0
    %v585 = vsel %vm199, %v149, 0
    %v588 = vsel %vm199, %v150, 0
    %v591 = vsel %vm199, %v151, 0
    %v594 = vsel %vm199, %v152, 0
    %v597 = vsel %vm199, %v153, 0
    %v600 = vsel %vm199, %v154, 0
    %v603 = vsel %vm199, %v155, 0
    %v606 = vsel %vm199, %v156, 0
    %v609 = vsel %vm199, %v157, 0
    %v612 = vsel %vm199, %v158, 0
    %v615 = vsel %vm199, %v159, 0
    %v618 = vsel %vm199, %v160, 0
    %v621 = vsel %vm199, %v161, 0
    %v624 = vsel %vm199, %v162, 0
    %v627 = vsel %vm199, %v163, 0
    %v630 = vsel %vm199, %v164, 0
    %v633 = vsel %vm199, %v165, 0
    %v636 = vsel %vm199, %v166, 0
    %v639 = vsel %vm199, %v167, 0
    %v642 = vsel %vm199, %v168, 0
    %v645 = vsel %vm199, %v169, 0
    %v648 = vsel %vm199, %v170, 0
    %v651 = vsel %vm199, %v171, 0
    %v654 = vsel %vm199, %v172, 0
    %v657 = vsel %vm199, %v173, 0
    %v660 = vsel %vm199, %v174, 0
    %v663 = vsel %vm199, %v175, 0
    %v666 = vsel %vm199, %v176, 0
    %v669 = vsel %vm199, %v177, 0
    %v672 = vsel %vm199, %v178, 0
    %v675 = vsel %vm199, %v179, 0
    %v678 = vsel %vm199, %v180, 0
    %v681 = vsel %vm199, %v181, 0
    %v684 = vsel %vm199, %v182, 0
    %v687 = vsel %vm199, %v183, 0
    %v690 = vsel %vm199, %v184, 0
    %v693 = vsel %vm199, %v185, 0
    %v696 = vsel %vm199, %v186, 0
    %v699 = vsel %vm199, %v187, 0
    %v702 = vsel %vm199, %v188, 0
    %v705 = vsel %vm199, %v189, 0
    %v708 = vsel %vm199, %v190, 0
    %v711 = vsel %vm199, %v191, 0
    %v714 = vsel %vm199, %v192, 0
    %v717 = vsel %vm199, %v193, 0
    %v720 = vsel %vm199, %v194, 0
    %v723 = vsel %vm199, %v195, 0
    %v726 = vsel %vm199, %v196, 0
    %vm728 = vcmask 1040384
    %v730 = vsel %vm728, %v198, 0
    %732 = vmatprep.subr.mxu0 0.0
    %733 = vmatpush1.msra.mxu0 0.0
    %734 = vmatprep.subr.mxu0 0.0
    %735 = vmatpush1.msra.mxu0 0.0
    %736 = vmatprep.subr.mxu0 0.0
    %737 = vmatpush1.msra.mxu0 0.0
    %738 = vmatprep.subr.mxu0 0.0
    %739 = vmatpush1.msra.mxu0 0.0
    %740 = vmatprep.subr.mxu0 0.0
    %741 = vmatpush1.msra.mxu0 0.0
    %742 = vmatprep.subr.mxu0 0.0
    %743 = vmatpush1.msra.mxu0 0.0
    %744 = vmatprep.subr.mxu0 0.0
    %745 = vmatpush1.msra.mxu0 0.0
    %746 = vmatprep.subr.mxu0 0.0
    %747 = vmatpush1.msra.mxu0 0.0
    %748 = vmatprep.subr.mxu0 0.0
    %749 = vmatpush1.msra.mxu0 0.0
    %750 = vmatprep.subr.mxu0 0.0
    %751 = vmatpush1.msra.mxu0 0.0
    %752 = vmatprep.subr.mxu0 0.0
    %753 = vmatpush1.msra.mxu0 0.0
    %754 = vmatprep.subr.mxu0 0.0
    %755 = vmatpush1.msra.mxu0 0.0
    %756 = vmatprep.subr.mxu0 0.0
    %757 = vmatpush1.msra.mxu0 0.0
    %758 = vmatprep.subr.mxu0 0.0
    %759 = vmatpush1.msra.mxu0 0.0
    %760 = vmatprep.subr.mxu0 0.0
    %761 = vmatpush1.msra.mxu0 %v730
    %762 = vmatprep.subr.mxu0 0.0
    %763 = vmatpush1.msra.mxu0 %v197
    %764 = vmatprep.subr.mxu0 0.0
    %765 = vmatpush2.msra.mxu0 0.0
    %766 = vmatprep.subr.mxu0 0.0
    %767 = vmatpush2.msra.mxu0 0.0
    %768 = vmatprep.subr.mxu0 0.0
    %769 = vmatpush2.msra.mxu0 0.0
    %770 = vmatprep.subr.mxu0 0.0
    %771 = vmatpush2.msra.mxu0 0.0
    %772 = vmatprep.subr.mxu0 0.0
    %773 = vmatpush2.msra.mxu0 0.0
    %774 = vmatprep.subr.mxu0 0.0
    %775 = vmatpush2.msra.mxu0 0.0
    %776 = vmatprep.subr.mxu0 0.0
    %777 = vmatpush2.msra.mxu0 0.0
    %778 = vmatprep.subr.mxu0 0.0
    %779 = vmatpush2.msra.mxu0 0.0
    %780 = vmatprep.subr.mxu0 0.0
    %781 = vmatpush2.msra.mxu0 0.0
    %782 = vmatprep.subr.mxu0 0.0
    %783 = vmatpush2.msra.mxu0 0.0
    %784 = vmatprep.subr.mxu0 0.0
    %785 = vmatpush2.msra.mxu0 0.0
    %786 = vmatprep.subr.mxu0 0.0
    %787 = vmatpush2.msra.mxu0 0.0
    %788 = vmatprep.subr.mxu0 0.0
    %789 = vmatpush2.msra.mxu0 0.0
    %790 = vmatprep.subr.mxu0 0.0
    %791 = vmatpush2.msra.mxu0 0.0
    %792 = vmatprep.subr.mxu0 0.0
    %793 = vmatpush2.msra.mxu0 0.0
    %794 = vmatprep.subr.mxu0 0.0
    %795 = vmatpush2.msra.mxu0 0.0
    %796 = vmatprep.mubr.f32.mxu0 0.0
    %797 = vmatmul.mubr.f32.gmra.mxu0 %v201
    %v798 = vpop.f32.mrf.mxu0
    %v799 = vadd.f32 0.0, %v798
    %v800 = vpop.f32.mrf.mxu0
    %801 = vmatprep.mubr.f32.mxu0 0.0
    %802 = vmatmul.mubr.f32.gmra.mxu0 %v204
    %v803 = vpop.f32.mrf.mxu0
    %v804 = vadd.f32 0.0, %v803
    %v805 = vpop.f32.mrf.mxu0
    %806 = vmatprep.mubr.f32.mxu0 0.0
    %807 = vmatmul.mubr.f32.gmra.mxu0 %v207
    %v808 = vpop.f32.mrf.mxu0
    %v809 = vadd.f32 0.0, %v808
    %v810 = vpop.f32.mrf.mxu0
    %811 = vmatprep.mubr.f32.mxu0 0.0
    %812 = vmatmul.mubr.f32.gmra.mxu0 %v210
    %v813 = vpop.f32.mrf.mxu0
    %v814 = vadd.f32 0.0, %v813
    %v815 = vpop.f32.mrf.mxu0
    %816 = vmatprep.mubr.f32.mxu0 0.0
    %817 = vmatmul.mubr.f32.gmra.mxu0 %v213
    %v818 = vpop.f32.mrf.mxu0
    %v819 = vadd.f32 0.0, %v818
    %v820 = vpop.f32.mrf.mxu0
    %821 = vmatprep.mubr.f32.mxu0 0.0
    %822 = vmatmul.mubr.f32.gmra.mxu0 %v216
    %v823 = vpop.f32.mrf.mxu0
    %v824 = vadd.f32 0.0, %v823
    %v825 = vpop.f32.mrf.mxu0
    %826 = vmatprep.mubr.f32.mxu0 0.0
    %827 = vmatmul.mubr.f32.gmra.mxu0 %v219
    %v828 = vpop.f32.mrf.mxu0
    %v829 = vadd.f32 0.0, %v828
    %v830 = vpop.f32.mrf.mxu0
    %831 = vmatprep.mubr.f32.mxu0 0.0
    %832 = vmatmul.mubr.f32.gmra.mxu0 %v222
    %v833 = vpop.f32.mrf.mxu0
    %v834 = vadd.f32 0.0, %v833
    %v835 = vpop.f32.mrf.mxu0
    %836 = vmatprep.mubr.f32.mxu0 0.0
    %837 = vmatmul.mubr.f32.gmra.mxu0 %v225
    %v838 = vpop.f32.mrf.mxu0
    %v839 = vadd.f32 0.0, %v838
    %v840 = vpop.f32.mrf.mxu0
    %841 = vmatprep.mubr.f32.mxu0 0.0
    %842 = vmatmul.mubr.f32.gmra.mxu0 %v228
    %v843 = vpop.f32.mrf.mxu0
    %v844 = vadd.f32 0.0, %v843
    %v845 = vpop.f32.mrf.mxu0
    %846 = vmatprep.mubr.f32.mxu0 0.0
    %847 = vmatmul.mubr.f32.gmra.mxu0 %v231
    %v848 = vpop.f32.mrf.mxu0
    %v849 = vadd.f32 0.0, %v848
    %v850 = vpop.f32.mrf.mxu0
    %851 = vmatprep.mubr.f32.mxu0 0.0
    %852 = vmatmul.mubr.f32.gmra.mxu0 %v234
    %v853 = vpop.f32.mrf.mxu0
    %v854 = vadd.f32 0.0, %v853
    %v855 = vpop.f32.mrf.mxu0
    %856 = vmatprep.mubr.f32.mxu0 0.0
    %857 = vmatmul.mubr.f32.gmra.mxu0 %v237
    %v858 = vpop.f32.mrf.mxu0
    %v859 = vadd.f32 0.0, %v858
    %v860 = vpop.f32.mrf.mxu0
    %861 = vmatprep.mubr.f32.mxu0 0.0
    %862 = vmatmul.mubr.f32.gmra.mxu0 %v240
    %v863 = vpop.f32.mrf.mxu0
    %v864 = vadd.f32 0.0, %v863
    %v865 = vpop.f32.mrf.mxu0
    %866 = vmatprep.mubr.f32.mxu0 0.0
    %867 = vmatmul.mubr.f32.gmra.mxu0 %v243
    %v868 = vpop.f32.mrf.mxu0
    %v869 = vadd.f32 0.0, %v868
    %v870 = vpop.f32.mrf.mxu0
    %871 = vmatprep.mubr.f32.mxu0 0.0
    %872 = vmatmul.mubr.f32.gmra.mxu0 %v246
    %v873 = vpop.f32.mrf.mxu0
    %v874 = vadd.f32 0.0, %v873
    %v875 = vpop.f32.mrf.mxu0
    %876 = vmatprep.mubr.f32.mxu0 0.0
    %877 = vmatmul.mubr.f32.gmra.mxu0 %v249
    %v878 = vpop.f32.mrf.mxu0
    %v879 = vadd.f32 0.0, %v878
    %v880 = vpop.f32.mrf.mxu0
    %881 = vmatprep.mubr.f32.mxu0 0.0
    %882 = vmatmul.mubr.f32.gmra.mxu0 %v252
    %v883 = vpop.f32.mrf.mxu0
    %v884 = vadd.f32 0.0, %v883
    %v885 = vpop.f32.mrf.mxu0
    %886 = vmatprep.mubr.f32.mxu0 0.0
    %887 = vmatmul.mubr.f32.gmra.mxu0 %v255
    %v888 = vpop.f32.mrf.mxu0
    %v889 = vadd.f32 0.0, %v888
    %v890 = vpop.f32.mrf.mxu0
    %891 = vmatprep.mubr.f32.mxu0 0.0
    %892 = vmatmul.mubr.f32.gmra.mxu0 %v258
    %v893 = vpop.f32.mrf.mxu0
    %v894 = vadd.f32 0.0, %v893
    %v895 = vpop.f32.mrf.mxu0
    %896 = vmatprep.mubr.f32.mxu0 0.0
    %897 = vmatmul.mubr.f32.gmra.mxu0 %v261
    %v898 = vpop.f32.mrf.mxu0
    %v899 = vadd.f32 0.0, %v898
    %v900 = vpop.f32.mrf.mxu0
    %901 = vmatprep.mubr.f32.mxu0 0.0
    %902 = vmatmul.mubr.f32.gmra.mxu0 %v264
    %v903 = vpop.f32.mrf.mxu0
    %v904 = vadd.f32 0.0, %v903
    %v905 = vpop.f32.mrf.mxu0
    %906 = vmatprep.mubr.f32.mxu0 0.0
    %907 = vmatmul.mubr.f32.gmra.mxu0 %v267
    %v908 = vpop.f32.mrf.mxu0
    %v909 = vadd.f32 0.0, %v908
    %v910 = vpop.f32.mrf.mxu0
    %911 = vmatprep.mubr.f32.mxu0 0.0
    %912 = vmatmul.mubr.f32.gmra.mxu0 %v270
    %v913 = vpop.f32.mrf.mxu0
    %v914 = vadd.f32 0.0, %v913
    %v915 = vpop.f32.mrf.mxu0
    %916 = vmatprep.mubr.f32.mxu0 0.0
    %917 = vmatmul.mubr.f32.gmra.mxu0 %v273
    %v918 = vpop.f32.mrf.mxu0
    %v919 = vadd.f32 0.0, %v918
    %v920 = vpop.f32.mrf.mxu0
    %921 = vmatprep.mubr.f32.mxu0 0.0
    %922 = vmatmul.mubr.f32.gmra.mxu0 %v276
    %v923 = vpop.f32.mrf.mxu0
    %v924 = vadd.f32 0.0, %v923
    %v925 = vpop.f32.mrf.mxu0
    %926 = vmatprep.mubr.f32.mxu0 0.0
    %927 = vmatmul.mubr.f32.gmra.mxu0 %v279
    %v928 = vpop.f32.mrf.mxu0
    %v929 = vadd.f32 0.0, %v928
    %v930 = vpop.f32.mrf.mxu0
    %931 = vmatprep.mubr.f32.mxu0 0.0
    %932 = vmatmul.mubr.f32.gmra.mxu0 %v282
    %v933 = vpop.f32.mrf.mxu0
    %v934 = vadd.f32 0.0, %v933
    %v935 = vpop.f32.mrf.mxu0
    %936 = vmatprep.mubr.f32.mxu0 0.0
    %937 = vmatmul.mubr.f32.gmra.mxu0 %v285
    %v938 = vpop.f32.mrf.mxu0
    %v939 = vadd.f32 0.0, %v938
    %v940 = vpop.f32.mrf.mxu0
    %941 = vmatprep.mubr.f32.mxu0 0.0
    %942 = vmatmul.mubr.f32.gmra.mxu0 %v288
    %v943 = vpop.f32.mrf.mxu0
    %v944 = vadd.f32 0.0, %v943
    %v945 = vpop.f32.mrf.mxu0
    %946 = vmatprep.mubr.f32.mxu0 0.0
    %947 = vmatmul.mubr.f32.gmra.mxu0 %v291
    %v948 = vpop.f32.mrf.mxu0
    %v949 = vadd.f32 0.0, %v948
    %v950 = vpop.f32.mrf.mxu0
    %951 = vmatprep.mubr.f32.mxu0 0.0
    %952 = vmatmul.mubr.f32.gmra.mxu0 %v294
    %v953 = vpop.f32.mrf.mxu0
    %v954 = vadd.f32 0.0, %v953
    %v955 = vpop.f32.mrf.mxu0
    %956 = vmatprep.mubr.f32.mxu0 0.0
    %957 = vmatmul.mubr.f32.gmra.mxu0 %v297
    %v958 = vpop.f32.mrf.mxu0
    %v959 = vadd.f32 0.0, %v958
    %v960 = vpop.f32.mrf.mxu0
    %961 = vmatprep.mubr.f32.mxu0 0.0
    %962 = vmatmul.mubr.f32.gmra.mxu0 %v300
    %v963 = vpop.f32.mrf.mxu0
    %v964 = vadd.f32 0.0, %v963
    %v965 = vpop.f32.mrf.mxu0
    %966 = vmatprep.mubr.f32.mxu0 0.0
    %967 = vmatmul.mubr.f32.gmra.mxu0 %v303
    %v968 = vpop.f32.mrf.mxu0
    %v969 = vadd.f32 0.0, %v968
    %v970 = vpop.f32.mrf.mxu0
    %971 = vmatprep.mubr.f32.mxu0 0.0
    %972 = vmatmul.mubr.f32.gmra.mxu0 %v306
    %v973 = vpop.f32.mrf.mxu0
    %v974 = vadd.f32 0.0, %v973
    %v975 = vpop.f32.mrf.mxu0
    %976 = vmatprep.mubr.f32.mxu0 0.0
    %977 = vmatmul.mubr.f32.gmra.mxu0 %v309
    %v978 = vpop.f32.mrf.mxu0
    %v979 = vadd.f32 0.0, %v978
    %v980 = vpop.f32.mrf.mxu0
    %981 = vmatprep.mubr.f32.mxu0 0.0
    %982 = vmatmul.mubr.f32.gmra.mxu0 %v312
    %v983 = vpop.f32.mrf.mxu0
    %v984 = vadd.f32 0.0, %v983
    %v985 = vpop.f32.mrf.mxu0
    %986 = vmatprep.mubr.f32.mxu0 0.0
    %987 = vmatmul.mubr.f32.gmra.mxu0 %v315
    %v988 = vpop.f32.mrf.mxu0
    %v989 = vadd.f32 0.0, %v988
    %v990 = vpop.f32.mrf.mxu0
    %991 = vmatprep.mubr.f32.mxu0 0.0
    %992 = vmatmul.mubr.f32.gmra.mxu0 %v318
    %v993 = vpop.f32.mrf.mxu0
    %v994 = vadd.f32 0.0, %v993
    %v995 = vpop.f32.mrf.mxu0
    %996 = vmatprep.mubr.f32.mxu0 0.0
    %997 = vmatmul.mubr.f32.gmra.mxu0 %v321
    %v998 = vpop.f32.mrf.mxu0
    %v999 = vadd.f32 0.0, %v998
    %v1000 = vpop.f32.mrf.mxu0
    %1001 = vmatprep.mubr.f32.mxu0 0.0
    %1002 = vmatmul.mubr.f32.gmra.mxu0 %v324
    %v1003 = vpop.f32.mrf.mxu0
    %v1004 = vadd.f32 0.0, %v1003
    %v1005 = vpop.f32.mrf.mxu0
    %1006 = vmatprep.mubr.f32.mxu0 0.0
    %1007 = vmatmul.mubr.f32.gmra.mxu0 %v327
    %v1008 = vpop.f32.mrf.mxu0
    %v1009 = vadd.f32 0.0, %v1008
    %v1010 = vpop.f32.mrf.mxu0
    %1011 = vmatprep.mubr.f32.mxu0 0.0
    %1012 = vmatmul.mubr.f32.gmra.mxu0 %v330
    %v1013 = vpop.f32.mrf.mxu0
    %v1014 = vadd.f32 0.0, %v1013
    %v1015 = vpop.f32.mrf.mxu0
    %1016 = vmatprep.mubr.f32.mxu0 0.0
    %1017 = vmatmul.mubr.f32.gmra.mxu0 %v333
    %v1018 = vpop.f32.mrf.mxu0
    %v1019 = vadd.f32 0.0, %v1018
    %v1020 = vpop.f32.mrf.mxu0
    %1021 = vmatprep.mubr.f32.mxu0 0.0
    %1022 = vmatmul.mubr.f32.gmra.mxu0 %v336
    %v1023 = vpop.f32.mrf.mxu0
    %v1024 = vadd.f32 0.0, %v1023
    %v1025 = vpop.f32.mrf.mxu0
    %1026 = vmatprep.mubr.f32.mxu0 0.0
    %1027 = vmatmul.mubr.f32.gmra.mxu0 %v339
    %v1028 = vpop.f32.mrf.mxu0
    %v1029 = vadd.f32 0.0, %v1028
    %v1030 = vpop.f32.mrf.mxu0
    %1031 = vmatprep.mubr.f32.mxu0 0.0
    %1032 = vmatmul.mubr.f32.gmra.mxu0 %v342
    %v1033 = vpop.f32.mrf.mxu0
    %v1034 = vadd.f32 0.0, %v1033
    %v1035 = vpop.f32.mrf.mxu0
    %1036 = vmatprep.mubr.f32.mxu0 0.0
    %1037 = vmatmul.mubr.f32.gmra.mxu0 %v345
    %v1038 = vpop.f32.mrf.mxu0
    %v1039 = vadd.f32 0.0, %v1038
    %v1040 = vpop.f32.mrf.mxu0
    %1041 = vmatprep.mubr.f32.mxu0 0.0
    %1042 = vmatmul.mubr.f32.gmra.mxu0 %v348
    %v1043 = vpop.f32.mrf.mxu0
    %v1044 = vadd.f32 0.0, %v1043
    %v1045 = vpop.f32.mrf.mxu0
    %1046 = vmatprep.mubr.f32.mxu0 0.0
    %1047 = vmatmul.mubr.f32.gmra.mxu0 %v351
    %v1048 = vpop.f32.mrf.mxu0
    %v1049 = vadd.f32 0.0, %v1048
    %v1050 = vpop.f32.mrf.mxu0
    %1051 = vmatprep.mubr.f32.mxu0 0.0
    %1052 = vmatmul.mubr.f32.gmra.mxu0 %v354
    %v1053 = vpop.f32.mrf.mxu0
    %v1054 = vadd.f32 0.0, %v1053
    %v1055 = vpop.f32.mrf.mxu0
    %1056 = vmatprep.mubr.f32.mxu0 0.0
    %1057 = vmatmul.mubr.f32.gmra.mxu0 %v357
    %v1058 = vpop.f32.mrf.mxu0
    %v1059 = vadd.f32 0.0, %v1058
    %v1060 = vpop.f32.mrf.mxu0
    %1061 = vmatprep.mubr.f32.mxu0 0.0
    %1062 = vmatmul.mubr.f32.gmra.mxu0 %v360
    %v1063 = vpop.f32.mrf.mxu0
    %v1064 = vadd.f32 0.0, %v1063
    %v1065 = vpop.f32.mrf.mxu0
    %1066 = vmatprep.mubr.f32.mxu0 0.0
    %1067 = vmatmul.mubr.f32.gmra.mxu0 %v363
    %v1068 = vpop.f32.mrf.mxu0
    %v1069 = vadd.f32 0.0, %v1068
    %v1070 = vpop.f32.mrf.mxu0
    %1071 = vmatprep.mubr.f32.mxu0 0.0
    %1072 = vmatmul.mubr.f32.gmra.mxu0 %v366
    %v1073 = vpop.f32.mrf.mxu0
    %v1074 = vadd.f32 0.0, %v1073
    %v1075 = vpop.f32.mrf.mxu0
    %1076 = vmatprep.mubr.f32.mxu0 0.0
    %1077 = vmatmul.mubr.f32.gmra.mxu0 %v369
    %v1078 = vpop.f32.mrf.mxu0
    %v1079 = vadd.f32 0.0, %v1078
    %v1080 = vpop.f32.mrf.mxu0
    %1081 = vmatprep.mubr.f32.mxu0 0.0
    %1082 = vmatmul.mubr.f32.gmra.mxu0 %v372
    %v1083 = vpop.f32.mrf.mxu0
    %v1084 = vadd.f32 0.0, %v1083
    %v1085 = vpop.f32.mrf.mxu0
    %1086 = vmatprep.mubr.f32.mxu0 0.0
    %1087 = vmatmul.mubr.f32.gmra.mxu0 %v375
    %v1088 = vpop.f32.mrf.mxu0
    %v1089 = vadd.f32 0.0, %v1088
    %v1090 = vpop.f32.mrf.mxu0
    %1091 = vmatprep.mubr.f32.mxu0 0.0
    %1092 = vmatmul.mubr.f32.gmra.mxu0 %v378
    %v1093 = vpop.f32.mrf.mxu0
    %v1094 = vadd.f32 0.0, %v1093
    %v1095 = vpop.f32.mrf.mxu0
    %1096 = vmatprep.mubr.f32.mxu0 0.0
    %1097 = vmatmul.mubr.f32.gmra.mxu0 %v381
    %v1098 = vpop.f32.mrf.mxu0
    %v1099 = vadd.f32 0.0, %v1098
    %v1100 = vpop.f32.mrf.mxu0
    %1101 = vmatprep.mubr.f32.mxu0 0.0
    %1102 = vmatmul.mubr.f32.gmra.mxu0 %v384
    %v1103 = vpop.f32.mrf.mxu0
    %v1104 = vadd.f32 0.0, %v1103
    %v1105 = vpop.f32.mrf.mxu0
    %1106 = vmatprep.mubr.f32.mxu0 0.0
    %1107 = vmatmul.mubr.f32.gmra.mxu0 %v387
    %v1108 = vpop.f32.mrf.mxu0
    %v1109 = vadd.f32 0.0, %v1108
    %v1110 = vpop.f32.mrf.mxu0
    %1111 = vmatprep.mubr.f32.mxu0 0.0
    %1112 = vmatmul.mubr.f32.gmra.mxu0 %v390
    %v1113 = vpop.f32.mrf.mxu0
    %v1114 = vadd.f32 0.0, %v1113
    %v1115 = vpop.f32.mrf.mxu0
    %1116 = vmatprep.mubr.f32.mxu0 0.0
    %1117 = vmatmul.mubr.f32.gmra.mxu0 %v393
    %v1118 = vpop.f32.mrf.mxu0
    %v1119 = vadd.f32 0.0, %v1118
    %v1120 = vpop.f32.mrf.mxu0
    %1121 = vmatprep.mubr.f32.mxu0 0.0
    %1122 = vmatmul.mubr.f32.gmra.mxu0 %v396
    %v1123 = vpop.f32.mrf.mxu0
    %v1124 = vadd.f32 0.0, %v1123
    %v1125 = vpop.f32.mrf.mxu0
    %1126 = vmatprep.mubr.f32.mxu0 0.0
    %1127 = vmatmul.mubr.f32.gmra.mxu0 %v399
    %v1128 = vpop.f32.mrf.mxu0
    %v1129 = vadd.f32 0.0, %v1128
    %v1130 = vpop.f32.mrf.mxu0
    %1131 = vmatprep.mubr.f32.mxu0 0.0
    %1132 = vmatmul.mubr.f32.gmra.mxu0 %v402
    %v1133 = vpop.f32.mrf.mxu0
    %v1134 = vadd.f32 0.0, %v1133
    %v1135 = vpop.f32.mrf.mxu0
    %1136 = vmatprep.mubr.f32.mxu0 0.0
    %1137 = vmatmul.mubr.f32.gmra.mxu0 %v405
    %v1138 = vpop.f32.mrf.mxu0
    %v1139 = vadd.f32 0.0, %v1138
    %v1140 = vpop.f32.mrf.mxu0
    %1141 = vmatprep.mubr.f32.mxu0 0.0
    %1142 = vmatmul.mubr.f32.gmra.mxu0 %v408
    %v1143 = vpop.f32.mrf.mxu0
    %v1144 = vadd.f32 0.0, %v1143
    %v1145 = vpop.f32.mrf.mxu0
    %1146 = vmatprep.mubr.f32.mxu0 0.0
    %1147 = vmatmul.mubr.f32.gmra.mxu0 %v411
    %v1148 = vpop.f32.mrf.mxu0
    %v1149 = vadd.f32 0.0, %v1148
    %v1150 = vpop.f32.mrf.mxu0
    %1151 = vmatprep.mubr.f32.mxu0 0.0
    %1152 = vmatmul.mubr.f32.gmra.mxu0 %v414
    %v1153 = vpop.f32.mrf.mxu0
    %v1154 = vadd.f32 0.0, %v1153
    %v1155 = vpop.f32.mrf.mxu0
    %1156 = vmatprep.mubr.f32.mxu0 0.0
    %1157 = vmatmul.mubr.f32.gmra.mxu0 %v417
    %v1158 = vpop.f32.mrf.mxu0
    %v1159 = vadd.f32 0.0, %v1158
    %v1160 = vpop.f32.mrf.mxu0
    %1161 = vmatprep.mubr.f32.mxu0 0.0
    %1162 = vmatmul.mubr.f32.gmra.mxu0 %v420
    %v1163 = vpop.f32.mrf.mxu0
    %v1164 = vadd.f32 0.0, %v1163
    %v1165 = vpop.f32.mrf.mxu0
    %1166 = vmatprep.mubr.f32.mxu0 0.0
    %1167 = vmatmul.mubr.f32.gmra.mxu0 %v423
    %v1168 = vpop.f32.mrf.mxu0
    %v1169 = vadd.f32 0.0, %v1168
    %v1170 = vpop.f32.mrf.mxu0
    %1171 = vmatprep.mubr.f32.mxu0 0.0
    %1172 = vmatmul.mubr.f32.gmra.mxu0 %v426
    %v1173 = vpop.f32.mrf.mxu0
    %v1174 = vadd.f32 0.0, %v1173
    %v1175 = vpop.f32.mrf.mxu0
    %1176 = vmatprep.mubr.f32.mxu0 0.0
    %1177 = vmatmul.mubr.f32.gmra.mxu0 %v429
    %v1178 = vpop.f32.mrf.mxu0
    %v1179 = vadd.f32 0.0, %v1178
    %v1180 = vpop.f32.mrf.mxu0
    %1181 = vmatprep.mubr.f32.mxu0 0.0
    %1182 = vmatmul.mubr.f32.gmra.mxu0 %v432
    %v1183 = vpop.f32.mrf.mxu0
    %v1184 = vadd.f32 0.0, %v1183
    %v1185 = vpop.f32.mrf.mxu0
    %1186 = vmatprep.mubr.f32.mxu0 0.0
    %1187 = vmatmul.mubr.f32.gmra.mxu0 %v435
    %v1188 = vpop.f32.mrf.mxu0
    %v1189 = vadd.f32 0.0, %v1188
    %v1190 = vpop.f32.mrf.mxu0
    %1191 = vmatprep.mubr.f32.mxu0 0.0
    %1192 = vmatmul.mubr.f32.gmra.mxu0 %v438
    %v1193 = vpop.f32.mrf.mxu0
    %v1194 = vadd.f32 0.0, %v1193
    %v1195 = vpop.f32.mrf.mxu0
    %1196 = vmatprep.mubr.f32.mxu0 0.0
    %1197 = vmatmul.mubr.f32.gmra.mxu0 %v441
    %v1198 = vpop.f32.mrf.mxu0
    %v1199 = vadd.f32 0.0, %v1198
    %v1200 = vpop.f32.mrf.mxu0
    %1201 = vmatprep.mubr.f32.mxu0 0.0
    %1202 = vmatmul.mubr.f32.gmra.mxu0 %v444
    %v1203 = vpop.f32.mrf.mxu0
    %v1204 = vadd.f32 0.0, %v1203
    %v1205 = vpop.f32.mrf.mxu0
    %1206 = vmatprep.mubr.f32.mxu0 0.0
    %1207 = vmatmul.mubr.f32.gmra.mxu0 %v447
    %v1208 = vpop.f32.mrf.mxu0
    %v1209 = vadd.f32 0.0, %v1208
    %v1210 = vpop.f32.mrf.mxu0
    %1211 = vmatprep.mubr.f32.mxu0 0.0
    %1212 = vmatmul.mubr.f32.gmra.mxu0 %v450
    %v1213 = vpop.f32.mrf.mxu0
    %v1214 = vadd.f32 0.0, %v1213
    %v1215 = vpop.f32.mrf.mxu0
    %1216 = vmatprep.mubr.f32.mxu0 0.0
    %1217 = vmatmul.mubr.f32.gmra.mxu0 %v453
    %v1218 = vpop.f32.mrf.mxu0
    %v1219 = vadd.f32 0.0, %v1218
    %v1220 = vpop.f32.mrf.mxu0
    %1221 = vmatprep.mubr.f32.mxu0 0.0
    %1222 = vmatmul.mubr.f32.gmra.mxu0 %v456
    %v1223 = vpop.f32.mrf.mxu0
    %v1224 = vadd.f32 0.0, %v1223
    %v1225 = vpop.f32.mrf.mxu0
    %1226 = vmatprep.mubr.f32.mxu0 0.0
    %1227 = vmatmul.mubr.f32.gmra.mxu0 %v459
    %v1228 = vpop.f32.mrf.mxu0
    %v1229 = vadd.f32 0.0, %v1228
    %v1230 = vpop.f32.mrf.mxu0
    %1231 = vmatprep.mubr.f32.mxu0 0.0
    %1232 = vmatmul.mubr.f32.gmra.mxu0 %v462
    %v1233 = vpop.f32.mrf.mxu0
    %v1234 = vadd.f32 0.0, %v1233
    %v1235 = vpop.f32.mrf.mxu0
    %1236 = vmatprep.mubr.f32.mxu0 0.0
    %1237 = vmatmul.mubr.f32.gmra.mxu0 %v465
    %v1238 = vpop.f32.mrf.mxu0
    %v1239 = vadd.f32 0.0, %v1238
    %v1240 = vpop.f32.mrf.mxu0
    %1241 = vmatprep.mubr.f32.mxu0 0.0
    %1242 = vmatmul.mubr.f32.gmra.mxu0 %v468
    %v1243 = vpop.f32.mrf.mxu0
    %v1244 = vadd.f32 0.0, %v1243
    %v1245 = vpop.f32.mrf.mxu0
    %1246 = vmatprep.mubr.f32.mxu0 0.0
    %1247 = vmatmul.mubr.f32.gmra.mxu0 %v471
    %v1248 = vpop.f32.mrf.mxu0
    %v1249 = vadd.f32 0.0, %v1248
    %v1250 = vpop.f32.mrf.mxu0
    %1251 = vmatprep.mubr.f32.mxu0 0.0
    %1252 = vmatmul.mubr.f32.gmra.mxu0 %v474
    %v1253 = vpop.f32.mrf.mxu0
    %v1254 = vadd.f32 0.0, %v1253
    %v1255 = vpop.f32.mrf.mxu0
    %1256 = vmatprep.mubr.f32.mxu0 0.0
    %1257 = vmatmul.mubr.f32.gmra.mxu0 %v477
    %v1258 = vpop.f32.mrf.mxu0
    %v1259 = vadd.f32 0.0, %v1258
    %v1260 = vpop.f32.mrf.mxu0
    %1261 = vmatprep.mubr.f32.mxu0 0.0
    %1262 = vmatmul.mubr.f32.gmra.mxu0 %v480
    %v1263 = vpop.f32.mrf.mxu0
    %v1264 = vadd.f32 0.0, %v1263
    %v1265 = vpop.f32.mrf.mxu0
    %1266 = vmatprep.mubr.f32.mxu0 0.0
    %1267 = vmatmul.mubr.f32.gmra.mxu0 %v483
    %v1268 = vpop.f32.mrf.mxu0
    %v1269 = vadd.f32 0.0, %v1268
    %v1270 = vpop.f32.mrf.mxu0
    %1271 = vmatprep.mubr.f32.mxu0 0.0
    %1272 = vmatmul.mubr.f32.gmra.mxu0 %v486
    %v1273 = vpop.f32.mrf.mxu0
    %v1274 = vadd.f32 0.0, %v1273
    %v1275 = vpop.f32.mrf.mxu0
    %1276 = vmatprep.mubr.f32.mxu0 0.0
    %1277 = vmatmul.mubr.f32.gmra.mxu0 %v489
    %v1278 = vpop.f32.mrf.mxu0
    %v1279 = vadd.f32 0.0, %v1278
    %v1280 = vpop.f32.mrf.mxu0
    %1281 = vmatprep.mubr.f32.mxu0 0.0
    %1282 = vmatmul.mubr.f32.gmra.mxu0 %v492
    %v1283 = vpop.f32.mrf.mxu0
    %v1284 = vadd.f32 0.0, %v1283
    %v1285 = vpop.f32.mrf.mxu0
    %1286 = vmatprep.mubr.f32.mxu0 0.0
    %1287 = vmatmul.mubr.f32.gmra.mxu0 %v495
    %v1288 = vpop.f32.mrf.mxu0
    %v1289 = vadd.f32 0.0, %v1288
    %v1290 = vpop.f32.mrf.mxu0
    %1291 = vmatprep.mubr.f32.mxu0 0.0
    %1292 = vmatmul.mubr.f32.gmra.mxu0 %v498
    %v1293 = vpop.f32.mrf.mxu0
    %v1294 = vadd.f32 0.0, %v1293
    %v1295 = vpop.f32.mrf.mxu0
    %1296 = vmatprep.mubr.f32.mxu0 0.0
    %1297 = vmatmul.mubr.f32.gmra.mxu0 %v501
    %v1298 = vpop.f32.mrf.mxu0
    %v1299 = vadd.f32 0.0, %v1298
    %v1300 = vpop.f32.mrf.mxu0
    %1301 = vmatprep.mubr.f32.mxu0 0.0
    %1302 = vmatmul.mubr.f32.gmra.mxu0 %v504
    %v1303 = vpop.f32.mrf.mxu0
    %v1304 = vadd.f32 0.0, %v1303
    %v1305 = vpop.f32.mrf.mxu0
    %1306 = vmatprep.mubr.f32.mxu0 0.0
    %1307 = vmatmul.mubr.f32.gmra.mxu0 %v507
    %v1308 = vpop.f32.mrf.mxu0
    %v1309 = vadd.f32 0.0, %v1308
    %v1310 = vpop.f32.mrf.mxu0
    %1311 = vmatprep.mubr.f32.mxu0 0.0
    %1312 = vmatmul.mubr.f32.gmra.mxu0 %v510
    %v1313 = vpop.f32.mrf.mxu0
    %v1314 = vadd.f32 0.0, %v1313
    %v1315 = vpop.f32.mrf.mxu0
    %1316 = vmatprep.mubr.f32.mxu0 0.0
    %1317 = vmatmul.mubr.f32.gmra.mxu0 %v513
    %v1318 = vpop.f32.mrf.mxu0
    %v1319 = vadd.f32 0.0, %v1318
    %v1320 = vpop.f32.mrf.mxu0
    %1321 = vmatprep.mubr.f32.mxu0 0.0
    %1322 = vmatmul.mubr.f32.gmra.mxu0 %v516
    %v1323 = vpop.f32.mrf.mxu0
    %v1324 = vadd.f32 0.0, %v1323
    %v1325 = vpop.f32.mrf.mxu0
    %1326 = vmatprep.mubr.f32.mxu0 0.0
    %1327 = vmatmul.mubr.f32.gmra.mxu0 %v519
    %v1328 = vpop.f32.mrf.mxu0
    %v1329 = vadd.f32 0.0, %v1328
    %v1330 = vpop.f32.mrf.mxu0
    %1331 = vmatprep.mubr.f32.mxu0 0.0
    %1332 = vmatmul.mubr.f32.gmra.mxu0 %v522
    %v1333 = vpop.f32.mrf.mxu0
    %v1334 = vadd.f32 0.0, %v1333
    %v1335 = vpop.f32.mrf.mxu0
    %1336 = vmatprep.mubr.f32.mxu0 0.0
    %1337 = vmatmul.mubr.f32.gmra.mxu0 %v525
    %v1338 = vpop.f32.mrf.mxu0
    %v1339 = vadd.f32 0.0, %v1338
    %v1340 = vpop.f32.mrf.mxu0
    %1341 = vmatprep.mubr.f32.mxu0 0.0
    %1342 = vmatmul.mubr.f32.gmra.mxu0 %v528
    %v1343 = vpop.f32.mrf.mxu0
    %v1344 = vadd.f32 0.0, %v1343
    %v1345 = vpop.f32.mrf.mxu0
    %1346 = vmatprep.mubr.f32.mxu0 0.0
    %1347 = vmatmul.mubr.f32.gmra.mxu0 %v531
    %v1348 = vpop.f32.mrf.mxu0
    %v1349 = vadd.f32 0.0, %v1348
    %v1350 = vpop.f32.mrf.mxu0
    %1351 = vmatprep.mubr.f32.mxu0 0.0
    %1352 = vmatmul.mubr.f32.gmra.mxu0 %v534
    %v1353 = vpop.f32.mrf.mxu0
    %v1354 = vadd.f32 0.0, %v1353
    %v1355 = vpop.f32.mrf.mxu0
    %1356 = vmatprep.mubr.f32.mxu0 0.0
    %1357 = vmatmul.mubr.f32.gmra.mxu0 %v537
    %v1358 = vpop.f32.mrf.mxu0
    %v1359 = vadd.f32 0.0, %v1358
    %v1360 = vpop.f32.mrf.mxu0
    %1361 = vmatprep.mubr.f32.mxu0 0.0
    %1362 = vmatmul.mubr.f32.gmra.mxu0 %v540
    %v1363 = vpop.f32.mrf.mxu0
    %v1364 = vadd.f32 0.0, %v1363
    %v1365 = vpop.f32.mrf.mxu0
    %1366 = vmatprep.mubr.f32.mxu0 0.0
    %1367 = vmatmul.mubr.f32.gmra.mxu0 %v543
    %v1368 = vpop.f32.mrf.mxu0
    %v1369 = vadd.f32 0.0, %v1368
    %v1370 = vpop.f32.mrf.mxu0
    %1371 = vmatprep.mubr.f32.mxu0 0.0
    %1372 = vmatmul.mubr.f32.gmra.mxu0 %v546
    %v1373 = vpop.f32.mrf.mxu0
    %v1374 = vadd.f32 0.0, %v1373
    %v1375 = vpop.f32.mrf.mxu0
    %1376 = vmatprep.mubr.f32.mxu0 0.0
    %1377 = vmatmul.mubr.f32.gmra.mxu0 %v549
    %v1378 = vpop.f32.mrf.mxu0
    %v1379 = vadd.f32 0.0, %v1378
    %v1380 = vpop.f32.mrf.mxu0
    %1381 = vmatprep.mubr.f32.mxu0 0.0
    %1382 = vmatmul.mubr.f32.gmra.mxu0 %v552
    %v1383 = vpop.f32.mrf.mxu0
    %v1384 = vadd.f32 0.0, %v1383
    %v1385 = vpop.f32.mrf.mxu0
    %1386 = vmatprep.mubr.f32.mxu0 0.0
    %1387 = vmatmul.mubr.f32.gmra.mxu0 %v555
    %v1388 = vpop.f32.mrf.mxu0
    %v1389 = vadd.f32 0.0, %v1388
    %v1390 = vpop.f32.mrf.mxu0
    %1391 = vmatprep.mubr.f32.mxu0 0.0
    %1392 = vmatmul.mubr.f32.gmra.mxu0 %v558
    %v1393 = vpop.f32.mrf.mxu0
    %v1394 = vadd.f32 0.0, %v1393
    %v1395 = vpop.f32.mrf.mxu0
    %1396 = vmatprep.mubr.f32.mxu0 0.0
    %1397 = vmatmul.mubr.f32.gmra.mxu0 %v561
    %v1398 = vpop.f32.mrf.mxu0
    %v1399 = vadd.f32 0.0, %v1398
    %v1400 = vpop.f32.mrf.mxu0
    %1401 = vmatprep.mubr.f32.mxu0 0.0
    %1402 = vmatmul.mubr.f32.gmra.mxu0 %v564
    %v1403 = vpop.f32.mrf.mxu0
    %v1404 = vadd.f32 0.0, %v1403
    %v1405 = vpop.f32.mrf.mxu0
    %1406 = vmatprep.mubr.f32.mxu0 0.0
    %1407 = vmatmul.mubr.f32.gmra.mxu0 %v567
    %v1408 = vpop.f32.mrf.mxu0
    %v1409 = vadd.f32 0.0, %v1408
    %v1410 = vpop.f32.mrf.mxu0
    %1411 = vmatprep.mubr.f32.mxu0 0.0
    %1412 = vmatmul.mubr.f32.gmra.mxu0 %v570
    %v1413 = vpop.f32.mrf.mxu0
    %v1414 = vadd.f32 0.0, %v1413
    %v1415 = vpop.f32.mrf.mxu0
    %1416 = vmatprep.mubr.f32.mxu0 0.0
    %1417 = vmatmul.mubr.f32.gmra.mxu0 %v573
    %v1418 = vpop.f32.mrf.mxu0
    %v1419 = vadd.f32 0.0, %v1418
    %v1420 = vpop.f32.mrf.mxu0
    %1421 = vmatprep.mubr.f32.mxu0 0.0
    %1422 = vmatmul.mubr.f32.gmra.mxu0 %v576
    %v1423 = vpop.f32.mrf.mxu0
    %v1424 = vadd.f32 0.0, %v1423
    %v1425 = vpop.f32.mrf.mxu0
    %1426 = vmatprep.mubr.f32.mxu0 0.0
    %1427 = vmatmul.mubr.f32.gmra.mxu0 %v579
    %v1428 = vpop.f32.mrf.mxu0
    %v1429 = vadd.f32 0.0, %v1428
    %v1430 = vpop.f32.mrf.mxu0
    %1431 = vmatprep.mubr.f32.mxu0 0.0
    %1432 = vmatmul.mubr.f32.gmra.mxu0 %v582
    %v1433 = vpop.f32.mrf.mxu0
    %v1434 = vadd.f32 0.0, %v1433
    %v1435 = vpop.f32.mrf.mxu0
    %1436 = vmatprep.mubr.f32.mxu0 0.0
    %1437 = vmatmul.mubr.f32.gmra.mxu0 %v585
    %v1438 = vpop.f32.mrf.mxu0
    %v1439 = vadd.f32 0.0, %v1438
    %v1440 = vpop.f32.mrf.mxu0
    %1441 = vmatprep.mubr.f32.mxu0 0.0
    %1442 = vmatmul.mubr.f32.gmra.mxu0 %v588
    %v1443 = vpop.f32.mrf.mxu0
    %v1444 = vadd.f32 0.0, %v1443
    %v1445 = vpop.f32.mrf.mxu0
    %1446 = vmatprep.mubr.f32.mxu0 0.0
    %1447 = vmatmul.mubr.f32.gmra.mxu0 %v591
    %v1448 = vpop.f32.mrf.mxu0
    %v1449 = vadd.f32 0.0, %v1448
    %v1450 = vpop.f32.mrf.mxu0
    %1451 = vmatprep.mubr.f32.mxu0 0.0
    %1452 = vmatmul.mubr.f32.gmra.mxu0 %v594
    %v1453 = vpop.f32.mrf.mxu0
    %v1454 = vadd.f32 0.0, %v1453
    %v1455 = vpop.f32.mrf.mxu0
    %1456 = vmatprep.mubr.f32.mxu0 0.0
    %1457 = vmatmul.mubr.f32.gmra.mxu0 %v597
    %v1458 = vpop.f32.mrf.mxu0
    %v1459 = vadd.f32 0.0, %v1458
    %v1460 = vpop.f32.mrf.mxu0
    %1461 = vmatprep.mubr.f32.mxu0 0.0
    %1462 = vmatmul.mubr.f32.gmra.mxu0 %v600
    %v1463 = vpop.f32.mrf.mxu0
    %v1464 = vadd.f32 0.0, %v1463
    %v1465 = vpop.f32.mrf.mxu0
    %1466 = vmatprep.mubr.f32.mxu0 0.0
    %1467 = vmatmul.mubr.f32.gmra.mxu0 %v603
    %v1468 = vpop.f32.mrf.mxu0
    %v1469 = vadd.f32 0.0, %v1468
    %v1470 = vpop.f32.mrf.mxu0
    %1471 = vmatprep.mubr.f32.mxu0 0.0
    %1472 = vmatmul.mubr.f32.gmra.mxu0 %v606
    %v1473 = vpop.f32.mrf.mxu0
    %v1474 = vadd.f32 0.0, %v1473
    %v1475 = vpop.f32.mrf.mxu0
    %1476 = vmatprep.mubr.f32.mxu0 0.0
    %1477 = vmatmul.mubr.f32.gmra.mxu0 %v609
    %v1478 = vpop.f32.mrf.mxu0
    %v1479 = vadd.f32 0.0, %v1478
    %v1480 = vpop.f32.mrf.mxu0
    %1481 = vmatprep.mubr.f32.mxu0 0.0
    %1482 = vmatmul.mubr.f32.gmra.mxu0 %v612
    %v1483 = vpop.f32.mrf.mxu0
    %v1484 = vadd.f32 0.0, %v1483
    %v1485 = vpop.f32.mrf.mxu0
    %1486 = vmatprep.mubr.f32.mxu0 0.0
    %1487 = vmatmul.mubr.f32.gmra.mxu0 %v615
    %v1488 = vpop.f32.mrf.mxu0
    %v1489 = vadd.f32 0.0, %v1488
    %v1490 = vpop.f32.mrf.mxu0
    %1491 = vmatprep.mubr.f32.mxu0 0.0
    %1492 = vmatmul.mubr.f32.gmra.mxu0 %v618
    %v1493 = vpop.f32.mrf.mxu0
    %v1494 = vadd.f32 0.0, %v1493
    %v1495 = vpop.f32.mrf.mxu0
    %1496 = vmatprep.mubr.f32.mxu0 0.0
    %1497 = vmatmul.mubr.f32.gmra.mxu0 %v621
    %v1498 = vpop.f32.mrf.mxu0
    %v1499 = vadd.f32 0.0, %v1498
    %v1500 = vpop.f32.mrf.mxu0
    %1501 = vmatprep.mubr.f32.mxu0 0.0
    %1502 = vmatmul.mubr.f32.gmra.mxu0 %v624
    %v1503 = vpop.f32.mrf.mxu0
    %v1504 = vadd.f32 0.0, %v1503
    %v1505 = vpop.f32.mrf.mxu0
    %1506 = vmatprep.mubr.f32.mxu0 0.0
    %1507 = vmatmul.mubr.f32.gmra.mxu0 %v627
    %v1508 = vpop.f32.mrf.mxu0
    %v1509 = vadd.f32 0.0, %v1508
    %v1510 = vpop.f32.mrf.mxu0
    %1511 = vmatprep.mubr.f32.mxu0 0.0
    %1512 = vmatmul.mubr.f32.gmra.mxu0 %v630
    %v1513 = vpop.f32.mrf.mxu0
    %v1514 = vadd.f32 0.0, %v1513
    %v1515 = vpop.f32.mrf.mxu0
    %1516 = vmatprep.mubr.f32.mxu0 0.0
    %1517 = vmatmul.mubr.f32.gmra.mxu0 %v633
    %v1518 = vpop.f32.mrf.mxu0
    %v1519 = vadd.f32 0.0, %v1518
    %v1520 = vpop.f32.mrf.mxu0
    %1521 = vmatprep.mubr.f32.mxu0 0.0
    %1522 = vmatmul.mubr.f32.gmra.mxu0 %v636
    %v1523 = vpop.f32.mrf.mxu0
    %v1524 = vadd.f32 0.0, %v1523
    %v1525 = vpop.f32.mrf.mxu0
    %1526 = vmatprep.mubr.f32.mxu0 0.0
    %1527 = vmatmul.mubr.f32.gmra.mxu0 %v639
    %v1528 = vpop.f32.mrf.mxu0
    %v1529 = vadd.f32 0.0, %v1528
    %v1530 = vpop.f32.mrf.mxu0
    %1531 = vmatprep.mubr.f32.mxu0 0.0
    %1532 = vmatmul.mubr.f32.gmra.mxu0 %v642
    %v1533 = vpop.f32.mrf.mxu0
    %v1534 = vadd.f32 0.0, %v1533
    %v1535 = vpop.f32.mrf.mxu0
    %1536 = vmatprep.mubr.f32.mxu0 0.0
    %1537 = vmatmul.mubr.f32.gmra.mxu0 %v645
    %v1538 = vpop.f32.mrf.mxu0
    %v1539 = vadd.f32 0.0, %v1538
    %v1540 = vpop.f32.mrf.mxu0
    %1541 = vmatprep.mubr.f32.mxu0 0.0
    %1542 = vmatmul.mubr.f32.gmra.mxu0 %v648
    %v1543 = vpop.f32.mrf.mxu0
    %v1544 = vadd.f32 0.0, %v1543
    %v1545 = vpop.f32.mrf.mxu0
    %1546 = vmatprep.mubr.f32.mxu0 0.0
    %1547 = vmatmul.mubr.f32.gmra.mxu0 %v651
    %v1548 = vpop.f32.mrf.mxu0
    %v1549 = vadd.f32 0.0, %v1548
    %v1550 = vpop.f32.mrf.mxu0
    %1551 = vmatprep.mubr.f32.mxu0 0.0
    %1552 = vmatmul.mubr.f32.gmra.mxu0 %v654
    %v1553 = vpop.f32.mrf.mxu0
    %v1554 = vadd.f32 0.0, %v1553
    %v1555 = vpop.f32.mrf.mxu0
    %1556 = vmatprep.mubr.f32.mxu0 0.0
    %1557 = vmatmul.mubr.f32.gmra.mxu0 %v657
    %v1558 = vpop.f32.mrf.mxu0
    %v1559 = vadd.f32 0.0, %v1558
    %v1560 = vpop.f32.mrf.mxu0
    %1561 = vmatprep.mubr.f32.mxu0 0.0
    %1562 = vmatmul.mubr.f32.gmra.mxu0 %v660
    %v1563 = vpop.f32.mrf.mxu0
    %v1564 = vadd.f32 0.0, %v1563
    %v1565 = vpop.f32.mrf.mxu0
    %1566 = vmatprep.mubr.f32.mxu0 0.0
    %1567 = vmatmul.mubr.f32.gmra.mxu0 %v663
    %v1568 = vpop.f32.mrf.mxu0
    %v1569 = vadd.f32 0.0, %v1568
    %v1570 = vpop.f32.mrf.mxu0
    %1571 = vmatprep.mubr.f32.mxu0 0.0
    %1572 = vmatmul.mubr.f32.gmra.mxu0 %v666
    %v1573 = vpop.f32.mrf.mxu0
    %v1574 = vadd.f32 0.0, %v1573
    %v1575 = vpop.f32.mrf.mxu0
    %1576 = vmatprep.mubr.f32.mxu0 0.0
    %1577 = vmatmul.mubr.f32.gmra.mxu0 %v669
    %v1578 = vpop.f32.mrf.mxu0
    %v1579 = vadd.f32 0.0, %v1578
    %v1580 = vpop.f32.mrf.mxu0
    %1581 = vmatprep.mubr.f32.mxu0 0.0
    %1582 = vmatmul.mubr.f32.gmra.mxu0 %v672
    %v1583 = vpop.f32.mrf.mxu0
    %v1584 = vadd.f32 0.0, %v1583
    %v1585 = vpop.f32.mrf.mxu0
    %1586 = vmatprep.mubr.f32.mxu0 0.0
    %1587 = vmatmul.mubr.f32.gmra.mxu0 %v675
    %v1588 = vpop.f32.mrf.mxu0
    %v1589 = vadd.f32 0.0, %v1588
    %v1590 = vpop.f32.mrf.mxu0
    %1591 = vmatprep.mubr.f32.mxu0 0.0
    %1592 = vmatmul.mubr.f32.gmra.mxu0 %v678
    %v1593 = vpop.f32.mrf.mxu0
    %v1594 = vadd.f32 0.0, %v1593
    %v1595 = vpop.f32.mrf.mxu0
    %1596 = vmatprep.mubr.f32.mxu0 0.0
    %1597 = vmatmul.mubr.f32.gmra.mxu0 %v681
    %v1598 = vpop.f32.mrf.mxu0
    %v1599 = vadd.f32 0.0, %v1598
    %v1600 = vpop.f32.mrf.mxu0
    %1601 = vmatprep.mubr.f32.mxu0 0.0
    %1602 = vmatmul.mubr.f32.gmra.mxu0 %v684
    %v1603 = vpop.f32.mrf.mxu0
    %v1604 = vadd.f32 0.0, %v1603
    %v1605 = vpop.f32.mrf.mxu0
    %1606 = vmatprep.mubr.f32.mxu0 0.0
    %1607 = vmatmul.mubr.f32.gmra.mxu0 %v687
    %v1608 = vpop.f32.mrf.mxu0
    %v1609 = vadd.f32 0.0, %v1608
    %v1610 = vpop.f32.mrf.mxu0
    %1611 = vmatprep.mubr.f32.mxu0 0.0
    %1612 = vmatmul.mubr.f32.gmra.mxu0 %v690
    %v1613 = vpop.f32.mrf.mxu0
    %v1614 = vadd.f32 0.0, %v1613
    %v1615 = vpop.f32.mrf.mxu0
    %1616 = vmatprep.mubr.f32.mxu0 0.0
    %1617 = vmatmul.mubr.f32.gmra.mxu0 %v693
    %v1618 = vpop.f32.mrf.mxu0
    %v1619 = vadd.f32 0.0, %v1618
    %v1620 = vpop.f32.mrf.mxu0
    %1621 = vmatprep.mubr.f32.mxu0 0.0
    %1622 = vmatmul.mubr.f32.gmra.mxu0 %v696
    %v1623 = vpop.f32.mrf.mxu0
    %v1624 = vadd.f32 0.0, %v1623
    %v1625 = vpop.f32.mrf.mxu0
    %1626 = vmatprep.mubr.f32.mxu0 0.0
    %1627 = vmatmul.mubr.f32.gmra.mxu0 %v699
    %v1628 = vpop.f32.mrf.mxu0
    %v1629 = vadd.f32 0.0, %v1628
    %v1630 = vpop.f32.mrf.mxu0
    %1631 = vmatprep.mubr.f32.mxu0 0.0
    %1632 = vmatmul.mubr.f32.gmra.mxu0 %v702
    %v1633 = vpop.f32.mrf.mxu0
    %v1634 = vadd.f32 0.0, %v1633
    %v1635 = vpop.f32.mrf.mxu0
    %1636 = vmatprep.mubr.f32.mxu0 0.0
    %1637 = vmatmul.mubr.f32.gmra.mxu0 %v705
    %v1638 = vpop.f32.mrf.mxu0
    %v1639 = vadd.f32 0.0, %v1638
    %v1640 = vpop.f32.mrf.mxu0
    %1641 = vmatprep.mubr.f32.mxu0 0.0
    %1642 = vmatmul.mubr.f32.gmra.mxu0 %v708
    %v1643 = vpop.f32.mrf.mxu0
    %v1644 = vadd.f32 0.0, %v1643
    %v1645 = vpop.f32.mrf.mxu0
    %1646 = vmatprep.mubr.f32.mxu0 0.0
    %1647 = vmatmul.mubr.f32.gmra.mxu0 %v711
    %v1648 = vpop.f32.mrf.mxu0
    %v1649 = vadd.f32 0.0, %v1648
    %v1650 = vpop.f32.mrf.mxu0
    %1651 = vmatprep.mubr.f32.mxu0 0.0
    %1652 = vmatmul.mubr.f32.gmra.mxu0 %v714
    %v1653 = vpop.f32.mrf.mxu0
    %v1654 = vadd.f32 0.0, %v1653
    %v1655 = vpop.f32.mrf.mxu0
    %1656 = vmatprep.mubr.f32.mxu0 0.0
    %1657 = vmatmul.mubr.f32.gmra.mxu0 %v717
    %v1658 = vpop.f32.mrf.mxu0
    %v1659 = vadd.f32 0.0, %v1658
    %v1660 = vpop.f32.mrf.mxu0
    %1661 = vmatprep.mubr.f32.mxu0 0.0
    %1662 = vmatmul.mubr.f32.gmra.mxu0 %v720
    %v1663 = vpop.f32.mrf.mxu0
    %v1664 = vadd.f32 0.0, %v1663
    %v1665 = vpop.f32.mrf.mxu0
    %1666 = vmatprep.mubr.f32.mxu0 0.0
    %1667 = vmatmul.mubr.f32.gmra.mxu0 %v723
    %v1668 = vpop.f32.mrf.mxu0
    %v1669 = vadd.f32 0.0, %v1668
    %v1670 = vpop.f32.mrf.mxu0
    %1671 = vmatprep.mubr.f32.mxu0 0.0
    %1672 = vmatmul.mubr.f32.gmra.mxu0 %v726
    %v1673 = vpop.f32.mrf.mxu0
    %v1674 = vadd.f32 0.0, %v1673
    %v1675 = vpop.f32.mrf.mxu0
    %1676 = vdwg.mxu0
    %v1677 = vmax.f32 %v799, %v909
    %v1678 = vmax.f32 %v804, %v914
    %v1679 = vmax.f32 %v809, %v919
    %v1680 = vmax.f32 %v814, %v924
    %v1681 = vmax.f32 %v819, %v929
    %v1682 = vmax.f32 %v824, %v934
    %v1683 = vmax.f32 %v829, %v939
    %v1684 = vmax.f32 %v834, %v944
    %v1685 = vmax.f32 %v839, %v949
    %v1686 = vmax.f32 %v844, %v954
    %v1687 = vmax.f32 %v849, %v959
    %v1688 = vmax.f32 %v854, %v964
    %v1689 = vmax.f32 %v859, %v969
    %v1690 = vmax.f32 %v864, %v974
    %v1691 = vmax.f32 %v869, %v979
    %v1692 = vmax.f32 %v874, %v984
    %v1693 = vmax.f32 %v879, %v989
    %v1694 = vmax.f32 %v884, %v994
    %v1695 = vmax.f32 %v889, %v999
    %v1696 = vmax.f32 %v894, %v1004
    %v1697 = vmax.f32 %v899, %v1009
    %v1698 = vmax.f32 %v904, %v1014
    %v1699 = vmax.f32 %v1239, %v1349
    %v1700 = vmax.f32 %v1244, %v1354
    %v1701 = vmax.f32 %v1249, %v1359
    %v1702 = vmax.f32 %v1254, %v1364
    %v1703 = vmax.f32 %v1259, %v1369
    %v1704 = vmax.f32 %v1264, %v1374
    %v1705 = vmax.f32 %v1269, %v1379
    %v1706 = vmax.f32 %v1274, %v1384
    %v1707 = vmax.f32 %v1279, %v1389
    %v1708 = vmax.f32 %v1284, %v1394
    %v1709 = vmax.f32 %v1289, %v1399
    %v1710 = vmax.f32 %v1294, %v1404
    %v1711 = vmax.f32 %v1299, %v1409
    %v1712 = vmax.f32 %v1304, %v1414
    %v1713 = vmax.f32 %v1309, %v1419
    %v1714 = vmax.f32 %v1314, %v1424
    %v1715 = vmax.f32 %v1319, %v1429
    %v1716 = vmax.f32 %v1324, %v1434
    %v1717 = vmax.f32 %v1329, %v1439
    %v1718 = vmax.f32 %v1334, %v1444
    %v1719 = vmax.f32 %v1339, %v1449
    %v1720 = vmax.f32 %v1344, %v1454
    %v1721 = vmax.f32 %v1019, %v1129
    %v1722 = vmax.f32 %v1024, %v1134
    %v1723 = vmax.f32 %v1029, %v1139
    %v1724 = vmax.f32 %v1034, %v1144
    %v1725 = vmax.f32 %v1039, %v1149
    %v1726 = vmax.f32 %v1044, %v1154
    %v1727 = vmax.f32 %v1049, %v1159
    %v1728 = vmax.f32 %v1054, %v1164
    %v1729 = vmax.f32 %v1059, %v1169
    %v1730 = vmax.f32 %v1064, %v1174
    %v1731 = vmax.f32 %v1069, %v1179
    %v1732 = vmax.f32 %v1074, %v1184
    %v1733 = vmax.f32 %v1079, %v1189
    %v1734 = vmax.f32 %v1084, %v1194
    %v1735 = vmax.f32 %v1089, %v1199
    %v1736 = vmax.f32 %v1094, %v1204
    %v1737 = vmax.f32 %v1099, %v1209
    %v1738 = vmax.f32 %v1104, %v1214
    %v1739 = vmax.f32 %v1109, %v1219
    %v1740 = vmax.f32 %v1114, %v1224
    %v1741 = vmax.f32 %v1119, %v1229
    %v1742 = vmax.f32 %v1124, %v1234
    %v1743 = vmax.f32 %v1459, %v1569
    %v1744 = vmax.f32 %v1464, %v1574
    %v1745 = vmax.f32 %v1469, %v1579
    %v1746 = vmax.f32 %v1474, %v1584
    %v1747 = vmax.f32 %v1479, %v1589
    %v1748 = vmax.f32 %v1484, %v1594
    %v1749 = vmax.f32 %v1489, %v1599
    %v1750 = vmax.f32 %v1494, %v1604
    %v1751 = vmax.f32 %v1499, %v1609
    %v1752 = vmax.f32 %v1504, %v1614
    %v1753 = vmax.f32 %v1509, %v1619
    %v1754 = vmax.f32 %v1514, %v1624
    %v1755 = vmax.f32 %v1519, %v1629
    %v1756 = vmax.f32 %v1524, %v1634
    %v1757 = vmax.f32 %v1529, %v1639
    %v1758 = vmax.f32 %v1534, %v1644
    %v1759 = vmax.f32 %v1539, %v1649
    %v1760 = vmax.f32 %v1544, %v1654
    %v1761 = vmax.f32 %v1549, %v1659
    %v1762 = vmax.f32 %v1554, %v1664
    %v1763 = vmax.f32 %v1559, %v1669
    %v1764 = vmax.f32 %v1564, %v1674
    %v1765 = vmax.f32 %v1677, %v1721
    %v1766 = vmax.f32 %v1678, %v1722
    %v1767 = vmax.f32 %v1679, %v1723
    %v1768 = vmax.f32 %v1680, %v1724
    %v1769 = vmax.f32 %v1681, %v1725
    %v1770 = vmax.f32 %v1682, %v1726
    %v1771 = vmax.f32 %v1683, %v1727
    %v1772 = vmax.f32 %v1684, %v1728
    %v1773 = vmax.f32 %v1685, %v1729
    %v1774 = vmax.f32 %v1686, %v1730
    %v1775 = vmax.f32 %v1687, %v1731
    %v1776 = vmax.f32 %v1688, %v1732
    %v1777 = vmax.f32 %v1689, %v1733
    %v1778 = vmax.f32 %v1690, %v1734
    %v1779 = vmax.f32 %v1691, %v1735
    %v1780 = vmax.f32 %v1692, %v1736
    %v1781 = vmax.f32 %v1693, %v1737
    %v1782 = vmax.f32 %v1694, %v1738
    %v1783 = vmax.f32 %v1695, %v1739
    %v1784 = vmax.f32 %v1696, %v1740
    %v1785 = vmax.f32 %v1697, %v1741
    %v1786 = vmax.f32 %v1698, %v1742
    %v1787 = vmax.f32 %v1699, %v1743
    %v1788 = vmax.f32 %v1700, %v1744
    %v1789 = vmax.f32 %v1701, %v1745
    %v1790 = vmax.f32 %v1702, %v1746
    %v1791 = vmax.f32 %v1703, %v1747
    %v1792 = vmax.f32 %v1704, %v1748
    %v1793 = vmax.f32 %v1705, %v1749
    %v1794 = vmax.f32 %v1706, %v1750
    %v1795 = vmax.f32 %v1707, %v1751
    %v1796 = vmax.f32 %v1708, %v1752
    %v1797 = vmax.f32 %v1709, %v1753
    %v1798 = vmax.f32 %v1710, %v1754
    %v1799 = vmax.f32 %v1711, %v1755
    %v1800 = vmax.f32 %v1712, %v1756
    %v1801 = vmax.f32 %v1713, %v1757
    %v1802 = vmax.f32 %v1714, %v1758
    %v1803 = vmax.f32 %v1715, %v1759
    %v1804 = vmax.f32 %v1716, %v1760
    %v1805 = vmax.f32 %v1717, %v1761
    %v1806 = vmax.f32 %v1718, %v1762
    %v1807 = vmax.f32 %v1719, %v1763
    %v1808 = vmax.f32 %v1720, %v1764
    %v1809 = vld [vmem:[%s2] sm:$0x1]
    %v1811 = vlaneseq
    %v1812 = vshrl.u32 %v1811, 7
    %v1813 = vsub.s32 0, %v1812
    %v1814 = vrot.slane %v1809, %v1813
    %v1816 = vadd.f32 %v1765, %v1814
    %v1817 = vadd.f32 %v1766, %v1814
    %v1818 = vadd.f32 %v1767, %v1814
    %v1819 = vadd.f32 %v1768, %v1814
    %v1820 = vadd.f32 %v1769, %v1814
    %v1821 = vadd.f32 %v1770, %v1814
    %v1822 = vadd.f32 %v1771, %v1814
    %v1823 = vadd.f32 %v1772, %v1814
    %v1824 = vadd.f32 %v1773, %v1814
    %v1825 = vadd.f32 %v1774, %v1814
    %v1826 = vadd.f32 %v1775, %v1814
    %v1827 = vadd.f32 %v1776, %v1814
    %v1828 = vadd.f32 %v1777, %v1814
    %v1829 = vadd.f32 %v1778, %v1814
    %v1830 = vadd.f32 %v1779, %v1814
    %v1831 = vadd.f32 %v1780, %v1814
    %v1832 = vadd.f32 %v1781, %v1814
    %v1833 = vadd.f32 %v1782, %v1814
    %v1834 = vadd.f32 %v1783, %v1814
    %v1835 = vadd.f32 %v1784, %v1814
    %v1836 = vadd.f32 %v1785, %v1814
    %v1837 = vadd.f32 %v1786, %v1814
    %v1838 = vadd.f32 %v1787, %v1814
    %v1839 = vadd.f32 %v1788, %v1814
    %v1840 = vadd.f32 %v1789, %v1814
    %v1841 = vadd.f32 %v1790, %v1814
    %v1842 = vadd.f32 %v1791, %v1814
    %v1843 = vadd.f32 %v1792, %v1814
    %v1844 = vadd.f32 %v1793, %v1814
    %v1845 = vadd.f32 %v1794, %v1814
    %v1846 = vadd.f32 %v1795, %v1814
    %v1847 = vadd.f32 %v1796, %v1814
    %v1848 = vadd.f32 %v1797, %v1814
    %v1849 = vadd.f32 %v1798, %v1814
    %v1850 = vadd.f32 %v1799, %v1814
    %v1851 = vadd.f32 %v1800, %v1814
    %v1852 = vadd.f32 %v1801, %v1814
    %v1853 = vadd.f32 %v1802, %v1814
    %v1854 = vadd.f32 %v1803, %v1814
    %v1855 = vadd.f32 %v1804, %v1814
    %v1856 = vadd.f32 %v1805, %v1814
    %v1857 = vadd.f32 %v1806, %v1814
    %v1858 = vadd.f32 %v1807, %v1814
    %v1859 = vadd.f32 %v1808, %v1814
    %v1860 = vmax.f32 %v1816, 0.0
    %v1861 = vmax.f32 %v1817, 0.0
    %v1862 = vmax.f32 %v1818, 0.0
    %v1863 = vmax.f32 %v1819, 0.0
    %v1864 = vmax.f32 %v1820, 0.0
    %v1865 = vmax.f32 %v1821, 0.0
    %v1866 = vmax.f32 %v1822, 0.0
    %v1867 = vmax.f32 %v1823, 0.0
    %v1868 = vmax.f32 %v1824, 0.0
    %v1869 = vmax.f32 %v1825, 0.0
    %v1870 = vmax.f32 %v1826, 0.0
    %v1871 = vmax.f32 %v1827, 0.0
    %v1872 = vmax.f32 %v1828, 0.0
    %v1873 = vmax.f32 %v1829, 0.0
    %v1874 = vmax.f32 %v1830, 0.0
    %v1875 = vmax.f32 %v1831, 0.0
    %v1876 = vmax.f32 %v1832, 0.0
    %v1877 = vmax.f32 %v1833, 0.0
    %v1878 = vmax.f32 %v1834, 0.0
    %v1879 = vmax.f32 %v1835, 0.0
    %v1880 = vmax.f32 %v1836, 0.0
    %v1881 = vmax.f32 %v1837, 0.0
    %v1882 = vmax.f32 %v1838, 0.0
    %v1883 = vmax.f32 %v1839, 0.0
    %v1884 = vmax.f32 %v1840, 0.0
    %v1885 = vmax.f32 %v1841, 0.0
    %v1886 = vmax.f32 %v1842, 0.0
    %v1887 = vmax.f32 %v1843, 0.0
    %v1888 = vmax.f32 %v1844, 0.0
    %v1889 = vmax.f32 %v1845, 0.0
    %v1890 = vmax.f32 %v1846, 0.0
    %v1891 = vmax.f32 %v1847, 0.0
    %v1892 = vmax.f32 %v1848, 0.0
    %v1893 = vmax.f32 %v1849, 0.0
    %v1894 = vmax.f32 %v1850, 0.0
    %v1895 = vmax.f32 %v1851, 0.0
    %v1896 = vmax.f32 %v1852, 0.0
    %v1897 = vmax.f32 %v1853, 0.0
    %v1898 = vmax.f32 %v1854, 0.0
    %v1899 = vmax.f32 %v1855, 0.0
    %v1900 = vmax.f32 %v1856, 0.0
    %v1901 = vmax.f32 %v1857, 0.0
    %v1902 = vmax.f32 %v1858, 0.0
    %v1903 = vmax.f32 %v1859, 0.0
    %v1904 = vld [vmem:[%s4] sm:$0x1]
    %v1906 = vlaneseq
    %v1907 = vshrl.u32 %v1906, 7
    %v1908 = vsub.s32 0, %v1907
    %v1909 = vrot.slane %v1904, %v1908
    %v1911 = vld [vmem:[%s3] sm:$0xff]
    %v1912 = vld [vmem:[%s3 + $0x8] sm:$0xff]
    %v1913 = vld [vmem:[%s3 + $0x10] sm:$0xff]
    %v1914 = vld [vmem:[%s3 + $0x18] sm:$0xff]
    %v1915 = vld [vmem:[%s3 + $0x20] sm:$0xff]
    %v1916 = vld [vmem:[%s3 + $0x28] sm:$0xff]
    %v1917 = vld [vmem:[%s3 + $0x30] sm:$0xff]
    %v1918 = vld [vmem:[%s3 + $0x38] sm:$0xff]
    %v1919 = vld [vmem:[%s3 + $0x40] sm:$0xff]
    %v1920 = vld [vmem:[%s3 + $0x48] sm:$0xff]
    %v1921 = vld [vmem:[%s3 + $0x50] sm:$0xff]
    %v1922 = vld [vmem:[%s3 + $0x58] sm:$0xff]
    %v1923 = vld [vmem:[%s3 + $0x60] sm:$0xff]
    %v1924 = vld [vmem:[%s3 + $0x68] sm:$0xff]
    %v1925 = vld [vmem:[%s3 + $0x70] sm:$0xff]
    %v1926 = vld [vmem:[%s3 + $0x78] sm:$0xff]
    %v1927 = vld [vmem:[%s3 + $0x80] sm:$0xff]
    %v1928 = vld [vmem:[%s3 + $0x88] sm:$0xff]
    %v1929 = vld [vmem:[%s3 + $0x90] sm:$0xff]
    %v1930 = vld [vmem:[%s3 + $0x98] sm:$0xff]
    %v1931 = vld [vmem:[%s3 + $0xa0] sm:$0xff]
    %v1932 = vld [vmem:[%s3 + $0xa8] sm:$0xff]
    %1934 = vset.pattern.permute.xlu0 0
    %1935 = vperm.xlu0 %1934, %v1860
    %v1936 = vpop.permute.xlu0 %1935
    %1939 = vset.pattern.permute.xlu0 0
    %1940 = vperm.xlu0 %1939, %v1861
    %v1941 = vpop.permute.xlu0 %1940
    %1944 = vset.pattern.permute.xlu0 0
    %1945 = vperm.xlu0 %1944, %v1862
    %v1946 = vpop.permute.xlu0 %1945
    %1949 = vset.pattern.permute.xlu0 0
    %1950 = vperm.xlu0 %1949, %v1863
    %v1951 = vpop.permute.xlu0 %1950
    %1954 = vset.pattern.permute.xlu0 0
    %1955 = vperm.xlu0 %1954, %v1864
    %v1956 = vpop.permute.xlu0 %1955
    %1959 = vset.pattern.permute.xlu0 0
    %1960 = vperm.xlu0 %1959, %v1865
    %v1961 = vpop.permute.xlu0 %1960
    %1964 = vset.pattern.permute.xlu0 0
    %1965 = vperm.xlu0 %1964, %v1866
    %v1966 = vpop.permute.xlu0 %1965
    %1969 = vset.pattern.permute.xlu0 0
    %1970 = vperm.xlu0 %1969, %v1867
    %v1971 = vpop.permute.xlu0 %1970
    %1974 = vset.pattern.permute.xlu0 0
    %1975 = vperm.xlu0 %1974, %v1868
    %v1976 = vpop.permute.xlu0 %1975
    %1979 = vset.pattern.permute.xlu0 0
    %1980 = vperm.xlu0 %1979, %v1869
    %v1981 = vpop.permute.xlu0 %1980
    %1984 = vset.pattern.permute.xlu0 0
    %1985 = vperm.xlu0 %1984, %v1870
    %v1986 = vpop.permute.xlu0 %1985
    %1989 = vset.pattern.permute.xlu0 0
    %1990 = vperm.xlu0 %1989, %v1871
    %v1991 = vpop.permute.xlu0 %1990
    %1994 = vset.pattern.permute.xlu0 0
    %1995 = vperm.xlu0 %1994, %v1872
    %v1996 = vpop.permute.xlu0 %1995
    %1999 = vset.pattern.permute.xlu0 0
    %2000 = vperm.xlu0 %1999, %v1873
    %v2001 = vpop.permute.xlu0 %2000
    %2004 = vset.pattern.permute.xlu0 0
    %2005 = vperm.xlu0 %2004, %v1874
    %v2006 = vpop.permute.xlu0 %2005
    %2009 = vset.pattern.permute.xlu0 0
    %2010 = vperm.xlu0 %2009, %v1875
    %v2011 = vpop.permute.xlu0 %2010
    %2014 = vset.pattern.permute.xlu0 0
    %2015 = vperm.xlu0 %2014, %v1876
    %v2016 = vpop.permute.xlu0 %2015
    %2019 = vset.pattern.permute.xlu0 0
    %2020 = vperm.xlu0 %2019, %v1877
    %v2021 = vpop.permute.xlu0 %2020
    %2024 = vset.pattern.permute.xlu0 0
    %2025 = vperm.xlu0 %2024, %v1878
    %v2026 = vpop.permute.xlu0 %2025
    %2029 = vset.pattern.permute.xlu0 0
    %2030 = vperm.xlu0 %2029, %v1879
    %v2031 = vpop.permute.xlu0 %2030
    %2034 = vset.pattern.permute.xlu0 0
    %2035 = vperm.xlu0 %2034, %v1880
    %v2036 = vpop.permute.xlu0 %2035
    %2039 = vset.pattern.permute.xlu0 0
    %2040 = vperm.xlu0 %2039, %v1881
    %v2041 = vpop.permute.xlu0 %2040
    %2044 = vset.pattern.permute.xlu0 0
    %2045 = vperm.xlu0 %2044, %v1882
    %v2046 = vpop.permute.xlu0 %2045
    %2049 = vset.pattern.permute.xlu0 0
    %2050 = vperm.xlu0 %2049, %v1883
    %v2051 = vpop.permute.xlu0 %2050
    %2054 = vset.pattern.permute.xlu0 0
    %2055 = vperm.xlu0 %2054, %v1884
    %v2056 = vpop.permute.xlu0 %2055
    %2059 = vset.pattern.permute.xlu0 0
    %2060 = vperm.xlu0 %2059, %v1885
    %v2061 = vpop.permute.xlu0 %2060
    %2064 = vset.pattern.permute.xlu0 0
    %2065 = vperm.xlu0 %2064, %v1886
    %v2066 = vpop.permute.xlu0 %2065
    %2069 = vset.pattern.permute.xlu0 0
    %2070 = vperm.xlu0 %2069, %v1887
    %v2071 = vpop.permute.xlu0 %2070
    %2074 = vset.pattern.permute.xlu0 0
    %2075 = vperm.xlu0 %2074, %v1888
    %v2076 = vpop.permute.xlu0 %2075
    %2079 = vset.pattern.permute.xlu0 0
    %2080 = vperm.xlu0 %2079, %v1889
    %v2081 = vpop.permute.xlu0 %2080
    %2084 = vset.pattern.permute.xlu0 0
    %2085 = vperm.xlu0 %2084, %v1890
    %v2086 = vpop.permute.xlu0 %2085
    %2089 = vset.pattern.permute.xlu0 0
    %2090 = vperm.xlu0 %2089, %v1891
    %v2091 = vpop.permute.xlu0 %2090
    %2094 = vset.pattern.permute.xlu0 0
    %2095 = vperm.xlu0 %2094, %v1892
    %v2096 = vpop.permute.xlu0 %2095
    %2099 = vset.pattern.permute.xlu0 0
    %2100 = vperm.xlu0 %2099, %v1893
    %v2101 = vpop.permute.xlu0 %2100
    %2104 = vset.pattern.permute.xlu0 0
    %2105 = vperm.xlu0 %2104, %v1894
    %v2106 = vpop.permute.xlu0 %2105
    %2109 = vset.pattern.permute.xlu0 0
    %2110 = vperm.xlu0 %2109, %v1895
    %v2111 = vpop.permute.xlu0 %2110
    %2114 = vset.pattern.permute.xlu0 0
    %2115 = vperm.xlu0 %2114, %v1896
    %v2116 = vpop.permute.xlu0 %2115
    %2119 = vset.pattern.permute.xlu0 0
    %2120 = vperm.xlu0 %2119, %v1897
    %v2121 = vpop.permute.xlu0 %2120
    %2124 = vset.pattern.permute.xlu0 0
    %2125 = vperm.xlu0 %2124, %v1898
    %v2126 = vpop.permute.xlu0 %2125
    %2129 = vset.pattern.permute.xlu0 0
    %2130 = vperm.xlu0 %2129, %v1899
    %v2131 = vpop.permute.xlu0 %2130
    %2134 = vset.pattern.permute.xlu0 0
    %2135 = vperm.xlu0 %2134, %v1900
    %v2136 = vpop.permute.xlu0 %2135
    %2139 = vset.pattern.permute.xlu0 0
    %2140 = vperm.xlu0 %2139, %v1901
    %v2141 = vpop.permute.xlu0 %2140
    %2144 = vset.pattern.permute.xlu0 0
    %2145 = vperm.xlu0 %2144, %v1902
    %v2146 = vpop.permute.xlu0 %2145
    %2149 = vset.pattern.permute.xlu0 0
    %2150 = vperm.xlu0 %2149, %v1903
    %v2151 = vpop.permute.xlu0 %2150
    %v2153 = vmul.f32 %v1936, %v1911
    %v2154 = vmul.f32 %v1941, %v1912
    %v2155 = vmul.f32 %v1946, %v1913
    %v2156 = vmul.f32 %v1951, %v1914
    %v2157 = vmul.f32 %v1956, %v1915
    %v2158 = vmul.f32 %v1961, %v1916
    %v2159 = vmul.f32 %v1966, %v1917
    %v2160 = vmul.f32 %v1971, %v1918
    %v2161 = vmul.f32 %v1976, %v1919
    %v2162 = vmul.f32 %v1981, %v1920
    %v2163 = vmul.f32 %v1986, %v1921
    %v2164 = vmul.f32 %v1991, %v1922
    %v2165 = vmul.f32 %v1996, %v1923
    %v2166 = vmul.f32 %v2001, %v1924
    %v2167 = vmul.f32 %v2006, %v1925
    %v2168 = vmul.f32 %v2011, %v1926
    %v2169 = vmul.f32 %v2016, %v1927
    %v2170 = vmul.f32 %v2021, %v1928
    %v2171 = vmul.f32 %v2026, %v1929
    %v2172 = vmul.f32 %v2031, %v1930
    %v2173 = vmul.f32 %v2036, %v1931
    %v2174 = vmul.f32 %v2041, %v1932
    %v2175 = vmul.f32 %v2046, %v1911
    %v2176 = vmul.f32 %v2051, %v1912
    %v2177 = vmul.f32 %v2056, %v1913
    %v2178 = vmul.f32 %v2061, %v1914
    %v2179 = vmul.f32 %v2066, %v1915
    %v2180 = vmul.f32 %v2071, %v1916
    %v2181 = vmul.f32 %v2076, %v1917
    %v2182 = vmul.f32 %v2081, %v1918
    %v2183 = vmul.f32 %v2086, %v1919
    %v2184 = vmul.f32 %v2091, %v1920
    %v2185 = vmul.f32 %v2096, %v1921
    %v2186 = vmul.f32 %v2101, %v1922
    %v2187 = vmul.f32 %v2106, %v1923
    %v2188 = vmul.f32 %v2111, %v1924
    %v2189 = vmul.f32 %v2116, %v1925
    %v2190 = vmul.f32 %v2121, %v1926
    %v2191 = vmul.f32 %v2126, %v1927
    %v2192 = vmul.f32 %v2131, %v1928
    %v2193 = vmul.f32 %v2136, %v1929
    %v2194 = vmul.f32 %v2141, %v1930
    %v2195 = vmul.f32 %v2146, %v1931
    %v2196 = vmul.f32 %v2151, %v1932
    %vm2197 = vcmask 80896
    %v2198 = vsel %vm2197, %v2153, 0.0
    %v2199 = vsel %vm2197, %v2154, 0.0
    %v2200 = vadd.f32 %v2198, %v2199
    %v2201 = vsel %vm2197, %v2155, 0.0
    %v2202 = vadd.f32 %v2200, %v2201
    %v2203 = vsel %vm2197, %v2156, 0.0
    %v2204 = vadd.f32 %v2202, %v2203
    %v2205 = vsel %vm2197, %v2157, 0.0
    %v2206 = vadd.f32 %v2204, %v2205
    %v2207 = vsel %vm2197, %v2158, 0.0
    %v2208 = vadd.f32 %v2206, %v2207
    %v2209 = vsel %vm2197, %v2159, 0.0
    %v2210 = vadd.f32 %v2208, %v2209
    %v2211 = vsel %vm2197, %v2160, 0.0
    %v2212 = vadd.f32 %v2210, %v2211
    %v2213 = vsel %vm2197, %v2161, 0.0
    %v2214 = vadd.f32 %v2212, %v2213
    %v2215 = vsel %vm2197, %v2162, 0.0
    %v2216 = vadd.f32 %v2214, %v2215
    %v2217 = vsel %vm2197, %v2163, 0.0
    %v2218 = vadd.f32 %v2216, %v2217
    %v2219 = vsel %vm2197, %v2164, 0.0
    %v2220 = vadd.f32 %v2218, %v2219
    %v2221 = vsel %vm2197, %v2165, 0.0
    %v2222 = vadd.f32 %v2220, %v2221
    %v2223 = vsel %vm2197, %v2166, 0.0
    %v2224 = vadd.f32 %v2222, %v2223
    %v2225 = vsel %vm2197, %v2167, 0.0
    %v2226 = vadd.f32 %v2224, %v2225
    %v2227 = vsel %vm2197, %v2168, 0.0
    %v2228 = vadd.f32 %v2226, %v2227
    %v2229 = vsel %vm2197, %v2169, 0.0
    %v2230 = vadd.f32 %v2228, %v2229
    %v2231 = vsel %vm2197, %v2170, 0.0
    %v2232 = vadd.f32 %v2230, %v2231
    %v2233 = vsel %vm2197, %v2171, 0.0
    %v2234 = vadd.f32 %v2232, %v2233
    %v2235 = vsel %vm2197, %v2172, 0.0
    %v2236 = vadd.f32 %v2234, %v2235
    %v2237 = vsel %vm2197, %v2173, 0.0
    %v2238 = vadd.f32 %v2236, %v2237
    %v2239 = vsel %vm2197, %v2174, 0.0
    %v2240 = vadd.f32 %v2238, %v2239
    %v2241 = vrot.slane %v2240, 4
    %v2242 = vadd.f32 %v2240, %v2241
    %v2243 = vrot.slane %v2242, 2
    %v2244 = vadd.f32 %v2242, %v2243
    %v2245 = vrot.slane %v2244, 1
    %v2246 = vadd.f32 %v2244, %v2245
    %v2247 = vsel %vm2197, %v2175, 0.0
    %v2248 = vsel %vm2197, %v2176, 0.0
    %v2249 = vadd.f32 %v2247, %v2248
    %v2250 = vsel %vm2197, %v2177, 0.0
    %v2251 = vadd.f32 %v2249, %v2250
    %v2252 = vsel %vm2197, %v2178, 0.0
    %v2253 = vadd.f32 %v2251, %v2252
    %v2254 = vsel %vm2197, %v2179, 0.0
    %v2255 = vadd.f32 %v2253, %v2254
    %v2256 = vsel %vm2197, %v2180, 0.0
    %v2257 = vadd.f32 %v2255, %v2256
    %v2258 = vsel %vm2197, %v2181, 0.0
    %v2259 = vadd.f32 %v2257, %v2258
    %v2260 = vsel %vm2197, %v2182, 0.0
    %v2261 = vadd.f32 %v2259, %v2260
    %v2262 = vsel %vm2197, %v2183, 0.0
    %v2263 = vadd.f32 %v2261, %v2262
    %v2264 = vsel %vm2197, %v2184, 0.0
    %v2265 = vadd.f32 %v2263, %v2264
    %v2266 = vsel %vm2197, %v2185, 0.0
    %v2267 = vadd.f32 %v2265, %v2266
    %v2268 = vsel %vm2197, %v2186, 0.0
    %v2269 = vadd.f32 %v2267, %v2268
    %v2270 = vsel %vm2197, %v2187, 0.0
    %v2271 = vadd.f32 %v2269, %v2270
    %v2272 = vsel %vm2197, %v2188, 0.0
    %v2273 = vadd.f32 %v2271, %v2272
    %v2274 = vsel %vm2197, %v2189, 0.0
    %v2275 = vadd.f32 %v2273, %v2274
    %v2276 = vsel %vm2197, %v2190, 0.0
    %v2277 = vadd.f32 %v2275, %v2276
    %v2278 = vsel %vm2197, %v2191, 0.0
    %v2279 = vadd.f32 %v2277, %v2278
    %v2280 = vsel %vm2197, %v2192, 0.0
    %v2281 = vadd.f32 %v2279, %v2280
    %v2282 = vsel %vm2197, %v2193, 0.0
    %v2283 = vadd.f32 %v2281, %v2282
    %v2284 = vsel %vm2197, %v2194, 0.0
    %v2285 = vadd.f32 %v2283, %v2284
    %v2286 = vsel %vm2197, %v2195, 0.0
    %v2287 = vadd.f32 %v2285, %v2286
    %v2288 = vsel %vm2197, %v2196, 0.0
    %v2289 = vadd.f32 %v2287, %v2288
    %v2290 = vrot.slane %v2289, 4
    %v2291 = vadd.f32 %v2289, %v2290
    %v2292 = vrot.slane %v2291, 2
    %v2293 = vadd.f32 %v2291, %v2292
    %v2294 = vrot.slane %v2293, 1
    %v2295 = vadd.f32 %v2293, %v2294
    %vm2298 = vcmask 1041409
    %v2299 = vsel %vm2298, %v2295, %v2246
    %v2301 = vadd.f32 %v1909, %v2299
    %s2302 = scalar_lea.vmem %s3, 176
    %v2303 = vld [vmem:[%s2302] sm:$0xff]
    %v2304 = vld [vmem:[%s2302 + $0x8] sm:$0xff]
    %v2305 = vld [vmem:[%s2302 + $0x10] sm:$0xff]
    %v2306 = vld [vmem:[%s2302 + $0x18] sm:$0xff]
    %v2307 = vld [vmem:[%s2302 + $0x20] sm:$0xff]
    %v2308 = vld [vmem:[%s2302 + $0x28] sm:$0xff]
    %v2309 = vld [vmem:[%s2302 + $0x30] sm:$0xff]
    %v2310 = vld [vmem:[%s2302 + $0x38] sm:$0xff]
    %v2311 = vld [vmem:[%s2302 + $0x40] sm:$0xff]
    %v2312 = vld [vmem:[%s2302 + $0x48] sm:$0xff]
    %v2313 = vld [vmem:[%s2302 + $0x50] sm:$0xff]
    %v2314 = vld [vmem:[%s2302 + $0x58] sm:$0xff]
    %v2315 = vld [vmem:[%s2302 + $0x60] sm:$0xff]
    %v2316 = vld [vmem:[%s2302 + $0x68] sm:$0xff]
    %v2317 = vld [vmem:[%s2302 + $0x70] sm:$0xff]
    %v2318 = vld [vmem:[%s2302 + $0x78] sm:$0xff]
    %v2319 = vld [vmem:[%s2302 + $0x80] sm:$0xff]
    %v2320 = vld [vmem:[%s2302 + $0x88] sm:$0xff]
    %v2321 = vld [vmem:[%s2302 + $0x90] sm:$0xff]
    %v2322 = vld [vmem:[%s2302 + $0x98] sm:$0xff]
    %v2323 = vld [vmem:[%s2302 + $0xa0] sm:$0xff]
    %v2324 = vld [vmem:[%s2302 + $0xa8] sm:$0xff]
    %2325 = vset.pattern.permute.xlu0 1
    %2326 = vperm.xlu0 %2325, %v1860
    %v2327 = vpop.permute.xlu0 %2326
    %2329 = vset.pattern.permute.xlu0 1
    %2330 = vperm.xlu0 %2329, %v1861
    %v2331 = vpop.permute.xlu0 %2330
    %2333 = vset.pattern.permute.xlu0 1
    %2334 = vperm.xlu0 %2333, %v1862
    %v2335 = vpop.permute.xlu0 %2334
    %2337 = vset.pattern.permute.xlu0 1
    %2338 = vperm.xlu0 %2337, %v1863
    %v2339 = vpop.permute.xlu0 %2338
    %2341 = vset.pattern.permute.xlu0 1
    %2342 = vperm.xlu0 %2341, %v1864
    %v2343 = vpop.permute.xlu0 %2342
    %2345 = vset.pattern.permute.xlu0 1
    %2346 = vperm.xlu0 %2345, %v1865
    %v2347 = vpop.permute.xlu0 %2346
    %2349 = vset.pattern.permute.xlu0 1
    %2350 = vperm.xlu0 %2349, %v1866
    %v2351 = vpop.permute.xlu0 %2350
    %2353 = vset.pattern.permute.xlu0 1
    %2354 = vperm.xlu0 %2353, %v1867
    %v2355 = vpop.permute.xlu0 %2354
    %2357 = vset.pattern.permute.xlu0 1
    %2358 = vperm.xlu0 %2357, %v1868
    %v2359 = vpop.permute.xlu0 %2358
    %2361 = vset.pattern.permute.xlu0 1
    %2362 = vperm.xlu0 %2361, %v1869
    %v2363 = vpop.permute.xlu0 %2362
    %2365 = vset.pattern.permute.xlu0 1
    %2366 = vperm.xlu0 %2365, %v1870
    %v2367 = vpop.permute.xlu0 %2366
    %2369 = vset.pattern.permute.xlu0 1
    %2370 = vperm.xlu0 %2369, %v1871
    %v2371 = vpop.permute.xlu0 %2370
    %2373 = vset.pattern.permute.xlu0 1
    %2374 = vperm.xlu0 %2373, %v1872
    %v2375 = vpop.permute.xlu0 %2374
    %2377 = vset.pattern.permute.xlu0 1
    %2378 = vperm.xlu0 %2377, %v1873
    %v2379 = vpop.permute.xlu0 %2378
    %2381 = vset.pattern.permute.xlu0 1
    %2382 = vperm.xlu0 %2381, %v1874
    %v2383 = vpop.permute.xlu0 %2382
    %2385 = vset.pattern.permute.xlu0 1
    %2386 = vperm.xlu0 %2385, %v1875
    %v2387 = vpop.permute.xlu0 %2386
    %2389 = vset.pattern.permute.xlu0 1
    %2390 = vperm.xlu0 %2389, %v1876
    %v2391 = vpop.permute.xlu0 %2390
    %2393 = vset.pattern.permute.xlu0 1
    %2394 = vperm.xlu0 %2393, %v1877
    %v2395 = vpop.permute.xlu0 %2394
    %2397 = vset.pattern.permute.xlu0 1
    %2398 = vperm.xlu0 %2397, %v1878
    %v2399 = vpop.permute.xlu0 %2398
    %2401 = vset.pattern.permute.xlu0 1
    %2402 = vperm.xlu0 %2401, %v1879
    %v2403 = vpop.permute.xlu0 %2402
    %2405 = vset.pattern.permute.xlu0 1
    %2406 = vperm.xlu0 %2405, %v1880
    %v2407 = vpop.permute.xlu0 %2406
    %2409 = vset.pattern.permute.xlu0 1
    %2410 = vperm.xlu0 %2409, %v1881
    %v2411 = vpop.permute.xlu0 %2410
    %2413 = vset.pattern.permute.xlu0 1
    %2414 = vperm.xlu0 %2413, %v1882
    %v2415 = vpop.permute.xlu0 %2414
    %2417 = vset.pattern.permute.xlu0 1
    %2418 = vperm.xlu0 %2417, %v1883
    %v2419 = vpop.permute.xlu0 %2418
    %2421 = vset.pattern.permute.xlu0 1
    %2422 = vperm.xlu0 %2421, %v1884
    %v2423 = vpop.permute.xlu0 %2422
    %2425 = vset.pattern.permute.xlu0 1
    %2426 = vperm.xlu0 %2425, %v1885
    %v2427 = vpop.permute.xlu0 %2426
    %2429 = vset.pattern.permute.xlu0 1
    %2430 = vperm.xlu0 %2429, %v1886
    %v2431 = vpop.permute.xlu0 %2430
    %2433 = vset.pattern.permute.xlu0 1
    %2434 = vperm.xlu0 %2433, %v1887
    %v2435 = vpop.permute.xlu0 %2434
    %2437 = vset.pattern.permute.xlu0 1
    %2438 = vperm.xlu0 %2437, %v1888
    %v2439 = vpop.permute.xlu0 %2438
    %2441 = vset.pattern.permute.xlu0 1
    %2442 = vperm.xlu0 %2441, %v1889
    %v2443 = vpop.permute.xlu0 %2442
    %2445 = vset.pattern.permute.xlu0 1
    %2446 = vperm.xlu0 %2445, %v1890
    %v2447 = vpop.permute.xlu0 %2446
    %2449 = vset.pattern.permute.xlu0 1
    %2450 = vperm.xlu0 %2449, %v1891
    %v2451 = vpop.permute.xlu0 %2450
    %2453 = vset.pattern.permute.xlu0 1
    %2454 = vperm.xlu0 %2453, %v1892
    %v2455 = vpop.permute.xlu0 %2454
    %2457 = vset.pattern.permute.xlu0 1
    %2458 = vperm.xlu0 %2457, %v1893
    %v2459 = vpop.permute.xlu0 %2458
    %2461 = vset.pattern.permute.xlu0 1
    %2462 = vperm.xlu0 %2461, %v1894
    %v2463 = vpop.permute.xlu0 %2462
    %2465 = vset.pattern.permute.xlu0 1
    %2466 = vperm.xlu0 %2465, %v1895
    %v2467 = vpop.permute.xlu0 %2466
    %2469 = vset.pattern.permute.xlu0 1
    %2470 = vperm.xlu0 %2469, %v1896
    %v2471 = vpop.permute.xlu0 %2470
    %2473 = vset.pattern.permute.xlu0 1
    %2474 = vperm.xlu0 %2473, %v1897
    %v2475 = vpop.permute.xlu0 %2474
    %2477 = vset.pattern.permute.xlu0 1
    %2478 = vperm.xlu0 %2477, %v1898
    %v2479 = vpop.permute.xlu0 %2478
    %2481 = vset.pattern.permute.xlu0 1
    %2482 = vperm.xlu0 %2481, %v1899
    %v2483 = vpop.permute.xlu0 %2482
    %2485 = vset.pattern.permute.xlu0 1
    %2486 = vperm.xlu0 %2485, %v1900
    %v2487 = vpop.permute.xlu0 %2486
    %2489 = vset.pattern.permute.xlu0 1
    %2490 = vperm.xlu0 %2489, %v1901
    %v2491 = vpop.permute.xlu0 %2490
    %2493 = vset.pattern.permute.xlu0 1
    %2494 = vperm.xlu0 %2493, %v1902
    %v2495 = vpop.permute.xlu0 %2494
    %2497 = vset.pattern.permute.xlu0 1
    %2498 = vperm.xlu0 %2497, %v1903
    %v2499 = vpop.permute.xlu0 %2498
    %v2501 = vmul.f32 %v2327, %v2303
    %v2502 = vmul.f32 %v2331, %v2304
    %v2503 = vmul.f32 %v2335, %v2305
    %v2504 = vmul.f32 %v2339, %v2306
    %v2505 = vmul.f32 %v2343, %v2307
    %v2506 = vmul.f32 %v2347, %v2308
    %v2507 = vmul.f32 %v2351, %v2309
    %v2508 = vmul.f32 %v2355, %v2310
    %v2509 = vmul.f32 %v2359, %v2311
    %v2510 = vmul.f32 %v2363, %v2312
    %v2511 = vmul.f32 %v2367, %v2313
    %v2512 = vmul.f32 %v2371, %v2314
    %v2513 = vmul.f32 %v2375, %v2315
    %v2514 = vmul.f32 %v2379, %v2316
    %v2515 = vmul.f32 %v2383, %v2317
    %v2516 = vmul.f32 %v2387, %v2318
    %v2517 = vmul.f32 %v2391, %v2319
    %v2518 = vmul.f32 %v2395, %v2320
    %v2519 = vmul.f32 %v2399, %v2321
    %v2520 = vmul.f32 %v2403, %v2322
    %v2521 = vmul.f32 %v2407, %v2323
    %v2522 = vmul.f32 %v2411, %v2324
    %v2523 = vmul.f32 %v2415, %v2303
    %v2524 = vmul.f32 %v2419, %v2304
    %v2525 = vmul.f32 %v2423, %v2305
    %v2526 = vmul.f32 %v2427, %v2306
    %v2527 = vmul.f32 %v2431, %v2307
    %v2528 = vmul.f32 %v2435, %v2308
    %v2529 = vmul.f32 %v2439, %v2309
    %v2530 = vmul.f32 %v2443, %v2310
    %v2531 = vmul.f32 %v2447, %v2311
    %v2532 = vmul.f32 %v2451, %v2312
    %v2533 = vmul.f32 %v2455, %v2313
    %v2534 = vmul.f32 %v2459, %v2314
    %v2535 = vmul.f32 %v2463, %v2315
    %v2536 = vmul.f32 %v2467, %v2316
    %v2537 = vmul.f32 %v2471, %v2317
    %v2538 = vmul.f32 %v2475, %v2318
    %v2539 = vmul.f32 %v2479, %v2319
    %v2540 = vmul.f32 %v2483, %v2320
    %v2541 = vmul.f32 %v2487, %v2321
    %v2542 = vmul.f32 %v2491, %v2322
    %v2543 = vmul.f32 %v2495, %v2323
    %v2544 = vmul.f32 %v2499, %v2324
    %v2545 = vsel %vm2197, %v2501, 0.0
    %v2546 = vsel %vm2197, %v2502, 0.0
    %v2547 = vadd.f32 %v2545, %v2546
    %v2548 = vsel %vm2197, %v2503, 0.0
    %v2549 = vadd.f32 %v2547, %v2548
    %v2550 = vsel %vm2197, %v2504, 0.0
    %v2551 = vadd.f32 %v2549, %v2550
    %v2552 = vsel %vm2197, %v2505, 0.0
    %v2553 = vadd.f32 %v2551, %v2552
    %v2554 = vsel %vm2197, %v2506, 0.0
    %v2555 = vadd.f32 %v2553, %v2554
    %v2556 = vsel %vm2197, %v2507, 0.0
    %v2557 = vadd.f32 %v2555, %v2556
    %v2558 = vsel %vm2197, %v2508, 0.0
    %v2559 = vadd.f32 %v2557, %v2558
    %v2560 = vsel %vm2197, %v2509, 0.0
    %v2561 = vadd.f32 %v2559, %v2560
    %v2562 = vsel %vm2197, %v2510, 0.0
    %v2563 = vadd.f32 %v2561, %v2562
    %v2564 = vsel %vm2197, %v2511, 0.0
    %v2565 = vadd.f32 %v2563, %v2564
    %v2566 = vsel %vm2197, %v2512, 0.0
    %v2567 = vadd.f32 %v2565, %v2566
    %v2568 = vsel %vm2197, %v2513, 0.0
    %v2569 = vadd.f32 %v2567, %v2568
    %v2570 = vsel %vm2197, %v2514, 0.0
    %v2571 = vadd.f32 %v2569, %v2570
    %v2572 = vsel %vm2197, %v2515, 0.0
    %v2573 = vadd.f32 %v2571, %v2572
    %v2574 = vsel %vm2197, %v2516, 0.0
    %v2575 = vadd.f32 %v2573, %v2574
    %v2576 = vsel %vm2197, %v2517, 0.0
    %v2577 = vadd.f32 %v2575, %v2576
    %v2578 = vsel %vm2197, %v2518, 0.0
    %v2579 = vadd.f32 %v2577, %v2578
    %v2580 = vsel %vm2197, %v2519, 0.0
    %v2581 = vadd.f32 %v2579, %v2580
    %v2582 = vsel %vm2197, %v2520, 0.0
    %v2583 = vadd.f32 %v2581, %v2582
    %v2584 = vsel %vm2197, %v2521, 0.0
    %v2585 = vadd.f32 %v2583, %v2584
    %v2586 = vsel %vm2197, %v2522, 0.0
    %v2587 = vadd.f32 %v2585, %v2586
    %v2588 = vrot.slane %v2587, 4
    %v2589 = vadd.f32 %v2587, %v2588
    %v2590 = vrot.slane %v2589, 2
    %v2591 = vadd.f32 %v2589, %v2590
    %v2592 = vrot.slane %v2591, 1
    %v2593 = vadd.f32 %v2591, %v2592
    %v2594 = vsel %vm2197, %v2523, 0.0
    %v2595 = vsel %vm2197, %v2524, 0.0
    %v2596 = vadd.f32 %v2594, %v2595
    %v2597 = vsel %vm2197, %v2525, 0.0
    %v2598 = vadd.f32 %v2596, %v2597
    %v2599 = vsel %vm2197, %v2526, 0.0
    %v2600 = vadd.f32 %v2598, %v2599
    %v2601 = vsel %vm2197, %v2527, 0.0
    %v2602 = vadd.f32 %v2600, %v2601
    %v2603 = vsel %vm2197, %v2528, 0.0
    %v2604 = vadd.f32 %v2602, %v2603
    %v2605 = vsel %vm2197, %v2529, 0.0
    %v2606 = vadd.f32 %v2604, %v2605
    %v2607 = vsel %vm2197, %v2530, 0.0
    %v2608 = vadd.f32 %v2606, %v2607
    %v2609 = vsel %vm2197, %v2531, 0.0
    %v2610 = vadd.f32 %v2608, %v2609
    %v2611 = vsel %vm2197, %v2532, 0.0
    %v2612 = vadd.f32 %v2610, %v2611
    %v2613 = vsel %vm2197, %v2533, 0.0
    %v2614 = vadd.f32 %v2612, %v2613
    %v2615 = vsel %vm2197, %v2534, 0.0
    %v2616 = vadd.f32 %v2614, %v2615
    %v2617 = vsel %vm2197, %v2535, 0.0
    %v2618 = vadd.f32 %v2616, %v2617
    %v2619 = vsel %vm2197, %v2536, 0.0
    %v2620 = vadd.f32 %v2618, %v2619
    %v2621 = vsel %vm2197, %v2537, 0.0
    %v2622 = vadd.f32 %v2620, %v2621
    %v2623 = vsel %vm2197, %v2538, 0.0
    %v2624 = vadd.f32 %v2622, %v2623
    %v2625 = vsel %vm2197, %v2539, 0.0
    %v2626 = vadd.f32 %v2624, %v2625
    %v2627 = vsel %vm2197, %v2540, 0.0
    %v2628 = vadd.f32 %v2626, %v2627
    %v2629 = vsel %vm2197, %v2541, 0.0
    %v2630 = vadd.f32 %v2628, %v2629
    %v2631 = vsel %vm2197, %v2542, 0.0
    %v2632 = vadd.f32 %v2630, %v2631
    %v2633 = vsel %vm2197, %v2543, 0.0
    %v2634 = vadd.f32 %v2632, %v2633
    %v2635 = vsel %vm2197, %v2544, 0.0
    %v2636 = vadd.f32 %v2634, %v2635
    %v2637 = vrot.slane %v2636, 4
    %v2638 = vadd.f32 %v2636, %v2637
    %v2639 = vrot.slane %v2638, 2
    %v2640 = vadd.f32 %v2638, %v2639
    %v2641 = vrot.slane %v2640, 1
    %v2642 = vadd.f32 %v2640, %v2641
    %v2645 = vsel %vm2298, %v2642, %v2593
    %v2647 = vadd.f32 %v2301, %v2645
    %s2648 = scalar_lea.vmem %s3, 352
    %v2649 = vld [vmem:[%s2648] sm:$0xff]
    %v2650 = vld [vmem:[%s2648 + $0x8] sm:$0xff]
    %v2651 = vld [vmem:[%s2648 + $0x10] sm:$0xff]
    %v2652 = vld [vmem:[%s2648 + $0x18] sm:$0xff]
    %v2653 = vld [vmem:[%s2648 + $0x20] sm:$0xff]
    %v2654 = vld [vmem:[%s2648 + $0x28] sm:$0xff]
    %v2655 = vld [vmem:[%s2648 + $0x30] sm:$0xff]
    %v2656 = vld [vmem:[%s2648 + $0x38] sm:$0xff]
    %v2657 = vld [vmem:[%s2648 + $0x40] sm:$0xff]
    %v2658 = vld [vmem:[%s2648 + $0x48] sm:$0xff]
    %v2659 = vld [vmem:[%s2648 + $0x50] sm:$0xff]
    %v2660 = vld [vmem:[%s2648 + $0x58] sm:$0xff]
    %v2661 = vld [vmem:[%s2648 + $0x60] sm:$0xff]
    %v2662 = vld [vmem:[%s2648 + $0x68] sm:$0xff]
    %v2663 = vld [vmem:[%s2648 + $0x70] sm:$0xff]
    %v2664 = vld [vmem:[%s2648 + $0x78] sm:$0xff]
    %v2665 = vld [vmem:[%s2648 + $0x80] sm:$0xff]
    %v2666 = vld [vmem:[%s2648 + $0x88] sm:$0xff]
    %v2667 = vld [vmem:[%s2648 + $0x90] sm:$0xff]
    %v2668 = vld [vmem:[%s2648 + $0x98] sm:$0xff]
    %v2669 = vld [vmem:[%s2648 + $0xa0] sm:$0xff]
    %v2670 = vld [vmem:[%s2648 + $0xa8] sm:$0xff]
    %2671 = vset.pattern.permute.xlu0 2
    %2672 = vperm.xlu0 %2671, %v1860
    %v2673 = vpop.permute.xlu0 %2672
    %2675 = vset.pattern.permute.xlu0 2
    %2676 = vperm.xlu0 %2675, %v1861
    %v2677 = vpop.permute.xlu0 %2676
    %2679 = vset.pattern.permute.xlu0 2
    %2680 = vperm.xlu0 %2679, %v1862
    %v2681 = vpop.permute.xlu0 %2680
    %2683 = vset.pattern.permute.xlu0 2
    %2684 = vperm.xlu0 %2683, %v1863
    %v2685 = vpop.permute.xlu0 %2684
    %2687 = vset.pattern.permute.xlu0 2
    %2688 = vperm.xlu0 %2687, %v1864
    %v2689 = vpop.permute.xlu0 %2688
    %2691 = vset.pattern.permute.xlu0 2
    %2692 = vperm.xlu0 %2691, %v1865
    %v2693 = vpop.permute.xlu0 %2692
    %2695 = vset.pattern.permute.xlu0 2
    %2696 = vperm.xlu0 %2695, %v1866
    %v2697 = vpop.permute.xlu0 %2696
    %2699 = vset.pattern.permute.xlu0 2
    %2700 = vperm.xlu0 %2699, %v1867
    %v2701 = vpop.permute.xlu0 %2700
    %2703 = vset.pattern.permute.xlu0 2
    %2704 = vperm.xlu0 %2703, %v1868
    %v2705 = vpop.permute.xlu0 %2704
    %2707 = vset.pattern.permute.xlu0 2
    %2708 = vperm.xlu0 %2707, %v1869
    %v2709 = vpop.permute.xlu0 %2708
    %2711 = vset.pattern.permute.xlu0 2
    %2712 = vperm.xlu0 %2711, %v1870
    %v2713 = vpop.permute.xlu0 %2712
    %2715 = vset.pattern.permute.xlu0 2
    %2716 = vperm.xlu0 %2715, %v1871
    %v2717 = vpop.permute.xlu0 %2716
    %2719 = vset.pattern.permute.xlu0 2
    %2720 = vperm.xlu0 %2719, %v1872
    %v2721 = vpop.permute.xlu0 %2720
    %2723 = vset.pattern.permute.xlu0 2
    %2724 = vperm.xlu0 %2723, %v1873
    %v2725 = vpop.permute.xlu0 %2724
    %2727 = vset.pattern.permute.xlu0 2
    %2728 = vperm.xlu0 %2727, %v1874
    %v2729 = vpop.permute.xlu0 %2728
    %2731 = vset.pattern.permute.xlu0 2
    %2732 = vperm.xlu0 %2731, %v1875
    %v2733 = vpop.permute.xlu0 %2732
    %2735 = vset.pattern.permute.xlu0 2
    %2736 = vperm.xlu0 %2735, %v1876
    %v2737 = vpop.permute.xlu0 %2736
    %2739 = vset.pattern.permute.xlu0 2
    %2740 = vperm.xlu0 %2739, %v1877
    %v2741 = vpop.permute.xlu0 %2740
    %2743 = vset.pattern.permute.xlu0 2
    %2744 = vperm.xlu0 %2743, %v1878
    %v2745 = vpop.permute.xlu0 %2744
    %2747 = vset.pattern.permute.xlu0 2
    %2748 = vperm.xlu0 %2747, %v1879
    %v2749 = vpop.permute.xlu0 %2748
    %2751 = vset.pattern.permute.xlu0 2
    %2752 = vperm.xlu0 %2751, %v1880
    %v2753 = vpop.permute.xlu0 %2752
    %2755 = vset.pattern.permute.xlu0 2
    %2756 = vperm.xlu0 %2755, %v1881
    %v2757 = vpop.permute.xlu0 %2756
    %2759 = vset.pattern.permute.xlu0 2
    %2760 = vperm.xlu0 %2759, %v1882
    %v2761 = vpop.permute.xlu0 %2760
    %2763 = vset.pattern.permute.xlu0 2
    %2764 = vperm.xlu0 %2763, %v1883
    %v2765 = vpop.permute.xlu0 %2764
    %2767 = vset.pattern.permute.xlu0 2
    %2768 = vperm.xlu0 %2767, %v1884
    %v2769 = vpop.permute.xlu0 %2768
    %2771 = vset.pattern.permute.xlu0 2
    %2772 = vperm.xlu0 %2771, %v1885
    %v2773 = vpop.permute.xlu0 %2772
    %2775 = vset.pattern.permute.xlu0 2
    %2776 = vperm.xlu0 %2775, %v1886
    %v2777 = vpop.permute.xlu0 %2776
    %2779 = vset.pattern.permute.xlu0 2
    %2780 = vperm.xlu0 %2779, %v1887
    %v2781 = vpop.permute.xlu0 %2780
    %2783 = vset.pattern.permute.xlu0 2
    %2784 = vperm.xlu0 %2783, %v1888
    %v2785 = vpop.permute.xlu0 %2784
    %2787 = vset.pattern.permute.xlu0 2
    %2788 = vperm.xlu0 %2787, %v1889
    %v2789 = vpop.permute.xlu0 %2788
    %2791 = vset.pattern.permute.xlu0 2
    %2792 = vperm.xlu0 %2791, %v1890
    %v2793 = vpop.permute.xlu0 %2792
    %2795 = vset.pattern.permute.xlu0 2
    %2796 = vperm.xlu0 %2795, %v1891
    %v2797 = vpop.permute.xlu0 %2796
    %2799 = vset.pattern.permute.xlu0 2
    %2800 = vperm.xlu0 %2799, %v1892
    %v2801 = vpop.permute.xlu0 %2800
    %2803 = vset.pattern.permute.xlu0 2
    %2804 = vperm.xlu0 %2803, %v1893
    %v2805 = vpop.permute.xlu0 %2804
    %2807 = vset.pattern.permute.xlu0 2
    %2808 = vperm.xlu0 %2807, %v1894
    %v2809 = vpop.permute.xlu0 %2808
    %2811 = vset.pattern.permute.xlu0 2
    %2812 = vperm.xlu0 %2811, %v1895
    %v2813 = vpop.permute.xlu0 %2812
    %2815 = vset.pattern.permute.xlu0 2
    %2816 = vperm.xlu0 %2815, %v1896
    %v2817 = vpop.permute.xlu0 %2816
    %2819 = vset.pattern.permute.xlu0 2
    %2820 = vperm.xlu0 %2819, %v1897
    %v2821 = vpop.permute.xlu0 %2820
    %2823 = vset.pattern.permute.xlu0 2
    %2824 = vperm.xlu0 %2823, %v1898
    %v2825 = vpop.permute.xlu0 %2824
    %2827 = vset.pattern.permute.xlu0 2
    %2828 = vperm.xlu0 %2827, %v1899
    %v2829 = vpop.permute.xlu0 %2828
    %2831 = vset.pattern.permute.xlu0 2
    %2832 = vperm.xlu0 %2831, %v1900
    %v2833 = vpop.permute.xlu0 %2832
    %2835 = vset.pattern.permute.xlu0 2
    %2836 = vperm.xlu0 %2835, %v1901
    %v2837 = vpop.permute.xlu0 %2836
    %2839 = vset.pattern.permute.xlu0 2
    %2840 = vperm.xlu0 %2839, %v1902
    %v2841 = vpop.permute.xlu0 %2840
    %2843 = vset.pattern.permute.xlu0 2
    %2844 = vperm.xlu0 %2843, %v1903
    %v2845 = vpop.permute.xlu0 %2844
    %v2847 = vmul.f32 %v2673, %v2649
    %v2848 = vmul.f32 %v2677, %v2650
    %v2849 = vmul.f32 %v2681, %v2651
    %v2850 = vmul.f32 %v2685, %v2652
    %v2851 = vmul.f32 %v2689, %v2653
    %v2852 = vmul.f32 %v2693, %v2654
    %v2853 = vmul.f32 %v2697, %v2655
    %v2854 = vmul.f32 %v2701, %v2656
    %v2855 = vmul.f32 %v2705, %v2657
    %v2856 = vmul.f32 %v2709, %v2658
    %v2857 = vmul.f32 %v2713, %v2659
    %v2858 = vmul.f32 %v2717, %v2660
    %v2859 = vmul.f32 %v2721, %v2661
    %v2860 = vmul.f32 %v2725, %v2662
    %v2861 = vmul.f32 %v2729, %v2663
    %v2862 = vmul.f32 %v2733, %v2664
    %v2863 = vmul.f32 %v2737, %v2665
    %v2864 = vmul.f32 %v2741, %v2666
    %v2865 = vmul.f32 %v2745, %v2667
    %v2866 = vmul.f32 %v2749, %v2668
    %v2867 = vmul.f32 %v2753, %v2669
    %v2868 = vmul.f32 %v2757, %v2670
    %v2869 = vmul.f32 %v2761, %v2649
    %v2870 = vmul.f32 %v2765, %v2650
    %v2871 = vmul.f32 %v2769, %v2651
    %v2872 = vmul.f32 %v2773, %v2652
    %v2873 = vmul.f32 %v2777, %v2653
    %v2874 = vmul.f32 %v2781, %v2654
    %v2875 = vmul.f32 %v2785, %v2655
    %v2876 = vmul.f32 %v2789, %v2656
    %v2877 = vmul.f32 %v2793, %v2657
    %v2878 = vmul.f32 %v2797, %v2658
    %v2879 = vmul.f32 %v2801, %v2659
    %v2880 = vmul.f32 %v2805, %v2660
    %v2881 = vmul.f32 %v2809, %v2661
    %v2882 = vmul.f32 %v2813, %v2662
    %v2883 = vmul.f32 %v2817, %v2663
    %v2884 = vmul.f32 %v2821, %v2664
    %v2885 = vmul.f32 %v2825, %v2665
    %v2886 = vmul.f32 %v2829, %v2666
    %v2887 = vmul.f32 %v2833, %v2667
    %v2888 = vmul.f32 %v2837, %v2668
    %v2889 = vmul.f32 %v2841, %v2669
    %v2890 = vmul.f32 %v2845, %v2670
    %v2891 = vsel %vm2197, %v2847, 0.0
    %v2892 = vsel %vm2197, %v2848, 0.0
    %v2893 = vadd.f32 %v2891, %v2892
    %v2894 = vsel %vm2197, %v2849, 0.0
    %v2895 = vadd.f32 %v2893, %v2894
    %v2896 = vsel %vm2197, %v2850, 0.0
    %v2897 = vadd.f32 %v2895, %v2896
    %v2898 = vsel %vm2197, %v2851, 0.0
    %v2899 = vadd.f32 %v2897, %v2898
    %v2900 = vsel %vm2197, %v2852, 0.0
    %v2901 = vadd.f32 %v2899, %v2900
    %v2902 = vsel %vm2197, %v2853, 0.0
    %v2903 = vadd.f32 %v2901, %v2902
    %v2904 = vsel %vm2197, %v2854, 0.0
    %v2905 = vadd.f32 %v2903, %v2904
    %v2906 = vsel %vm2197, %v2855, 0.0
    %v2907 = vadd.f32 %v2905, %v2906
    %v2908 = vsel %vm2197, %v2856, 0.0
    %v2909 = vadd.f32 %v2907, %v2908
    %v2910 = vsel %vm2197, %v2857, 0.0
    %v2911 = vadd.f32 %v2909, %v2910
    %v2912 = vsel %vm2197, %v2858, 0.0
    %v2913 = vadd.f32 %v2911, %v2912
    %v2914 = vsel %vm2197, %v2859, 0.0
    %v2915 = vadd.f32 %v2913, %v2914
    %v2916 = vsel %vm2197, %v2860, 0.0
    %v2917 = vadd.f32 %v2915, %v2916
    %v2918 = vsel %vm2197, %v2861, 0.0
    %v2919 = vadd.f32 %v2917, %v2918
    %v2920 = vsel %vm2197, %v2862, 0.0
    %v2921 = vadd.f32 %v2919, %v2920
    %v2922 = vsel %vm2197, %v2863, 0.0
    %v2923 = vadd.f32 %v2921, %v2922
    %v2924 = vsel %vm2197, %v2864, 0.0
    %v2925 = vadd.f32 %v2923, %v2924
    %v2926 = vsel %vm2197, %v2865, 0.0
    %v2927 = vadd.f32 %v2925, %v2926
    %v2928 = vsel %vm2197, %v2866, 0.0
    %v2929 = vadd.f32 %v2927, %v2928
    %v2930 = vsel %vm2197, %v2867, 0.0
    %v2931 = vadd.f32 %v2929, %v2930
    %v2932 = vsel %vm2197, %v2868, 0.0
    %v2933 = vadd.f32 %v2931, %v2932
    %v2934 = vrot.slane %v2933, 4
    %v2935 = vadd.f32 %v2933, %v2934
    %v2936 = vrot.slane %v2935, 2
    %v2937 = vadd.f32 %v2935, %v2936
    %v2938 = vrot.slane %v2937, 1
    %v2939 = vadd.f32 %v2937, %v2938
    %v2940 = vsel %vm2197, %v2869, 0.0
    %v2941 = vsel %vm2197, %v2870, 0.0
    %v2942 = vadd.f32 %v2940, %v2941
    %v2943 = vsel %vm2197, %v2871, 0.0
    %v2944 = vadd.f32 %v2942, %v2943
    %v2945 = vsel %vm2197, %v2872, 0.0
    %v2946 = vadd.f32 %v2944, %v2945
    %v2947 = vsel %vm2197, %v2873, 0.0
    %v2948 = vadd.f32 %v2946, %v2947
    %v2949 = vsel %vm2197, %v2874, 0.0
    %v2950 = vadd.f32 %v2948, %v2949
    %v2951 = vsel %vm2197, %v2875, 0.0
    %v2952 = vadd.f32 %v2950, %v2951
    %v2953 = vsel %vm2197, %v2876, 0.0
    %v2954 = vadd.f32 %v2952, %v2953
    %v2955 = vsel %vm2197, %v2877, 0.0
    %v2956 = vadd.f32 %v2954, %v2955
    %v2957 = vsel %vm2197, %v2878, 0.0
    %v2958 = vadd.f32 %v2956, %v2957
    %v2959 = vsel %vm2197, %v2879, 0.0
    %v2960 = vadd.f32 %v2958, %v2959
    %v2961 = vsel %vm2197, %v2880, 0.0
    %v2962 = vadd.f32 %v2960, %v2961
    %v2963 = vsel %vm2197, %v2881, 0.0
    %v2964 = vadd.f32 %v2962, %v2963
    %v2965 = vsel %vm2197, %v2882, 0.0
    %v2966 = vadd.f32 %v2964, %v2965
    %v2967 = vsel %vm2197, %v2883, 0.0
    %v2968 = vadd.f32 %v2966, %v2967
    %v2969 = vsel %vm2197, %v2884, 0.0
    %v2970 = vadd.f32 %v2968, %v2969
    %v2971 = vsel %vm2197, %v2885, 0.0
    %v2972 = vadd.f32 %v2970, %v2971
    %v2973 = vsel %vm2197, %v2886, 0.0
    %v2974 = vadd.f32 %v2972, %v2973
    %v2975 = vsel %vm2197, %v2887, 0.0
    %v2976 = vadd.f32 %v2974, %v2975
    %v2977 = vsel %vm2197, %v2888, 0.0
    %v2978 = vadd.f32 %v2976, %v2977
    %v2979 = vsel %vm2197, %v2889, 0.0
    %v2980 = vadd.f32 %v2978, %v2979
    %v2981 = vsel %vm2197, %v2890, 0.0
    %v2982 = vadd.f32 %v2980, %v2981
    %v2983 = vrot.slane %v2982, 4
    %v2984 = vadd.f32 %v2982, %v2983
    %v2985 = vrot.slane %v2984, 2
    %v2986 = vadd.f32 %v2984, %v2985
    %v2987 = vrot.slane %v2986, 1
    %v2988 = vadd.f32 %v2986, %v2987
    %v2991 = vsel %vm2298, %v2988, %v2939
    %v2993 = vadd.f32 %v2647, %v2991
    %s2994 = scalar_lea.vmem %s3, 528
    %v2995 = vld [vmem:[%s2994] sm:$0xff]
    %v2996 = vld [vmem:[%s2994 + $0x8] sm:$0xff]
    %v2997 = vld [vmem:[%s2994 + $0x10] sm:$0xff]
    %v2998 = vld [vmem:[%s2994 + $0x18] sm:$0xff]
    %v2999 = vld [vmem:[%s2994 + $0x20] sm:$0xff]
    %v3000 = vld [vmem:[%s2994 + $0x28] sm:$0xff]
    %v3001 = vld [vmem:[%s2994 + $0x30] sm:$0xff]
    %v3002 = vld [vmem:[%s2994 + $0x38] sm:$0xff]
    %v3003 = vld [vmem:[%s2994 + $0x40] sm:$0xff]
    %v3004 = vld [vmem:[%s2994 + $0x48] sm:$0xff]
    %v3005 = vld [vmem:[%s2994 + $0x50] sm:$0xff]
    %v3006 = vld [vmem:[%s2994 + $0x58] sm:$0xff]
    %v3007 = vld [vmem:[%s2994 + $0x60] sm:$0xff]
    %v3008 = vld [vmem:[%s2994 + $0x68] sm:$0xff]
    %v3009 = vld [vmem:[%s2994 + $0x70] sm:$0xff]
    %v3010 = vld [vmem:[%s2994 + $0x78] sm:$0xff]
    %v3011 = vld [vmem:[%s2994 + $0x80] sm:$0xff]
    %v3012 = vld [vmem:[%s2994 + $0x88] sm:$0xff]
    %v3013 = vld [vmem:[%s2994 + $0x90] sm:$0xff]
    %v3014 = vld [vmem:[%s2994 + $0x98] sm:$0xff]
    %v3015 = vld [vmem:[%s2994 + $0xa0] sm:$0xff]
    %v3016 = vld [vmem:[%s2994 + $0xa8] sm:$0xff]
    %3017 = vset.pattern.permute.xlu0 3
    %3018 = vperm.xlu0 %3017, %v1860
    %v3019 = vpop.permute.xlu0 %3018
    %3021 = vset.pattern.permute.xlu0 3
    %3022 = vperm.xlu0 %3021, %v1861
    %v3023 = vpop.permute.xlu0 %3022
    %3025 = vset.pattern.permute.xlu0 3
    %3026 = vperm.xlu0 %3025, %v1862
    %v3027 = vpop.permute.xlu0 %3026
    %3029 = vset.pattern.permute.xlu0 3
    %3030 = vperm.xlu0 %3029, %v1863
    %v3031 = vpop.permute.xlu0 %3030
    %3033 = vset.pattern.permute.xlu0 3
    %3034 = vperm.xlu0 %3033, %v1864
    %v3035 = vpop.permute.xlu0 %3034
    %3037 = vset.pattern.permute.xlu0 3
    %3038 = vperm.xlu0 %3037, %v1865
    %v3039 = vpop.permute.xlu0 %3038
    %3041 = vset.pattern.permute.xlu0 3
    %3042 = vperm.xlu0 %3041, %v1866
    %v3043 = vpop.permute.xlu0 %3042
    %3045 = vset.pattern.permute.xlu0 3
    %3046 = vperm.xlu0 %3045, %v1867
    %v3047 = vpop.permute.xlu0 %3046
    %3049 = vset.pattern.permute.xlu0 3
    %3050 = vperm.xlu0 %3049, %v1868
    %v3051 = vpop.permute.xlu0 %3050
    %3053 = vset.pattern.permute.xlu0 3
    %3054 = vperm.xlu0 %3053, %v1869
    %v3055 = vpop.permute.xlu0 %3054
    %3057 = vset.pattern.permute.xlu0 3
    %3058 = vperm.xlu0 %3057, %v1870
    %v3059 = vpop.permute.xlu0 %3058
    %3061 = vset.pattern.permute.xlu0 3
    %3062 = vperm.xlu0 %3061, %v1871
    %v3063 = vpop.permute.xlu0 %3062
    %3065 = vset.pattern.permute.xlu0 3
    %3066 = vperm.xlu0 %3065, %v1872
    %v3067 = vpop.permute.xlu0 %3066
    %3069 = vset.pattern.permute.xlu0 3
    %3070 = vperm.xlu0 %3069, %v1873
    %v3071 = vpop.permute.xlu0 %3070
    %3073 = vset.pattern.permute.xlu0 3
    %3074 = vperm.xlu0 %3073, %v1874
    %v3075 = vpop.permute.xlu0 %3074
    %3077 = vset.pattern.permute.xlu0 3
    %3078 = vperm.xlu0 %3077, %v1875
    %v3079 = vpop.permute.xlu0 %3078
    %3081 = vset.pattern.permute.xlu0 3
    %3082 = vperm.xlu0 %3081, %v1876
    %v3083 = vpop.permute.xlu0 %3082
    %3085 = vset.pattern.permute.xlu0 3
    %3086 = vperm.xlu0 %3085, %v1877
    %v3087 = vpop.permute.xlu0 %3086
    %3089 = vset.pattern.permute.xlu0 3
    %3090 = vperm.xlu0 %3089, %v1878
    %v3091 = vpop.permute.xlu0 %3090
    %3093 = vset.pattern.permute.xlu0 3
    %3094 = vperm.xlu0 %3093, %v1879
    %v3095 = vpop.permute.xlu0 %3094
    %3097 = vset.pattern.permute.xlu0 3
    %3098 = vperm.xlu0 %3097, %v1880
    %v3099 = vpop.permute.xlu0 %3098
    %3101 = vset.pattern.permute.xlu0 3
    %3102 = vperm.xlu0 %3101, %v1881
    %v3103 = vpop.permute.xlu0 %3102
    %3105 = vset.pattern.permute.xlu0 3
    %3106 = vperm.xlu0 %3105, %v1882
    %v3107 = vpop.permute.xlu0 %3106
    %3109 = vset.pattern.permute.xlu0 3
    %3110 = vperm.xlu0 %3109, %v1883
    %v3111 = vpop.permute.xlu0 %3110
    %3113 = vset.pattern.permute.xlu0 3
    %3114 = vperm.xlu0 %3113, %v1884
    %v3115 = vpop.permute.xlu0 %3114
    %3117 = vset.pattern.permute.xlu0 3
    %3118 = vperm.xlu0 %3117, %v1885
    %v3119 = vpop.permute.xlu0 %3118
    %3121 = vset.pattern.permute.xlu0 3
    %3122 = vperm.xlu0 %3121, %v1886
    %v3123 = vpop.permute.xlu0 %3122
    %3125 = vset.pattern.permute.xlu0 3
    %3126 = vperm.xlu0 %3125, %v1887
    %v3127 = vpop.permute.xlu0 %3126
    %3129 = vset.pattern.permute.xlu0 3
    %3130 = vperm.xlu0 %3129, %v1888
    %v3131 = vpop.permute.xlu0 %3130
    %3133 = vset.pattern.permute.xlu0 3
    %3134 = vperm.xlu0 %3133, %v1889
    %v3135 = vpop.permute.xlu0 %3134
    %3137 = vset.pattern.permute.xlu0 3
    %3138 = vperm.xlu0 %3137, %v1890
    %v3139 = vpop.permute.xlu0 %3138
    %3141 = vset.pattern.permute.xlu0 3
    %3142 = vperm.xlu0 %3141, %v1891
    %v3143 = vpop.permute.xlu0 %3142
    %3145 = vset.pattern.permute.xlu0 3
    %3146 = vperm.xlu0 %3145, %v1892
    %v3147 = vpop.permute.xlu0 %3146
    %3149 = vset.pattern.permute.xlu0 3
    %3150 = vperm.xlu0 %3149, %v1893
    %v3151 = vpop.permute.xlu0 %3150
    %3153 = vset.pattern.permute.xlu0 3
    %3154 = vperm.xlu0 %3153, %v1894
    %v3155 = vpop.permute.xlu0 %3154
    %3157 = vset.pattern.permute.xlu0 3
    %3158 = vperm.xlu0 %3157, %v1895
    %v3159 = vpop.permute.xlu0 %3158
    %3161 = vset.pattern.permute.xlu0 3
    %3162 = vperm.xlu0 %3161, %v1896
    %v3163 = vpop.permute.xlu0 %3162
    %3165 = vset.pattern.permute.xlu0 3
    %3166 = vperm.xlu0 %3165, %v1897
    %v3167 = vpop.permute.xlu0 %3166
    %3169 = vset.pattern.permute.xlu0 3
    %3170 = vperm.xlu0 %3169, %v1898
    %v3171 = vpop.permute.xlu0 %3170
    %3173 = vset.pattern.permute.xlu0 3
    %3174 = vperm.xlu0 %3173, %v1899
    %v3175 = vpop.permute.xlu0 %3174
    %3177 = vset.pattern.permute.xlu0 3
    %3178 = vperm.xlu0 %3177, %v1900
    %v3179 = vpop.permute.xlu0 %3178
    %3181 = vset.pattern.permute.xlu0 3
    %3182 = vperm.xlu0 %3181, %v1901
    %v3183 = vpop.permute.xlu0 %3182
    %3185 = vset.pattern.permute.xlu0 3
    %3186 = vperm.xlu0 %3185, %v1902
    %v3187 = vpop.permute.xlu0 %3186
    %3189 = vset.pattern.permute.xlu0 3
    %3190 = vperm.xlu0 %3189, %v1903
    %v3191 = vpop.permute.xlu0 %3190
    %v3193 = vmul.f32 %v3019, %v2995
    %v3194 = vmul.f32 %v3023, %v2996
    %v3195 = vmul.f32 %v3027, %v2997
    %v3196 = vmul.f32 %v3031, %v2998
    %v3197 = vmul.f32 %v3035, %v2999
    %v3198 = vmul.f32 %v3039, %v3000
    %v3199 = vmul.f32 %v3043, %v3001
    %v3200 = vmul.f32 %v3047, %v3002
    %v3201 = vmul.f32 %v3051, %v3003
    %v3202 = vmul.f32 %v3055, %v3004
    %v3203 = vmul.f32 %v3059, %v3005
    %v3204 = vmul.f32 %v3063, %v3006
    %v3205 = vmul.f32 %v3067, %v3007
    %v3206 = vmul.f32 %v3071, %v3008
    %v3207 = vmul.f32 %v3075, %v3009
    %v3208 = vmul.f32 %v3079, %v3010
    %v3209 = vmul.f32 %v3083, %v3011
    %v3210 = vmul.f32 %v3087, %v3012
    %v3211 = vmul.f32 %v3091, %v3013
    %v3212 = vmul.f32 %v3095, %v3014
    %v3213 = vmul.f32 %v3099, %v3015
    %v3214 = vmul.f32 %v3103, %v3016
    %v3215 = vmul.f32 %v3107, %v2995
    %v3216 = vmul.f32 %v3111, %v2996
    %v3217 = vmul.f32 %v3115, %v2997
    %v3218 = vmul.f32 %v3119, %v2998
    %v3219 = vmul.f32 %v3123, %v2999
    %v3220 = vmul.f32 %v3127, %v3000
    %v3221 = vmul.f32 %v3131, %v3001
    %v3222 = vmul.f32 %v3135, %v3002
    %v3223 = vmul.f32 %v3139, %v3003
    %v3224 = vmul.f32 %v3143, %v3004
    %v3225 = vmul.f32 %v3147, %v3005
    %v3226 = vmul.f32 %v3151, %v3006
    %v3227 = vmul.f32 %v3155, %v3007
    %v3228 = vmul.f32 %v3159, %v3008
    %v3229 = vmul.f32 %v3163, %v3009
    %v3230 = vmul.f32 %v3167, %v3010
    %v3231 = vmul.f32 %v3171, %v3011
    %v3232 = vmul.f32 %v3175, %v3012
    %v3233 = vmul.f32 %v3179, %v3013
    %v3234 = vmul.f32 %v3183, %v3014
    %v3235 = vmul.f32 %v3187, %v3015
    %v3236 = vmul.f32 %v3191, %v3016
    %v3237 = vsel %vm2197, %v3193, 0.0
    %v3238 = vsel %vm2197, %v3194, 0.0
    %v3239 = vadd.f32 %v3237, %v3238
    %v3240 = vsel %vm2197, %v3195, 0.0
    %v3241 = vadd.f32 %v3239, %v3240
    %v3242 = vsel %vm2197, %v3196, 0.0
    %v3243 = vadd.f32 %v3241, %v3242
    %v3244 = vsel %vm2197, %v3197, 0.0
    %v3245 = vadd.f32 %v3243, %v3244
    %v3246 = vsel %vm2197, %v3198, 0.0
    %v3247 = vadd.f32 %v3245, %v3246
    %v3248 = vsel %vm2197, %v3199, 0.0
    %v3249 = vadd.f32 %v3247, %v3248
    %v3250 = vsel %vm2197, %v3200, 0.0
    %v3251 = vadd.f32 %v3249, %v3250
    %v3252 = vsel %vm2197, %v3201, 0.0
    %v3253 = vadd.f32 %v3251, %v3252
    %v3254 = vsel %vm2197, %v3202, 0.0
    %v3255 = vadd.f32 %v3253, %v3254
    %v3256 = vsel %vm2197, %v3203, 0.0
    %v3257 = vadd.f32 %v3255, %v3256
    %v3258 = vsel %vm2197, %v3204, 0.0
    %v3259 = vadd.f32 %v3257, %v3258
    %v3260 = vsel %vm2197, %v3205, 0.0
    %v3261 = vadd.f32 %v3259, %v3260
    %v3262 = vsel %vm2197, %v3206, 0.0
    %v3263 = vadd.f32 %v3261, %v3262
    %v3264 = vsel %vm2197, %v3207, 0.0
    %v3265 = vadd.f32 %v3263, %v3264
    %v3266 = vsel %vm2197, %v3208, 0.0
    %v3267 = vadd.f32 %v3265, %v3266
    %v3268 = vsel %vm2197, %v3209, 0.0
    %v3269 = vadd.f32 %v3267, %v3268
    %v3270 = vsel %vm2197, %v3210, 0.0
    %v3271 = vadd.f32 %v3269, %v3270
    %v3272 = vsel %vm2197, %v3211, 0.0
    %v3273 = vadd.f32 %v3271, %v3272
    %v3274 = vsel %vm2197, %v3212, 0.0
    %v3275 = vadd.f32 %v3273, %v3274
    %v3276 = vsel %vm2197, %v3213, 0.0
    %v3277 = vadd.f32 %v3275, %v3276
    %v3278 = vsel %vm2197, %v3214, 0.0
    %v3279 = vadd.f32 %v3277, %v3278
    %v3280 = vrot.slane %v3279, 4
    %v3281 = vadd.f32 %v3279, %v3280
    %v3282 = vrot.slane %v3281, 2
    %v3283 = vadd.f32 %v3281, %v3282
    %v3284 = vrot.slane %v3283, 1
    %v3285 = vadd.f32 %v3283, %v3284
    %v3286 = vsel %vm2197, %v3215, 0.0
    %v3287 = vsel %vm2197, %v3216, 0.0
    %v3288 = vadd.f32 %v3286, %v3287
    %v3289 = vsel %vm2197, %v3217, 0.0
    %v3290 = vadd.f32 %v3288, %v3289
    %v3291 = vsel %vm2197, %v3218, 0.0
    %v3292 = vadd.f32 %v3290, %v3291
    %v3293 = vsel %vm2197, %v3219, 0.0
    %v3294 = vadd.f32 %v3292, %v3293
    %v3295 = vsel %vm2197, %v3220, 0.0
    %v3296 = vadd.f32 %v3294, %v3295
    %v3297 = vsel %vm2197, %v3221, 0.0
    %v3298 = vadd.f32 %v3296, %v3297
    %v3299 = vsel %vm2197, %v3222, 0.0
    %v3300 = vadd.f32 %v3298, %v3299
    %v3301 = vsel %vm2197, %v3223, 0.0
    %v3302 = vadd.f32 %v3300, %v3301
    %v3303 = vsel %vm2197, %v3224, 0.0
    %v3304 = vadd.f32 %v3302, %v3303
    %v3305 = vsel %vm2197, %v3225, 0.0
    %v3306 = vadd.f32 %v3304, %v3305
    %v3307 = vsel %vm2197, %v3226, 0.0
    %v3308 = vadd.f32 %v3306, %v3307
    %v3309 = vsel %vm2197, %v3227, 0.0
    %v3310 = vadd.f32 %v3308, %v3309
    %v3311 = vsel %vm2197, %v3228, 0.0
    %v3312 = vadd.f32 %v3310, %v3311
    %v3313 = vsel %vm2197, %v3229, 0.0
    %v3314 = vadd.f32 %v3312, %v3313
    %v3315 = vsel %vm2197, %v3230, 0.0
    %v3316 = vadd.f32 %v3314, %v3315
    %v3317 = vsel %vm2197, %v3231, 0.0
    %v3318 = vadd.f32 %v3316, %v3317
    %v3319 = vsel %vm2197, %v3232, 0.0
    %v3320 = vadd.f32 %v3318, %v3319
    %v3321 = vsel %vm2197, %v3233, 0.0
    %v3322 = vadd.f32 %v3320, %v3321
    %v3323 = vsel %vm2197, %v3234, 0.0
    %v3324 = vadd.f32 %v3322, %v3323
    %v3325 = vsel %vm2197, %v3235, 0.0
    %v3326 = vadd.f32 %v3324, %v3325
    %v3327 = vsel %vm2197, %v3236, 0.0
    %v3328 = vadd.f32 %v3326, %v3327
    %v3329 = vrot.slane %v3328, 4
    %v3330 = vadd.f32 %v3328, %v3329
    %v3331 = vrot.slane %v3330, 2
    %v3332 = vadd.f32 %v3330, %v3331
    %v3333 = vrot.slane %v3332, 1
    %v3334 = vadd.f32 %v3332, %v3333
    %v3337 = vsel %vm2298, %v3334, %v3285
    %v3339 = vadd.f32 %v2993, %v3337
    %s3340 = scalar_lea.vmem %s3, 704
    %v3341 = vld [vmem:[%s3340] sm:$0xff]
    %v3342 = vld [vmem:[%s3340 + $0x8] sm:$0xff]
    %v3343 = vld [vmem:[%s3340 + $0x10] sm:$0xff]
    %v3344 = vld [vmem:[%s3340 + $0x18] sm:$0xff]
    %v3345 = vld [vmem:[%s3340 + $0x20] sm:$0xff]
    %v3346 = vld [vmem:[%s3340 + $0x28] sm:$0xff]
    %v3347 = vld [vmem:[%s3340 + $0x30] sm:$0xff]
    %v3348 = vld [vmem:[%s3340 + $0x38] sm:$0xff]
    %v3349 = vld [vmem:[%s3340 + $0x40] sm:$0xff]
    %v3350 = vld [vmem:[%s3340 + $0x48] sm:$0xff]
    %v3351 = vld [vmem:[%s3340 + $0x50] sm:$0xff]
    %v3352 = vld [vmem:[%s3340 + $0x58] sm:$0xff]
    %v3353 = vld [vmem:[%s3340 + $0x60] sm:$0xff]
    %v3354 = vld [vmem:[%s3340 + $0x68] sm:$0xff]
    %v3355 = vld [vmem:[%s3340 + $0x70] sm:$0xff]
    %v3356 = vld [vmem:[%s3340 + $0x78] sm:$0xff]
    %v3357 = vld [vmem:[%s3340 + $0x80] sm:$0xff]
    %v3358 = vld [vmem:[%s3340 + $0x88] sm:$0xff]
    %v3359 = vld [vmem:[%s3340 + $0x90] sm:$0xff]
    %v3360 = vld [vmem:[%s3340 + $0x98] sm:$0xff]
    %v3361 = vld [vmem:[%s3340 + $0xa0] sm:$0xff]
    %v3362 = vld [vmem:[%s3340 + $0xa8] sm:$0xff]
    %3363 = vset.pattern.permute.xlu0 4
    %3364 = vperm.xlu0 %3363, %v1860
    %v3365 = vpop.permute.xlu0 %3364
    %3367 = vset.pattern.permute.xlu0 4
    %3368 = vperm.xlu0 %3367, %v1861
    %v3369 = vpop.permute.xlu0 %3368
    %3371 = vset.pattern.permute.xlu0 4
    %3372 = vperm.xlu0 %3371, %v1862
    %v3373 = vpop.permute.xlu0 %3372
    %3375 = vset.pattern.permute.xlu0 4
    %3376 = vperm.xlu0 %3375, %v1863
    %v3377 = vpop.permute.xlu0 %3376
    %3379 = vset.pattern.permute.xlu0 4
    %3380 = vperm.xlu0 %3379, %v1864
    %v3381 = vpop.permute.xlu0 %3380
    %3383 = vset.pattern.permute.xlu0 4
    %3384 = vperm.xlu0 %3383, %v1865
    %v3385 = vpop.permute.xlu0 %3384
    %3387 = vset.pattern.permute.xlu0 4
    %3388 = vperm.xlu0 %3387, %v1866
    %v3389 = vpop.permute.xlu0 %3388
    %3391 = vset.pattern.permute.xlu0 4
    %3392 = vperm.xlu0 %3391, %v1867
    %v3393 = vpop.permute.xlu0 %3392
    %3395 = vset.pattern.permute.xlu0 4
    %3396 = vperm.xlu0 %3395, %v1868
    %v3397 = vpop.permute.xlu0 %3396
    %3399 = vset.pattern.permute.xlu0 4
    %3400 = vperm.xlu0 %3399, %v1869
    %v3401 = vpop.permute.xlu0 %3400
    %3403 = vset.pattern.permute.xlu0 4
    %3404 = vperm.xlu0 %3403, %v1870
    %v3405 = vpop.permute.xlu0 %3404
    %3407 = vset.pattern.permute.xlu0 4
    %3408 = vperm.xlu0 %3407, %v1871
    %v3409 = vpop.permute.xlu0 %3408
    %3411 = vset.pattern.permute.xlu0 4
    %3412 = vperm.xlu0 %3411, %v1872
    %v3413 = vpop.permute.xlu0 %3412
    %3415 = vset.pattern.permute.xlu0 4
    %3416 = vperm.xlu0 %3415, %v1873
    %v3417 = vpop.permute.xlu0 %3416
    %3419 = vset.pattern.permute.xlu0 4
    %3420 = vperm.xlu0 %3419, %v1874
    %v3421 = vpop.permute.xlu0 %3420
    %3423 = vset.pattern.permute.xlu0 4
    %3424 = vperm.xlu0 %3423, %v1875
    %v3425 = vpop.permute.xlu0 %3424
    %3427 = vset.pattern.permute.xlu0 4
    %3428 = vperm.xlu0 %3427, %v1876
    %v3429 = vpop.permute.xlu0 %3428
    %3431 = vset.pattern.permute.xlu0 4
    %3432 = vperm.xlu0 %3431, %v1877
    %v3433 = vpop.permute.xlu0 %3432
    %3435 = vset.pattern.permute.xlu0 4
    %3436 = vperm.xlu0 %3435, %v1878
    %v3437 = vpop.permute.xlu0 %3436
    %3439 = vset.pattern.permute.xlu0 4
    %3440 = vperm.xlu0 %3439, %v1879
    %v3441 = vpop.permute.xlu0 %3440
    %3443 = vset.pattern.permute.xlu0 4
    %3444 = vperm.xlu0 %3443, %v1880
    %v3445 = vpop.permute.xlu0 %3444
    %3447 = vset.pattern.permute.xlu0 4
    %3448 = vperm.xlu0 %3447, %v1881
    %v3449 = vpop.permute.xlu0 %3448
    %3451 = vset.pattern.permute.xlu0 4
    %3452 = vperm.xlu0 %3451, %v1882
    %v3453 = vpop.permute.xlu0 %3452
    %3455 = vset.pattern.permute.xlu0 4
    %3456 = vperm.xlu0 %3455, %v1883
    %v3457 = vpop.permute.xlu0 %3456
    %3459 = vset.pattern.permute.xlu0 4
    %3460 = vperm.xlu0 %3459, %v1884
    %v3461 = vpop.permute.xlu0 %3460
    %3463 = vset.pattern.permute.xlu0 4
    %3464 = vperm.xlu0 %3463, %v1885
    %v3465 = vpop.permute.xlu0 %3464
    %3467 = vset.pattern.permute.xlu0 4
    %3468 = vperm.xlu0 %3467, %v1886
    %v3469 = vpop.permute.xlu0 %3468
    %3471 = vset.pattern.permute.xlu0 4
    %3472 = vperm.xlu0 %3471, %v1887
    %v3473 = vpop.permute.xlu0 %3472
    %3475 = vset.pattern.permute.xlu0 4
    %3476 = vperm.xlu0 %3475, %v1888
    %v3477 = vpop.permute.xlu0 %3476
    %3479 = vset.pattern.permute.xlu0 4
    %3480 = vperm.xlu0 %3479, %v1889
    %v3481 = vpop.permute.xlu0 %3480
    %3483 = vset.pattern.permute.xlu0 4
    %3484 = vperm.xlu0 %3483, %v1890
    %v3485 = vpop.permute.xlu0 %3484
    %3487 = vset.pattern.permute.xlu0 4
    %3488 = vperm.xlu0 %3487, %v1891
    %v3489 = vpop.permute.xlu0 %3488
    %3491 = vset.pattern.permute.xlu0 4
    %3492 = vperm.xlu0 %3491, %v1892
    %v3493 = vpop.permute.xlu0 %3492
    %3495 = vset.pattern.permute.xlu0 4
    %3496 = vperm.xlu0 %3495, %v1893
    %v3497 = vpop.permute.xlu0 %3496
    %3499 = vset.pattern.permute.xlu0 4
    %3500 = vperm.xlu0 %3499, %v1894
    %v3501 = vpop.permute.xlu0 %3500
    %3503 = vset.pattern.permute.xlu0 4
    %3504 = vperm.xlu0 %3503, %v1895
    %v3505 = vpop.permute.xlu0 %3504
    %3507 = vset.pattern.permute.xlu0 4
    %3508 = vperm.xlu0 %3507, %v1896
    %v3509 = vpop.permute.xlu0 %3508
    %3511 = vset.pattern.permute.xlu0 4
    %3512 = vperm.xlu0 %3511, %v1897
    %v3513 = vpop.permute.xlu0 %3512
    %3515 = vset.pattern.permute.xlu0 4
    %3516 = vperm.xlu0 %3515, %v1898
    %v3517 = vpop.permute.xlu0 %3516
    %3519 = vset.pattern.permute.xlu0 4
    %3520 = vperm.xlu0 %3519, %v1899
    %v3521 = vpop.permute.xlu0 %3520
    %3523 = vset.pattern.permute.xlu0 4
    %3524 = vperm.xlu0 %3523, %v1900
    %v3525 = vpop.permute.xlu0 %3524
    %3527 = vset.pattern.permute.xlu0 4
    %3528 = vperm.xlu0 %3527, %v1901
    %v3529 = vpop.permute.xlu0 %3528
    %3531 = vset.pattern.permute.xlu0 4
    %3532 = vperm.xlu0 %3531, %v1902
    %v3533 = vpop.permute.xlu0 %3532
    %3535 = vset.pattern.permute.xlu0 4
    %3536 = vperm.xlu0 %3535, %v1903
    %v3537 = vpop.permute.xlu0 %3536
    %v3539 = vmul.f32 %v3365, %v3341
    %v3540 = vmul.f32 %v3369, %v3342
    %v3541 = vmul.f32 %v3373, %v3343
    %v3542 = vmul.f32 %v3377, %v3344
    %v3543 = vmul.f32 %v3381, %v3345
    %v3544 = vmul.f32 %v3385, %v3346
    %v3545 = vmul.f32 %v3389, %v3347
    %v3546 = vmul.f32 %v3393, %v3348
    %v3547 = vmul.f32 %v3397, %v3349
    %v3548 = vmul.f32 %v3401, %v3350
    %v3549 = vmul.f32 %v3405, %v3351
    %v3550 = vmul.f32 %v3409, %v3352
    %v3551 = vmul.f32 %v3413, %v3353
    %v3552 = vmul.f32 %v3417, %v3354
    %v3553 = vmul.f32 %v3421, %v3355
    %v3554 = vmul.f32 %v3425, %v3356
    %v3555 = vmul.f32 %v3429, %v3357
    %v3556 = vmul.f32 %v3433, %v3358
    %v3557 = vmul.f32 %v3437, %v3359
    %v3558 = vmul.f32 %v3441, %v3360
    %v3559 = vmul.f32 %v3445, %v3361
    %v3560 = vmul.f32 %v3449, %v3362
    %v3561 = vmul.f32 %v3453, %v3341
    %v3562 = vmul.f32 %v3457, %v3342
    %v3563 = vmul.f32 %v3461, %v3343
    %v3564 = vmul.f32 %v3465, %v3344
    %v3565 = vmul.f32 %v3469, %v3345
    %v3566 = vmul.f32 %v3473, %v3346
    %v3567 = vmul.f32 %v3477, %v3347
    %v3568 = vmul.f32 %v3481, %v3348
    %v3569 = vmul.f32 %v3485, %v3349
    %v3570 = vmul.f32 %v3489, %v3350
    %v3571 = vmul.f32 %v3493, %v3351
    %v3572 = vmul.f32 %v3497, %v3352
    %v3573 = vmul.f32 %v3501, %v3353
    %v3574 = vmul.f32 %v3505, %v3354
    %v3575 = vmul.f32 %v3509, %v3355
    %v3576 = vmul.f32 %v3513, %v3356
    %v3577 = vmul.f32 %v3517, %v3357
    %v3578 = vmul.f32 %v3521, %v3358
    %v3579 = vmul.f32 %v3525, %v3359
    %v3580 = vmul.f32 %v3529, %v3360
    %v3581 = vmul.f32 %v3533, %v3361
    %v3582 = vmul.f32 %v3537, %v3362
    %v3583 = vsel %vm2197, %v3539, 0.0
    %v3584 = vsel %vm2197, %v3540, 0.0
    %v3585 = vadd.f32 %v3583, %v3584
    %v3586 = vsel %vm2197, %v3541, 0.0
    %v3587 = vadd.f32 %v3585, %v3586
    %v3588 = vsel %vm2197, %v3542, 0.0
    %v3589 = vadd.f32 %v3587, %v3588
    %v3590 = vsel %vm2197, %v3543, 0.0
    %v3591 = vadd.f32 %v3589, %v3590
    %v3592 = vsel %vm2197, %v3544, 0.0
    %v3593 = vadd.f32 %v3591, %v3592
    %v3594 = vsel %vm2197, %v3545, 0.0
    %v3595 = vadd.f32 %v3593, %v3594
    %v3596 = vsel %vm2197, %v3546, 0.0
    %v3597 = vadd.f32 %v3595, %v3596
    %v3598 = vsel %vm2197, %v3547, 0.0
    %v3599 = vadd.f32 %v3597, %v3598
    %v3600 = vsel %vm2197, %v3548, 0.0
    %v3601 = vadd.f32 %v3599, %v3600
    %v3602 = vsel %vm2197, %v3549, 0.0
    %v3603 = vadd.f32 %v3601, %v3602
    %v3604 = vsel %vm2197, %v3550, 0.0
    %v3605 = vadd.f32 %v3603, %v3604
    %v3606 = vsel %vm2197, %v3551, 0.0
    %v3607 = vadd.f32 %v3605, %v3606
    %v3608 = vsel %vm2197, %v3552, 0.0
    %v3609 = vadd.f32 %v3607, %v3608
    %v3610 = vsel %vm2197, %v3553, 0.0
    %v3611 = vadd.f32 %v3609, %v3610
    %v3612 = vsel %vm2197, %v3554, 0.0
    %v3613 = vadd.f32 %v3611, %v3612
    %v3614 = vsel %vm2197, %v3555, 0.0
    %v3615 = vadd.f32 %v3613, %v3614
    %v3616 = vsel %vm2197, %v3556, 0.0
    %v3617 = vadd.f32 %v3615, %v3616
    %v3618 = vsel %vm2197, %v3557, 0.0
    %v3619 = vadd.f32 %v3617, %v3618
    %v3620 = vsel %vm2197, %v3558, 0.0
    %v3621 = vadd.f32 %v3619, %v3620
    %v3622 = vsel %vm2197, %v3559, 0.0
    %v3623 = vadd.f32 %v3621, %v3622
    %v3624 = vsel %vm2197, %v3560, 0.0
    %v3625 = vadd.f32 %v3623, %v3624
    %v3626 = vrot.slane %v3625, 4
    %v3627 = vadd.f32 %v3625, %v3626
    %v3628 = vrot.slane %v3627, 2
    %v3629 = vadd.f32 %v3627, %v3628
    %v3630 = vrot.slane %v3629, 1
    %v3631 = vadd.f32 %v3629, %v3630
    %v3632 = vsel %vm2197, %v3561, 0.0
    %v3633 = vsel %vm2197, %v3562, 0.0
    %v3634 = vadd.f32 %v3632, %v3633
    %v3635 = vsel %vm2197, %v3563, 0.0
    %v3636 = vadd.f32 %v3634, %v3635
    %v3637 = vsel %vm2197, %v3564, 0.0
    %v3638 = vadd.f32 %v3636, %v3637
    %v3639 = vsel %vm2197, %v3565, 0.0
    %v3640 = vadd.f32 %v3638, %v3639
    %v3641 = vsel %vm2197, %v3566, 0.0
    %v3642 = vadd.f32 %v3640, %v3641
    %v3643 = vsel %vm2197, %v3567, 0.0
    %v3644 = vadd.f32 %v3642, %v3643
    %v3645 = vsel %vm2197, %v3568, 0.0
    %v3646 = vadd.f32 %v3644, %v3645
    %v3647 = vsel %vm2197, %v3569, 0.0
    %v3648 = vadd.f32 %v3646, %v3647
    %v3649 = vsel %vm2197, %v3570, 0.0
    %v3650 = vadd.f32 %v3648, %v3649
    %v3651 = vsel %vm2197, %v3571, 0.0
    %v3652 = vadd.f32 %v3650, %v3651
    %v3653 = vsel %vm2197, %v3572, 0.0
    %v3654 = vadd.f32 %v3652, %v3653
    %v3655 = vsel %vm2197, %v3573, 0.0
    %v3656 = vadd.f32 %v3654, %v3655
    %v3657 = vsel %vm2197, %v3574, 0.0
    %v3658 = vadd.f32 %v3656, %v3657
    %v3659 = vsel %vm2197, %v3575, 0.0
    %v3660 = vadd.f32 %v3658, %v3659
    %v3661 = vsel %vm2197, %v3576, 0.0
    %v3662 = vadd.f32 %v3660, %v3661
    %v3663 = vsel %vm2197, %v3577, 0.0
    %v3664 = vadd.f32 %v3662, %v3663
    %v3665 = vsel %vm2197, %v3578, 0.0
    %v3666 = vadd.f32 %v3664, %v3665
    %v3667 = vsel %vm2197, %v3579, 0.0
    %v3668 = vadd.f32 %v3666, %v3667
    %v3669 = vsel %vm2197, %v3580, 0.0
    %v3670 = vadd.f32 %v3668, %v3669
    %v3671 = vsel %vm2197, %v3581, 0.0
    %v3672 = vadd.f32 %v3670, %v3671
    %v3673 = vsel %vm2197, %v3582, 0.0
    %v3674 = vadd.f32 %v3672, %v3673
    %v3675 = vrot.slane %v3674, 4
    %v3676 = vadd.f32 %v3674, %v3675
    %v3677 = vrot.slane %v3676, 2
    %v3678 = vadd.f32 %v3676, %v3677
    %v3679 = vrot.slane %v3678, 1
    %v3680 = vadd.f32 %v3678, %v3679
    %v3683 = vsel %vm2298, %v3680, %v3631
    %v3685 = vadd.f32 %v3339, %v3683
    %s3686 = scalar_lea.vmem %s3, 880
    %v3687 = vld [vmem:[%s3686] sm:$0xff]
    %v3688 = vld [vmem:[%s3686 + $0x8] sm:$0xff]
    %v3689 = vld [vmem:[%s3686 + $0x10] sm:$0xff]
    %v3690 = vld [vmem:[%s3686 + $0x18] sm:$0xff]
    %v3691 = vld [vmem:[%s3686 + $0x20] sm:$0xff]
    %v3692 = vld [vmem:[%s3686 + $0x28] sm:$0xff]
    %v3693 = vld [vmem:[%s3686 + $0x30] sm:$0xff]
    %v3694 = vld [vmem:[%s3686 + $0x38] sm:$0xff]
    %v3695 = vld [vmem:[%s3686 + $0x40] sm:$0xff]
    %v3696 = vld [vmem:[%s3686 + $0x48] sm:$0xff]
    %v3697 = vld [vmem:[%s3686 + $0x50] sm:$0xff]
    %v3698 = vld [vmem:[%s3686 + $0x58] sm:$0xff]
    %v3699 = vld [vmem:[%s3686 + $0x60] sm:$0xff]
    %v3700 = vld [vmem:[%s3686 + $0x68] sm:$0xff]
    %v3701 = vld [vmem:[%s3686 + $0x70] sm:$0xff]
    %v3702 = vld [vmem:[%s3686 + $0x78] sm:$0xff]
    %v3703 = vld [vmem:[%s3686 + $0x80] sm:$0xff]
    %v3704 = vld [vmem:[%s3686 + $0x88] sm:$0xff]
    %v3705 = vld [vmem:[%s3686 + $0x90] sm:$0xff]
    %v3706 = vld [vmem:[%s3686 + $0x98] sm:$0xff]
    %v3707 = vld [vmem:[%s3686 + $0xa0] sm:$0xff]
    %v3708 = vld [vmem:[%s3686 + $0xa8] sm:$0xff]
    %3709 = vset.pattern.permute.xlu0 5
    %3710 = vperm.xlu0 %3709, %v1860
    %v3711 = vpop.permute.xlu0 %3710
    %3713 = vset.pattern.permute.xlu0 5
    %3714 = vperm.xlu0 %3713, %v1861
    %v3715 = vpop.permute.xlu0 %3714
    %3717 = vset.pattern.permute.xlu0 5
    %3718 = vperm.xlu0 %3717, %v1862
    %v3719 = vpop.permute.xlu0 %3718
    %3721 = vset.pattern.permute.xlu0 5
    %3722 = vperm.xlu0 %3721, %v1863
    %v3723 = vpop.permute.xlu0 %3722
    %3725 = vset.pattern.permute.xlu0 5
    %3726 = vperm.xlu0 %3725, %v1864
    %v3727 = vpop.permute.xlu0 %3726
    %3729 = vset.pattern.permute.xlu0 5
    %3730 = vperm.xlu0 %3729, %v1865
    %v3731 = vpop.permute.xlu0 %3730
    %3733 = vset.pattern.permute.xlu0 5
    %3734 = vperm.xlu0 %3733, %v1866
    %v3735 = vpop.permute.xlu0 %3734
    %3737 = vset.pattern.permute.xlu0 5
    %3738 = vperm.xlu0 %3737, %v1867
    %v3739 = vpop.permute.xlu0 %3738
    %3741 = vset.pattern.permute.xlu0 5
    %3742 = vperm.xlu0 %3741, %v1868
    %v3743 = vpop.permute.xlu0 %3742
    %3745 = vset.pattern.permute.xlu0 5
    %3746 = vperm.xlu0 %3745, %v1869
    %v3747 = vpop.permute.xlu0 %3746
    %3749 = vset.pattern.permute.xlu0 5
    %3750 = vperm.xlu0 %3749, %v1870
    %v3751 = vpop.permute.xlu0 %3750
    %3753 = vset.pattern.permute.xlu0 5
    %3754 = vperm.xlu0 %3753, %v1871
    %v3755 = vpop.permute.xlu0 %3754
    %3757 = vset.pattern.permute.xlu0 5
    %3758 = vperm.xlu0 %3757, %v1872
    %v3759 = vpop.permute.xlu0 %3758
    %3761 = vset.pattern.permute.xlu0 5
    %3762 = vperm.xlu0 %3761, %v1873
    %v3763 = vpop.permute.xlu0 %3762
    %3765 = vset.pattern.permute.xlu0 5
    %3766 = vperm.xlu0 %3765, %v1874
    %v3767 = vpop.permute.xlu0 %3766
    %3769 = vset.pattern.permute.xlu0 5
    %3770 = vperm.xlu0 %3769, %v1875
    %v3771 = vpop.permute.xlu0 %3770
    %3773 = vset.pattern.permute.xlu0 5
    %3774 = vperm.xlu0 %3773, %v1876
    %v3775 = vpop.permute.xlu0 %3774
    %3777 = vset.pattern.permute.xlu0 5
    %3778 = vperm.xlu0 %3777, %v1877
    %v3779 = vpop.permute.xlu0 %3778
    %3781 = vset.pattern.permute.xlu0 5
    %3782 = vperm.xlu0 %3781, %v1878
    %v3783 = vpop.permute.xlu0 %3782
    %3785 = vset.pattern.permute.xlu0 5
    %3786 = vperm.xlu0 %3785, %v1879
    %v3787 = vpop.permute.xlu0 %3786
    %3789 = vset.pattern.permute.xlu0 5
    %3790 = vperm.xlu0 %3789, %v1880
    %v3791 = vpop.permute.xlu0 %3790
    %3793 = vset.pattern.permute.xlu0 5
    %3794 = vperm.xlu0 %3793, %v1881
    %v3795 = vpop.permute.xlu0 %3794
    %3797 = vset.pattern.permute.xlu0 5
    %3798 = vperm.xlu0 %3797, %v1882
    %v3799 = vpop.permute.xlu0 %3798
    %3801 = vset.pattern.permute.xlu0 5
    %3802 = vperm.xlu0 %3801, %v1883
    %v3803 = vpop.permute.xlu0 %3802
    %3805 = vset.pattern.permute.xlu0 5
    %3806 = vperm.xlu0 %3805, %v1884
    %v3807 = vpop.permute.xlu0 %3806
    %3809 = vset.pattern.permute.xlu0 5
    %3810 = vperm.xlu0 %3809, %v1885
    %v3811 = vpop.permute.xlu0 %3810
    %3813 = vset.pattern.permute.xlu0 5
    %3814 = vperm.xlu0 %3813, %v1886
    %v3815 = vpop.permute.xlu0 %3814
    %3817 = vset.pattern.permute.xlu0 5
    %3818 = vperm.xlu0 %3817, %v1887
    %v3819 = vpop.permute.xlu0 %3818
    %3821 = vset.pattern.permute.xlu0 5
    %3822 = vperm.xlu0 %3821, %v1888
    %v3823 = vpop.permute.xlu0 %3822
    %3825 = vset.pattern.permute.xlu0 5
    %3826 = vperm.xlu0 %3825, %v1889
    %v3827 = vpop.permute.xlu0 %3826
    %3829 = vset.pattern.permute.xlu0 5
    %3830 = vperm.xlu0 %3829, %v1890
    %v3831 = vpop.permute.xlu0 %3830
    %3833 = vset.pattern.permute.xlu0 5
    %3834 = vperm.xlu0 %3833, %v1891
    %v3835 = vpop.permute.xlu0 %3834
    %3837 = vset.pattern.permute.xlu0 5
    %3838 = vperm.xlu0 %3837, %v1892
    %v3839 = vpop.permute.xlu0 %3838
    %3841 = vset.pattern.permute.xlu0 5
    %3842 = vperm.xlu0 %3841, %v1893
    %v3843 = vpop.permute.xlu0 %3842
    %3845 = vset.pattern.permute.xlu0 5
    %3846 = vperm.xlu0 %3845, %v1894
    %v3847 = vpop.permute.xlu0 %3846
    %3849 = vset.pattern.permute.xlu0 5
    %3850 = vperm.xlu0 %3849, %v1895
    %v3851 = vpop.permute.xlu0 %3850
    %3853 = vset.pattern.permute.xlu0 5
    %3854 = vperm.xlu0 %3853, %v1896
    %v3855 = vpop.permute.xlu0 %3854
    %3857 = vset.pattern.permute.xlu0 5
    %3858 = vperm.xlu0 %3857, %v1897
    %v3859 = vpop.permute.xlu0 %3858
    %3861 = vset.pattern.permute.xlu0 5
    %3862 = vperm.xlu0 %3861, %v1898
    %v3863 = vpop.permute.xlu0 %3862
    %3865 = vset.pattern.permute.xlu0 5
    %3866 = vperm.xlu0 %3865, %v1899
    %v3867 = vpop.permute.xlu0 %3866
    %3869 = vset.pattern.permute.xlu0 5
    %3870 = vperm.xlu0 %3869, %v1900
    %v3871 = vpop.permute.xlu0 %3870
    %3873 = vset.pattern.permute.xlu0 5
    %3874 = vperm.xlu0 %3873, %v1901
    %v3875 = vpop.permute.xlu0 %3874
    %3877 = vset.pattern.permute.xlu0 5
    %3878 = vperm.xlu0 %3877, %v1902
    %v3879 = vpop.permute.xlu0 %3878
    %3881 = vset.pattern.permute.xlu0 5
    %3882 = vperm.xlu0 %3881, %v1903
    %v3883 = vpop.permute.xlu0 %3882
    %v3885 = vmul.f32 %v3711, %v3687
    %v3886 = vmul.f32 %v3715, %v3688
    %v3887 = vmul.f32 %v3719, %v3689
    %v3888 = vmul.f32 %v3723, %v3690
    %v3889 = vmul.f32 %v3727, %v3691
    %v3890 = vmul.f32 %v3731, %v3692
    %v3891 = vmul.f32 %v3735, %v3693
    %v3892 = vmul.f32 %v3739, %v3694
    %v3893 = vmul.f32 %v3743, %v3695
    %v3894 = vmul.f32 %v3747, %v3696
    %v3895 = vmul.f32 %v3751, %v3697
    %v3896 = vmul.f32 %v3755, %v3698
    %v3897 = vmul.f32 %v3759, %v3699
    %v3898 = vmul.f32 %v3763, %v3700
    %v3899 = vmul.f32 %v3767, %v3701
    %v3900 = vmul.f32 %v3771, %v3702
    %v3901 = vmul.f32 %v3775, %v3703
    %v3902 = vmul.f32 %v3779, %v3704
    %v3903 = vmul.f32 %v3783, %v3705
    %v3904 = vmul.f32 %v3787, %v3706
    %v3905 = vmul.f32 %v3791, %v3707
    %v3906 = vmul.f32 %v3795, %v3708
    %v3907 = vmul.f32 %v3799, %v3687
    %v3908 = vmul.f32 %v3803, %v3688
    %v3909 = vmul.f32 %v3807, %v3689
    %v3910 = vmul.f32 %v3811, %v3690
    %v3911 = vmul.f32 %v3815, %v3691
    %v3912 = vmul.f32 %v3819, %v3692
    %v3913 = vmul.f32 %v3823, %v3693
    %v3914 = vmul.f32 %v3827, %v3694
    %v3915 = vmul.f32 %v3831, %v3695
    %v3916 = vmul.f32 %v3835, %v3696
    %v3917 = vmul.f32 %v3839, %v3697
    %v3918 = vmul.f32 %v3843, %v3698
    %v3919 = vmul.f32 %v3847, %v3699
    %v3920 = vmul.f32 %v3851, %v3700
    %v3921 = vmul.f32 %v3855, %v3701
    %v3922 = vmul.f32 %v3859, %v3702
    %v3923 = vmul.f32 %v3863, %v3703
    %v3924 = vmul.f32 %v3867, %v3704
    %v3925 = vmul.f32 %v3871, %v3705
    %v3926 = vmul.f32 %v3875, %v3706
    %v3927 = vmul.f32 %v3879, %v3707
    %v3928 = vmul.f32 %v3883, %v3708
    %v3929 = vsel %vm2197, %v3885, 0.0
    %v3930 = vsel %vm2197, %v3886, 0.0
    %v3931 = vadd.f32 %v3929, %v3930
    %v3932 = vsel %vm2197, %v3887, 0.0
    %v3933 = vadd.f32 %v3931, %v3932
    %v3934 = vsel %vm2197, %v3888, 0.0
    %v3935 = vadd.f32 %v3933, %v3934
    %v3936 = vsel %vm2197, %v3889, 0.0
    %v3937 = vadd.f32 %v3935, %v3936
    %v3938 = vsel %vm2197, %v3890, 0.0
    %v3939 = vadd.f32 %v3937, %v3938
    %v3940 = vsel %vm2197, %v3891, 0.0
    %v3941 = vadd.f32 %v3939, %v3940
    %v3942 = vsel %vm2197, %v3892, 0.0
    %v3943 = vadd.f32 %v3941, %v3942
    %v3944 = vsel %vm2197, %v3893, 0.0
    %v3945 = vadd.f32 %v3943, %v3944
    %v3946 = vsel %vm2197, %v3894, 0.0
    %v3947 = vadd.f32 %v3945, %v3946
    %v3948 = vsel %vm2197, %v3895, 0.0
    %v3949 = vadd.f32 %v3947, %v3948
    %v3950 = vsel %vm2197, %v3896, 0.0
    %v3951 = vadd.f32 %v3949, %v3950
    %v3952 = vsel %vm2197, %v3897, 0.0
    %v3953 = vadd.f32 %v3951, %v3952
    %v3954 = vsel %vm2197, %v3898, 0.0
    %v3955 = vadd.f32 %v3953, %v3954
    %v3956 = vsel %vm2197, %v3899, 0.0
    %v3957 = vadd.f32 %v3955, %v3956
    %v3958 = vsel %vm2197, %v3900, 0.0
    %v3959 = vadd.f32 %v3957, %v3958
    %v3960 = vsel %vm2197, %v3901, 0.0
    %v3961 = vadd.f32 %v3959, %v3960
    %v3962 = vsel %vm2197, %v3902, 0.0
    %v3963 = vadd.f32 %v3961, %v3962
    %v3964 = vsel %vm2197, %v3903, 0.0
    %v3965 = vadd.f32 %v3963, %v3964
    %v3966 = vsel %vm2197, %v3904, 0.0
    %v3967 = vadd.f32 %v3965, %v3966
    %v3968 = vsel %vm2197, %v3905, 0.0
    %v3969 = vadd.f32 %v3967, %v3968
    %v3970 = vsel %vm2197, %v3906, 0.0
    %v3971 = vadd.f32 %v3969, %v3970
    %v3972 = vrot.slane %v3971, 4
    %v3973 = vadd.f32 %v3971, %v3972
    %v3974 = vrot.slane %v3973, 2
    %v3975 = vadd.f32 %v3973, %v3974
    %v3976 = vrot.slane %v3975, 1
    %v3977 = vadd.f32 %v3975, %v3976
    %v3978 = vsel %vm2197, %v3907, 0.0
    %v3979 = vsel %vm2197, %v3908, 0.0
    %v3980 = vadd.f32 %v3978, %v3979
    %v3981 = vsel %vm2197, %v3909, 0.0
    %v3982 = vadd.f32 %v3980, %v3981
    %v3983 = vsel %vm2197, %v3910, 0.0
    %v3984 = vadd.f32 %v3982, %v3983
    %v3985 = vsel %vm2197, %v3911, 0.0
    %v3986 = vadd.f32 %v3984, %v3985
    %v3987 = vsel %vm2197, %v3912, 0.0
    %v3988 = vadd.f32 %v3986, %v3987
    %v3989 = vsel %vm2197, %v3913, 0.0
    %v3990 = vadd.f32 %v3988, %v3989
    %v3991 = vsel %vm2197, %v3914, 0.0
    %v3992 = vadd.f32 %v3990, %v3991
    %v3993 = vsel %vm2197, %v3915, 0.0
    %v3994 = vadd.f32 %v3992, %v3993
    %v3995 = vsel %vm2197, %v3916, 0.0
    %v3996 = vadd.f32 %v3994, %v3995
    %v3997 = vsel %vm2197, %v3917, 0.0
    %v3998 = vadd.f32 %v3996, %v3997
    %v3999 = vsel %vm2197, %v3918, 0.0
    %v4000 = vadd.f32 %v3998, %v3999
    %v4001 = vsel %vm2197, %v3919, 0.0
    %v4002 = vadd.f32 %v4000, %v4001
    %v4003 = vsel %vm2197, %v3920, 0.0
    %v4004 = vadd.f32 %v4002, %v4003
    %v4005 = vsel %vm2197, %v3921, 0.0
    %v4006 = vadd.f32 %v4004, %v4005
    %v4007 = vsel %vm2197, %v3922, 0.0
    %v4008 = vadd.f32 %v4006, %v4007
    %v4009 = vsel %vm2197, %v3923, 0.0
    %v4010 = vadd.f32 %v4008, %v4009
    %v4011 = vsel %vm2197, %v3924, 0.0
    %v4012 = vadd.f32 %v4010, %v4011
    %v4013 = vsel %vm2197, %v3925, 0.0
    %v4014 = vadd.f32 %v4012, %v4013
    %v4015 = vsel %vm2197, %v3926, 0.0
    %v4016 = vadd.f32 %v4014, %v4015
    %v4017 = vsel %vm2197, %v3927, 0.0
    %v4018 = vadd.f32 %v4016, %v4017
    %v4019 = vsel %vm2197, %v3928, 0.0
    %v4020 = vadd.f32 %v4018, %v4019
    %v4021 = vrot.slane %v4020, 4
    %v4022 = vadd.f32 %v4020, %v4021
    %v4023 = vrot.slane %v4022, 2
    %v4024 = vadd.f32 %v4022, %v4023
    %v4025 = vrot.slane %v4024, 1
    %v4026 = vadd.f32 %v4024, %v4025
    %v4029 = vsel %vm2298, %v4026, %v3977
    %v4031 = vadd.f32 %v3685, %v4029
    %s4032 = scalar_lea.vmem %s3, 1056
    %v4033 = vld [vmem:[%s4032] sm:$0xff]
    %v4034 = vld [vmem:[%s4032 + $0x8] sm:$0xff]
    %v4035 = vld [vmem:[%s4032 + $0x10] sm:$0xff]
    %v4036 = vld [vmem:[%s4032 + $0x18] sm:$0xff]
    %v4037 = vld [vmem:[%s4032 + $0x20] sm:$0xff]
    %v4038 = vld [vmem:[%s4032 + $0x28] sm:$0xff]
    %v4039 = vld [vmem:[%s4032 + $0x30] sm:$0xff]
    %v4040 = vld [vmem:[%s4032 + $0x38] sm:$0xff]
    %v4041 = vld [vmem:[%s4032 + $0x40] sm:$0xff]
    %v4042 = vld [vmem:[%s4032 + $0x48] sm:$0xff]
    %v4043 = vld [vmem:[%s4032 + $0x50] sm:$0xff]
    %v4044 = vld [vmem:[%s4032 + $0x58] sm:$0xff]
    %v4045 = vld [vmem:[%s4032 + $0x60] sm:$0xff]
    %v4046 = vld [vmem:[%s4032 + $0x68] sm:$0xff]
    %v4047 = vld [vmem:[%s4032 + $0x70] sm:$0xff]
    %v4048 = vld [vmem:[%s4032 + $0x78] sm:$0xff]
    %v4049 = vld [vmem:[%s4032 + $0x80] sm:$0xff]
    %v4050 = vld [vmem:[%s4032 + $0x88] sm:$0xff]
    %v4051 = vld [vmem:[%s4032 + $0x90] sm:$0xff]
    %v4052 = vld [vmem:[%s4032 + $0x98] sm:$0xff]
    %v4053 = vld [vmem:[%s4032 + $0xa0] sm:$0xff]
    %v4054 = vld [vmem:[%s4032 + $0xa8] sm:$0xff]
    %4055 = vset.pattern.permute.xlu0 6
    %4056 = vperm.xlu0 %4055, %v1860
    %v4057 = vpop.permute.xlu0 %4056
    %4059 = vset.pattern.permute.xlu0 6
    %4060 = vperm.xlu0 %4059, %v1861
    %v4061 = vpop.permute.xlu0 %4060
    %4063 = vset.pattern.permute.xlu0 6
    %4064 = vperm.xlu0 %4063, %v1862
    %v4065 = vpop.permute.xlu0 %4064
    %4067 = vset.pattern.permute.xlu0 6
    %4068 = vperm.xlu0 %4067, %v1863
    %v4069 = vpop.permute.xlu0 %4068
    %4071 = vset.pattern.permute.xlu0 6
    %4072 = vperm.xlu0 %4071, %v1864
    %v4073 = vpop.permute.xlu0 %4072
    %4075 = vset.pattern.permute.xlu0 6
    %4076 = vperm.xlu0 %4075, %v1865
    %v4077 = vpop.permute.xlu0 %4076
    %4079 = vset.pattern.permute.xlu0 6
    %4080 = vperm.xlu0 %4079, %v1866
    %v4081 = vpop.permute.xlu0 %4080
    %4083 = vset.pattern.permute.xlu0 6
    %4084 = vperm.xlu0 %4083, %v1867
    %v4085 = vpop.permute.xlu0 %4084
    %4087 = vset.pattern.permute.xlu0 6
    %4088 = vperm.xlu0 %4087, %v1868
    %v4089 = vpop.permute.xlu0 %4088
    %4091 = vset.pattern.permute.xlu0 6
    %4092 = vperm.xlu0 %4091, %v1869
    %v4093 = vpop.permute.xlu0 %4092
    %4095 = vset.pattern.permute.xlu0 6
    %4096 = vperm.xlu0 %4095, %v1870
    %v4097 = vpop.permute.xlu0 %4096
    %4099 = vset.pattern.permute.xlu0 6
    %4100 = vperm.xlu0 %4099, %v1871
    %v4101 = vpop.permute.xlu0 %4100
    %4103 = vset.pattern.permute.xlu0 6
    %4104 = vperm.xlu0 %4103, %v1872
    %v4105 = vpop.permute.xlu0 %4104
    %4107 = vset.pattern.permute.xlu0 6
    %4108 = vperm.xlu0 %4107, %v1873
    %v4109 = vpop.permute.xlu0 %4108
    %4111 = vset.pattern.permute.xlu0 6
    %4112 = vperm.xlu0 %4111, %v1874
    %v4113 = vpop.permute.xlu0 %4112
    %4115 = vset.pattern.permute.xlu0 6
    %4116 = vperm.xlu0 %4115, %v1875
    %v4117 = vpop.permute.xlu0 %4116
    %4119 = vset.pattern.permute.xlu0 6
    %4120 = vperm.xlu0 %4119, %v1876
    %v4121 = vpop.permute.xlu0 %4120
    %4123 = vset.pattern.permute.xlu0 6
    %4124 = vperm.xlu0 %4123, %v1877
    %v4125 = vpop.permute.xlu0 %4124
    %4127 = vset.pattern.permute.xlu0 6
    %4128 = vperm.xlu0 %4127, %v1878
    %v4129 = vpop.permute.xlu0 %4128
    %4131 = vset.pattern.permute.xlu0 6
    %4132 = vperm.xlu0 %4131, %v1879
    %v4133 = vpop.permute.xlu0 %4132
    %4135 = vset.pattern.permute.xlu0 6
    %4136 = vperm.xlu0 %4135, %v1880
    %v4137 = vpop.permute.xlu0 %4136
    %4139 = vset.pattern.permute.xlu0 6
    %4140 = vperm.xlu0 %4139, %v1881
    %v4141 = vpop.permute.xlu0 %4140
    %4143 = vset.pattern.permute.xlu0 6
    %4144 = vperm.xlu0 %4143, %v1882
    %v4145 = vpop.permute.xlu0 %4144
    %4147 = vset.pattern.permute.xlu0 6
    %4148 = vperm.xlu0 %4147, %v1883
    %v4149 = vpop.permute.xlu0 %4148
    %4151 = vset.pattern.permute.xlu0 6
    %4152 = vperm.xlu0 %4151, %v1884
    %v4153 = vpop.permute.xlu0 %4152
    %4155 = vset.pattern.permute.xlu0 6
    %4156 = vperm.xlu0 %4155, %v1885
    %v4157 = vpop.permute.xlu0 %4156
    %4159 = vset.pattern.permute.xlu0 6
    %4160 = vperm.xlu0 %4159, %v1886
    %v4161 = vpop.permute.xlu0 %4160
    %4163 = vset.pattern.permute.xlu0 6
    %4164 = vperm.xlu0 %4163, %v1887
    %v4165 = vpop.permute.xlu0 %4164
    %4167 = vset.pattern.permute.xlu0 6
    %4168 = vperm.xlu0 %4167, %v1888
    %v4169 = vpop.permute.xlu0 %4168
    %4171 = vset.pattern.permute.xlu0 6
    %4172 = vperm.xlu0 %4171, %v1889
    %v4173 = vpop.permute.xlu0 %4172
    %4175 = vset.pattern.permute.xlu0 6
    %4176 = vperm.xlu0 %4175, %v1890
    %v4177 = vpop.permute.xlu0 %4176
    %4179 = vset.pattern.permute.xlu0 6
    %4180 = vperm.xlu0 %4179, %v1891
    %v4181 = vpop.permute.xlu0 %4180
    %4183 = vset.pattern.permute.xlu0 6
    %4184 = vperm.xlu0 %4183, %v1892
    %v4185 = vpop.permute.xlu0 %4184
    %4187 = vset.pattern.permute.xlu0 6
    %4188 = vperm.xlu0 %4187, %v1893
    %v4189 = vpop.permute.xlu0 %4188
    %4191 = vset.pattern.permute.xlu0 6
    %4192 = vperm.xlu0 %4191, %v1894
    %v4193 = vpop.permute.xlu0 %4192
    %4195 = vset.pattern.permute.xlu0 6
    %4196 = vperm.xlu0 %4195, %v1895
    %v4197 = vpop.permute.xlu0 %4196
    %4199 = vset.pattern.permute.xlu0 6
    %4200 = vperm.xlu0 %4199, %v1896
    %v4201 = vpop.permute.xlu0 %4200
    %4203 = vset.pattern.permute.xlu0 6
    %4204 = vperm.xlu0 %4203, %v1897
    %v4205 = vpop.permute.xlu0 %4204
    %4207 = vset.pattern.permute.xlu0 6
    %4208 = vperm.xlu0 %4207, %v1898
    %v4209 = vpop.permute.xlu0 %4208
    %4211 = vset.pattern.permute.xlu0 6
    %4212 = vperm.xlu0 %4211, %v1899
    %v4213 = vpop.permute.xlu0 %4212
    %4215 = vset.pattern.permute.xlu0 6
    %4216 = vperm.xlu0 %4215, %v1900
    %v4217 = vpop.permute.xlu0 %4216
    %4219 = vset.pattern.permute.xlu0 6
    %4220 = vperm.xlu0 %4219, %v1901
    %v4221 = vpop.permute.xlu0 %4220
    %4223 = vset.pattern.permute.xlu0 6
    %4224 = vperm.xlu0 %4223, %v1902
    %v4225 = vpop.permute.xlu0 %4224
    %4227 = vset.pattern.permute.xlu0 6
    %4228 = vperm.xlu0 %4227, %v1903
    %v4229 = vpop.permute.xlu0 %4228
    %v4231 = vmul.f32 %v4057, %v4033
    %v4232 = vmul.f32 %v4061, %v4034
    %v4233 = vmul.f32 %v4065, %v4035
    %v4234 = vmul.f32 %v4069, %v4036
    %v4235 = vmul.f32 %v4073, %v4037
    %v4236 = vmul.f32 %v4077, %v4038
    %v4237 = vmul.f32 %v4081, %v4039
    %v4238 = vmul.f32 %v4085, %v4040
    %v4239 = vmul.f32 %v4089, %v4041
    %v4240 = vmul.f32 %v4093, %v4042
    %v4241 = vmul.f32 %v4097, %v4043
    %v4242 = vmul.f32 %v4101, %v4044
    %v4243 = vmul.f32 %v4105, %v4045
    %v4244 = vmul.f32 %v4109, %v4046
    %v4245 = vmul.f32 %v4113, %v4047
    %v4246 = vmul.f32 %v4117, %v4048
    %v4247 = vmul.f32 %v4121, %v4049
    %v4248 = vmul.f32 %v4125, %v4050
    %v4249 = vmul.f32 %v4129, %v4051
    %v4250 = vmul.f32 %v4133, %v4052
    %v4251 = vmul.f32 %v4137, %v4053
    %v4252 = vmul.f32 %v4141, %v4054
    %v4253 = vmul.f32 %v4145, %v4033
    %v4254 = vmul.f32 %v4149, %v4034
    %v4255 = vmul.f32 %v4153, %v4035
    %v4256 = vmul.f32 %v4157, %v4036
    %v4257 = vmul.f32 %v4161, %v4037
    %v4258 = vmul.f32 %v4165, %v4038
    %v4259 = vmul.f32 %v4169, %v4039
    %v4260 = vmul.f32 %v4173, %v4040
    %v4261 = vmul.f32 %v4177, %v4041
    %v4262 = vmul.f32 %v4181, %v4042
    %v4263 = vmul.f32 %v4185, %v4043
    %v4264 = vmul.f32 %v4189, %v4044
    %v4265 = vmul.f32 %v4193, %v4045
    %v4266 = vmul.f32 %v4197, %v4046
    %v4267 = vmul.f32 %v4201, %v4047
    %v4268 = vmul.f32 %v4205, %v4048
    %v4269 = vmul.f32 %v4209, %v4049
    %v4270 = vmul.f32 %v4213, %v4050
    %v4271 = vmul.f32 %v4217, %v4051
    %v4272 = vmul.f32 %v4221, %v4052
    %v4273 = vmul.f32 %v4225, %v4053
    %v4274 = vmul.f32 %v4229, %v4054
    %v4275 = vsel %vm2197, %v4231, 0.0
    %v4276 = vsel %vm2197, %v4232, 0.0
    %v4277 = vadd.f32 %v4275, %v4276
    %v4278 = vsel %vm2197, %v4233, 0.0
    %v4279 = vadd.f32 %v4277, %v4278
    %v4280 = vsel %vm2197, %v4234, 0.0
    %v4281 = vadd.f32 %v4279, %v4280
    %v4282 = vsel %vm2197, %v4235, 0.0
    %v4283 = vadd.f32 %v4281, %v4282
    %v4284 = vsel %vm2197, %v4236, 0.0
    %v4285 = vadd.f32 %v4283, %v4284
    %v4286 = vsel %vm2197, %v4237, 0.0
    %v4287 = vadd.f32 %v4285, %v4286
    %v4288 = vsel %vm2197, %v4238, 0.0
    %v4289 = vadd.f32 %v4287, %v4288
    %v4290 = vsel %vm2197, %v4239, 0.0
    %v4291 = vadd.f32 %v4289, %v4290
    %v4292 = vsel %vm2197, %v4240, 0.0
    %v4293 = vadd.f32 %v4291, %v4292
    %v4294 = vsel %vm2197, %v4241, 0.0
    %v4295 = vadd.f32 %v4293, %v4294
    %v4296 = vsel %vm2197, %v4242, 0.0
    %v4297 = vadd.f32 %v4295, %v4296
    %v4298 = vsel %vm2197, %v4243, 0.0
    %v4299 = vadd.f32 %v4297, %v4298
    %v4300 = vsel %vm2197, %v4244, 0.0
    %v4301 = vadd.f32 %v4299, %v4300
    %v4302 = vsel %vm2197, %v4245, 0.0
    %v4303 = vadd.f32 %v4301, %v4302
    %v4304 = vsel %vm2197, %v4246, 0.0
    %v4305 = vadd.f32 %v4303, %v4304
    %v4306 = vsel %vm2197, %v4247, 0.0
    %v4307 = vadd.f32 %v4305, %v4306
    %v4308 = vsel %vm2197, %v4248, 0.0
    %v4309 = vadd.f32 %v4307, %v4308
    %v4310 = vsel %vm2197, %v4249, 0.0
    %v4311 = vadd.f32 %v4309, %v4310
    %v4312 = vsel %vm2197, %v4250, 0.0
    %v4313 = vadd.f32 %v4311, %v4312
    %v4314 = vsel %vm2197, %v4251, 0.0
    %v4315 = vadd.f32 %v4313, %v4314
    %v4316 = vsel %vm2197, %v4252, 0.0
    %v4317 = vadd.f32 %v4315, %v4316
    %v4318 = vrot.slane %v4317, 4
    %v4319 = vadd.f32 %v4317, %v4318
    %v4320 = vrot.slane %v4319, 2
    %v4321 = vadd.f32 %v4319, %v4320
    %v4322 = vrot.slane %v4321, 1
    %v4323 = vadd.f32 %v4321, %v4322
    %v4324 = vsel %vm2197, %v4253, 0.0
    %v4325 = vsel %vm2197, %v4254, 0.0
    %v4326 = vadd.f32 %v4324, %v4325
    %v4327 = vsel %vm2197, %v4255, 0.0
    %v4328 = vadd.f32 %v4326, %v4327
    %v4329 = vsel %vm2197, %v4256, 0.0
    %v4330 = vadd.f32 %v4328, %v4329
    %v4331 = vsel %vm2197, %v4257, 0.0
    %v4332 = vadd.f32 %v4330, %v4331
    %v4333 = vsel %vm2197, %v4258, 0.0
    %v4334 = vadd.f32 %v4332, %v4333
    %v4335 = vsel %vm2197, %v4259, 0.0
    %v4336 = vadd.f32 %v4334, %v4335
    %v4337 = vsel %vm2197, %v4260, 0.0
    %v4338 = vadd.f32 %v4336, %v4337
    %v4339 = vsel %vm2197, %v4261, 0.0
    %v4340 = vadd.f32 %v4338, %v4339
    %v4341 = vsel %vm2197, %v4262, 0.0
    %v4342 = vadd.f32 %v4340, %v4341
    %v4343 = vsel %vm2197, %v4263, 0.0
    %v4344 = vadd.f32 %v4342, %v4343
    %v4345 = vsel %vm2197, %v4264, 0.0
    %v4346 = vadd.f32 %v4344, %v4345
    %v4347 = vsel %vm2197, %v4265, 0.0
    %v4348 = vadd.f32 %v4346, %v4347
    %v4349 = vsel %vm2197, %v4266, 0.0
    %v4350 = vadd.f32 %v4348, %v4349
    %v4351 = vsel %vm2197, %v4267, 0.0
    %v4352 = vadd.f32 %v4350, %v4351
    %v4353 = vsel %vm2197, %v4268, 0.0
    %v4354 = vadd.f32 %v4352, %v4353
    %v4355 = vsel %vm2197, %v4269, 0.0
    %v4356 = vadd.f32 %v4354, %v4355
    %v4357 = vsel %vm2197, %v4270, 0.0
    %v4358 = vadd.f32 %v4356, %v4357
    %v4359 = vsel %vm2197, %v4271, 0.0
    %v4360 = vadd.f32 %v4358, %v4359
    %v4361 = vsel %vm2197, %v4272, 0.0
    %v4362 = vadd.f32 %v4360, %v4361
    %v4363 = vsel %vm2197, %v4273, 0.0
    %v4364 = vadd.f32 %v4362, %v4363
    %v4365 = vsel %vm2197, %v4274, 0.0
    %v4366 = vadd.f32 %v4364, %v4365
    %v4367 = vrot.slane %v4366, 4
    %v4368 = vadd.f32 %v4366, %v4367
    %v4369 = vrot.slane %v4368, 2
    %v4370 = vadd.f32 %v4368, %v4369
    %v4371 = vrot.slane %v4370, 1
    %v4372 = vadd.f32 %v4370, %v4371
    %v4375 = vsel %vm2298, %v4372, %v4323
    %v4377 = vadd.f32 %v4031, %v4375
    %s4378 = scalar_lea.vmem %s3, 1232
    %v4379 = vld [vmem:[%s4378] sm:$0xff]
    %v4380 = vld [vmem:[%s4378 + $0x8] sm:$0xff]
    %v4381 = vld [vmem:[%s4378 + $0x10] sm:$0xff]
    %v4382 = vld [vmem:[%s4378 + $0x18] sm:$0xff]
    %v4383 = vld [vmem:[%s4378 + $0x20] sm:$0xff]
    %v4384 = vld [vmem:[%s4378 + $0x28] sm:$0xff]
    %v4385 = vld [vmem:[%s4378 + $0x30] sm:$0xff]
    %v4386 = vld [vmem:[%s4378 + $0x38] sm:$0xff]
    %v4387 = vld [vmem:[%s4378 + $0x40] sm:$0xff]
    %v4388 = vld [vmem:[%s4378 + $0x48] sm:$0xff]
    %v4389 = vld [vmem:[%s4378 + $0x50] sm:$0xff]
    %v4390 = vld [vmem:[%s4378 + $0x58] sm:$0xff]
    %v4391 = vld [vmem:[%s4378 + $0x60] sm:$0xff]
    %v4392 = vld [vmem:[%s4378 + $0x68] sm:$0xff]
    %v4393 = vld [vmem:[%s4378 + $0x70] sm:$0xff]
    %v4394 = vld [vmem:[%s4378 + $0x78] sm:$0xff]
    %v4395 = vld [vmem:[%s4378 + $0x80] sm:$0xff]
    %v4396 = vld [vmem:[%s4378 + $0x88] sm:$0xff]
    %v4397 = vld [vmem:[%s4378 + $0x90] sm:$0xff]
    %v4398 = vld [vmem:[%s4378 + $0x98] sm:$0xff]
    %v4399 = vld [vmem:[%s4378 + $0xa0] sm:$0xff]
    %v4400 = vld [vmem:[%s4378 + $0xa8] sm:$0xff]
    %4401 = vset.pattern.permute.xlu0 7
    %4402 = vperm.xlu0 %4401, %v1860
    %v4403 = vpop.permute.xlu0 %4402
    %4405 = vset.pattern.permute.xlu0 7
    %4406 = vperm.xlu0 %4405, %v1861
    %v4407 = vpop.permute.xlu0 %4406
    %4409 = vset.pattern.permute.xlu0 7
    %4410 = vperm.xlu0 %4409, %v1862
    %v4411 = vpop.permute.xlu0 %4410
    %4413 = vset.pattern.permute.xlu0 7
    %4414 = vperm.xlu0 %4413, %v1863
    %v4415 = vpop.permute.xlu0 %4414
    %4417 = vset.pattern.permute.xlu0 7
    %4418 = vperm.xlu0 %4417, %v1864
    %v4419 = vpop.permute.xlu0 %4418
    %4421 = vset.pattern.permute.xlu0 7
    %4422 = vperm.xlu0 %4421, %v1865
    %v4423 = vpop.permute.xlu0 %4422
    %4425 = vset.pattern.permute.xlu0 7
    %4426 = vperm.xlu0 %4425, %v1866
    %v4427 = vpop.permute.xlu0 %4426
    %4429 = vset.pattern.permute.xlu0 7
    %4430 = vperm.xlu0 %4429, %v1867
    %v4431 = vpop.permute.xlu0 %4430
    %4433 = vset.pattern.permute.xlu0 7
    %4434 = vperm.xlu0 %4433, %v1868
    %v4435 = vpop.permute.xlu0 %4434
    %4437 = vset.pattern.permute.xlu0 7
    %4438 = vperm.xlu0 %4437, %v1869
    %v4439 = vpop.permute.xlu0 %4438
    %4441 = vset.pattern.permute.xlu0 7
    %4442 = vperm.xlu0 %4441, %v1870
    %v4443 = vpop.permute.xlu0 %4442
    %4445 = vset.pattern.permute.xlu0 7
    %4446 = vperm.xlu0 %4445, %v1871
    %v4447 = vpop.permute.xlu0 %4446
    %4449 = vset.pattern.permute.xlu0 7
    %4450 = vperm.xlu0 %4449, %v1872
    %v4451 = vpop.permute.xlu0 %4450
    %4453 = vset.pattern.permute.xlu0 7
    %4454 = vperm.xlu0 %4453, %v1873
    %v4455 = vpop.permute.xlu0 %4454
    %4457 = vset.pattern.permute.xlu0 7
    %4458 = vperm.xlu0 %4457, %v1874
    %v4459 = vpop.permute.xlu0 %4458
    %4461 = vset.pattern.permute.xlu0 7
    %4462 = vperm.xlu0 %4461, %v1875
    %v4463 = vpop.permute.xlu0 %4462
    %4465 = vset.pattern.permute.xlu0 7
    %4466 = vperm.xlu0 %4465, %v1876
    %v4467 = vpop.permute.xlu0 %4466
    %4469 = vset.pattern.permute.xlu0 7
    %4470 = vperm.xlu0 %4469, %v1877
    %v4471 = vpop.permute.xlu0 %4470
    %4473 = vset.pattern.permute.xlu0 7
    %4474 = vperm.xlu0 %4473, %v1878
    %v4475 = vpop.permute.xlu0 %4474
    %4477 = vset.pattern.permute.xlu0 7
    %4478 = vperm.xlu0 %4477, %v1879
    %v4479 = vpop.permute.xlu0 %4478
    %4481 = vset.pattern.permute.xlu0 7
    %4482 = vperm.xlu0 %4481, %v1880
    %v4483 = vpop.permute.xlu0 %4482
    %4485 = vset.pattern.permute.xlu0 7
    %4486 = vperm.xlu0 %4485, %v1881
    %v4487 = vpop.permute.xlu0 %4486
    %4489 = vset.pattern.permute.xlu0 7
    %4490 = vperm.xlu0 %4489, %v1882
    %v4491 = vpop.permute.xlu0 %4490
    %4493 = vset.pattern.permute.xlu0 7
    %4494 = vperm.xlu0 %4493, %v1883
    %v4495 = vpop.permute.xlu0 %4494
    %4497 = vset.pattern.permute.xlu0 7
    %4498 = vperm.xlu0 %4497, %v1884
    %v4499 = vpop.permute.xlu0 %4498
    %4501 = vset.pattern.permute.xlu0 7
    %4502 = vperm.xlu0 %4501, %v1885
    %v4503 = vpop.permute.xlu0 %4502
    %4505 = vset.pattern.permute.xlu0 7
    %4506 = vperm.xlu0 %4505, %v1886
    %v4507 = vpop.permute.xlu0 %4506
    %4509 = vset.pattern.permute.xlu0 7
    %4510 = vperm.xlu0 %4509, %v1887
    %v4511 = vpop.permute.xlu0 %4510
    %4513 = vset.pattern.permute.xlu0 7
    %4514 = vperm.xlu0 %4513, %v1888
    %v4515 = vpop.permute.xlu0 %4514
    %4517 = vset.pattern.permute.xlu0 7
    %4518 = vperm.xlu0 %4517, %v1889
    %v4519 = vpop.permute.xlu0 %4518
    %4521 = vset.pattern.permute.xlu0 7
    %4522 = vperm.xlu0 %4521, %v1890
    %v4523 = vpop.permute.xlu0 %4522
    %4525 = vset.pattern.permute.xlu0 7
    %4526 = vperm.xlu0 %4525, %v1891
    %v4527 = vpop.permute.xlu0 %4526
    %4529 = vset.pattern.permute.xlu0 7
    %4530 = vperm.xlu0 %4529, %v1892
    %v4531 = vpop.permute.xlu0 %4530
    %4533 = vset.pattern.permute.xlu0 7
    %4534 = vperm.xlu0 %4533, %v1893
    %v4535 = vpop.permute.xlu0 %4534
    %4537 = vset.pattern.permute.xlu0 7
    %4538 = vperm.xlu0 %4537, %v1894
    %v4539 = vpop.permute.xlu0 %4538
    %4541 = vset.pattern.permute.xlu0 7
    %4542 = vperm.xlu0 %4541, %v1895
    %v4543 = vpop.permute.xlu0 %4542
    %4545 = vset.pattern.permute.xlu0 7
    %4546 = vperm.xlu0 %4545, %v1896
    %v4547 = vpop.permute.xlu0 %4546
    %4549 = vset.pattern.permute.xlu0 7
    %4550 = vperm.xlu0 %4549, %v1897
    %v4551 = vpop.permute.xlu0 %4550
    %4553 = vset.pattern.permute.xlu0 7
    %4554 = vperm.xlu0 %4553, %v1898
    %v4555 = vpop.permute.xlu0 %4554
    %4557 = vset.pattern.permute.xlu0 7
    %4558 = vperm.xlu0 %4557, %v1899
    %v4559 = vpop.permute.xlu0 %4558
    %4561 = vset.pattern.permute.xlu0 7
    %4562 = vperm.xlu0 %4561, %v1900
    %v4563 = vpop.permute.xlu0 %4562
    %4565 = vset.pattern.permute.xlu0 7
    %4566 = vperm.xlu0 %4565, %v1901
    %v4567 = vpop.permute.xlu0 %4566
    %4569 = vset.pattern.permute.xlu0 7
    %4570 = vperm.xlu0 %4569, %v1902
    %v4571 = vpop.permute.xlu0 %4570
    %4573 = vset.pattern.permute.xlu0 7
    %4574 = vperm.xlu0 %4573, %v1903
    %v4575 = vpop.permute.xlu0 %4574
    %v4577 = vmul.f32 %v4403, %v4379
    %v4578 = vmul.f32 %v4407, %v4380
    %v4579 = vmul.f32 %v4411, %v4381
    %v4580 = vmul.f32 %v4415, %v4382
    %v4581 = vmul.f32 %v4419, %v4383
    %v4582 = vmul.f32 %v4423, %v4384
    %v4583 = vmul.f32 %v4427, %v4385
    %v4584 = vmul.f32 %v4431, %v4386
    %v4585 = vmul.f32 %v4435, %v4387
    %v4586 = vmul.f32 %v4439, %v4388
    %v4587 = vmul.f32 %v4443, %v4389
    %v4588 = vmul.f32 %v4447, %v4390
    %v4589 = vmul.f32 %v4451, %v4391
    %v4590 = vmul.f32 %v4455, %v4392
    %v4591 = vmul.f32 %v4459, %v4393
    %v4592 = vmul.f32 %v4463, %v4394
    %v4593 = vmul.f32 %v4467, %v4395
    %v4594 = vmul.f32 %v4471, %v4396
    %v4595 = vmul.f32 %v4475, %v4397
    %v4596 = vmul.f32 %v4479, %v4398
    %v4597 = vmul.f32 %v4483, %v4399
    %v4598 = vmul.f32 %v4487, %v4400
    %v4599 = vmul.f32 %v4491, %v4379
    %v4600 = vmul.f32 %v4495, %v4380
    %v4601 = vmul.f32 %v4499, %v4381
    %v4602 = vmul.f32 %v4503, %v4382
    %v4603 = vmul.f32 %v4507, %v4383
    %v4604 = vmul.f32 %v4511, %v4384
    %v4605 = vmul.f32 %v4515, %v4385
    %v4606 = vmul.f32 %v4519, %v4386
    %v4607 = vmul.f32 %v4523, %v4387
    %v4608 = vmul.f32 %v4527, %v4388
    %v4609 = vmul.f32 %v4531, %v4389
    %v4610 = vmul.f32 %v4535, %v4390
    %v4611 = vmul.f32 %v4539, %v4391
    %v4612 = vmul.f32 %v4543, %v4392
    %v4613 = vmul.f32 %v4547, %v4393
    %v4614 = vmul.f32 %v4551, %v4394
    %v4615 = vmul.f32 %v4555, %v4395
    %v4616 = vmul.f32 %v4559, %v4396
    %v4617 = vmul.f32 %v4563, %v4397
    %v4618 = vmul.f32 %v4567, %v4398
    %v4619 = vmul.f32 %v4571, %v4399
    %v4620 = vmul.f32 %v4575, %v4400
    %v4621 = vsel %vm2197, %v4577, 0.0
    %v4622 = vsel %vm2197, %v4578, 0.0
    %v4623 = vadd.f32 %v4621, %v4622
    %v4624 = vsel %vm2197, %v4579, 0.0
    %v4625 = vadd.f32 %v4623, %v4624
    %v4626 = vsel %vm2197, %v4580, 0.0
    %v4627 = vadd.f32 %v4625, %v4626
    %v4628 = vsel %vm2197, %v4581, 0.0
    %v4629 = vadd.f32 %v4627, %v4628
    %v4630 = vsel %vm2197, %v4582, 0.0
    %v4631 = vadd.f32 %v4629, %v4630
    %v4632 = vsel %vm2197, %v4583, 0.0
    %v4633 = vadd.f32 %v4631, %v4632
    %v4634 = vsel %vm2197, %v4584, 0.0
    %v4635 = vadd.f32 %v4633, %v4634
    %v4636 = vsel %vm2197, %v4585, 0.0
    %v4637 = vadd.f32 %v4635, %v4636
    %v4638 = vsel %vm2197, %v4586, 0.0
    %v4639 = vadd.f32 %v4637, %v4638
    %v4640 = vsel %vm2197, %v4587, 0.0
    %v4641 = vadd.f32 %v4639, %v4640
    %v4642 = vsel %vm2197, %v4588, 0.0
    %v4643 = vadd.f32 %v4641, %v4642
    %v4644 = vsel %vm2197, %v4589, 0.0
    %v4645 = vadd.f32 %v4643, %v4644
    %v4646 = vsel %vm2197, %v4590, 0.0
    %v4647 = vadd.f32 %v4645, %v4646
    %v4648 = vsel %vm2197, %v4591, 0.0
    %v4649 = vadd.f32 %v4647, %v4648
    %v4650 = vsel %vm2197, %v4592, 0.0
    %v4651 = vadd.f32 %v4649, %v4650
    %v4652 = vsel %vm2197, %v4593, 0.0
    %v4653 = vadd.f32 %v4651, %v4652
    %v4654 = vsel %vm2197, %v4594, 0.0
    %v4655 = vadd.f32 %v4653, %v4654
    %v4656 = vsel %vm2197, %v4595, 0.0
    %v4657 = vadd.f32 %v4655, %v4656
    %v4658 = vsel %vm2197, %v4596, 0.0
    %v4659 = vadd.f32 %v4657, %v4658
    %v4660 = vsel %vm2197, %v4597, 0.0
    %v4661 = vadd.f32 %v4659, %v4660
    %v4662 = vsel %vm2197, %v4598, 0.0
    %v4663 = vadd.f32 %v4661, %v4662
    %v4664 = vrot.slane %v4663, 4
    %v4665 = vadd.f32 %v4663, %v4664
    %v4666 = vrot.slane %v4665, 2
    %v4667 = vadd.f32 %v4665, %v4666
    %v4668 = vrot.slane %v4667, 1
    %v4669 = vadd.f32 %v4667, %v4668
    %v4670 = vsel %vm2197, %v4599, 0.0
    %v4671 = vsel %vm2197, %v4600, 0.0
    %v4672 = vadd.f32 %v4670, %v4671
    %v4673 = vsel %vm2197, %v4601, 0.0
    %v4674 = vadd.f32 %v4672, %v4673
    %v4675 = vsel %vm2197, %v4602, 0.0
    %v4676 = vadd.f32 %v4674, %v4675
    %v4677 = vsel %vm2197, %v4603, 0.0
    %v4678 = vadd.f32 %v4676, %v4677
    %v4679 = vsel %vm2197, %v4604, 0.0
    %v4680 = vadd.f32 %v4678, %v4679
    %v4681 = vsel %vm2197, %v4605, 0.0
    %v4682 = vadd.f32 %v4680, %v4681
    %v4683 = vsel %vm2197, %v4606, 0.0
    %v4684 = vadd.f32 %v4682, %v4683
    %v4685 = vsel %vm2197, %v4607, 0.0
    %v4686 = vadd.f32 %v4684, %v4685
    %v4687 = vsel %vm2197, %v4608, 0.0
    %v4688 = vadd.f32 %v4686, %v4687
    %v4689 = vsel %vm2197, %v4609, 0.0
    %v4690 = vadd.f32 %v4688, %v4689
    %v4691 = vsel %vm2197, %v4610, 0.0
    %v4692 = vadd.f32 %v4690, %v4691
    %v4693 = vsel %vm2197, %v4611, 0.0
    %v4694 = vadd.f32 %v4692, %v4693
    %v4695 = vsel %vm2197, %v4612, 0.0
    %v4696 = vadd.f32 %v4694, %v4695
    %v4697 = vsel %vm2197, %v4613, 0.0
    %v4698 = vadd.f32 %v4696, %v4697
    %v4699 = vsel %vm2197, %v4614, 0.0
    %v4700 = vadd.f32 %v4698, %v4699
    %v4701 = vsel %vm2197, %v4615, 0.0
    %v4702 = vadd.f32 %v4700, %v4701
    %v4703 = vsel %vm2197, %v4616, 0.0
    %v4704 = vadd.f32 %v4702, %v4703
    %v4705 = vsel %vm2197, %v4617, 0.0
    %v4706 = vadd.f32 %v4704, %v4705
    %v4707 = vsel %vm2197, %v4618, 0.0
    %v4708 = vadd.f32 %v4706, %v4707
    %v4709 = vsel %vm2197, %v4619, 0.0
    %v4710 = vadd.f32 %v4708, %v4709
    %v4711 = vsel %vm2197, %v4620, 0.0
    %v4712 = vadd.f32 %v4710, %v4711
    %v4713 = vrot.slane %v4712, 4
    %v4714 = vadd.f32 %v4712, %v4713
    %v4715 = vrot.slane %v4714, 2
    %v4716 = vadd.f32 %v4714, %v4715
    %v4717 = vrot.slane %v4716, 1
    %v4718 = vadd.f32 %v4716, %v4717
    %v4721 = vsel %vm2298, %v4718, %v4669
    %v4723 = vadd.f32 %v4377, %v4721
    %s4724 = scalar_lea.vmem %s3, 1408
    %v4725 = vld [vmem:[%s4724] sm:$0xff]
    %v4726 = vld [vmem:[%s4724 + $0x8] sm:$0xff]
    %v4727 = vld [vmem:[%s4724 + $0x10] sm:$0xff]
    %v4728 = vld [vmem:[%s4724 + $0x18] sm:$0xff]
    %v4729 = vld [vmem:[%s4724 + $0x20] sm:$0xff]
    %v4730 = vld [vmem:[%s4724 + $0x28] sm:$0xff]
    %v4731 = vld [vmem:[%s4724 + $0x30] sm:$0xff]
    %v4732 = vld [vmem:[%s4724 + $0x38] sm:$0xff]
    %v4733 = vld [vmem:[%s4724 + $0x40] sm:$0xff]
    %v4734 = vld [vmem:[%s4724 + $0x48] sm:$0xff]
    %v4735 = vld [vmem:[%s4724 + $0x50] sm:$0xff]
    %v4736 = vld [vmem:[%s4724 + $0x58] sm:$0xff]
    %v4737 = vld [vmem:[%s4724 + $0x60] sm:$0xff]
    %v4738 = vld [vmem:[%s4724 + $0x68] sm:$0xff]
    %v4739 = vld [vmem:[%s4724 + $0x70] sm:$0xff]
    %v4740 = vld [vmem:[%s4724 + $0x78] sm:$0xff]
    %v4741 = vld [vmem:[%s4724 + $0x80] sm:$0xff]
    %v4742 = vld [vmem:[%s4724 + $0x88] sm:$0xff]
    %v4743 = vld [vmem:[%s4724 + $0x90] sm:$0xff]
    %v4744 = vld [vmem:[%s4724 + $0x98] sm:$0xff]
    %v4745 = vld [vmem:[%s4724 + $0xa0] sm:$0xff]
    %v4746 = vld [vmem:[%s4724 + $0xa8] sm:$0xff]
    %4747 = vset.pattern.permute.xlu0 8
    %4748 = vperm.xlu0 %4747, %v1860
    %v4749 = vpop.permute.xlu0 %4748
    %4751 = vset.pattern.permute.xlu0 8
    %4752 = vperm.xlu0 %4751, %v1861
    %v4753 = vpop.permute.xlu0 %4752
    %4755 = vset.pattern.permute.xlu0 8
    %4756 = vperm.xlu0 %4755, %v1862
    %v4757 = vpop.permute.xlu0 %4756
    %4759 = vset.pattern.permute.xlu0 8
    %4760 = vperm.xlu0 %4759, %v1863
    %v4761 = vpop.permute.xlu0 %4760
    %4763 = vset.pattern.permute.xlu0 8
    %4764 = vperm.xlu0 %4763, %v1864
    %v4765 = vpop.permute.xlu0 %4764
    %4767 = vset.pattern.permute.xlu0 8
    %4768 = vperm.xlu0 %4767, %v1865
    %v4769 = vpop.permute.xlu0 %4768
    %4771 = vset.pattern.permute.xlu0 8
    %4772 = vperm.xlu0 %4771, %v1866
    %v4773 = vpop.permute.xlu0 %4772
    %4775 = vset.pattern.permute.xlu0 8
    %4776 = vperm.xlu0 %4775, %v1867
    %v4777 = vpop.permute.xlu0 %4776
    %4779 = vset.pattern.permute.xlu0 8
    %4780 = vperm.xlu0 %4779, %v1868
    %v4781 = vpop.permute.xlu0 %4780
    %4783 = vset.pattern.permute.xlu0 8
    %4784 = vperm.xlu0 %4783, %v1869
    %v4785 = vpop.permute.xlu0 %4784
    %4787 = vset.pattern.permute.xlu0 8
    %4788 = vperm.xlu0 %4787, %v1870
    %v4789 = vpop.permute.xlu0 %4788
    %4791 = vset.pattern.permute.xlu0 8
    %4792 = vperm.xlu0 %4791, %v1871
    %v4793 = vpop.permute.xlu0 %4792
    %4795 = vset.pattern.permute.xlu0 8
    %4796 = vperm.xlu0 %4795, %v1872
    %v4797 = vpop.permute.xlu0 %4796
    %4799 = vset.pattern.permute.xlu0 8
    %4800 = vperm.xlu0 %4799, %v1873
    %v4801 = vpop.permute.xlu0 %4800
    %4803 = vset.pattern.permute.xlu0 8
    %4804 = vperm.xlu0 %4803, %v1874
    %v4805 = vpop.permute.xlu0 %4804
    %4807 = vset.pattern.permute.xlu0 8
    %4808 = vperm.xlu0 %4807, %v1875
    %v4809 = vpop.permute.xlu0 %4808
    %4811 = vset.pattern.permute.xlu0 8
    %4812 = vperm.xlu0 %4811, %v1876
    %v4813 = vpop.permute.xlu0 %4812
    %4815 = vset.pattern.permute.xlu0 8
    %4816 = vperm.xlu0 %4815, %v1877
    %v4817 = vpop.permute.xlu0 %4816
    %4819 = vset.pattern.permute.xlu0 8
    %4820 = vperm.xlu0 %4819, %v1878
    %v4821 = vpop.permute.xlu0 %4820
    %4823 = vset.pattern.permute.xlu0 8
    %4824 = vperm.xlu0 %4823, %v1879
    %v4825 = vpop.permute.xlu0 %4824
    %4827 = vset.pattern.permute.xlu0 8
    %4828 = vperm.xlu0 %4827, %v1880
    %v4829 = vpop.permute.xlu0 %4828
    %4831 = vset.pattern.permute.xlu0 8
    %4832 = vperm.xlu0 %4831, %v1881
    %v4833 = vpop.permute.xlu0 %4832
    %4835 = vset.pattern.permute.xlu0 8
    %4836 = vperm.xlu0 %4835, %v1882
    %v4837 = vpop.permute.xlu0 %4836
    %4839 = vset.pattern.permute.xlu0 8
    %4840 = vperm.xlu0 %4839, %v1883
    %v4841 = vpop.permute.xlu0 %4840
    %4843 = vset.pattern.permute.xlu0 8
    %4844 = vperm.xlu0 %4843, %v1884
    %v4845 = vpop.permute.xlu0 %4844
    %4847 = vset.pattern.permute.xlu0 8
    %4848 = vperm.xlu0 %4847, %v1885
    %v4849 = vpop.permute.xlu0 %4848
    %4851 = vset.pattern.permute.xlu0 8
    %4852 = vperm.xlu0 %4851, %v1886
    %v4853 = vpop.permute.xlu0 %4852
    %4855 = vset.pattern.permute.xlu0 8
    %4856 = vperm.xlu0 %4855, %v1887
    %v4857 = vpop.permute.xlu0 %4856
    %4859 = vset.pattern.permute.xlu0 8
    %4860 = vperm.xlu0 %4859, %v1888
    %v4861 = vpop.permute.xlu0 %4860
    %4863 = vset.pattern.permute.xlu0 8
    %4864 = vperm.xlu0 %4863, %v1889
    %v4865 = vpop.permute.xlu0 %4864
    %4867 = vset.pattern.permute.xlu0 8
    %4868 = vperm.xlu0 %4867, %v1890
    %v4869 = vpop.permute.xlu0 %4868
    %4871 = vset.pattern.permute.xlu0 8
    %4872 = vperm.xlu0 %4871, %v1891
    %v4873 = vpop.permute.xlu0 %4872
    %4875 = vset.pattern.permute.xlu0 8
    %4876 = vperm.xlu0 %4875, %v1892
    %v4877 = vpop.permute.xlu0 %4876
    %4879 = vset.pattern.permute.xlu0 8
    %4880 = vperm.xlu0 %4879, %v1893
    %v4881 = vpop.permute.xlu0 %4880
    %4883 = vset.pattern.permute.xlu0 8
    %4884 = vperm.xlu0 %4883, %v1894
    %v4885 = vpop.permute.xlu0 %4884
    %4887 = vset.pattern.permute.xlu0 8
    %4888 = vperm.xlu0 %4887, %v1895
    %v4889 = vpop.permute.xlu0 %4888
    %4891 = vset.pattern.permute.xlu0 8
    %4892 = vperm.xlu0 %4891, %v1896
    %v4893 = vpop.permute.xlu0 %4892
    %4895 = vset.pattern.permute.xlu0 8
    %4896 = vperm.xlu0 %4895, %v1897
    %v4897 = vpop.permute.xlu0 %4896
    %4899 = vset.pattern.permute.xlu0 8
    %4900 = vperm.xlu0 %4899, %v1898
    %v4901 = vpop.permute.xlu0 %4900
    %4903 = vset.pattern.permute.xlu0 8
    %4904 = vperm.xlu0 %4903, %v1899
    %v4905 = vpop.permute.xlu0 %4904
    %4907 = vset.pattern.permute.xlu0 8
    %4908 = vperm.xlu0 %4907, %v1900
    %v4909 = vpop.permute.xlu0 %4908
    %4911 = vset.pattern.permute.xlu0 8
    %4912 = vperm.xlu0 %4911, %v1901
    %v4913 = vpop.permute.xlu0 %4912
    %4915 = vset.pattern.permute.xlu0 8
    %4916 = vperm.xlu0 %4915, %v1902
    %v4917 = vpop.permute.xlu0 %4916
    %4919 = vset.pattern.permute.xlu0 8
    %4920 = vperm.xlu0 %4919, %v1903
    %v4921 = vpop.permute.xlu0 %4920
    %v4923 = vmul.f32 %v4749, %v4725
    %v4924 = vmul.f32 %v4753, %v4726
    %v4925 = vmul.f32 %v4757, %v4727
    %v4926 = vmul.f32 %v4761, %v4728
    %v4927 = vmul.f32 %v4765, %v4729
    %v4928 = vmul.f32 %v4769, %v4730
    %v4929 = vmul.f32 %v4773, %v4731
    %v4930 = vmul.f32 %v4777, %v4732
    %v4931 = vmul.f32 %v4781, %v4733
    %v4932 = vmul.f32 %v4785, %v4734
    %v4933 = vmul.f32 %v4789, %v4735
    %v4934 = vmul.f32 %v4793, %v4736
    %v4935 = vmul.f32 %v4797, %v4737
    %v4936 = vmul.f32 %v4801, %v4738
    %v4937 = vmul.f32 %v4805, %v4739
    %v4938 = vmul.f32 %v4809, %v4740
    %v4939 = vmul.f32 %v4813, %v4741
    %v4940 = vmul.f32 %v4817, %v4742
    %v4941 = vmul.f32 %v4821, %v4743
    %v4942 = vmul.f32 %v4825, %v4744
    %v4943 = vmul.f32 %v4829, %v4745
    %v4944 = vmul.f32 %v4833, %v4746
    %v4945 = vmul.f32 %v4837, %v4725
    %v4946 = vmul.f32 %v4841, %v4726
    %v4947 = vmul.f32 %v4845, %v4727
    %v4948 = vmul.f32 %v4849, %v4728
    %v4949 = vmul.f32 %v4853, %v4729
    %v4950 = vmul.f32 %v4857, %v4730
    %v4951 = vmul.f32 %v4861, %v4731
    %v4952 = vmul.f32 %v4865, %v4732
    %v4953 = vmul.f32 %v4869, %v4733
    %v4954 = vmul.f32 %v4873, %v4734
    %v4955 = vmul.f32 %v4877, %v4735
    %v4956 = vmul.f32 %v4881, %v4736
    %v4957 = vmul.f32 %v4885, %v4737
    %v4958 = vmul.f32 %v4889, %v4738
    %v4959 = vmul.f32 %v4893, %v4739
    %v4960 = vmul.f32 %v4897, %v4740
    %v4961 = vmul.f32 %v4901, %v4741
    %v4962 = vmul.f32 %v4905, %v4742
    %v4963 = vmul.f32 %v4909, %v4743
    %v4964 = vmul.f32 %v4913, %v4744
    %v4965 = vmul.f32 %v4917, %v4745
    %v4966 = vmul.f32 %v4921, %v4746
    %v4967 = vsel %vm2197, %v4923, 0.0
    %v4968 = vsel %vm2197, %v4924, 0.0
    %v4969 = vadd.f32 %v4967, %v4968
    %v4970 = vsel %vm2197, %v4925, 0.0
    %v4971 = vadd.f32 %v4969, %v4970
    %v4972 = vsel %vm2197, %v4926, 0.0
    %v4973 = vadd.f32 %v4971, %v4972
    %v4974 = vsel %vm2197, %v4927, 0.0
    %v4975 = vadd.f32 %v4973, %v4974
    %v4976 = vsel %vm2197, %v4928, 0.0
    %v4977 = vadd.f32 %v4975, %v4976
    %v4978 = vsel %vm2197, %v4929, 0.0
    %v4979 = vadd.f32 %v4977, %v4978
    %v4980 = vsel %vm2197, %v4930, 0.0
    %v4981 = vadd.f32 %v4979, %v4980
    %v4982 = vsel %vm2197, %v4931, 0.0
    %v4983 = vadd.f32 %v4981, %v4982
    %v4984 = vsel %vm2197, %v4932, 0.0
    %v4985 = vadd.f32 %v4983, %v4984
    %v4986 = vsel %vm2197, %v4933, 0.0
    %v4987 = vadd.f32 %v4985, %v4986
    %v4988 = vsel %vm2197, %v4934, 0.0
    %v4989 = vadd.f32 %v4987, %v4988
    %v4990 = vsel %vm2197, %v4935, 0.0
    %v4991 = vadd.f32 %v4989, %v4990
    %v4992 = vsel %vm2197, %v4936, 0.0
    %v4993 = vadd.f32 %v4991, %v4992
    %v4994 = vsel %vm2197, %v4937, 0.0
    %v4995 = vadd.f32 %v4993, %v4994
    %v4996 = vsel %vm2197, %v4938, 0.0
    %v4997 = vadd.f32 %v4995, %v4996
    %v4998 = vsel %vm2197, %v4939, 0.0
    %v4999 = vadd.f32 %v4997, %v4998
    %v5000 = vsel %vm2197, %v4940, 0.0
    %v5001 = vadd.f32 %v4999, %v5000
    %v5002 = vsel %vm2197, %v4941, 0.0
    %v5003 = vadd.f32 %v5001, %v5002
    %v5004 = vsel %vm2197, %v4942, 0.0
    %v5005 = vadd.f32 %v5003, %v5004
    %v5006 = vsel %vm2197, %v4943, 0.0
    %v5007 = vadd.f32 %v5005, %v5006
    %v5008 = vsel %vm2197, %v4944, 0.0
    %v5009 = vadd.f32 %v5007, %v5008
    %v5010 = vrot.slane %v5009, 4
    %v5011 = vadd.f32 %v5009, %v5010
    %v5012 = vrot.slane %v5011, 2
    %v5013 = vadd.f32 %v5011, %v5012
    %v5014 = vrot.slane %v5013, 1
    %v5015 = vadd.f32 %v5013, %v5014
    %v5016 = vsel %vm2197, %v4945, 0.0
    %v5017 = vsel %vm2197, %v4946, 0.0
    %v5018 = vadd.f32 %v5016, %v5017
    %v5019 = vsel %vm2197, %v4947, 0.0
    %v5020 = vadd.f32 %v5018, %v5019
    %v5021 = vsel %vm2197, %v4948, 0.0
    %v5022 = vadd.f32 %v5020, %v5021
    %v5023 = vsel %vm2197, %v4949, 0.0
    %v5024 = vadd.f32 %v5022, %v5023
    %v5025 = vsel %vm2197, %v4950, 0.0
    %v5026 = vadd.f32 %v5024, %v5025
    %v5027 = vsel %vm2197, %v4951, 0.0
    %v5028 = vadd.f32 %v5026, %v5027
    %v5029 = vsel %vm2197, %v4952, 0.0
    %v5030 = vadd.f32 %v5028, %v5029
    %v5031 = vsel %vm2197, %v4953, 0.0
    %v5032 = vadd.f32 %v5030, %v5031
    %v5033 = vsel %vm2197, %v4954, 0.0
    %v5034 = vadd.f32 %v5032, %v5033
    %v5035 = vsel %vm2197, %v4955, 0.0
    %v5036 = vadd.f32 %v5034, %v5035
    %v5037 = vsel %vm2197, %v4956, 0.0
    %v5038 = vadd.f32 %v5036, %v5037
    %v5039 = vsel %vm2197, %v4957, 0.0
    %v5040 = vadd.f32 %v5038, %v5039
    %v5041 = vsel %vm2197, %v4958, 0.0
    %v5042 = vadd.f32 %v5040, %v5041
    %v5043 = vsel %vm2197, %v4959, 0.0
    %v5044 = vadd.f32 %v5042, %v5043
    %v5045 = vsel %vm2197, %v4960, 0.0
    %v5046 = vadd.f32 %v5044, %v5045
    %v5047 = vsel %vm2197, %v4961, 0.0
    %v5048 = vadd.f32 %v5046, %v5047
    %v5049 = vsel %vm2197, %v4962, 0.0
    %v5050 = vadd.f32 %v5048, %v5049
    %v5051 = vsel %vm2197, %v4963, 0.0
    %v5052 = vadd.f32 %v5050, %v5051
    %v5053 = vsel %vm2197, %v4964, 0.0
    %v5054 = vadd.f32 %v5052, %v5053
    %v5055 = vsel %vm2197, %v4965, 0.0
    %v5056 = vadd.f32 %v5054, %v5055
    %v5057 = vsel %vm2197, %v4966, 0.0
    %v5058 = vadd.f32 %v5056, %v5057
    %v5059 = vrot.slane %v5058, 4
    %v5060 = vadd.f32 %v5058, %v5059
    %v5061 = vrot.slane %v5060, 2
    %v5062 = vadd.f32 %v5060, %v5061
    %v5063 = vrot.slane %v5062, 1
    %v5064 = vadd.f32 %v5062, %v5063
    %v5067 = vsel %vm2298, %v5064, %v5015
    %v5069 = vadd.f32 %v4723, %v5067
    %s5070 = scalar_lea.vmem %s3, 1584
    %v5071 = vld [vmem:[%s5070] sm:$0xff]
    %v5072 = vld [vmem:[%s5070 + $0x8] sm:$0xff]
    %v5073 = vld [vmem:[%s5070 + $0x10] sm:$0xff]
    %v5074 = vld [vmem:[%s5070 + $0x18] sm:$0xff]
    %v5075 = vld [vmem:[%s5070 + $0x20] sm:$0xff]
    %v5076 = vld [vmem:[%s5070 + $0x28] sm:$0xff]
    %v5077 = vld [vmem:[%s5070 + $0x30] sm:$0xff]
    %v5078 = vld [vmem:[%s5070 + $0x38] sm:$0xff]
    %v5079 = vld [vmem:[%s5070 + $0x40] sm:$0xff]
    %v5080 = vld [vmem:[%s5070 + $0x48] sm:$0xff]
    %v5081 = vld [vmem:[%s5070 + $0x50] sm:$0xff]
    %v5082 = vld [vmem:[%s5070 + $0x58] sm:$0xff]
    %v5083 = vld [vmem:[%s5070 + $0x60] sm:$0xff]
    %v5084 = vld [vmem:[%s5070 + $0x68] sm:$0xff]
    %v5085 = vld [vmem:[%s5070 + $0x70] sm:$0xff]
    %v5086 = vld [vmem:[%s5070 + $0x78] sm:$0xff]
    %v5087 = vld [vmem:[%s5070 + $0x80] sm:$0xff]
    %v5088 = vld [vmem:[%s5070 + $0x88] sm:$0xff]
    %v5089 = vld [vmem:[%s5070 + $0x90] sm:$0xff]
    %v5090 = vld [vmem:[%s5070 + $0x98] sm:$0xff]
    %v5091 = vld [vmem:[%s5070 + $0xa0] sm:$0xff]
    %v5092 = vld [vmem:[%s5070 + $0xa8] sm:$0xff]
    %5093 = vset.pattern.permute.xlu0 9
    %5094 = vperm.xlu0 %5093, %v1860
    %v5095 = vpop.permute.xlu0 %5094
    %5097 = vset.pattern.permute.xlu0 9
    %5098 = vperm.xlu0 %5097, %v1861
    %v5099 = vpop.permute.xlu0 %5098
    %5101 = vset.pattern.permute.xlu0 9
    %5102 = vperm.xlu0 %5101, %v1862
    %v5103 = vpop.permute.xlu0 %5102
    %5105 = vset.pattern.permute.xlu0 9
    %5106 = vperm.xlu0 %5105, %v1863
    %v5107 = vpop.permute.xlu0 %5106
    %5109 = vset.pattern.permute.xlu0 9
    %5110 = vperm.xlu0 %5109, %v1864
    %v5111 = vpop.permute.xlu0 %5110
    %5113 = vset.pattern.permute.xlu0 9
    %5114 = vperm.xlu0 %5113, %v1865
    %v5115 = vpop.permute.xlu0 %5114
    %5117 = vset.pattern.permute.xlu0 9
    %5118 = vperm.xlu0 %5117, %v1866
    %v5119 = vpop.permute.xlu0 %5118
    %5121 = vset.pattern.permute.xlu0 9
    %5122 = vperm.xlu0 %5121, %v1867
    %v5123 = vpop.permute.xlu0 %5122
    %5125 = vset.pattern.permute.xlu0 9
    %5126 = vperm.xlu0 %5125, %v1868
    %v5127 = vpop.permute.xlu0 %5126
    %5129 = vset.pattern.permute.xlu0 9
    %5130 = vperm.xlu0 %5129, %v1869
    %v5131 = vpop.permute.xlu0 %5130
    %5133 = vset.pattern.permute.xlu0 9
    %5134 = vperm.xlu0 %5133, %v1870
    %v5135 = vpop.permute.xlu0 %5134
    %5137 = vset.pattern.permute.xlu0 9
    %5138 = vperm.xlu0 %5137, %v1871
    %v5139 = vpop.permute.xlu0 %5138
    %5141 = vset.pattern.permute.xlu0 9
    %5142 = vperm.xlu0 %5141, %v1872
    %v5143 = vpop.permute.xlu0 %5142
    %5145 = vset.pattern.permute.xlu0 9
    %5146 = vperm.xlu0 %5145, %v1873
    %v5147 = vpop.permute.xlu0 %5146
    %5149 = vset.pattern.permute.xlu0 9
    %5150 = vperm.xlu0 %5149, %v1874
    %v5151 = vpop.permute.xlu0 %5150
    %5153 = vset.pattern.permute.xlu0 9
    %5154 = vperm.xlu0 %5153, %v1875
    %v5155 = vpop.permute.xlu0 %5154
    %5157 = vset.pattern.permute.xlu0 9
    %5158 = vperm.xlu0 %5157, %v1876
    %v5159 = vpop.permute.xlu0 %5158
    %5161 = vset.pattern.permute.xlu0 9
    %5162 = vperm.xlu0 %5161, %v1877
    %v5163 = vpop.permute.xlu0 %5162
    %5165 = vset.pattern.permute.xlu0 9
    %5166 = vperm.xlu0 %5165, %v1878
    %v5167 = vpop.permute.xlu0 %5166
    %5169 = vset.pattern.permute.xlu0 9
    %5170 = vperm.xlu0 %5169, %v1879
    %v5171 = vpop.permute.xlu0 %5170
    %5173 = vset.pattern.permute.xlu0 9
    %5174 = vperm.xlu0 %5173, %v1880
    %v5175 = vpop.permute.xlu0 %5174
    %5177 = vset.pattern.permute.xlu0 9
    %5178 = vperm.xlu0 %5177, %v1881
    %v5179 = vpop.permute.xlu0 %5178
    %5181 = vset.pattern.permute.xlu0 9
    %5182 = vperm.xlu0 %5181, %v1882
    %v5183 = vpop.permute.xlu0 %5182
    %5185 = vset.pattern.permute.xlu0 9
    %5186 = vperm.xlu0 %5185, %v1883
    %v5187 = vpop.permute.xlu0 %5186
    %5189 = vset.pattern.permute.xlu0 9
    %5190 = vperm.xlu0 %5189, %v1884
    %v5191 = vpop.permute.xlu0 %5190
    %5193 = vset.pattern.permute.xlu0 9
    %5194 = vperm.xlu0 %5193, %v1885
    %v5195 = vpop.permute.xlu0 %5194
    %5197 = vset.pattern.permute.xlu0 9
    %5198 = vperm.xlu0 %5197, %v1886
    %v5199 = vpop.permute.xlu0 %5198
    %5201 = vset.pattern.permute.xlu0 9
    %5202 = vperm.xlu0 %5201, %v1887
    %v5203 = vpop.permute.xlu0 %5202
    %5205 = vset.pattern.permute.xlu0 9
    %5206 = vperm.xlu0 %5205, %v1888
    %v5207 = vpop.permute.xlu0 %5206
    %5209 = vset.pattern.permute.xlu0 9
    %5210 = vperm.xlu0 %5209, %v1889
    %v5211 = vpop.permute.xlu0 %5210
    %5213 = vset.pattern.permute.xlu0 9
    %5214 = vperm.xlu0 %5213, %v1890
    %v5215 = vpop.permute.xlu0 %5214
    %5217 = vset.pattern.permute.xlu0 9
    %5218 = vperm.xlu0 %5217, %v1891
    %v5219 = vpop.permute.xlu0 %5218
    %5221 = vset.pattern.permute.xlu0 9
    %5222 = vperm.xlu0 %5221, %v1892
    %v5223 = vpop.permute.xlu0 %5222
    %5225 = vset.pattern.permute.xlu0 9
    %5226 = vperm.xlu0 %5225, %v1893
    %v5227 = vpop.permute.xlu0 %5226
    %5229 = vset.pattern.permute.xlu0 9
    %5230 = vperm.xlu0 %5229, %v1894
    %v5231 = vpop.permute.xlu0 %5230
    %5233 = vset.pattern.permute.xlu0 9
    %5234 = vperm.xlu0 %5233, %v1895
    %v5235 = vpop.permute.xlu0 %5234
    %5237 = vset.pattern.permute.xlu0 9
    %5238 = vperm.xlu0 %5237, %v1896
    %v5239 = vpop.permute.xlu0 %5238
    %5241 = vset.pattern.permute.xlu0 9
    %5242 = vperm.xlu0 %5241, %v1897
    %v5243 = vpop.permute.xlu0 %5242
    %5245 = vset.pattern.permute.xlu0 9
    %5246 = vperm.xlu0 %5245, %v1898
    %v5247 = vpop.permute.xlu0 %5246
    %5249 = vset.pattern.permute.xlu0 9
    %5250 = vperm.xlu0 %5249, %v1899
    %v5251 = vpop.permute.xlu0 %5250
    %5253 = vset.pattern.permute.xlu0 9
    %5254 = vperm.xlu0 %5253, %v1900
    %v5255 = vpop.permute.xlu0 %5254
    %5257 = vset.pattern.permute.xlu0 9
    %5258 = vperm.xlu0 %5257, %v1901
    %v5259 = vpop.permute.xlu0 %5258
    %5261 = vset.pattern.permute.xlu0 9
    %5262 = vperm.xlu0 %5261, %v1902
    %v5263 = vpop.permute.xlu0 %5262
    %5265 = vset.pattern.permute.xlu0 9
    %5266 = vperm.xlu0 %5265, %v1903
    %v5267 = vpop.permute.xlu0 %5266
    %v5269 = vmul.f32 %v5095, %v5071
    %v5270 = vmul.f32 %v5099, %v5072
    %v5271 = vmul.f32 %v5103, %v5073
    %v5272 = vmul.f32 %v5107, %v5074
    %v5273 = vmul.f32 %v5111, %v5075
    %v5274 = vmul.f32 %v5115, %v5076
    %v5275 = vmul.f32 %v5119, %v5077
    %v5276 = vmul.f32 %v5123, %v5078
    %v5277 = vmul.f32 %v5127, %v5079
    %v5278 = vmul.f32 %v5131, %v5080
    %v5279 = vmul.f32 %v5135, %v5081
    %v5280 = vmul.f32 %v5139, %v5082
    %v5281 = vmul.f32 %v5143, %v5083
    %v5282 = vmul.f32 %v5147, %v5084
    %v5283 = vmul.f32 %v5151, %v5085
    %v5284 = vmul.f32 %v5155, %v5086
    %v5285 = vmul.f32 %v5159, %v5087
    %v5286 = vmul.f32 %v5163, %v5088
    %v5287 = vmul.f32 %v5167, %v5089
    %v5288 = vmul.f32 %v5171, %v5090
    %v5289 = vmul.f32 %v5175, %v5091
    %v5290 = vmul.f32 %v5179, %v5092
    %v5291 = vmul.f32 %v5183, %v5071
    %v5292 = vmul.f32 %v5187, %v5072
    %v5293 = vmul.f32 %v5191, %v5073
    %v5294 = vmul.f32 %v5195, %v5074
    %v5295 = vmul.f32 %v5199, %v5075
    %v5296 = vmul.f32 %v5203, %v5076
    %v5297 = vmul.f32 %v5207, %v5077
    %v5298 = vmul.f32 %v5211, %v5078
    %v5299 = vmul.f32 %v5215, %v5079
    %v5300 = vmul.f32 %v5219, %v5080
    %v5301 = vmul.f32 %v5223, %v5081
    %v5302 = vmul.f32 %v5227, %v5082
    %v5303 = vmul.f32 %v5231, %v5083
    %v5304 = vmul.f32 %v5235, %v5084
    %v5305 = vmul.f32 %v5239, %v5085
    %v5306 = vmul.f32 %v5243, %v5086
    %v5307 = vmul.f32 %v5247, %v5087
    %v5308 = vmul.f32 %v5251, %v5088
    %v5309 = vmul.f32 %v5255, %v5089
    %v5310 = vmul.f32 %v5259, %v5090
    %v5311 = vmul.f32 %v5263, %v5091
    %v5312 = vmul.f32 %v5267, %v5092
    %v5313 = vsel %vm2197, %v5269, 0.0
    %v5314 = vsel %vm2197, %v5270, 0.0
    %v5315 = vadd.f32 %v5313, %v5314
    %v5316 = vsel %vm2197, %v5271, 0.0
    %v5317 = vadd.f32 %v5315, %v5316
    %v5318 = vsel %vm2197, %v5272, 0.0
    %v5319 = vadd.f32 %v5317, %v5318
    %v5320 = vsel %vm2197, %v5273, 0.0
    %v5321 = vadd.f32 %v5319, %v5320
    %v5322 = vsel %vm2197, %v5274, 0.0
    %v5323 = vadd.f32 %v5321, %v5322
    %v5324 = vsel %vm2197, %v5275, 0.0
    %v5325 = vadd.f32 %v5323, %v5324
    %v5326 = vsel %vm2197, %v5276, 0.0
    %v5327 = vadd.f32 %v5325, %v5326
    %v5328 = vsel %vm2197, %v5277, 0.0
    %v5329 = vadd.f32 %v5327, %v5328
    %v5330 = vsel %vm2197, %v5278, 0.0
    %v5331 = vadd.f32 %v5329, %v5330
    %v5332 = vsel %vm2197, %v5279, 0.0
    %v5333 = vadd.f32 %v5331, %v5332
    %v5334 = vsel %vm2197, %v5280, 0.0
    %v5335 = vadd.f32 %v5333, %v5334
    %v5336 = vsel %vm2197, %v5281, 0.0
    %v5337 = vadd.f32 %v5335, %v5336
    %v5338 = vsel %vm2197, %v5282, 0.0
    %v5339 = vadd.f32 %v5337, %v5338
    %v5340 = vsel %vm2197, %v5283, 0.0
    %v5341 = vadd.f32 %v5339, %v5340
    %v5342 = vsel %vm2197, %v5284, 0.0
    %v5343 = vadd.f32 %v5341, %v5342
    %v5344 = vsel %vm2197, %v5285, 0.0
    %v5345 = vadd.f32 %v5343, %v5344
    %v5346 = vsel %vm2197, %v5286, 0.0
    %v5347 = vadd.f32 %v5345, %v5346
    %v5348 = vsel %vm2197, %v5287, 0.0
    %v5349 = vadd.f32 %v5347, %v5348
    %v5350 = vsel %vm2197, %v5288, 0.0
    %v5351 = vadd.f32 %v5349, %v5350
    %v5352 = vsel %vm2197, %v5289, 0.0
    %v5353 = vadd.f32 %v5351, %v5352
    %v5354 = vsel %vm2197, %v5290, 0.0
    %v5355 = vadd.f32 %v5353, %v5354
    %v5356 = vrot.slane %v5355, 4
    %v5357 = vadd.f32 %v5355, %v5356
    %v5358 = vrot.slane %v5357, 2
    %v5359 = vadd.f32 %v5357, %v5358
    %v5360 = vrot.slane %v5359, 1
    %v5361 = vadd.f32 %v5359, %v5360
    %v5362 = vsel %vm2197, %v5291, 0.0
    %v5363 = vsel %vm2197, %v5292, 0.0
    %v5364 = vadd.f32 %v5362, %v5363
    %v5365 = vsel %vm2197, %v5293, 0.0
    %v5366 = vadd.f32 %v5364, %v5365
    %v5367 = vsel %vm2197, %v5294, 0.0
    %v5368 = vadd.f32 %v5366, %v5367
    %v5369 = vsel %vm2197, %v5295, 0.0
    %v5370 = vadd.f32 %v5368, %v5369
    %v5371 = vsel %vm2197, %v5296, 0.0
    %v5372 = vadd.f32 %v5370, %v5371
    %v5373 = vsel %vm2197, %v5297, 0.0
    %v5374 = vadd.f32 %v5372, %v5373
    %v5375 = vsel %vm2197, %v5298, 0.0
    %v5376 = vadd.f32 %v5374, %v5375
    %v5377 = vsel %vm2197, %v5299, 0.0
    %v5378 = vadd.f32 %v5376, %v5377
    %v5379 = vsel %vm2197, %v5300, 0.0
    %v5380 = vadd.f32 %v5378, %v5379
    %v5381 = vsel %vm2197, %v5301, 0.0
    %v5382 = vadd.f32 %v5380, %v5381
    %v5383 = vsel %vm2197, %v5302, 0.0
    %v5384 = vadd.f32 %v5382, %v5383
    %v5385 = vsel %vm2197, %v5303, 0.0
    %v5386 = vadd.f32 %v5384, %v5385
    %v5387 = vsel %vm2197, %v5304, 0.0
    %v5388 = vadd.f32 %v5386, %v5387
    %v5389 = vsel %vm2197, %v5305, 0.0
    %v5390 = vadd.f32 %v5388, %v5389
    %v5391 = vsel %vm2197, %v5306, 0.0
    %v5392 = vadd.f32 %v5390, %v5391
    %v5393 = vsel %vm2197, %v5307, 0.0
    %v5394 = vadd.f32 %v5392, %v5393
    %v5395 = vsel %vm2197, %v5308, 0.0
    %v5396 = vadd.f32 %v5394, %v5395
    %v5397 = vsel %vm2197, %v5309, 0.0
    %v5398 = vadd.f32 %v5396, %v5397
    %v5399 = vsel %vm2197, %v5310, 0.0
    %v5400 = vadd.f32 %v5398, %v5399
    %v5401 = vsel %vm2197, %v5311, 0.0
    %v5402 = vadd.f32 %v5400, %v5401
    %v5403 = vsel %vm2197, %v5312, 0.0
    %v5404 = vadd.f32 %v5402, %v5403
    %v5405 = vrot.slane %v5404, 4
    %v5406 = vadd.f32 %v5404, %v5405
    %v5407 = vrot.slane %v5406, 2
    %v5408 = vadd.f32 %v5406, %v5407
    %v5409 = vrot.slane %v5408, 1
    %v5410 = vadd.f32 %v5408, %v5409
    %v5413 = vsel %vm2298, %v5410, %v5361
    %v5415 = vadd.f32 %v5069, %v5413
    %s5416 = scalar_lea.vmem %s3, 1760
    %v5417 = vld [vmem:[%s5416] sm:$0xff]
    %v5418 = vld [vmem:[%s5416 + $0x8] sm:$0xff]
    %v5419 = vld [vmem:[%s5416 + $0x10] sm:$0xff]
    %v5420 = vld [vmem:[%s5416 + $0x18] sm:$0xff]
    %v5421 = vld [vmem:[%s5416 + $0x20] sm:$0xff]
    %v5422 = vld [vmem:[%s5416 + $0x28] sm:$0xff]
    %v5423 = vld [vmem:[%s5416 + $0x30] sm:$0xff]
    %v5424 = vld [vmem:[%s5416 + $0x38] sm:$0xff]
    %v5425 = vld [vmem:[%s5416 + $0x40] sm:$0xff]
    %v5426 = vld [vmem:[%s5416 + $0x48] sm:$0xff]
    %v5427 = vld [vmem:[%s5416 + $0x50] sm:$0xff]
    %v5428 = vld [vmem:[%s5416 + $0x58] sm:$0xff]
    %v5429 = vld [vmem:[%s5416 + $0x60] sm:$0xff]
    %v5430 = vld [vmem:[%s5416 + $0x68] sm:$0xff]
    %v5431 = vld [vmem:[%s5416 + $0x70] sm:$0xff]
    %v5432 = vld [vmem:[%s5416 + $0x78] sm:$0xff]
    %v5433 = vld [vmem:[%s5416 + $0x80] sm:$0xff]
    %v5434 = vld [vmem:[%s5416 + $0x88] sm:$0xff]
    %v5435 = vld [vmem:[%s5416 + $0x90] sm:$0xff]
    %v5436 = vld [vmem:[%s5416 + $0x98] sm:$0xff]
    %v5437 = vld [vmem:[%s5416 + $0xa0] sm:$0xff]
    %v5438 = vld [vmem:[%s5416 + $0xa8] sm:$0xff]
    %5439 = vset.pattern.permute.xlu0 10
    %5440 = vperm.xlu0 %5439, %v1860
    %v5441 = vpop.permute.xlu0 %5440
    %5443 = vset.pattern.permute.xlu0 10
    %5444 = vperm.xlu0 %5443, %v1861
    %v5445 = vpop.permute.xlu0 %5444
    %5447 = vset.pattern.permute.xlu0 10
    %5448 = vperm.xlu0 %5447, %v1862
    %v5449 = vpop.permute.xlu0 %5448
    %5451 = vset.pattern.permute.xlu0 10
    %5452 = vperm.xlu0 %5451, %v1863
    %v5453 = vpop.permute.xlu0 %5452
    %5455 = vset.pattern.permute.xlu0 10
    %5456 = vperm.xlu0 %5455, %v1864
    %v5457 = vpop.permute.xlu0 %5456
    %5459 = vset.pattern.permute.xlu0 10
    %5460 = vperm.xlu0 %5459, %v1865
    %v5461 = vpop.permute.xlu0 %5460
    %5463 = vset.pattern.permute.xlu0 10
    %5464 = vperm.xlu0 %5463, %v1866
    %v5465 = vpop.permute.xlu0 %5464
    %5467 = vset.pattern.permute.xlu0 10
    %5468 = vperm.xlu0 %5467, %v1867
    %v5469 = vpop.permute.xlu0 %5468
    %5471 = vset.pattern.permute.xlu0 10
    %5472 = vperm.xlu0 %5471, %v1868
    %v5473 = vpop.permute.xlu0 %5472
    %5475 = vset.pattern.permute.xlu0 10
    %5476 = vperm.xlu0 %5475, %v1869
    %v5477 = vpop.permute.xlu0 %5476
    %5479 = vset.pattern.permute.xlu0 10
    %5480 = vperm.xlu0 %5479, %v1870
    %v5481 = vpop.permute.xlu0 %5480
    %5483 = vset.pattern.permute.xlu0 10
    %5484 = vperm.xlu0 %5483, %v1871
    %v5485 = vpop.permute.xlu0 %5484
    %5487 = vset.pattern.permute.xlu0 10
    %5488 = vperm.xlu0 %5487, %v1872
    %v5489 = vpop.permute.xlu0 %5488
    %5491 = vset.pattern.permute.xlu0 10
    %5492 = vperm.xlu0 %5491, %v1873
    %v5493 = vpop.permute.xlu0 %5492
    %5495 = vset.pattern.permute.xlu0 10
    %5496 = vperm.xlu0 %5495, %v1874
    %v5497 = vpop.permute.xlu0 %5496
    %5499 = vset.pattern.permute.xlu0 10
    %5500 = vperm.xlu0 %5499, %v1875
    %v5501 = vpop.permute.xlu0 %5500
    %5503 = vset.pattern.permute.xlu0 10
    %5504 = vperm.xlu0 %5503, %v1876
    %v5505 = vpop.permute.xlu0 %5504
    %5507 = vset.pattern.permute.xlu0 10
    %5508 = vperm.xlu0 %5507, %v1877
    %v5509 = vpop.permute.xlu0 %5508
    %5511 = vset.pattern.permute.xlu0 10
    %5512 = vperm.xlu0 %5511, %v1878
    %v5513 = vpop.permute.xlu0 %5512
    %5515 = vset.pattern.permute.xlu0 10
    %5516 = vperm.xlu0 %5515, %v1879
    %v5517 = vpop.permute.xlu0 %5516
    %5519 = vset.pattern.permute.xlu0 10
    %5520 = vperm.xlu0 %5519, %v1880
    %v5521 = vpop.permute.xlu0 %5520
    %5523 = vset.pattern.permute.xlu0 10
    %5524 = vperm.xlu0 %5523, %v1881
    %v5525 = vpop.permute.xlu0 %5524
    %5527 = vset.pattern.permute.xlu0 10
    %5528 = vperm.xlu0 %5527, %v1882
    %v5529 = vpop.permute.xlu0 %5528
    %5531 = vset.pattern.permute.xlu0 10
    %5532 = vperm.xlu0 %5531, %v1883
    %v5533 = vpop.permute.xlu0 %5532
    %5535 = vset.pattern.permute.xlu0 10
    %5536 = vperm.xlu0 %5535, %v1884
    %v5537 = vpop.permute.xlu0 %5536
    %5539 = vset.pattern.permute.xlu0 10
    %5540 = vperm.xlu0 %5539, %v1885
    %v5541 = vpop.permute.xlu0 %5540
    %5543 = vset.pattern.permute.xlu0 10
    %5544 = vperm.xlu0 %5543, %v1886
    %v5545 = vpop.permute.xlu0 %5544
    %5547 = vset.pattern.permute.xlu0 10
    %5548 = vperm.xlu0 %5547, %v1887
    %v5549 = vpop.permute.xlu0 %5548
    %5551 = vset.pattern.permute.xlu0 10
    %5552 = vperm.xlu0 %5551, %v1888
    %v5553 = vpop.permute.xlu0 %5552
    %5555 = vset.pattern.permute.xlu0 10
    %5556 = vperm.xlu0 %5555, %v1889
    %v5557 = vpop.permute.xlu0 %5556
    %5559 = vset.pattern.permute.xlu0 10
    %5560 = vperm.xlu0 %5559, %v1890
    %v5561 = vpop.permute.xlu0 %5560
    %5563 = vset.pattern.permute.xlu0 10
    %5564 = vperm.xlu0 %5563, %v1891
    %v5565 = vpop.permute.xlu0 %5564
    %5567 = vset.pattern.permute.xlu0 10
    %5568 = vperm.xlu0 %5567, %v1892
    %v5569 = vpop.permute.xlu0 %5568
    %5571 = vset.pattern.permute.xlu0 10
    %5572 = vperm.xlu0 %5571, %v1893
    %v5573 = vpop.permute.xlu0 %5572
    %5575 = vset.pattern.permute.xlu0 10
    %5576 = vperm.xlu0 %5575, %v1894
    %v5577 = vpop.permute.xlu0 %5576
    %5579 = vset.pattern.permute.xlu0 10
    %5580 = vperm.xlu0 %5579, %v1895
    %v5581 = vpop.permute.xlu0 %5580
    %5583 = vset.pattern.permute.xlu0 10
    %5584 = vperm.xlu0 %5583, %v1896
    %v5585 = vpop.permute.xlu0 %5584
    %5587 = vset.pattern.permute.xlu0 10
    %5588 = vperm.xlu0 %5587, %v1897
    %v5589 = vpop.permute.xlu0 %5588
    %5591 = vset.pattern.permute.xlu0 10
    %5592 = vperm.xlu0 %5591, %v1898
    %v5593 = vpop.permute.xlu0 %5592
    %5595 = vset.pattern.permute.xlu0 10
    %5596 = vperm.xlu0 %5595, %v1899
    %v5597 = vpop.permute.xlu0 %5596
    %5599 = vset.pattern.permute.xlu0 10
    %5600 = vperm.xlu0 %5599, %v1900
    %v5601 = vpop.permute.xlu0 %5600
    %5603 = vset.pattern.permute.xlu0 10
    %5604 = vperm.xlu0 %5603, %v1901
    %v5605 = vpop.permute.xlu0 %5604
    %5607 = vset.pattern.permute.xlu0 10
    %5608 = vperm.xlu0 %5607, %v1902
    %v5609 = vpop.permute.xlu0 %5608
    %5611 = vset.pattern.permute.xlu0 10
    %5612 = vperm.xlu0 %5611, %v1903
    %v5613 = vpop.permute.xlu0 %5612
    %v5615 = vmul.f32 %v5441, %v5417
    %v5616 = vmul.f32 %v5445, %v5418
    %v5617 = vmul.f32 %v5449, %v5419
    %v5618 = vmul.f32 %v5453, %v5420
    %v5619 = vmul.f32 %v5457, %v5421
    %v5620 = vmul.f32 %v5461, %v5422
    %v5621 = vmul.f32 %v5465, %v5423
    %v5622 = vmul.f32 %v5469, %v5424
    %v5623 = vmul.f32 %v5473, %v5425
    %v5624 = vmul.f32 %v5477, %v5426
    %v5625 = vmul.f32 %v5481, %v5427
    %v5626 = vmul.f32 %v5485, %v5428
    %v5627 = vmul.f32 %v5489, %v5429
    %v5628 = vmul.f32 %v5493, %v5430
    %v5629 = vmul.f32 %v5497, %v5431
    %v5630 = vmul.f32 %v5501, %v5432
    %v5631 = vmul.f32 %v5505, %v5433
    %v5632 = vmul.f32 %v5509, %v5434
    %v5633 = vmul.f32 %v5513, %v5435
    %v5634 = vmul.f32 %v5517, %v5436
    %v5635 = vmul.f32 %v5521, %v5437
    %v5636 = vmul.f32 %v5525, %v5438
    %v5637 = vmul.f32 %v5529, %v5417
    %v5638 = vmul.f32 %v5533, %v5418
    %v5639 = vmul.f32 %v5537, %v5419
    %v5640 = vmul.f32 %v5541, %v5420
    %v5641 = vmul.f32 %v5545, %v5421
    %v5642 = vmul.f32 %v5549, %v5422
    %v5643 = vmul.f32 %v5553, %v5423
    %v5644 = vmul.f32 %v5557, %v5424
    %v5645 = vmul.f32 %v5561, %v5425
    %v5646 = vmul.f32 %v5565, %v5426
    %v5647 = vmul.f32 %v5569, %v5427
    %v5648 = vmul.f32 %v5573, %v5428
    %v5649 = vmul.f32 %v5577, %v5429
    %v5650 = vmul.f32 %v5581, %v5430
    %v5651 = vmul.f32 %v5585, %v5431
    %v5652 = vmul.f32 %v5589, %v5432
    %v5653 = vmul.f32 %v5593, %v5433
    %v5654 = vmul.f32 %v5597, %v5434
    %v5655 = vmul.f32 %v5601, %v5435
    %v5656 = vmul.f32 %v5605, %v5436
    %v5657 = vmul.f32 %v5609, %v5437
    %v5658 = vmul.f32 %v5613, %v5438
    %v5659 = vsel %vm2197, %v5615, 0.0
    %v5660 = vsel %vm2197, %v5616, 0.0
    %v5661 = vadd.f32 %v5659, %v5660
    %v5662 = vsel %vm2197, %v5617, 0.0
    %v5663 = vadd.f32 %v5661, %v5662
    %v5664 = vsel %vm2197, %v5618, 0.0
    %v5665 = vadd.f32 %v5663, %v5664
    %v5666 = vsel %vm2197, %v5619, 0.0
    %v5667 = vadd.f32 %v5665, %v5666
    %v5668 = vsel %vm2197, %v5620, 0.0
    %v5669 = vadd.f32 %v5667, %v5668
    %v5670 = vsel %vm2197, %v5621, 0.0
    %v5671 = vadd.f32 %v5669, %v5670
    %v5672 = vsel %vm2197, %v5622, 0.0
    %v5673 = vadd.f32 %v5671, %v5672
    %v5674 = vsel %vm2197, %v5623, 0.0
    %v5675 = vadd.f32 %v5673, %v5674
    %v5676 = vsel %vm2197, %v5624, 0.0
    %v5677 = vadd.f32 %v5675, %v5676
    %v5678 = vsel %vm2197, %v5625, 0.0
    %v5679 = vadd.f32 %v5677, %v5678
    %v5680 = vsel %vm2197, %v5626, 0.0
    %v5681 = vadd.f32 %v5679, %v5680
    %v5682 = vsel %vm2197, %v5627, 0.0
    %v5683 = vadd.f32 %v5681, %v5682
    %v5684 = vsel %vm2197, %v5628, 0.0
    %v5685 = vadd.f32 %v5683, %v5684
    %v5686 = vsel %vm2197, %v5629, 0.0
    %v5687 = vadd.f32 %v5685, %v5686
    %v5688 = vsel %vm2197, %v5630, 0.0
    %v5689 = vadd.f32 %v5687, %v5688
    %v5690 = vsel %vm2197, %v5631, 0.0
    %v5691 = vadd.f32 %v5689, %v5690
    %v5692 = vsel %vm2197, %v5632, 0.0
    %v5693 = vadd.f32 %v5691, %v5692
    %v5694 = vsel %vm2197, %v5633, 0.0
    %v5695 = vadd.f32 %v5693, %v5694
    %v5696 = vsel %vm2197, %v5634, 0.0
    %v5697 = vadd.f32 %v5695, %v5696
    %v5698 = vsel %vm2197, %v5635, 0.0
    %v5699 = vadd.f32 %v5697, %v5698
    %v5700 = vsel %vm2197, %v5636, 0.0
    %v5701 = vadd.f32 %v5699, %v5700
    %v5702 = vrot.slane %v5701, 4
    %v5703 = vadd.f32 %v5701, %v5702
    %v5704 = vrot.slane %v5703, 2
    %v5705 = vadd.f32 %v5703, %v5704
    %v5706 = vrot.slane %v5705, 1
    %v5707 = vadd.f32 %v5705, %v5706
    %v5708 = vsel %vm2197, %v5637, 0.0
    %v5709 = vsel %vm2197, %v5638, 0.0
    %v5710 = vadd.f32 %v5708, %v5709
    %v5711 = vsel %vm2197, %v5639, 0.0
    %v5712 = vadd.f32 %v5710, %v5711
    %v5713 = vsel %vm2197, %v5640, 0.0
    %v5714 = vadd.f32 %v5712, %v5713
    %v5715 = vsel %vm2197, %v5641, 0.0
    %v5716 = vadd.f32 %v5714, %v5715
    %v5717 = vsel %vm2197, %v5642, 0.0
    %v5718 = vadd.f32 %v5716, %v5717
    %v5719 = vsel %vm2197, %v5643, 0.0
    %v5720 = vadd.f32 %v5718, %v5719
    %v5721 = vsel %vm2197, %v5644, 0.0
    %v5722 = vadd.f32 %v5720, %v5721
    %v5723 = vsel %vm2197, %v5645, 0.0
    %v5724 = vadd.f32 %v5722, %v5723
    %v5725 = vsel %vm2197, %v5646, 0.0
    %v5726 = vadd.f32 %v5724, %v5725
    %v5727 = vsel %vm2197, %v5647, 0.0
    %v5728 = vadd.f32 %v5726, %v5727
    %v5729 = vsel %vm2197, %v5648, 0.0
    %v5730 = vadd.f32 %v5728, %v5729
    %v5731 = vsel %vm2197, %v5649, 0.0
    %v5732 = vadd.f32 %v5730, %v5731
    %v5733 = vsel %vm2197, %v5650, 0.0
    %v5734 = vadd.f32 %v5732, %v5733
    %v5735 = vsel %vm2197, %v5651, 0.0
    %v5736 = vadd.f32 %v5734, %v5735
    %v5737 = vsel %vm2197, %v5652, 0.0
    %v5738 = vadd.f32 %v5736, %v5737
    %v5739 = vsel %vm2197, %v5653, 0.0
    %v5740 = vadd.f32 %v5738, %v5739
    %v5741 = vsel %vm2197, %v5654, 0.0
    %v5742 = vadd.f32 %v5740, %v5741
    %v5743 = vsel %vm2197, %v5655, 0.0
    %v5744 = vadd.f32 %v5742, %v5743
    %v5745 = vsel %vm2197, %v5656, 0.0
    %v5746 = vadd.f32 %v5744, %v5745
    %v5747 = vsel %vm2197, %v5657, 0.0
    %v5748 = vadd.f32 %v5746, %v5747
    %v5749 = vsel %vm2197, %v5658, 0.0
    %v5750 = vadd.f32 %v5748, %v5749
    %v5751 = vrot.slane %v5750, 4
    %v5752 = vadd.f32 %v5750, %v5751
    %v5753 = vrot.slane %v5752, 2
    %v5754 = vadd.f32 %v5752, %v5753
    %v5755 = vrot.slane %v5754, 1
    %v5756 = vadd.f32 %v5754, %v5755
    %v5759 = vsel %vm2298, %v5756, %v5707
    %v5761 = vadd.f32 %v5415, %v5759
    %s5762 = scalar_lea.vmem %s3, 1936
    %v5763 = vld [vmem:[%s5762] sm:$0xff]
    %v5764 = vld [vmem:[%s5762 + $0x8] sm:$0xff]
    %v5765 = vld [vmem:[%s5762 + $0x10] sm:$0xff]
    %v5766 = vld [vmem:[%s5762 + $0x18] sm:$0xff]
    %v5767 = vld [vmem:[%s5762 + $0x20] sm:$0xff]
    %v5768 = vld [vmem:[%s5762 + $0x28] sm:$0xff]
    %v5769 = vld [vmem:[%s5762 + $0x30] sm:$0xff]
    %v5770 = vld [vmem:[%s5762 + $0x38] sm:$0xff]
    %v5771 = vld [vmem:[%s5762 + $0x40] sm:$0xff]
    %v5772 = vld [vmem:[%s5762 + $0x48] sm:$0xff]
    %v5773 = vld [vmem:[%s5762 + $0x50] sm:$0xff]
    %v5774 = vld [vmem:[%s5762 + $0x58] sm:$0xff]
    %v5775 = vld [vmem:[%s5762 + $0x60] sm:$0xff]
    %v5776 = vld [vmem:[%s5762 + $0x68] sm:$0xff]
    %v5777 = vld [vmem:[%s5762 + $0x70] sm:$0xff]
    %v5778 = vld [vmem:[%s5762 + $0x78] sm:$0xff]
    %v5779 = vld [vmem:[%s5762 + $0x80] sm:$0xff]
    %v5780 = vld [vmem:[%s5762 + $0x88] sm:$0xff]
    %v5781 = vld [vmem:[%s5762 + $0x90] sm:$0xff]
    %v5782 = vld [vmem:[%s5762 + $0x98] sm:$0xff]
    %v5783 = vld [vmem:[%s5762 + $0xa0] sm:$0xff]
    %v5784 = vld [vmem:[%s5762 + $0xa8] sm:$0xff]
    %5785 = vset.pattern.permute.xlu0 11
    %5786 = vperm.xlu0 %5785, %v1860
    %v5787 = vpop.permute.xlu0 %5786
    %5789 = vset.pattern.permute.xlu0 11
    %5790 = vperm.xlu0 %5789, %v1861
    %v5791 = vpop.permute.xlu0 %5790
    %5793 = vset.pattern.permute.xlu0 11
    %5794 = vperm.xlu0 %5793, %v1862
    %v5795 = vpop.permute.xlu0 %5794
    %5797 = vset.pattern.permute.xlu0 11
    %5798 = vperm.xlu0 %5797, %v1863
    %v5799 = vpop.permute.xlu0 %5798
    %5801 = vset.pattern.permute.xlu0 11
    %5802 = vperm.xlu0 %5801, %v1864
    %v5803 = vpop.permute.xlu0 %5802
    %5805 = vset.pattern.permute.xlu0 11
    %5806 = vperm.xlu0 %5805, %v1865
    %v5807 = vpop.permute.xlu0 %5806
    %5809 = vset.pattern.permute.xlu0 11
    %5810 = vperm.xlu0 %5809, %v1866
    %v5811 = vpop.permute.xlu0 %5810
    %5813 = vset.pattern.permute.xlu0 11
    %5814 = vperm.xlu0 %5813, %v1867
    %v5815 = vpop.permute.xlu0 %5814
    %5817 = vset.pattern.permute.xlu0 11
    %5818 = vperm.xlu0 %5817, %v1868
    %v5819 = vpop.permute.xlu0 %5818
    %5821 = vset.pattern.permute.xlu0 11
    %5822 = vperm.xlu0 %5821, %v1869
    %v5823 = vpop.permute.xlu0 %5822
    %5825 = vset.pattern.permute.xlu0 11
    %5826 = vperm.xlu0 %5825, %v1870
    %v5827 = vpop.permute.xlu0 %5826
    %5829 = vset.pattern.permute.xlu0 11
    %5830 = vperm.xlu0 %5829, %v1871
    %v5831 = vpop.permute.xlu0 %5830
    %5833 = vset.pattern.permute.xlu0 11
    %5834 = vperm.xlu0 %5833, %v1872
    %v5835 = vpop.permute.xlu0 %5834
    %5837 = vset.pattern.permute.xlu0 11
    %5838 = vperm.xlu0 %5837, %v1873
    %v5839 = vpop.permute.xlu0 %5838
    %5841 = vset.pattern.permute.xlu0 11
    %5842 = vperm.xlu0 %5841, %v1874
    %v5843 = vpop.permute.xlu0 %5842
    %5845 = vset.pattern.permute.xlu0 11
    %5846 = vperm.xlu0 %5845, %v1875
    %v5847 = vpop.permute.xlu0 %5846
    %5849 = vset.pattern.permute.xlu0 11
    %5850 = vperm.xlu0 %5849, %v1876
    %v5851 = vpop.permute.xlu0 %5850
    %5853 = vset.pattern.permute.xlu0 11
    %5854 = vperm.xlu0 %5853, %v1877
    %v5855 = vpop.permute.xlu0 %5854
    %5857 = vset.pattern.permute.xlu0 11
    %5858 = vperm.xlu0 %5857, %v1878
    %v5859 = vpop.permute.xlu0 %5858
    %5861 = vset.pattern.permute.xlu0 11
    %5862 = vperm.xlu0 %5861, %v1879
    %v5863 = vpop.permute.xlu0 %5862
    %5865 = vset.pattern.permute.xlu0 11
    %5866 = vperm.xlu0 %5865, %v1880
    %v5867 = vpop.permute.xlu0 %5866
    %5869 = vset.pattern.permute.xlu0 11
    %5870 = vperm.xlu0 %5869, %v1881
    %v5871 = vpop.permute.xlu0 %5870
    %5873 = vset.pattern.permute.xlu0 11
    %5874 = vperm.xlu0 %5873, %v1882
    %v5875 = vpop.permute.xlu0 %5874
    %5877 = vset.pattern.permute.xlu0 11
    %5878 = vperm.xlu0 %5877, %v1883
    %v5879 = vpop.permute.xlu0 %5878
    %5881 = vset.pattern.permute.xlu0 11
    %5882 = vperm.xlu0 %5881, %v1884
    %v5883 = vpop.permute.xlu0 %5882
    %5885 = vset.pattern.permute.xlu0 11
    %5886 = vperm.xlu0 %5885, %v1885
    %v5887 = vpop.permute.xlu0 %5886
    %5889 = vset.pattern.permute.xlu0 11
    %5890 = vperm.xlu0 %5889, %v1886
    %v5891 = vpop.permute.xlu0 %5890
    %5893 = vset.pattern.permute.xlu0 11
    %5894 = vperm.xlu0 %5893, %v1887
    %v5895 = vpop.permute.xlu0 %5894
    %5897 = vset.pattern.permute.xlu0 11
    %5898 = vperm.xlu0 %5897, %v1888
    %v5899 = vpop.permute.xlu0 %5898
    %5901 = vset.pattern.permute.xlu0 11
    %5902 = vperm.xlu0 %5901, %v1889
    %v5903 = vpop.permute.xlu0 %5902
    %5905 = vset.pattern.permute.xlu0 11
    %5906 = vperm.xlu0 %5905, %v1890
    %v5907 = vpop.permute.xlu0 %5906
    %5909 = vset.pattern.permute.xlu0 11
    %5910 = vperm.xlu0 %5909, %v1891
    %v5911 = vpop.permute.xlu0 %5910
    %5913 = vset.pattern.permute.xlu0 11
    %5914 = vperm.xlu0 %5913, %v1892
    %v5915 = vpop.permute.xlu0 %5914
    %5917 = vset.pattern.permute.xlu0 11
    %5918 = vperm.xlu0 %5917, %v1893
    %v5919 = vpop.permute.xlu0 %5918
    %5921 = vset.pattern.permute.xlu0 11
    %5922 = vperm.xlu0 %5921, %v1894
    %v5923 = vpop.permute.xlu0 %5922
    %5925 = vset.pattern.permute.xlu0 11
    %5926 = vperm.xlu0 %5925, %v1895
    %v5927 = vpop.permute.xlu0 %5926
    %5929 = vset.pattern.permute.xlu0 11
    %5930 = vperm.xlu0 %5929, %v1896
    %v5931 = vpop.permute.xlu0 %5930
    %5933 = vset.pattern.permute.xlu0 11
    %5934 = vperm.xlu0 %5933, %v1897
    %v5935 = vpop.permute.xlu0 %5934
    %5937 = vset.pattern.permute.xlu0 11
    %5938 = vperm.xlu0 %5937, %v1898
    %v5939 = vpop.permute.xlu0 %5938
    %5941 = vset.pattern.permute.xlu0 11
    %5942 = vperm.xlu0 %5941, %v1899
    %v5943 = vpop.permute.xlu0 %5942
    %5945 = vset.pattern.permute.xlu0 11
    %5946 = vperm.xlu0 %5945, %v1900
    %v5947 = vpop.permute.xlu0 %5946
    %5949 = vset.pattern.permute.xlu0 11
    %5950 = vperm.xlu0 %5949, %v1901
    %v5951 = vpop.permute.xlu0 %5950
    %5953 = vset.pattern.permute.xlu0 11
    %5954 = vperm.xlu0 %5953, %v1902
    %v5955 = vpop.permute.xlu0 %5954
    %5957 = vset.pattern.permute.xlu0 11
    %5958 = vperm.xlu0 %5957, %v1903
    %v5959 = vpop.permute.xlu0 %5958
    %v5961 = vmul.f32 %v5787, %v5763
    %v5962 = vmul.f32 %v5791, %v5764
    %v5963 = vmul.f32 %v5795, %v5765
    %v5964 = vmul.f32 %v5799, %v5766
    %v5965 = vmul.f32 %v5803, %v5767
    %v5966 = vmul.f32 %v5807, %v5768
    %v5967 = vmul.f32 %v5811, %v5769
    %v5968 = vmul.f32 %v5815, %v5770
    %v5969 = vmul.f32 %v5819, %v5771
    %v5970 = vmul.f32 %v5823, %v5772
    %v5971 = vmul.f32 %v5827, %v5773
    %v5972 = vmul.f32 %v5831, %v5774
    %v5973 = vmul.f32 %v5835, %v5775
    %v5974 = vmul.f32 %v5839, %v5776
    %v5975 = vmul.f32 %v5843, %v5777
    %v5976 = vmul.f32 %v5847, %v5778
    %v5977 = vmul.f32 %v5851, %v5779
    %v5978 = vmul.f32 %v5855, %v5780
    %v5979 = vmul.f32 %v5859, %v5781
    %v5980 = vmul.f32 %v5863, %v5782
    %v5981 = vmul.f32 %v5867, %v5783
    %v5982 = vmul.f32 %v5871, %v5784
    %v5983 = vmul.f32 %v5875, %v5763
    %v5984 = vmul.f32 %v5879, %v5764
    %v5985 = vmul.f32 %v5883, %v5765
    %v5986 = vmul.f32 %v5887, %v5766
    %v5987 = vmul.f32 %v5891, %v5767
    %v5988 = vmul.f32 %v5895, %v5768
    %v5989 = vmul.f32 %v5899, %v5769
    %v5990 = vmul.f32 %v5903, %v5770
    %v5991 = vmul.f32 %v5907, %v5771
    %v5992 = vmul.f32 %v5911, %v5772
    %v5993 = vmul.f32 %v5915, %v5773
    %v5994 = vmul.f32 %v5919, %v5774
    %v5995 = vmul.f32 %v5923, %v5775
    %v5996 = vmul.f32 %v5927, %v5776
    %v5997 = vmul.f32 %v5931, %v5777
    %v5998 = vmul.f32 %v5935, %v5778
    %v5999 = vmul.f32 %v5939, %v5779
    %v6000 = vmul.f32 %v5943, %v5780
    %v6001 = vmul.f32 %v5947, %v5781
    %v6002 = vmul.f32 %v5951, %v5782
    %v6003 = vmul.f32 %v5955, %v5783
    %v6004 = vmul.f32 %v5959, %v5784
    %v6005 = vsel %vm2197, %v5961, 0.0
    %v6006 = vsel %vm2197, %v5962, 0.0
    %v6007 = vadd.f32 %v6005, %v6006
    %v6008 = vsel %vm2197, %v5963, 0.0
    %v6009 = vadd.f32 %v6007, %v6008
    %v6010 = vsel %vm2197, %v5964, 0.0
    %v6011 = vadd.f32 %v6009, %v6010
    %v6012 = vsel %vm2197, %v5965, 0.0
    %v6013 = vadd.f32 %v6011, %v6012
    %v6014 = vsel %vm2197, %v5966, 0.0
    %v6015 = vadd.f32 %v6013, %v6014
    %v6016 = vsel %vm2197, %v5967, 0.0
    %v6017 = vadd.f32 %v6015, %v6016
    %v6018 = vsel %vm2197, %v5968, 0.0
    %v6019 = vadd.f32 %v6017, %v6018
    %v6020 = vsel %vm2197, %v5969, 0.0
    %v6021 = vadd.f32 %v6019, %v6020
    %v6022 = vsel %vm2197, %v5970, 0.0
    %v6023 = vadd.f32 %v6021, %v6022
    %v6024 = vsel %vm2197, %v5971, 0.0
    %v6025 = vadd.f32 %v6023, %v6024
    %v6026 = vsel %vm2197, %v5972, 0.0
    %v6027 = vadd.f32 %v6025, %v6026
    %v6028 = vsel %vm2197, %v5973, 0.0
    %v6029 = vadd.f32 %v6027, %v6028
    %v6030 = vsel %vm2197, %v5974, 0.0
    %v6031 = vadd.f32 %v6029, %v6030
    %v6032 = vsel %vm2197, %v5975, 0.0
    %v6033 = vadd.f32 %v6031, %v6032
    %v6034 = vsel %vm2197, %v5976, 0.0
    %v6035 = vadd.f32 %v6033, %v6034
    %v6036 = vsel %vm2197, %v5977, 0.0
    %v6037 = vadd.f32 %v6035, %v6036
    %v6038 = vsel %vm2197, %v5978, 0.0
    %v6039 = vadd.f32 %v6037, %v6038
    %v6040 = vsel %vm2197, %v5979, 0.0
    %v6041 = vadd.f32 %v6039, %v6040
    %v6042 = vsel %vm2197, %v5980, 0.0
    %v6043 = vadd.f32 %v6041, %v6042
    %v6044 = vsel %vm2197, %v5981, 0.0
    %v6045 = vadd.f32 %v6043, %v6044
    %v6046 = vsel %vm2197, %v5982, 0.0
    %v6047 = vadd.f32 %v6045, %v6046
    %v6048 = vrot.slane %v6047, 4
    %v6049 = vadd.f32 %v6047, %v6048
    %v6050 = vrot.slane %v6049, 2
    %v6051 = vadd.f32 %v6049, %v6050
    %v6052 = vrot.slane %v6051, 1
    %v6053 = vadd.f32 %v6051, %v6052
    %v6054 = vsel %vm2197, %v5983, 0.0
    %v6055 = vsel %vm2197, %v5984, 0.0
    %v6056 = vadd.f32 %v6054, %v6055
    %v6057 = vsel %vm2197, %v5985, 0.0
    %v6058 = vadd.f32 %v6056, %v6057
    %v6059 = vsel %vm2197, %v5986, 0.0
    %v6060 = vadd.f32 %v6058, %v6059
    %v6061 = vsel %vm2197, %v5987, 0.0
    %v6062 = vadd.f32 %v6060, %v6061
    %v6063 = vsel %vm2197, %v5988, 0.0
    %v6064 = vadd.f32 %v6062, %v6063
    %v6065 = vsel %vm2197, %v5989, 0.0
    %v6066 = vadd.f32 %v6064, %v6065
    %v6067 = vsel %vm2197, %v5990, 0.0
    %v6068 = vadd.f32 %v6066, %v6067
    %v6069 = vsel %vm2197, %v5991, 0.0
    %v6070 = vadd.f32 %v6068, %v6069
    %v6071 = vsel %vm2197, %v5992, 0.0
    %v6072 = vadd.f32 %v6070, %v6071
    %v6073 = vsel %vm2197, %v5993, 0.0
    %v6074 = vadd.f32 %v6072, %v6073
    %v6075 = vsel %vm2197, %v5994, 0.0
    %v6076 = vadd.f32 %v6074, %v6075
    %v6077 = vsel %vm2197, %v5995, 0.0
    %v6078 = vadd.f32 %v6076, %v6077
    %v6079 = vsel %vm2197, %v5996, 0.0
    %v6080 = vadd.f32 %v6078, %v6079
    %v6081 = vsel %vm2197, %v5997, 0.0
    %v6082 = vadd.f32 %v6080, %v6081
    %v6083 = vsel %vm2197, %v5998, 0.0
    %v6084 = vadd.f32 %v6082, %v6083
    %v6085 = vsel %vm2197, %v5999, 0.0
    %v6086 = vadd.f32 %v6084, %v6085
    %v6087 = vsel %vm2197, %v6000, 0.0
    %v6088 = vadd.f32 %v6086, %v6087
    %v6089 = vsel %vm2197, %v6001, 0.0
    %v6090 = vadd.f32 %v6088, %v6089
    %v6091 = vsel %vm2197, %v6002, 0.0
    %v6092 = vadd.f32 %v6090, %v6091
    %v6093 = vsel %vm2197, %v6003, 0.0
    %v6094 = vadd.f32 %v6092, %v6093
    %v6095 = vsel %vm2197, %v6004, 0.0
    %v6096 = vadd.f32 %v6094, %v6095
    %v6097 = vrot.slane %v6096, 4
    %v6098 = vadd.f32 %v6096, %v6097
    %v6099 = vrot.slane %v6098, 2
    %v6100 = vadd.f32 %v6098, %v6099
    %v6101 = vrot.slane %v6100, 1
    %v6102 = vadd.f32 %v6100, %v6101
    %v6105 = vsel %vm2298, %v6102, %v6053
    %v6107 = vadd.f32 %v5761, %v6105
    %s6108 = scalar_lea.vmem %s3, 2112
    %v6109 = vld [vmem:[%s6108] sm:$0xff]
    %v6110 = vld [vmem:[%s6108 + $0x8] sm:$0xff]
    %v6111 = vld [vmem:[%s6108 + $0x10] sm:$0xff]
    %v6112 = vld [vmem:[%s6108 + $0x18] sm:$0xff]
    %v6113 = vld [vmem:[%s6108 + $0x20] sm:$0xff]
    %v6114 = vld [vmem:[%s6108 + $0x28] sm:$0xff]
    %v6115 = vld [vmem:[%s6108 + $0x30] sm:$0xff]
    %v6116 = vld [vmem:[%s6108 + $0x38] sm:$0xff]
    %v6117 = vld [vmem:[%s6108 + $0x40] sm:$0xff]
    %v6118 = vld [vmem:[%s6108 + $0x48] sm:$0xff]
    %v6119 = vld [vmem:[%s6108 + $0x50] sm:$0xff]
    %v6120 = vld [vmem:[%s6108 + $0x58] sm:$0xff]
    %v6121 = vld [vmem:[%s6108 + $0x60] sm:$0xff]
    %v6122 = vld [vmem:[%s6108 + $0x68] sm:$0xff]
    %v6123 = vld [vmem:[%s6108 + $0x70] sm:$0xff]
    %v6124 = vld [vmem:[%s6108 + $0x78] sm:$0xff]
    %v6125 = vld [vmem:[%s6108 + $0x80] sm:$0xff]
    %v6126 = vld [vmem:[%s6108 + $0x88] sm:$0xff]
    %v6127 = vld [vmem:[%s6108 + $0x90] sm:$0xff]
    %v6128 = vld [vmem:[%s6108 + $0x98] sm:$0xff]
    %v6129 = vld [vmem:[%s6108 + $0xa0] sm:$0xff]
    %v6130 = vld [vmem:[%s6108 + $0xa8] sm:$0xff]
    %6131 = vset.pattern.permute.xlu0 12
    %6132 = vperm.xlu0 %6131, %v1860
    %v6133 = vpop.permute.xlu0 %6132
    %6135 = vset.pattern.permute.xlu0 12
    %6136 = vperm.xlu0 %6135, %v1861
    %v6137 = vpop.permute.xlu0 %6136
    %6139 = vset.pattern.permute.xlu0 12
    %6140 = vperm.xlu0 %6139, %v1862
    %v6141 = vpop.permute.xlu0 %6140
    %6143 = vset.pattern.permute.xlu0 12
    %6144 = vperm.xlu0 %6143, %v1863
    %v6145 = vpop.permute.xlu0 %6144
    %6147 = vset.pattern.permute.xlu0 12
    %6148 = vperm.xlu0 %6147, %v1864
    %v6149 = vpop.permute.xlu0 %6148
    %6151 = vset.pattern.permute.xlu0 12
    %6152 = vperm.xlu0 %6151, %v1865
    %v6153 = vpop.permute.xlu0 %6152
    %6155 = vset.pattern.permute.xlu0 12
    %6156 = vperm.xlu0 %6155, %v1866
    %v6157 = vpop.permute.xlu0 %6156
    %6159 = vset.pattern.permute.xlu0 12
    %6160 = vperm.xlu0 %6159, %v1867
    %v6161 = vpop.permute.xlu0 %6160
    %6163 = vset.pattern.permute.xlu0 12
    %6164 = vperm.xlu0 %6163, %v1868
    %v6165 = vpop.permute.xlu0 %6164
    %6167 = vset.pattern.permute.xlu0 12
    %6168 = vperm.xlu0 %6167, %v1869
    %v6169 = vpop.permute.xlu0 %6168
    %6171 = vset.pattern.permute.xlu0 12
    %6172 = vperm.xlu0 %6171, %v1870
    %v6173 = vpop.permute.xlu0 %6172
    %6175 = vset.pattern.permute.xlu0 12
    %6176 = vperm.xlu0 %6175, %v1871
    %v6177 = vpop.permute.xlu0 %6176
    %6179 = vset.pattern.permute.xlu0 12
    %6180 = vperm.xlu0 %6179, %v1872
    %v6181 = vpop.permute.xlu0 %6180
    %6183 = vset.pattern.permute.xlu0 12
    %6184 = vperm.xlu0 %6183, %v1873
    %v6185 = vpop.permute.xlu0 %6184
    %6187 = vset.pattern.permute.xlu0 12
    %6188 = vperm.xlu0 %6187, %v1874
    %v6189 = vpop.permute.xlu0 %6188
    %6191 = vset.pattern.permute.xlu0 12
    %6192 = vperm.xlu0 %6191, %v1875
    %v6193 = vpop.permute.xlu0 %6192
    %6195 = vset.pattern.permute.xlu0 12
    %6196 = vperm.xlu0 %6195, %v1876
    %v6197 = vpop.permute.xlu0 %6196
    %6199 = vset.pattern.permute.xlu0 12
    %6200 = vperm.xlu0 %6199, %v1877
    %v6201 = vpop.permute.xlu0 %6200
    %6203 = vset.pattern.permute.xlu0 12
    %6204 = vperm.xlu0 %6203, %v1878
    %v6205 = vpop.permute.xlu0 %6204
    %6207 = vset.pattern.permute.xlu0 12
    %6208 = vperm.xlu0 %6207, %v1879
    %v6209 = vpop.permute.xlu0 %6208
    %6211 = vset.pattern.permute.xlu0 12
    %6212 = vperm.xlu0 %6211, %v1880
    %v6213 = vpop.permute.xlu0 %6212
    %6215 = vset.pattern.permute.xlu0 12
    %6216 = vperm.xlu0 %6215, %v1881
    %v6217 = vpop.permute.xlu0 %6216
    %6219 = vset.pattern.permute.xlu0 12
    %6220 = vperm.xlu0 %6219, %v1882
    %v6221 = vpop.permute.xlu0 %6220
    %6223 = vset.pattern.permute.xlu0 12
    %6224 = vperm.xlu0 %6223, %v1883
    %v6225 = vpop.permute.xlu0 %6224
    %6227 = vset.pattern.permute.xlu0 12
    %6228 = vperm.xlu0 %6227, %v1884
    %v6229 = vpop.permute.xlu0 %6228
    %6231 = vset.pattern.permute.xlu0 12
    %6232 = vperm.xlu0 %6231, %v1885
    %v6233 = vpop.permute.xlu0 %6232
    %6235 = vset.pattern.permute.xlu0 12
    %6236 = vperm.xlu0 %6235, %v1886
    %v6237 = vpop.permute.xlu0 %6236
    %6239 = vset.pattern.permute.xlu0 12
    %6240 = vperm.xlu0 %6239, %v1887
    %v6241 = vpop.permute.xlu0 %6240
    %6243 = vset.pattern.permute.xlu0 12
    %6244 = vperm.xlu0 %6243, %v1888
    %v6245 = vpop.permute.xlu0 %6244
    %6247 = vset.pattern.permute.xlu0 12
    %6248 = vperm.xlu0 %6247, %v1889
    %v6249 = vpop.permute.xlu0 %6248
    %6251 = vset.pattern.permute.xlu0 12
    %6252 = vperm.xlu0 %6251, %v1890
    %v6253 = vpop.permute.xlu0 %6252
    %6255 = vset.pattern.permute.xlu0 12
    %6256 = vperm.xlu0 %6255, %v1891
    %v6257 = vpop.permute.xlu0 %6256
    %6259 = vset.pattern.permute.xlu0 12
    %6260 = vperm.xlu0 %6259, %v1892
    %v6261 = vpop.permute.xlu0 %6260
    %6263 = vset.pattern.permute.xlu0 12
    %6264 = vperm.xlu0 %6263, %v1893
    %v6265 = vpop.permute.xlu0 %6264
    %6267 = vset.pattern.permute.xlu0 12
    %6268 = vperm.xlu0 %6267, %v1894
    %v6269 = vpop.permute.xlu0 %6268
    %6271 = vset.pattern.permute.xlu0 12
    %6272 = vperm.xlu0 %6271, %v1895
    %v6273 = vpop.permute.xlu0 %6272
    %6275 = vset.pattern.permute.xlu0 12
    %6276 = vperm.xlu0 %6275, %v1896
    %v6277 = vpop.permute.xlu0 %6276
    %6279 = vset.pattern.permute.xlu0 12
    %6280 = vperm.xlu0 %6279, %v1897
    %v6281 = vpop.permute.xlu0 %6280
    %6283 = vset.pattern.permute.xlu0 12
    %6284 = vperm.xlu0 %6283, %v1898
    %v6285 = vpop.permute.xlu0 %6284
    %6287 = vset.pattern.permute.xlu0 12
    %6288 = vperm.xlu0 %6287, %v1899
    %v6289 = vpop.permute.xlu0 %6288
    %6291 = vset.pattern.permute.xlu0 12
    %6292 = vperm.xlu0 %6291, %v1900
    %v6293 = vpop.permute.xlu0 %6292
    %6295 = vset.pattern.permute.xlu0 12
    %6296 = vperm.xlu0 %6295, %v1901
    %v6297 = vpop.permute.xlu0 %6296
    %6299 = vset.pattern.permute.xlu0 12
    %6300 = vperm.xlu0 %6299, %v1902
    %v6301 = vpop.permute.xlu0 %6300
    %6303 = vset.pattern.permute.xlu0 12
    %6304 = vperm.xlu0 %6303, %v1903
    %v6305 = vpop.permute.xlu0 %6304
    %v6307 = vmul.f32 %v6133, %v6109
    %v6308 = vmul.f32 %v6137, %v6110
    %v6309 = vmul.f32 %v6141, %v6111
    %v6310 = vmul.f32 %v6145, %v6112
    %v6311 = vmul.f32 %v6149, %v6113
    %v6312 = vmul.f32 %v6153, %v6114
    %v6313 = vmul.f32 %v6157, %v6115
    %v6314 = vmul.f32 %v6161, %v6116
    %v6315 = vmul.f32 %v6165, %v6117
    %v6316 = vmul.f32 %v6169, %v6118
    %v6317 = vmul.f32 %v6173, %v6119
    %v6318 = vmul.f32 %v6177, %v6120
    %v6319 = vmul.f32 %v6181, %v6121
    %v6320 = vmul.f32 %v6185, %v6122
    %v6321 = vmul.f32 %v6189, %v6123
    %v6322 = vmul.f32 %v6193, %v6124
    %v6323 = vmul.f32 %v6197, %v6125
    %v6324 = vmul.f32 %v6201, %v6126
    %v6325 = vmul.f32 %v6205, %v6127
    %v6326 = vmul.f32 %v6209, %v6128
    %v6327 = vmul.f32 %v6213, %v6129
    %v6328 = vmul.f32 %v6217, %v6130
    %v6329 = vmul.f32 %v6221, %v6109
    %v6330 = vmul.f32 %v6225, %v6110
    %v6331 = vmul.f32 %v6229, %v6111
    %v6332 = vmul.f32 %v6233, %v6112
    %v6333 = vmul.f32 %v6237, %v6113
    %v6334 = vmul.f32 %v6241, %v6114
    %v6335 = vmul.f32 %v6245, %v6115
    %v6336 = vmul.f32 %v6249, %v6116
    %v6337 = vmul.f32 %v6253, %v6117
    %v6338 = vmul.f32 %v6257, %v6118
    %v6339 = vmul.f32 %v6261, %v6119
    %v6340 = vmul.f32 %v6265, %v6120
    %v6341 = vmul.f32 %v6269, %v6121
    %v6342 = vmul.f32 %v6273, %v6122
    %v6343 = vmul.f32 %v6277, %v6123
    %v6344 = vmul.f32 %v6281, %v6124
    %v6345 = vmul.f32 %v6285, %v6125
    %v6346 = vmul.f32 %v6289, %v6126
    %v6347 = vmul.f32 %v6293, %v6127
    %v6348 = vmul.f32 %v6297, %v6128
    %v6349 = vmul.f32 %v6301, %v6129
    %v6350 = vmul.f32 %v6305, %v6130
    %v6351 = vsel %vm2197, %v6307, 0.0
    %v6352 = vsel %vm2197, %v6308, 0.0
    %v6353 = vadd.f32 %v6351, %v6352
    %v6354 = vsel %vm2197, %v6309, 0.0
    %v6355 = vadd.f32 %v6353, %v6354
    %v6356 = vsel %vm2197, %v6310, 0.0
    %v6357 = vadd.f32 %v6355, %v6356
    %v6358 = vsel %vm2197, %v6311, 0.0
    %v6359 = vadd.f32 %v6357, %v6358
    %v6360 = vsel %vm2197, %v6312, 0.0
    %v6361 = vadd.f32 %v6359, %v6360
    %v6362 = vsel %vm2197, %v6313, 0.0
    %v6363 = vadd.f32 %v6361, %v6362
    %v6364 = vsel %vm2197, %v6314, 0.0
    %v6365 = vadd.f32 %v6363, %v6364
    %v6366 = vsel %vm2197, %v6315, 0.0
    %v6367 = vadd.f32 %v6365, %v6366
    %v6368 = vsel %vm2197, %v6316, 0.0
    %v6369 = vadd.f32 %v6367, %v6368
    %v6370 = vsel %vm2197, %v6317, 0.0
    %v6371 = vadd.f32 %v6369, %v6370
    %v6372 = vsel %vm2197, %v6318, 0.0
    %v6373 = vadd.f32 %v6371, %v6372
    %v6374 = vsel %vm2197, %v6319, 0.0
    %v6375 = vadd.f32 %v6373, %v6374
    %v6376 = vsel %vm2197, %v6320, 0.0
    %v6377 = vadd.f32 %v6375, %v6376
    %v6378 = vsel %vm2197, %v6321, 0.0
    %v6379 = vadd.f32 %v6377, %v6378
    %v6380 = vsel %vm2197, %v6322, 0.0
    %v6381 = vadd.f32 %v6379, %v6380
    %v6382 = vsel %vm2197, %v6323, 0.0
    %v6383 = vadd.f32 %v6381, %v6382
    %v6384 = vsel %vm2197, %v6324, 0.0
    %v6385 = vadd.f32 %v6383, %v6384
    %v6386 = vsel %vm2197, %v6325, 0.0
    %v6387 = vadd.f32 %v6385, %v6386
    %v6388 = vsel %vm2197, %v6326, 0.0
    %v6389 = vadd.f32 %v6387, %v6388
    %v6390 = vsel %vm2197, %v6327, 0.0
    %v6391 = vadd.f32 %v6389, %v6390
    %v6392 = vsel %vm2197, %v6328, 0.0
    %v6393 = vadd.f32 %v6391, %v6392
    %v6394 = vrot.slane %v6393, 4
    %v6395 = vadd.f32 %v6393, %v6394
    %v6396 = vrot.slane %v6395, 2
    %v6397 = vadd.f32 %v6395, %v6396
    %v6398 = vrot.slane %v6397, 1
    %v6399 = vadd.f32 %v6397, %v6398
    %v6400 = vsel %vm2197, %v6329, 0.0
    %v6401 = vsel %vm2197, %v6330, 0.0
    %v6402 = vadd.f32 %v6400, %v6401
    %v6403 = vsel %vm2197, %v6331, 0.0
    %v6404 = vadd.f32 %v6402, %v6403
    %v6405 = vsel %vm2197, %v6332, 0.0
    %v6406 = vadd.f32 %v6404, %v6405
    %v6407 = vsel %vm2197, %v6333, 0.0
    %v6408 = vadd.f32 %v6406, %v6407
    %v6409 = vsel %vm2197, %v6334, 0.0
    %v6410 = vadd.f32 %v6408, %v6409
    %v6411 = vsel %vm2197, %v6335, 0.0
    %v6412 = vadd.f32 %v6410, %v6411
    %v6413 = vsel %vm2197, %v6336, 0.0
    %v6414 = vadd.f32 %v6412, %v6413
    %v6415 = vsel %vm2197, %v6337, 0.0
    %v6416 = vadd.f32 %v6414, %v6415
    %v6417 = vsel %vm2197, %v6338, 0.0
    %v6418 = vadd.f32 %v6416, %v6417
    %v6419 = vsel %vm2197, %v6339, 0.0
    %v6420 = vadd.f32 %v6418, %v6419
    %v6421 = vsel %vm2197, %v6340, 0.0
    %v6422 = vadd.f32 %v6420, %v6421
    %v6423 = vsel %vm2197, %v6341, 0.0
    %v6424 = vadd.f32 %v6422, %v6423
    %v6425 = vsel %vm2197, %v6342, 0.0
    %v6426 = vadd.f32 %v6424, %v6425
    %v6427 = vsel %vm2197, %v6343, 0.0
    %v6428 = vadd.f32 %v6426, %v6427
    %v6429 = vsel %vm2197, %v6344, 0.0
    %v6430 = vadd.f32 %v6428, %v6429
    %v6431 = vsel %vm2197, %v6345, 0.0
    %v6432 = vadd.f32 %v6430, %v6431
    %v6433 = vsel %vm2197, %v6346, 0.0
    %v6434 = vadd.f32 %v6432, %v6433
    %v6435 = vsel %vm2197, %v6347, 0.0
    %v6436 = vadd.f32 %v6434, %v6435
    %v6437 = vsel %vm2197, %v6348, 0.0
    %v6438 = vadd.f32 %v6436, %v6437
    %v6439 = vsel %vm2197, %v6349, 0.0
    %v6440 = vadd.f32 %v6438, %v6439
    %v6441 = vsel %vm2197, %v6350, 0.0
    %v6442 = vadd.f32 %v6440, %v6441
    %v6443 = vrot.slane %v6442, 4
    %v6444 = vadd.f32 %v6442, %v6443
    %v6445 = vrot.slane %v6444, 2
    %v6446 = vadd.f32 %v6444, %v6445
    %v6447 = vrot.slane %v6446, 1
    %v6448 = vadd.f32 %v6446, %v6447
    %v6451 = vsel %vm2298, %v6448, %v6399
    %v6453 = vadd.f32 %v6107, %v6451
    %s6454 = scalar_lea.vmem %s3, 2288
    %v6455 = vld [vmem:[%s6454] sm:$0xff]
    %v6456 = vld [vmem:[%s6454 + $0x8] sm:$0xff]
    %v6457 = vld [vmem:[%s6454 + $0x10] sm:$0xff]
    %v6458 = vld [vmem:[%s6454 + $0x18] sm:$0xff]
    %v6459 = vld [vmem:[%s6454 + $0x20] sm:$0xff]
    %v6460 = vld [vmem:[%s6454 + $0x28] sm:$0xff]
    %v6461 = vld [vmem:[%s6454 + $0x30] sm:$0xff]
    %v6462 = vld [vmem:[%s6454 + $0x38] sm:$0xff]
    %v6463 = vld [vmem:[%s6454 + $0x40] sm:$0xff]
    %v6464 = vld [vmem:[%s6454 + $0x48] sm:$0xff]
    %v6465 = vld [vmem:[%s6454 + $0x50] sm:$0xff]
    %v6466 = vld [vmem:[%s6454 + $0x58] sm:$0xff]
    %v6467 = vld [vmem:[%s6454 + $0x60] sm:$0xff]
    %v6468 = vld [vmem:[%s6454 + $0x68] sm:$0xff]
    %v6469 = vld [vmem:[%s6454 + $0x70] sm:$0xff]
    %v6470 = vld [vmem:[%s6454 + $0x78] sm:$0xff]
    %v6471 = vld [vmem:[%s6454 + $0x80] sm:$0xff]
    %v6472 = vld [vmem:[%s6454 + $0x88] sm:$0xff]
    %v6473 = vld [vmem:[%s6454 + $0x90] sm:$0xff]
    %v6474 = vld [vmem:[%s6454 + $0x98] sm:$0xff]
    %v6475 = vld [vmem:[%s6454 + $0xa0] sm:$0xff]
    %v6476 = vld [vmem:[%s6454 + $0xa8] sm:$0xff]
    %6477 = vset.pattern.permute.xlu0 13
    %6478 = vperm.xlu0 %6477, %v1860
    %v6479 = vpop.permute.xlu0 %6478
    %6481 = vset.pattern.permute.xlu0 13
    %6482 = vperm.xlu0 %6481, %v1861
    %v6483 = vpop.permute.xlu0 %6482
    %6485 = vset.pattern.permute.xlu0 13
    %6486 = vperm.xlu0 %6485, %v1862
    %v6487 = vpop.permute.xlu0 %6486
    %6489 = vset.pattern.permute.xlu0 13
    %6490 = vperm.xlu0 %6489, %v1863
    %v6491 = vpop.permute.xlu0 %6490
    %6493 = vset.pattern.permute.xlu0 13
    %6494 = vperm.xlu0 %6493, %v1864
    %v6495 = vpop.permute.xlu0 %6494
    %6497 = vset.pattern.permute.xlu0 13
    %6498 = vperm.xlu0 %6497, %v1865
    %v6499 = vpop.permute.xlu0 %6498
    %6501 = vset.pattern.permute.xlu0 13
    %6502 = vperm.xlu0 %6501, %v1866
    %v6503 = vpop.permute.xlu0 %6502
    %6505 = vset.pattern.permute.xlu0 13
    %6506 = vperm.xlu0 %6505, %v1867
    %v6507 = vpop.permute.xlu0 %6506
    %6509 = vset.pattern.permute.xlu0 13
    %6510 = vperm.xlu0 %6509, %v1868
    %v6511 = vpop.permute.xlu0 %6510
    %6513 = vset.pattern.permute.xlu0 13
    %6514 = vperm.xlu0 %6513, %v1869
    %v6515 = vpop.permute.xlu0 %6514
    %6517 = vset.pattern.permute.xlu0 13
    %6518 = vperm.xlu0 %6517, %v1870
    %v6519 = vpop.permute.xlu0 %6518
    %6521 = vset.pattern.permute.xlu0 13
    %6522 = vperm.xlu0 %6521, %v1871
    %v6523 = vpop.permute.xlu0 %6522
    %6525 = vset.pattern.permute.xlu0 13
    %6526 = vperm.xlu0 %6525, %v1872
    %v6527 = vpop.permute.xlu0 %6526
    %6529 = vset.pattern.permute.xlu0 13
    %6530 = vperm.xlu0 %6529, %v1873
    %v6531 = vpop.permute.xlu0 %6530
    %6533 = vset.pattern.permute.xlu0 13
    %6534 = vperm.xlu0 %6533, %v1874
    %v6535 = vpop.permute.xlu0 %6534
    %6537 = vset.pattern.permute.xlu0 13
    %6538 = vperm.xlu0 %6537, %v1875
    %v6539 = vpop.permute.xlu0 %6538
    %6541 = vset.pattern.permute.xlu0 13
    %6542 = vperm.xlu0 %6541, %v1876
    %v6543 = vpop.permute.xlu0 %6542
    %6545 = vset.pattern.permute.xlu0 13
    %6546 = vperm.xlu0 %6545, %v1877
    %v6547 = vpop.permute.xlu0 %6546
    %6549 = vset.pattern.permute.xlu0 13
    %6550 = vperm.xlu0 %6549, %v1878
    %v6551 = vpop.permute.xlu0 %6550
    %6553 = vset.pattern.permute.xlu0 13
    %6554 = vperm.xlu0 %6553, %v1879
    %v6555 = vpop.permute.xlu0 %6554
    %6557 = vset.pattern.permute.xlu0 13
    %6558 = vperm.xlu0 %6557, %v1880
    %v6559 = vpop.permute.xlu0 %6558
    %6561 = vset.pattern.permute.xlu0 13
    %6562 = vperm.xlu0 %6561, %v1881
    %v6563 = vpop.permute.xlu0 %6562
    %6565 = vset.pattern.permute.xlu0 13
    %6566 = vperm.xlu0 %6565, %v1882
    %v6567 = vpop.permute.xlu0 %6566
    %6569 = vset.pattern.permute.xlu0 13
    %6570 = vperm.xlu0 %6569, %v1883
    %v6571 = vpop.permute.xlu0 %6570
    %6573 = vset.pattern.permute.xlu0 13
    %6574 = vperm.xlu0 %6573, %v1884
    %v6575 = vpop.permute.xlu0 %6574
    %6577 = vset.pattern.permute.xlu0 13
    %6578 = vperm.xlu0 %6577, %v1885
    %v6579 = vpop.permute.xlu0 %6578
    %6581 = vset.pattern.permute.xlu0 13
    %6582 = vperm.xlu0 %6581, %v1886
    %v6583 = vpop.permute.xlu0 %6582
    %6585 = vset.pattern.permute.xlu0 13
    %6586 = vperm.xlu0 %6585, %v1887
    %v6587 = vpop.permute.xlu0 %6586
    %6589 = vset.pattern.permute.xlu0 13
    %6590 = vperm.xlu0 %6589, %v1888
    %v6591 = vpop.permute.xlu0 %6590
    %6593 = vset.pattern.permute.xlu0 13
    %6594 = vperm.xlu0 %6593, %v1889
    %v6595 = vpop.permute.xlu0 %6594
    %6597 = vset.pattern.permute.xlu0 13
    %6598 = vperm.xlu0 %6597, %v1890
    %v6599 = vpop.permute.xlu0 %6598
    %6601 = vset.pattern.permute.xlu0 13
    %6602 = vperm.xlu0 %6601, %v1891
    %v6603 = vpop.permute.xlu0 %6602
    %6605 = vset.pattern.permute.xlu0 13
    %6606 = vperm.xlu0 %6605, %v1892
    %v6607 = vpop.permute.xlu0 %6606
    %6609 = vset.pattern.permute.xlu0 13
    %6610 = vperm.xlu0 %6609, %v1893
    %v6611 = vpop.permute.xlu0 %6610
    %6613 = vset.pattern.permute.xlu0 13
    %6614 = vperm.xlu0 %6613, %v1894
    %v6615 = vpop.permute.xlu0 %6614
    %6617 = vset.pattern.permute.xlu0 13
    %6618 = vperm.xlu0 %6617, %v1895
    %v6619 = vpop.permute.xlu0 %6618
    %6621 = vset.pattern.permute.xlu0 13
    %6622 = vperm.xlu0 %6621, %v1896
    %v6623 = vpop.permute.xlu0 %6622
    %6625 = vset.pattern.permute.xlu0 13
    %6626 = vperm.xlu0 %6625, %v1897
    %v6627 = vpop.permute.xlu0 %6626
    %6629 = vset.pattern.permute.xlu0 13
    %6630 = vperm.xlu0 %6629, %v1898
    %v6631 = vpop.permute.xlu0 %6630
    %6633 = vset.pattern.permute.xlu0 13
    %6634 = vperm.xlu0 %6633, %v1899
    %v6635 = vpop.permute.xlu0 %6634
    %6637 = vset.pattern.permute.xlu0 13
    %6638 = vperm.xlu0 %6637, %v1900
    %v6639 = vpop.permute.xlu0 %6638
    %6641 = vset.pattern.permute.xlu0 13
    %6642 = vperm.xlu0 %6641, %v1901
    %v6643 = vpop.permute.xlu0 %6642
    %6645 = vset.pattern.permute.xlu0 13
    %6646 = vperm.xlu0 %6645, %v1902
    %v6647 = vpop.permute.xlu0 %6646
    %6649 = vset.pattern.permute.xlu0 13
    %6650 = vperm.xlu0 %6649, %v1903
    %v6651 = vpop.permute.xlu0 %6650
    %v6653 = vmul.f32 %v6479, %v6455
    %v6654 = vmul.f32 %v6483, %v6456
    %v6655 = vmul.f32 %v6487, %v6457
    %v6656 = vmul.f32 %v6491, %v6458
    %v6657 = vmul.f32 %v6495, %v6459
    %v6658 = vmul.f32 %v6499, %v6460
    %v6659 = vmul.f32 %v6503, %v6461
    %v6660 = vmul.f32 %v6507, %v6462
    %v6661 = vmul.f32 %v6511, %v6463
    %v6662 = vmul.f32 %v6515, %v6464
    %v6663 = vmul.f32 %v6519, %v6465
    %v6664 = vmul.f32 %v6523, %v6466
    %v6665 = vmul.f32 %v6527, %v6467
    %v6666 = vmul.f32 %v6531, %v6468
    %v6667 = vmul.f32 %v6535, %v6469
    %v6668 = vmul.f32 %v6539, %v6470
    %v6669 = vmul.f32 %v6543, %v6471
    %v6670 = vmul.f32 %v6547, %v6472
    %v6671 = vmul.f32 %v6551, %v6473
    %v6672 = vmul.f32 %v6555, %v6474
    %v6673 = vmul.f32 %v6559, %v6475
    %v6674 = vmul.f32 %v6563, %v6476
    %v6675 = vmul.f32 %v6567, %v6455
    %v6676 = vmul.f32 %v6571, %v6456
    %v6677 = vmul.f32 %v6575, %v6457
    %v6678 = vmul.f32 %v6579, %v6458
    %v6679 = vmul.f32 %v6583, %v6459
    %v6680 = vmul.f32 %v6587, %v6460
    %v6681 = vmul.f32 %v6591, %v6461
    %v6682 = vmul.f32 %v6595, %v6462
    %v6683 = vmul.f32 %v6599, %v6463
    %v6684 = vmul.f32 %v6603, %v6464
    %v6685 = vmul.f32 %v6607, %v6465
    %v6686 = vmul.f32 %v6611, %v6466
    %v6687 = vmul.f32 %v6615, %v6467
    %v6688 = vmul.f32 %v6619, %v6468
    %v6689 = vmul.f32 %v6623, %v6469
    %v6690 = vmul.f32 %v6627, %v6470
    %v6691 = vmul.f32 %v6631, %v6471
    %v6692 = vmul.f32 %v6635, %v6472
    %v6693 = vmul.f32 %v6639, %v6473
    %v6694 = vmul.f32 %v6643, %v6474
    %v6695 = vmul.f32 %v6647, %v6475
    %v6696 = vmul.f32 %v6651, %v6476
    %v6697 = vsel %vm2197, %v6653, 0.0
    %v6698 = vsel %vm2197, %v6654, 0.0
    %v6699 = vadd.f32 %v6697, %v6698
    %v6700 = vsel %vm2197, %v6655, 0.0
    %v6701 = vadd.f32 %v6699, %v6700
    %v6702 = vsel %vm2197, %v6656, 0.0
    %v6703 = vadd.f32 %v6701, %v6702
    %v6704 = vsel %vm2197, %v6657, 0.0
    %v6705 = vadd.f32 %v6703, %v6704
    %v6706 = vsel %vm2197, %v6658, 0.0
    %v6707 = vadd.f32 %v6705, %v6706
    %v6708 = vsel %vm2197, %v6659, 0.0
    %v6709 = vadd.f32 %v6707, %v6708
    %v6710 = vsel %vm2197, %v6660, 0.0
    %v6711 = vadd.f32 %v6709, %v6710
    %v6712 = vsel %vm2197, %v6661, 0.0
    %v6713 = vadd.f32 %v6711, %v6712
    %v6714 = vsel %vm2197, %v6662, 0.0
    %v6715 = vadd.f32 %v6713, %v6714
    %v6716 = vsel %vm2197, %v6663, 0.0
    %v6717 = vadd.f32 %v6715, %v6716
    %v6718 = vsel %vm2197, %v6664, 0.0
    %v6719 = vadd.f32 %v6717, %v6718
    %v6720 = vsel %vm2197, %v6665, 0.0
    %v6721 = vadd.f32 %v6719, %v6720
    %v6722 = vsel %vm2197, %v6666, 0.0
    %v6723 = vadd.f32 %v6721, %v6722
    %v6724 = vsel %vm2197, %v6667, 0.0
    %v6725 = vadd.f32 %v6723, %v6724
    %v6726 = vsel %vm2197, %v6668, 0.0
    %v6727 = vadd.f32 %v6725, %v6726
    %v6728 = vsel %vm2197, %v6669, 0.0
    %v6729 = vadd.f32 %v6727, %v6728
    %v6730 = vsel %vm2197, %v6670, 0.0
    %v6731 = vadd.f32 %v6729, %v6730
    %v6732 = vsel %vm2197, %v6671, 0.0
    %v6733 = vadd.f32 %v6731, %v6732
    %v6734 = vsel %vm2197, %v6672, 0.0
    %v6735 = vadd.f32 %v6733, %v6734
    %v6736 = vsel %vm2197, %v6673, 0.0
    %v6737 = vadd.f32 %v6735, %v6736
    %v6738 = vsel %vm2197, %v6674, 0.0
    %v6739 = vadd.f32 %v6737, %v6738
    %v6740 = vrot.slane %v6739, 4
    %v6741 = vadd.f32 %v6739, %v6740
    %v6742 = vrot.slane %v6741, 2
    %v6743 = vadd.f32 %v6741, %v6742
    %v6744 = vrot.slane %v6743, 1
    %v6745 = vadd.f32 %v6743, %v6744
    %v6746 = vsel %vm2197, %v6675, 0.0
    %v6747 = vsel %vm2197, %v6676, 0.0
    %v6748 = vadd.f32 %v6746, %v6747
    %v6749 = vsel %vm2197, %v6677, 0.0
    %v6750 = vadd.f32 %v6748, %v6749
    %v6751 = vsel %vm2197, %v6678, 0.0
    %v6752 = vadd.f32 %v6750, %v6751
    %v6753 = vsel %vm2197, %v6679, 0.0
    %v6754 = vadd.f32 %v6752, %v6753
    %v6755 = vsel %vm2197, %v6680, 0.0
    %v6756 = vadd.f32 %v6754, %v6755
    %v6757 = vsel %vm2197, %v6681, 0.0
    %v6758 = vadd.f32 %v6756, %v6757
    %v6759 = vsel %vm2197, %v6682, 0.0
    %v6760 = vadd.f32 %v6758, %v6759
    %v6761 = vsel %vm2197, %v6683, 0.0
    %v6762 = vadd.f32 %v6760, %v6761
    %v6763 = vsel %vm2197, %v6684, 0.0
    %v6764 = vadd.f32 %v6762, %v6763
    %v6765 = vsel %vm2197, %v6685, 0.0
    %v6766 = vadd.f32 %v6764, %v6765
    %v6767 = vsel %vm2197, %v6686, 0.0
    %v6768 = vadd.f32 %v6766, %v6767
    %v6769 = vsel %vm2197, %v6687, 0.0
    %v6770 = vadd.f32 %v6768, %v6769
    %v6771 = vsel %vm2197, %v6688, 0.0
    %v6772 = vadd.f32 %v6770, %v6771
    %v6773 = vsel %vm2197, %v6689, 0.0
    %v6774 = vadd.f32 %v6772, %v6773
    %v6775 = vsel %vm2197, %v6690, 0.0
    %v6776 = vadd.f32 %v6774, %v6775
    %v6777 = vsel %vm2197, %v6691, 0.0
    %v6778 = vadd.f32 %v6776, %v6777
    %v6779 = vsel %vm2197, %v6692, 0.0
    %v6780 = vadd.f32 %v6778, %v6779
    %v6781 = vsel %vm2197, %v6693, 0.0
    %v6782 = vadd.f32 %v6780, %v6781
    %v6783 = vsel %vm2197, %v6694, 0.0
    %v6784 = vadd.f32 %v6782, %v6783
    %v6785 = vsel %vm2197, %v6695, 0.0
    %v6786 = vadd.f32 %v6784, %v6785
    %v6787 = vsel %vm2197, %v6696, 0.0
    %v6788 = vadd.f32 %v6786, %v6787
    %v6789 = vrot.slane %v6788, 4
    %v6790 = vadd.f32 %v6788, %v6789
    %v6791 = vrot.slane %v6790, 2
    %v6792 = vadd.f32 %v6790, %v6791
    %v6793 = vrot.slane %v6792, 1
    %v6794 = vadd.f32 %v6792, %v6793
    %v6797 = vsel %vm2298, %v6794, %v6745
    %v6799 = vadd.f32 %v6453, %v6797
    %s6800 = scalar_lea.vmem %s3, 2464
    %v6801 = vld [vmem:[%s6800] sm:$0xff]
    %v6802 = vld [vmem:[%s6800 + $0x8] sm:$0xff]
    %v6803 = vld [vmem:[%s6800 + $0x10] sm:$0xff]
    %v6804 = vld [vmem:[%s6800 + $0x18] sm:$0xff]
    %v6805 = vld [vmem:[%s6800 + $0x20] sm:$0xff]
    %v6806 = vld [vmem:[%s6800 + $0x28] sm:$0xff]
    %v6807 = vld [vmem:[%s6800 + $0x30] sm:$0xff]
    %v6808 = vld [vmem:[%s6800 + $0x38] sm:$0xff]
    %v6809 = vld [vmem:[%s6800 + $0x40] sm:$0xff]
    %v6810 = vld [vmem:[%s6800 + $0x48] sm:$0xff]
    %v6811 = vld [vmem:[%s6800 + $0x50] sm:$0xff]
    %v6812 = vld [vmem:[%s6800 + $0x58] sm:$0xff]
    %v6813 = vld [vmem:[%s6800 + $0x60] sm:$0xff]
    %v6814 = vld [vmem:[%s6800 + $0x68] sm:$0xff]
    %v6815 = vld [vmem:[%s6800 + $0x70] sm:$0xff]
    %v6816 = vld [vmem:[%s6800 + $0x78] sm:$0xff]
    %v6817 = vld [vmem:[%s6800 + $0x80] sm:$0xff]
    %v6818 = vld [vmem:[%s6800 + $0x88] sm:$0xff]
    %v6819 = vld [vmem:[%s6800 + $0x90] sm:$0xff]
    %v6820 = vld [vmem:[%s6800 + $0x98] sm:$0xff]
    %v6821 = vld [vmem:[%s6800 + $0xa0] sm:$0xff]
    %v6822 = vld [vmem:[%s6800 + $0xa8] sm:$0xff]
    %6823 = vset.pattern.permute.xlu0 14
    %6824 = vperm.xlu0 %6823, %v1860
    %v6825 = vpop.permute.xlu0 %6824
    %6827 = vset.pattern.permute.xlu0 14
    %6828 = vperm.xlu0 %6827, %v1861
    %v6829 = vpop.permute.xlu0 %6828
    %6831 = vset.pattern.permute.xlu0 14
    %6832 = vperm.xlu0 %6831, %v1862
    %v6833 = vpop.permute.xlu0 %6832
    %6835 = vset.pattern.permute.xlu0 14
    %6836 = vperm.xlu0 %6835, %v1863
    %v6837 = vpop.permute.xlu0 %6836
    %6839 = vset.pattern.permute.xlu0 14
    %6840 = vperm.xlu0 %6839, %v1864
    %v6841 = vpop.permute.xlu0 %6840
    %6843 = vset.pattern.permute.xlu0 14
    %6844 = vperm.xlu0 %6843, %v1865
    %v6845 = vpop.permute.xlu0 %6844
    %6847 = vset.pattern.permute.xlu0 14
    %6848 = vperm.xlu0 %6847, %v1866
    %v6849 = vpop.permute.xlu0 %6848
    %6851 = vset.pattern.permute.xlu0 14
    %6852 = vperm.xlu0 %6851, %v1867
    %v6853 = vpop.permute.xlu0 %6852
    %6855 = vset.pattern.permute.xlu0 14
    %6856 = vperm.xlu0 %6855, %v1868
    %v6857 = vpop.permute.xlu0 %6856
    %6859 = vset.pattern.permute.xlu0 14
    %6860 = vperm.xlu0 %6859, %v1869
    %v6861 = vpop.permute.xlu0 %6860
    %6863 = vset.pattern.permute.xlu0 14
    %6864 = vperm.xlu0 %6863, %v1870
    %v6865 = vpop.permute.xlu0 %6864
    %6867 = vset.pattern.permute.xlu0 14
    %6868 = vperm.xlu0 %6867, %v1871
    %v6869 = vpop.permute.xlu0 %6868
    %6871 = vset.pattern.permute.xlu0 14
    %6872 = vperm.xlu0 %6871, %v1872
    %v6873 = vpop.permute.xlu0 %6872
    %6875 = vset.pattern.permute.xlu0 14
    %6876 = vperm.xlu0 %6875, %v1873
    %v6877 = vpop.permute.xlu0 %6876
    %6879 = vset.pattern.permute.xlu0 14
    %6880 = vperm.xlu0 %6879, %v1874
    %v6881 = vpop.permute.xlu0 %6880
    %6883 = vset.pattern.permute.xlu0 14
    %6884 = vperm.xlu0 %6883, %v1875
    %v6885 = vpop.permute.xlu0 %6884
    %6887 = vset.pattern.permute.xlu0 14
    %6888 = vperm.xlu0 %6887, %v1876
    %v6889 = vpop.permute.xlu0 %6888
    %6891 = vset.pattern.permute.xlu0 14
    %6892 = vperm.xlu0 %6891, %v1877
    %v6893 = vpop.permute.xlu0 %6892
    %6895 = vset.pattern.permute.xlu0 14
    %6896 = vperm.xlu0 %6895, %v1878
    %v6897 = vpop.permute.xlu0 %6896
    %6899 = vset.pattern.permute.xlu0 14
    %6900 = vperm.xlu0 %6899, %v1879
    %v6901 = vpop.permute.xlu0 %6900
    %6903 = vset.pattern.permute.xlu0 14
    %6904 = vperm.xlu0 %6903, %v1880
    %v6905 = vpop.permute.xlu0 %6904
    %6907 = vset.pattern.permute.xlu0 14
    %6908 = vperm.xlu0 %6907, %v1881
    %v6909 = vpop.permute.xlu0 %6908
    %6911 = vset.pattern.permute.xlu0 14
    %6912 = vperm.xlu0 %6911, %v1882
    %v6913 = vpop.permute.xlu0 %6912
    %6915 = vset.pattern.permute.xlu0 14
    %6916 = vperm.xlu0 %6915, %v1883
    %v6917 = vpop.permute.xlu0 %6916
    %6919 = vset.pattern.permute.xlu0 14
    %6920 = vperm.xlu0 %6919, %v1884
    %v6921 = vpop.permute.xlu0 %6920
    %6923 = vset.pattern.permute.xlu0 14
    %6924 = vperm.xlu0 %6923, %v1885
    %v6925 = vpop.permute.xlu0 %6924
    %6927 = vset.pattern.permute.xlu0 14
    %6928 = vperm.xlu0 %6927, %v1886
    %v6929 = vpop.permute.xlu0 %6928
    %6931 = vset.pattern.permute.xlu0 14
    %6932 = vperm.xlu0 %6931, %v1887
    %v6933 = vpop.permute.xlu0 %6932
    %6935 = vset.pattern.permute.xlu0 14
    %6936 = vperm.xlu0 %6935, %v1888
    %v6937 = vpop.permute.xlu0 %6936
    %6939 = vset.pattern.permute.xlu0 14
    %6940 = vperm.xlu0 %6939, %v1889
    %v6941 = vpop.permute.xlu0 %6940
    %6943 = vset.pattern.permute.xlu0 14
    %6944 = vperm.xlu0 %6943, %v1890
    %v6945 = vpop.permute.xlu0 %6944
    %6947 = vset.pattern.permute.xlu0 14
    %6948 = vperm.xlu0 %6947, %v1891
    %v6949 = vpop.permute.xlu0 %6948
    %6951 = vset.pattern.permute.xlu0 14
    %6952 = vperm.xlu0 %6951, %v1892
    %v6953 = vpop.permute.xlu0 %6952
    %6955 = vset.pattern.permute.xlu0 14
    %6956 = vperm.xlu0 %6955, %v1893
    %v6957 = vpop.permute.xlu0 %6956
    %6959 = vset.pattern.permute.xlu0 14
    %6960 = vperm.xlu0 %6959, %v1894
    %v6961 = vpop.permute.xlu0 %6960
    %6963 = vset.pattern.permute.xlu0 14
    %6964 = vperm.xlu0 %6963, %v1895
    %v6965 = vpop.permute.xlu0 %6964
    %6967 = vset.pattern.permute.xlu0 14
    %6968 = vperm.xlu0 %6967, %v1896
    %v6969 = vpop.permute.xlu0 %6968
    %6971 = vset.pattern.permute.xlu0 14
    %6972 = vperm.xlu0 %6971, %v1897
    %v6973 = vpop.permute.xlu0 %6972
    %6975 = vset.pattern.permute.xlu0 14
    %6976 = vperm.xlu0 %6975, %v1898
    %v6977 = vpop.permute.xlu0 %6976
    %6979 = vset.pattern.permute.xlu0 14
    %6980 = vperm.xlu0 %6979, %v1899
    %v6981 = vpop.permute.xlu0 %6980
    %6983 = vset.pattern.permute.xlu0 14
    %6984 = vperm.xlu0 %6983, %v1900
    %v6985 = vpop.permute.xlu0 %6984
    %6987 = vset.pattern.permute.xlu0 14
    %6988 = vperm.xlu0 %6987, %v1901
    %v6989 = vpop.permute.xlu0 %6988
    %6991 = vset.pattern.permute.xlu0 14
    %6992 = vperm.xlu0 %6991, %v1902
    %v6993 = vpop.permute.xlu0 %6992
    %6995 = vset.pattern.permute.xlu0 14
    %6996 = vperm.xlu0 %6995, %v1903
    %v6997 = vpop.permute.xlu0 %6996
    %v6999 = vmul.f32 %v6825, %v6801
    %v7000 = vmul.f32 %v6829, %v6802
    %v7001 = vmul.f32 %v6833, %v6803
    %v7002 = vmul.f32 %v6837, %v6804
    %v7003 = vmul.f32 %v6841, %v6805
    %v7004 = vmul.f32 %v6845, %v6806
    %v7005 = vmul.f32 %v6849, %v6807
    %v7006 = vmul.f32 %v6853, %v6808
    %v7007 = vmul.f32 %v6857, %v6809
    %v7008 = vmul.f32 %v6861, %v6810
    %v7009 = vmul.f32 %v6865, %v6811
    %v7010 = vmul.f32 %v6869, %v6812
    %v7011 = vmul.f32 %v6873, %v6813
    %v7012 = vmul.f32 %v6877, %v6814
    %v7013 = vmul.f32 %v6881, %v6815
    %v7014 = vmul.f32 %v6885, %v6816
    %v7015 = vmul.f32 %v6889, %v6817
    %v7016 = vmul.f32 %v6893, %v6818
    %v7017 = vmul.f32 %v6897, %v6819
    %v7018 = vmul.f32 %v6901, %v6820
    %v7019 = vmul.f32 %v6905, %v6821
    %v7020 = vmul.f32 %v6909, %v6822
    %v7021 = vmul.f32 %v6913, %v6801
    %v7022 = vmul.f32 %v6917, %v6802
    %v7023 = vmul.f32 %v6921, %v6803
    %v7024 = vmul.f32 %v6925, %v6804
    %v7025 = vmul.f32 %v6929, %v6805
    %v7026 = vmul.f32 %v6933, %v6806
    %v7027 = vmul.f32 %v6937, %v6807
    %v7028 = vmul.f32 %v6941, %v6808
    %v7029 = vmul.f32 %v6945, %v6809
    %v7030 = vmul.f32 %v6949, %v6810
    %v7031 = vmul.f32 %v6953, %v6811
    %v7032 = vmul.f32 %v6957, %v6812
    %v7033 = vmul.f32 %v6961, %v6813
    %v7034 = vmul.f32 %v6965, %v6814
    %v7035 = vmul.f32 %v6969, %v6815
    %v7036 = vmul.f32 %v6973, %v6816
    %v7037 = vmul.f32 %v6977, %v6817
    %v7038 = vmul.f32 %v6981, %v6818
    %v7039 = vmul.f32 %v6985, %v6819
    %v7040 = vmul.f32 %v6989, %v6820
    %v7041 = vmul.f32 %v6993, %v6821
    %v7042 = vmul.f32 %v6997, %v6822
    %v7043 = vsel %vm2197, %v6999, 0.0
    %v7044 = vsel %vm2197, %v7000, 0.0
    %v7045 = vadd.f32 %v7043, %v7044
    %v7046 = vsel %vm2197, %v7001, 0.0
    %v7047 = vadd.f32 %v7045, %v7046
    %v7048 = vsel %vm2197, %v7002, 0.0
    %v7049 = vadd.f32 %v7047, %v7048
    %v7050 = vsel %vm2197, %v7003, 0.0
    %v7051 = vadd.f32 %v7049, %v7050
    %v7052 = vsel %vm2197, %v7004, 0.0
    %v7053 = vadd.f32 %v7051, %v7052
    %v7054 = vsel %vm2197, %v7005, 0.0
    %v7055 = vadd.f32 %v7053, %v7054
    %v7056 = vsel %vm2197, %v7006, 0.0
    %v7057 = vadd.f32 %v7055, %v7056
    %v7058 = vsel %vm2197, %v7007, 0.0
    %v7059 = vadd.f32 %v7057, %v7058
    %v7060 = vsel %vm2197, %v7008, 0.0
    %v7061 = vadd.f32 %v7059, %v7060
    %v7062 = vsel %vm2197, %v7009, 0.0
    %v7063 = vadd.f32 %v7061, %v7062
    %v7064 = vsel %vm2197, %v7010, 0.0
    %v7065 = vadd.f32 %v7063, %v7064
    %v7066 = vsel %vm2197, %v7011, 0.0
    %v7067 = vadd.f32 %v7065, %v7066
    %v7068 = vsel %vm2197, %v7012, 0.0
    %v7069 = vadd.f32 %v7067, %v7068
    %v7070 = vsel %vm2197, %v7013, 0.0
    %v7071 = vadd.f32 %v7069, %v7070
    %v7072 = vsel %vm2197, %v7014, 0.0
    %v7073 = vadd.f32 %v7071, %v7072
    %v7074 = vsel %vm2197, %v7015, 0.0
    %v7075 = vadd.f32 %v7073, %v7074
    %v7076 = vsel %vm2197, %v7016, 0.0
    %v7077 = vadd.f32 %v7075, %v7076
    %v7078 = vsel %vm2197, %v7017, 0.0
    %v7079 = vadd.f32 %v7077, %v7078
    %v7080 = vsel %vm2197, %v7018, 0.0
    %v7081 = vadd.f32 %v7079, %v7080
    %v7082 = vsel %vm2197, %v7019, 0.0
    %v7083 = vadd.f32 %v7081, %v7082
    %v7084 = vsel %vm2197, %v7020, 0.0
    %v7085 = vadd.f32 %v7083, %v7084
    %v7086 = vrot.slane %v7085, 4
    %v7087 = vadd.f32 %v7085, %v7086
    %v7088 = vrot.slane %v7087, 2
    %v7089 = vadd.f32 %v7087, %v7088
    %v7090 = vrot.slane %v7089, 1
    %v7091 = vadd.f32 %v7089, %v7090
    %v7092 = vsel %vm2197, %v7021, 0.0
    %v7093 = vsel %vm2197, %v7022, 0.0
    %v7094 = vadd.f32 %v7092, %v7093
    %v7095 = vsel %vm2197, %v7023, 0.0
    %v7096 = vadd.f32 %v7094, %v7095
    %v7097 = vsel %vm2197, %v7024, 0.0
    %v7098 = vadd.f32 %v7096, %v7097
    %v7099 = vsel %vm2197, %v7025, 0.0
    %v7100 = vadd.f32 %v7098, %v7099
    %v7101 = vsel %vm2197, %v7026, 0.0
    %v7102 = vadd.f32 %v7100, %v7101
    %v7103 = vsel %vm2197, %v7027, 0.0
    %v7104 = vadd.f32 %v7102, %v7103
    %v7105 = vsel %vm2197, %v7028, 0.0
    %v7106 = vadd.f32 %v7104, %v7105
    %v7107 = vsel %vm2197, %v7029, 0.0
    %v7108 = vadd.f32 %v7106, %v7107
    %v7109 = vsel %vm2197, %v7030, 0.0
    %v7110 = vadd.f32 %v7108, %v7109
    %v7111 = vsel %vm2197, %v7031, 0.0
    %v7112 = vadd.f32 %v7110, %v7111
    %v7113 = vsel %vm2197, %v7032, 0.0
    %v7114 = vadd.f32 %v7112, %v7113
    %v7115 = vsel %vm2197, %v7033, 0.0
    %v7116 = vadd.f32 %v7114, %v7115
    %v7117 = vsel %vm2197, %v7034, 0.0
    %v7118 = vadd.f32 %v7116, %v7117
    %v7119 = vsel %vm2197, %v7035, 0.0
    %v7120 = vadd.f32 %v7118, %v7119
    %v7121 = vsel %vm2197, %v7036, 0.0
    %v7122 = vadd.f32 %v7120, %v7121
    %v7123 = vsel %vm2197, %v7037, 0.0
    %v7124 = vadd.f32 %v7122, %v7123
    %v7125 = vsel %vm2197, %v7038, 0.0
    %v7126 = vadd.f32 %v7124, %v7125
    %v7127 = vsel %vm2197, %v7039, 0.0
    %v7128 = vadd.f32 %v7126, %v7127
    %v7129 = vsel %vm2197, %v7040, 0.0
    %v7130 = vadd.f32 %v7128, %v7129
    %v7131 = vsel %vm2197, %v7041, 0.0
    %v7132 = vadd.f32 %v7130, %v7131
    %v7133 = vsel %vm2197, %v7042, 0.0
    %v7134 = vadd.f32 %v7132, %v7133
    %v7135 = vrot.slane %v7134, 4
    %v7136 = vadd.f32 %v7134, %v7135
    %v7137 = vrot.slane %v7136, 2
    %v7138 = vadd.f32 %v7136, %v7137
    %v7139 = vrot.slane %v7138, 1
    %v7140 = vadd.f32 %v7138, %v7139
    %v7143 = vsel %vm2298, %v7140, %v7091
    %v7145 = vadd.f32 %v6799, %v7143
    %s7146 = scalar_lea.vmem %s3, 2640
    %v7147 = vld [vmem:[%s7146] sm:$0xff]
    %v7148 = vld [vmem:[%s7146 + $0x8] sm:$0xff]
    %v7149 = vld [vmem:[%s7146 + $0x10] sm:$0xff]
    %v7150 = vld [vmem:[%s7146 + $0x18] sm:$0xff]
    %v7151 = vld [vmem:[%s7146 + $0x20] sm:$0xff]
    %v7152 = vld [vmem:[%s7146 + $0x28] sm:$0xff]
    %v7153 = vld [vmem:[%s7146 + $0x30] sm:$0xff]
    %v7154 = vld [vmem:[%s7146 + $0x38] sm:$0xff]
    %v7155 = vld [vmem:[%s7146 + $0x40] sm:$0xff]
    %v7156 = vld [vmem:[%s7146 + $0x48] sm:$0xff]
    %v7157 = vld [vmem:[%s7146 + $0x50] sm:$0xff]
    %v7158 = vld [vmem:[%s7146 + $0x58] sm:$0xff]
    %v7159 = vld [vmem:[%s7146 + $0x60] sm:$0xff]
    %v7160 = vld [vmem:[%s7146 + $0x68] sm:$0xff]
    %v7161 = vld [vmem:[%s7146 + $0x70] sm:$0xff]
    %v7162 = vld [vmem:[%s7146 + $0x78] sm:$0xff]
    %v7163 = vld [vmem:[%s7146 + $0x80] sm:$0xff]
    %v7164 = vld [vmem:[%s7146 + $0x88] sm:$0xff]
    %v7165 = vld [vmem:[%s7146 + $0x90] sm:$0xff]
    %v7166 = vld [vmem:[%s7146 + $0x98] sm:$0xff]
    %v7167 = vld [vmem:[%s7146 + $0xa0] sm:$0xff]
    %v7168 = vld [vmem:[%s7146 + $0xa8] sm:$0xff]
    %7169 = vset.pattern.permute.xlu0 15
    %7170 = vperm.xlu0 %7169, %v1860
    %v7171 = vpop.permute.xlu0 %7170
    %7173 = vset.pattern.permute.xlu0 15
    %7174 = vperm.xlu0 %7173, %v1861
    %v7175 = vpop.permute.xlu0 %7174
    %7177 = vset.pattern.permute.xlu0 15
    %7178 = vperm.xlu0 %7177, %v1862
    %v7179 = vpop.permute.xlu0 %7178
    %7181 = vset.pattern.permute.xlu0 15
    %7182 = vperm.xlu0 %7181, %v1863
    %v7183 = vpop.permute.xlu0 %7182
    %7185 = vset.pattern.permute.xlu0 15
    %7186 = vperm.xlu0 %7185, %v1864
    %v7187 = vpop.permute.xlu0 %7186
    %7189 = vset.pattern.permute.xlu0 15
    %7190 = vperm.xlu0 %7189, %v1865
    %v7191 = vpop.permute.xlu0 %7190
    %7193 = vset.pattern.permute.xlu0 15
    %7194 = vperm.xlu0 %7193, %v1866
    %v7195 = vpop.permute.xlu0 %7194
    %7197 = vset.pattern.permute.xlu0 15
    %7198 = vperm.xlu0 %7197, %v1867
    %v7199 = vpop.permute.xlu0 %7198
    %7201 = vset.pattern.permute.xlu0 15
    %7202 = vperm.xlu0 %7201, %v1868
    %v7203 = vpop.permute.xlu0 %7202
    %7205 = vset.pattern.permute.xlu0 15
    %7206 = vperm.xlu0 %7205, %v1869
    %v7207 = vpop.permute.xlu0 %7206
    %7209 = vset.pattern.permute.xlu0 15
    %7210 = vperm.xlu0 %7209, %v1870
    %v7211 = vpop.permute.xlu0 %7210
    %7213 = vset.pattern.permute.xlu0 15
    %7214 = vperm.xlu0 %7213, %v1871
    %v7215 = vpop.permute.xlu0 %7214
    %7217 = vset.pattern.permute.xlu0 15
    %7218 = vperm.xlu0 %7217, %v1872
    %v7219 = vpop.permute.xlu0 %7218
    %7221 = vset.pattern.permute.xlu0 15
    %7222 = vperm.xlu0 %7221, %v1873
    %v7223 = vpop.permute.xlu0 %7222
    %7225 = vset.pattern.permute.xlu0 15
    %7226 = vperm.xlu0 %7225, %v1874
    %v7227 = vpop.permute.xlu0 %7226
    %7229 = vset.pattern.permute.xlu0 15
    %7230 = vperm.xlu0 %7229, %v1875
    %v7231 = vpop.permute.xlu0 %7230
    %7233 = vset.pattern.permute.xlu0 15
    %7234 = vperm.xlu0 %7233, %v1876
    %v7235 = vpop.permute.xlu0 %7234
    %7237 = vset.pattern.permute.xlu0 15
    %7238 = vperm.xlu0 %7237, %v1877
    %v7239 = vpop.permute.xlu0 %7238
    %7241 = vset.pattern.permute.xlu0 15
    %7242 = vperm.xlu0 %7241, %v1878
    %v7243 = vpop.permute.xlu0 %7242
    %7245 = vset.pattern.permute.xlu0 15
    %7246 = vperm.xlu0 %7245, %v1879
    %v7247 = vpop.permute.xlu0 %7246
    %7249 = vset.pattern.permute.xlu0 15
    %7250 = vperm.xlu0 %7249, %v1880
    %v7251 = vpop.permute.xlu0 %7250
    %7253 = vset.pattern.permute.xlu0 15
    %7254 = vperm.xlu0 %7253, %v1881
    %v7255 = vpop.permute.xlu0 %7254
    %7257 = vset.pattern.permute.xlu0 15
    %7258 = vperm.xlu0 %7257, %v1882
    %v7259 = vpop.permute.xlu0 %7258
    %7261 = vset.pattern.permute.xlu0 15
    %7262 = vperm.xlu0 %7261, %v1883
    %v7263 = vpop.permute.xlu0 %7262
    %7265 = vset.pattern.permute.xlu0 15
    %7266 = vperm.xlu0 %7265, %v1884
    %v7267 = vpop.permute.xlu0 %7266
    %7269 = vset.pattern.permute.xlu0 15
    %7270 = vperm.xlu0 %7269, %v1885
    %v7271 = vpop.permute.xlu0 %7270
    %7273 = vset.pattern.permute.xlu0 15
    %7274 = vperm.xlu0 %7273, %v1886
    %v7275 = vpop.permute.xlu0 %7274
    %7277 = vset.pattern.permute.xlu0 15
    %7278 = vperm.xlu0 %7277, %v1887
    %v7279 = vpop.permute.xlu0 %7278
    %7281 = vset.pattern.permute.xlu0 15
    %7282 = vperm.xlu0 %7281, %v1888
    %v7283 = vpop.permute.xlu0 %7282
    %7285 = vset.pattern.permute.xlu0 15
    %7286 = vperm.xlu0 %7285, %v1889
    %v7287 = vpop.permute.xlu0 %7286
    %7289 = vset.pattern.permute.xlu0 15
    %7290 = vperm.xlu0 %7289, %v1890
    %v7291 = vpop.permute.xlu0 %7290
    %7293 = vset.pattern.permute.xlu0 15
    %7294 = vperm.xlu0 %7293, %v1891
    %v7295 = vpop.permute.xlu0 %7294
    %7297 = vset.pattern.permute.xlu0 15
    %7298 = vperm.xlu0 %7297, %v1892
    %v7299 = vpop.permute.xlu0 %7298
    %7301 = vset.pattern.permute.xlu0 15
    %7302 = vperm.xlu0 %7301, %v1893
    %v7303 = vpop.permute.xlu0 %7302
    %7305 = vset.pattern.permute.xlu0 15
    %7306 = vperm.xlu0 %7305, %v1894
    %v7307 = vpop.permute.xlu0 %7306
    %7309 = vset.pattern.permute.xlu0 15
    %7310 = vperm.xlu0 %7309, %v1895
    %v7311 = vpop.permute.xlu0 %7310
    %7313 = vset.pattern.permute.xlu0 15
    %7314 = vperm.xlu0 %7313, %v1896
    %v7315 = vpop.permute.xlu0 %7314
    %7317 = vset.pattern.permute.xlu0 15
    %7318 = vperm.xlu0 %7317, %v1897
    %v7319 = vpop.permute.xlu0 %7318
    %7321 = vset.pattern.permute.xlu0 15
    %7322 = vperm.xlu0 %7321, %v1898
    %v7323 = vpop.permute.xlu0 %7322
    %7325 = vset.pattern.permute.xlu0 15
    %7326 = vperm.xlu0 %7325, %v1899
    %v7327 = vpop.permute.xlu0 %7326
    %7329 = vset.pattern.permute.xlu0 15
    %7330 = vperm.xlu0 %7329, %v1900
    %v7331 = vpop.permute.xlu0 %7330
    %7333 = vset.pattern.permute.xlu0 15
    %7334 = vperm.xlu0 %7333, %v1901
    %v7335 = vpop.permute.xlu0 %7334
    %7337 = vset.pattern.permute.xlu0 15
    %7338 = vperm.xlu0 %7337, %v1902
    %v7339 = vpop.permute.xlu0 %7338
    %7341 = vset.pattern.permute.xlu0 15
    %7342 = vperm.xlu0 %7341, %v1903
    %v7343 = vpop.permute.xlu0 %7342
    %v7345 = vmul.f32 %v7171, %v7147
    %v7346 = vmul.f32 %v7175, %v7148
    %v7347 = vmul.f32 %v7179, %v7149
    %v7348 = vmul.f32 %v7183, %v7150
    %v7349 = vmul.f32 %v7187, %v7151
    %v7350 = vmul.f32 %v7191, %v7152
    %v7351 = vmul.f32 %v7195, %v7153
    %v7352 = vmul.f32 %v7199, %v7154
    %v7353 = vmul.f32 %v7203, %v7155
    %v7354 = vmul.f32 %v7207, %v7156
    %v7355 = vmul.f32 %v7211, %v7157
    %v7356 = vmul.f32 %v7215, %v7158
    %v7357 = vmul.f32 %v7219, %v7159
    %v7358 = vmul.f32 %v7223, %v7160
    %v7359 = vmul.f32 %v7227, %v7161
    %v7360 = vmul.f32 %v7231, %v7162
    %v7361 = vmul.f32 %v7235, %v7163
    %v7362 = vmul.f32 %v7239, %v7164
    %v7363 = vmul.f32 %v7243, %v7165
    %v7364 = vmul.f32 %v7247, %v7166
    %v7365 = vmul.f32 %v7251, %v7167
    %v7366 = vmul.f32 %v7255, %v7168
    %v7367 = vmul.f32 %v7259, %v7147
    %v7368 = vmul.f32 %v7263, %v7148
    %v7369 = vmul.f32 %v7267, %v7149
    %v7370 = vmul.f32 %v7271, %v7150
    %v7371 = vmul.f32 %v7275, %v7151
    %v7372 = vmul.f32 %v7279, %v7152
    %v7373 = vmul.f32 %v7283, %v7153
    %v7374 = vmul.f32 %v7287, %v7154
    %v7375 = vmul.f32 %v7291, %v7155
    %v7376 = vmul.f32 %v7295, %v7156
    %v7377 = vmul.f32 %v7299, %v7157
    %v7378 = vmul.f32 %v7303, %v7158
    %v7379 = vmul.f32 %v7307, %v7159
    %v7380 = vmul.f32 %v7311, %v7160
    %v7381 = vmul.f32 %v7315, %v7161
    %v7382 = vmul.f32 %v7319, %v7162
    %v7383 = vmul.f32 %v7323, %v7163
    %v7384 = vmul.f32 %v7327, %v7164
    %v7385 = vmul.f32 %v7331, %v7165
    %v7386 = vmul.f32 %v7335, %v7166
    %v7387 = vmul.f32 %v7339, %v7167
    %v7388 = vmul.f32 %v7343, %v7168
    %v7389 = vsel %vm2197, %v7345, 0.0
    %v7390 = vsel %vm2197, %v7346, 0.0
    %v7391 = vadd.f32 %v7389, %v7390
    %v7392 = vsel %vm2197, %v7347, 0.0
    %v7393 = vadd.f32 %v7391, %v7392
    %v7394 = vsel %vm2197, %v7348, 0.0
    %v7395 = vadd.f32 %v7393, %v7394
    %v7396 = vsel %vm2197, %v7349, 0.0
    %v7397 = vadd.f32 %v7395, %v7396
    %v7398 = vsel %vm2197, %v7350, 0.0
    %v7399 = vadd.f32 %v7397, %v7398
    %v7400 = vsel %vm2197, %v7351, 0.0
    %v7401 = vadd.f32 %v7399, %v7400
    %v7402 = vsel %vm2197, %v7352, 0.0
    %v7403 = vadd.f32 %v7401, %v7402
    %v7404 = vsel %vm2197, %v7353, 0.0
    %v7405 = vadd.f32 %v7403, %v7404
    %v7406 = vsel %vm2197, %v7354, 0.0
    %v7407 = vadd.f32 %v7405, %v7406
    %v7408 = vsel %vm2197, %v7355, 0.0
    %v7409 = vadd.f32 %v7407, %v7408
    %v7410 = vsel %vm2197, %v7356, 0.0
    %v7411 = vadd.f32 %v7409, %v7410
    %v7412 = vsel %vm2197, %v7357, 0.0
    %v7413 = vadd.f32 %v7411, %v7412
    %v7414 = vsel %vm2197, %v7358, 0.0
    %v7415 = vadd.f32 %v7413, %v7414
    %v7416 = vsel %vm2197, %v7359, 0.0
    %v7417 = vadd.f32 %v7415, %v7416
    %v7418 = vsel %vm2197, %v7360, 0.0
    %v7419 = vadd.f32 %v7417, %v7418
    %v7420 = vsel %vm2197, %v7361, 0.0
    %v7421 = vadd.f32 %v7419, %v7420
    %v7422 = vsel %vm2197, %v7362, 0.0
    %v7423 = vadd.f32 %v7421, %v7422
    %v7424 = vsel %vm2197, %v7363, 0.0
    %v7425 = vadd.f32 %v7423, %v7424
    %v7426 = vsel %vm2197, %v7364, 0.0
    %v7427 = vadd.f32 %v7425, %v7426
    %v7428 = vsel %vm2197, %v7365, 0.0
    %v7429 = vadd.f32 %v7427, %v7428
    %v7430 = vsel %vm2197, %v7366, 0.0
    %v7431 = vadd.f32 %v7429, %v7430
    %v7432 = vrot.slane %v7431, 4
    %v7433 = vadd.f32 %v7431, %v7432
    %v7434 = vrot.slane %v7433, 2
    %v7435 = vadd.f32 %v7433, %v7434
    %v7436 = vrot.slane %v7435, 1
    %v7437 = vadd.f32 %v7435, %v7436
    %v7438 = vsel %vm2197, %v7367, 0.0
    %v7439 = vsel %vm2197, %v7368, 0.0
    %v7440 = vadd.f32 %v7438, %v7439
    %v7441 = vsel %vm2197, %v7369, 0.0
    %v7442 = vadd.f32 %v7440, %v7441
    %v7443 = vsel %vm2197, %v7370, 0.0
    %v7444 = vadd.f32 %v7442, %v7443
    %v7445 = vsel %vm2197, %v7371, 0.0
    %v7446 = vadd.f32 %v7444, %v7445
    %v7447 = vsel %vm2197, %v7372, 0.0
    %v7448 = vadd.f32 %v7446, %v7447
    %v7449 = vsel %vm2197, %v7373, 0.0
    %v7450 = vadd.f32 %v7448, %v7449
    %v7451 = vsel %vm2197, %v7374, 0.0
    %v7452 = vadd.f32 %v7450, %v7451
    %v7453 = vsel %vm2197, %v7375, 0.0
    %v7454 = vadd.f32 %v7452, %v7453
    %v7455 = vsel %vm2197, %v7376, 0.0
    %v7456 = vadd.f32 %v7454, %v7455
    %v7457 = vsel %vm2197, %v7377, 0.0
    %v7458 = vadd.f32 %v7456, %v7457
    %v7459 = vsel %vm2197, %v7378, 0.0
    %v7460 = vadd.f32 %v7458, %v7459
    %v7461 = vsel %vm2197, %v7379, 0.0
    %v7462 = vadd.f32 %v7460, %v7461
    %v7463 = vsel %vm2197, %v7380, 0.0
    %v7464 = vadd.f32 %v7462, %v7463
    %v7465 = vsel %vm2197, %v7381, 0.0
    %v7466 = vadd.f32 %v7464, %v7465
    %v7467 = vsel %vm2197, %v7382, 0.0
    %v7468 = vadd.f32 %v7466, %v7467
    %v7469 = vsel %vm2197, %v7383, 0.0
    %v7470 = vadd.f32 %v7468, %v7469
    %v7471 = vsel %vm2197, %v7384, 0.0
    %v7472 = vadd.f32 %v7470, %v7471
    %v7473 = vsel %vm2197, %v7385, 0.0
    %v7474 = vadd.f32 %v7472, %v7473
    %v7475 = vsel %vm2197, %v7386, 0.0
    %v7476 = vadd.f32 %v7474, %v7475
    %v7477 = vsel %vm2197, %v7387, 0.0
    %v7478 = vadd.f32 %v7476, %v7477
    %v7479 = vsel %vm2197, %v7388, 0.0
    %v7480 = vadd.f32 %v7478, %v7479
    %v7481 = vrot.slane %v7480, 4
    %v7482 = vadd.f32 %v7480, %v7481
    %v7483 = vrot.slane %v7482, 2
    %v7484 = vadd.f32 %v7482, %v7483
    %v7485 = vrot.slane %v7484, 1
    %v7486 = vadd.f32 %v7484, %v7485
    %v7489 = vsel %vm2298, %v7486, %v7437
    %v7491 = vadd.f32 %v7145, %v7489
    %vm7492 = vcmask 74752
    %7493 = vst.msk [vmem:[#allocation2] sm:$0x3] %vm7492, %v7491
    // Predicated region
    $region22: #{cnn_forward.1} parent=1 // pred_check
      _
    $region23: #{cnn_forward.1} parent=1 // pred_check_branch
      %7495 = sbr.rel (0) target = $region25
    $region24: #{cnn_forward.1} parent=1 // pred_region
      %s7497 = ssub.s32 32, 32
      %7498 = vsyncadd [#allocation3], %s7497
      %s7500 = sshll.u32 [#allocation2], 4
      %s7501 = int_to_ptr.vmem [resolvable:$true] %s7500
      %7503 = dma.vmem_to_hbm [thread:$0]  %s7501, 32, %s5, [#allocation3]
    $region25: #{cnn_forward.1} parent=1 // pred_fallthru
      _
    // Predicated region
    $region26: #{cnn_forward.1} parent=1 // pred_check
      _
    $region27: #{cnn_forward.1} parent=1 // pred_check_branch
      %7505 = sbr.rel (0) target = $region29
    $region28: #{cnn_forward.1} parent=1 // pred_region
      %7506 = dma.done [#allocation3], 32
    $region29: #{cnn_forward.1} parent=1 // pred_fallthru
      _
    %7507 = vsyncpa [#allocation3], 1

</llo_original>
